<compile_context>
chip_gen: v5e
topology: v5e:2x2
jax: 0.10.0
libtpu: 0.0.40
codegen_flags: <defaults>
</compile_context>

<pallas_src>
import functools
import math

import jax
import jax.numpy as jnp
from jax import lax
from jax.experimental import pallas as pl
from jax.experimental.pallas import tpu as pltpu

_BN_EPS = 1e-5
_MAX_TILE_ROWS = 512  # row tile for large lane-dense slabs (multiple of 8)


# ---------------------------------------------------------------------------
# Pallas kernels
# ---------------------------------------------------------------------------
def _matmul_affine_kernel(x_ref, w_ref, s_ref, b_ref, o_ref, *, apply_relu):
    """o = maybe_relu((x @ w) * scale + bias); scale/bias broadcast over rows."""
    acc = jnp.dot(x_ref[...], w_ref[...], preferred_element_type=jnp.float32)
    y = acc * s_ref[...] + b_ref[...]
    if apply_relu:
        y = jnp.maximum(y, 0.0)
    o_ref[...] = y.astype(o_ref.dtype)


def _max4_kernel(a_ref, b_ref, c_ref, d_ref, o_ref):
    """Elementwise max of the four 2x2-window taps (== MaxPool2d(2,2))."""
    o_ref[...] = jnp.maximum(jnp.maximum(a_ref[...], b_ref[...]),
                             jnp.maximum(c_ref[...], d_ref[...]))


# ---------------------------------------------------------------------------
# pallas_call wrappers
# ---------------------------------------------------------------------------
def _row_tile(m):
    # Full-extent block when small / unaligned (always legal); otherwise a
    # multiple-of-8 row tile with a cdiv grid (partial last block is handled).
    if m > _MAX_TILE_ROWS and m % 8 == 0:
        return _MAX_TILE_ROWS
    return m


def _matmul_affine(x, w, scale, bias, *, apply_relu):
    m, k = x.shape
    n = w.shape[1]
    tile_m = _row_tile(m)
    grid = (pl.cdiv(m, tile_m),)
    kern = functools.partial(_matmul_affine_kernel, apply_relu=apply_relu)
    return pl.pallas_call(
        kern,
        out_shape=jax.ShapeDtypeStruct((m, n), x.dtype),
        grid=grid,
        in_specs=[
            pl.BlockSpec((tile_m, k), lambda i: (i, 0)),
            pl.BlockSpec((k, n), lambda i: (0, 0)),
            pl.BlockSpec((1, n), lambda i: (0, 0)),
            pl.BlockSpec((1, n), lambda i: (0, 0)),
        ],
        out_specs=pl.BlockSpec((tile_m, n), lambda i: (i, 0)),
        compiler_params=pltpu.CompilerParams(dimension_semantics=("parallel",)),
    )(x, w, scale.reshape(1, n).astype(x.dtype), bias.reshape(1, n).astype(x.dtype))


def _max4(a, b, c, d):
    m, n = a.shape
    tile_m = _row_tile(m)
    grid = (pl.cdiv(m, tile_m),)
    spec = pl.BlockSpec((tile_m, n), lambda i: (i, 0))
    return pl.pallas_call(
        _max4_kernel,
        out_shape=jax.ShapeDtypeStruct((m, n), a.dtype),
        grid=grid,
        in_specs=[spec, spec, spec, spec],
        out_specs=spec,
        compiler_params=pltpu.CompilerParams(dimension_semantics=("parallel",)),
    )(a, b, c, d)


# ---------------------------------------------------------------------------
# UNet layers (NHWC internally; channels on the lane dimension)
# ---------------------------------------------------------------------------
def _fold_bn(gamma, beta, mean, var):
    scale = gamma * lax.rsqrt(var + _BN_EPS)
    return scale, beta - mean * scale


def conv3x3_bn_relu(x, w_hwio, scale, bias):
    """3x3 conv (padding=1, no bias) + folded BatchNorm + ReLU, fused."""
    b, h, w_, cin = x.shape
    cout = w_hwio.shape[-1]
    xp = jnp.pad(x, ((0, 0), (1, 1), (1, 1), (0, 0)))
    # im2col as 9 shifted slices: (B*H*W, 9*Cin), lane-dense. Layout plumbing.
    patches = jnp.concatenate(
        [xp[:, dh:dh + h, dw:dw + w_, :] for dh in range(3) for dw in range(3)],
        axis=-1).reshape(b * h * w_, 9 * cin)
    wmat = w_hwio.reshape(9 * cin, cout)      # (kh, kw, cin) ordering matches
    y = _matmul_affine(patches, wmat, scale, bias, apply_relu=True)
    return y.reshape(b, h, w_, cout)


def conv_block(x, p):
    """UNet._block: conv3x3 -> BN -> ReLU -> conv3x3 -> BN -> ReLU."""
    s1, b1 = _fold_bn(*p["bn1"])
    y = conv3x3_bn_relu(x, p["w1"], s1, b1)
    s2, b2 = _fold_bn(*p["bn2"])
    return conv3x3_bn_relu(y, p["w2"], s2, b2)


def maxpool2x2(x):
    b, h, w_, c = x.shape
    ho, wo = h // 2, w_ // 2
    taps = [x[:, dh::2, dw::2, :].reshape(b * ho * wo, c)
            for dh in (0, 1) for dw in (0, 1)]
    return _max4(*taps).reshape(b, ho, wo, c)


def conv_transpose2x2(x, w_ikkc, bias):
    """ConvTranspose2d(kernel=2, stride=2) + bias.

    w_ikkc: (Cin, 2, 2, Cout); PyTorch weight (Cin, Cout, kh, kw) maps via
    transpose(0, 2, 3, 1). out[b, 2h+kh, 2w+kw, co] = sum_ci x*W + bias.
    """
    b, h, w_, cin = x.shape
    cout = w_ikkc.shape[-1]
    wmat = w_ikkc.reshape(cin, 4 * cout)
    ones = jnp.ones((4 * cout,), x.dtype)
    bias4 = jnp.tile(bias, 4)
    y = _matmul_affine(x.reshape(b * h * w_, cin), wmat, ones, bias4,
                       apply_relu=False)
    y = y.reshape(b, h, w_, 2, 2, cout)
    y = jnp.transpose(y, (0, 1, 3, 2, 4, 5)).reshape(b, 2 * h, 2 * w_, cout)
    return y


def conv1x1_bias(x, w_io, bias):
    b, h, w_, cin = x.shape
    cout = w_io.shape[-1]
    ones = jnp.ones((cout,), x.dtype)
    y = _matmul_affine(x.reshape(b * h * w_, cin), w_io, ones, bias,
                       apply_relu=False)
    return y.reshape(b, h, w_, cout)


def unet_forward(x_nchw, p):
    """Pallas UNet.forward: NCHW in -> NCHW out (B, out_channels, H, W)."""
    x = jnp.transpose(x_nchw, (0, 2, 3, 1))
    enc1 = conv_block(x, p["enc1"])
    enc2 = conv_block(maxpool2x2(enc1), p["enc2"])
    enc3 = conv_block(maxpool2x2(enc2), p["enc3"])
    enc4 = conv_block(maxpool2x2(enc3), p["enc4"])
    bott = conv_block(maxpool2x2(enc4), p["bottleneck"])

    d4 = conv_transpose2x2(bott, *p["up4"])
    d4 = conv_block(jnp.concatenate([d4, enc4], axis=-1), p["dec4"])
    d3 = conv_transpose2x2(d4, *p["up3"])
    d3 = conv_block(jnp.concatenate([d3, enc3], axis=-1), p["dec3"])
    d2 = conv_transpose2x2(d3, *p["up2"])
    d2 = conv_block(jnp.concatenate([d2, enc2], axis=-1), p["dec2"])
    d1 = conv_transpose2x2(d2, *p["up1"])
    d1 = conv_block(jnp.concatenate([d1, enc1], axis=-1), p["dec1"])

    out = conv1x1_bias(d1, *p["head"])
    return jnp.transpose(out, (0, 3, 1, 2))


# ---------------------------------------------------------------------------
# Pure-JAX reference (independent math path) for correctness checking
# ---------------------------------------------------------------------------
def _ref_conv3x3(x, w):
    return lax.conv_general_dilated(x, w, (1, 1), "SAME",
                                    dimension_numbers=("NHWC", "HWIO", "NHWC"))


def _ref_bn_relu(y, bn):
    gamma, beta, mean, var = bn
    return jnp.maximum((y - mean) * (gamma / jnp.sqrt(var + _BN_EPS)) + beta, 0.0)


def _ref_block(x, p):
    y = _ref_bn_relu(_ref_conv3x3(x, p["w1"]), p["bn1"])
    return _ref_bn_relu(_ref_conv3x3(y, p["w2"]), p["bn2"])


def _ref_pool(x):
    b, h, w_, c = x.shape
    return jnp.max(x.reshape(b, h // 2, 2, w_ // 2, 2, c), axis=(2, 4))


def _ref_upconv(x, w, bias):
    b, h, w_, cin = x.shape
    cout = w.shape[-1]
    out = jnp.zeros((b, 2 * h, 2 * w_, cout), x.dtype)
    for kh in range(2):
        for kw in range(2):
            out = out.at[:, kh::2, kw::2, :].set(
                jnp.einsum("bhwi,io->bhwo", x, w[:, kh, kw, :]))
    return out + bias


def unet_forward_ref(x_nchw, p):
    x = jnp.transpose(x_nchw, (0, 2, 3, 1))
    e1 = _ref_block(x, p["enc1"])
    e2 = _ref_block(_ref_pool(e1), p["enc2"])
    e3 = _ref_block(_ref_pool(e2), p["enc3"])
    e4 = _ref_block(_ref_pool(e3), p["enc4"])
    bn = _ref_block(_ref_pool(e4), p["bottleneck"])
    d4 = _ref_block(jnp.concatenate([_ref_upconv(bn, *p["up4"]), e4], -1), p["dec4"])
    d3 = _ref_block(jnp.concatenate([_ref_upconv(d4, *p["up3"]), e3], -1), p["dec3"])
    d2 = _ref_block(jnp.concatenate([_ref_upconv(d3, *p["up2"]), e2], -1), p["dec2"])
    d1 = _ref_block(jnp.concatenate([_ref_upconv(d2, *p["up1"]), e1], -1), p["dec1"])
    w, b = p["head"]
    out = jnp.einsum("bhwi,io->bhwo", d1, w) + b
    return jnp.transpose(out, (0, 3, 1, 2))


# ---------------------------------------------------------------------------
# Parameter construction (deterministic, small values)
# ---------------------------------------------------------------------------
def _init_bn(key, c):
    k1, k2, k3, k4 = jax.random.split(key, 4)
    gamma = 1.0 + 0.1 * jax.random.normal(k1, (c,), jnp.float32)
    beta = 0.1 * jax.random.normal(k2, (c,), jnp.float32)
    mean = 0.1 * jax.random.normal(k3, (c,), jnp.float32)
    var = jax.random.uniform(k4, (c,), jnp.float32, minval=0.5, maxval=1.5)
    return gamma, beta, mean, var


def _init_block(key, cin, cf):
    k1, k2, k3, k4 = jax.random.split(key, 4)
    w1 = jax.random.normal(k1, (3, 3, cin, cf), jnp.float32) * (0.5 / math.sqrt(9 * cin))
    w2 = jax.random.normal(k2, (3, 3, cf, cf), jnp.float32) * (0.5 / math.sqrt(9 * cf))
    return {"w1": w1, "bn1": _init_bn(k3, cf), "w2": w2, "bn2": _init_bn(k4, cf)}


def _init_upconv(key, cin, cout):
    k1, k2 = jax.random.split(key, 2)
    w = jax.random.normal(k1, (cin, 2, 2, cout), jnp.float32) * (0.5 / math.sqrt(4 * cin))
    b = 0.1 * jax.random.normal(k2, (cout,), jnp.float32)
    return w, b


def _init_head(key, cin, cout):
    k1, k2 = jax.random.split(key, 2)
    w = jax.random.normal(k1, (cin, cout), jnp.float32) * (0.5 / math.sqrt(cin))
    b = 0.1 * jax.random.normal(k2, (cout,), jnp.float32)
    return w, b


def init_unet_params(key, in_channels=3, out_channels=2, init_features=4):
    f = init_features
    ks = jax.random.split(key, 15)
    return {
        "enc1": _init_block(ks[0], in_channels, f),
        "enc2": _init_block(ks[1], f, 2 * f),
        "enc3": _init_block(ks[2], 2 * f, 4 * f),
        "enc4": _init_block(ks[3], 4 * f, 8 * f),
        "bottleneck": _init_block(ks[4], 8 * f, 16 * f),
        "up4": _init_upconv(ks[5], 16 * f, 8 * f),
        "dec4": _init_block(ks[6], 16 * f, 8 * f),
        "up3": _init_upconv(ks[7], 8 * f, 4 * f),
        "dec3": _init_block(ks[8], 8 * f, 4 * f),
        "up2": _init_upconv(ks[9], 4 * f, 2 * f),
        "dec2": _init_block(ks[10], 4 * f, 2 * f),
        "up1": _init_upconv(ks[11], 2 * f, f),
        "dec1": _init_block(ks[12], 2 * f, f),
        "head": _init_head(ks[13], f, out_channels),
    }


if __name__ == "__main__":
    key = jax.random.PRNGKey(0)
    kx, kp = jax.random.split(key)

    # Small shapes consistent with the module: NCHW (B=2, C_in=3, 16, 16),
    # init_features=4 -> channels 4/8/16/32/64 down to a 1x1 bottleneck.
    B, CIN, H, W = 2, 3, 16, 16
    x = jax.random.normal(kx, (B, CIN, H, W), dtype=jnp.float32)
    params = init_unet_params(kp, in_channels=CIN, out_channels=2, init_features=4)

    y = jax.block_until_ready(jax.jit(unet_forward)(x, params))
    assert y.shape == (B, 2, H, W), y.shape
    assert y.dtype == jnp.float32

    y_ref = jax.block_until_ready(jax.jit(unet_forward_ref)(x, params))
    max_err = float(jnp.max(jnp.abs(y - y_ref)))
    assert bool(jnp.allclose(y, y_ref, atol=1e-3, rtol=1e-3)), max_err

    print("KERNEL_OK")
</pallas_src>

<mosaic_0001>
module attributes {stable_mosaic.version = 11 : i64} {
  func.func @_matmul_affine_kernel(%arg0: i32, %arg1: memref<512x27xf32, #tpu.memory_space<vmem>>, %arg2: memref<27x4xf32, #tpu.memory_space<vmem>>, %arg3: memref<1x4xf32, #tpu.memory_space<vmem>>, %arg4: memref<1x4xf32, #tpu.memory_space<vmem>>, %arg5: memref<512x4xf32, #tpu.memory_space<vmem>>) attributes {dimension_semantics = [#tpu.dimension_semantics<parallel>], iteration_bounds = array<i64: 1>, scalar_prefetch = 0 : i64, scratch_operands = 0 : i64, tpu.core_type = #tpu.core_type<tc>, window_params = [{transform_indices = @transform_0, window_bounds = array<i64: 512, 27>}, {pipeline_mode = #tpu.pipeline_mode<synchronous>, transform_indices = @transform_1, window_bounds = array<i64: 27, 4>}, {pipeline_mode = #tpu.pipeline_mode<synchronous>, transform_indices = @transform_2, window_bounds = array<i64: 1, 4>}, {pipeline_mode = #tpu.pipeline_mode<synchronous>, transform_indices = @transform_3, window_bounds = array<i64: 1, 4>}, {transform_indices = @transform_4, window_bounds = array<i64: 512, 4>}]} {
    %c0 = arith.constant 0 : index
    %c0_0 = arith.constant 0 : index
    %0 = vector.load %arg1[%c0, %c0_0] : memref<512x27xf32, #tpu.memory_space<vmem>>, vector<512x27xf32>
    %c0_1 = arith.constant 0 : index
    %c0_2 = arith.constant 0 : index
    %1 = vector.load %arg2[%c0_1, %c0_2] : memref<27x4xf32, #tpu.memory_space<vmem>>, vector<27x4xf32>
    %cst = arith.constant dense<0.000000e+00> : vector<512x4xf32>
    %2 = tpu.matmul %0, %1, %cst {dimension_numbers = #tpu.dot_dimension_numbers<[1], [0], [0], [1], [0, 0, 1, 1], [], []>} : vector<512x27xf32>, vector<27x4xf32>, vector<512x4xf32> -> vector<512x4xf32>
    %c0_3 = arith.constant 0 : index
    %c0_4 = arith.constant 0 : index
    %3 = vector.load %arg3[%c0_3, %c0_4] : memref<1x4xf32, #tpu.memory_space<vmem>>, vector<1x4xf32>
    %4 = vector.broadcast %3 : vector<1x4xf32> to vector<512x4xf32>
    %5 = arith.mulf %2, %4 : vector<512x4xf32>
    %c0_5 = arith.constant 0 : index
    %c0_6 = arith.constant 0 : index
    %6 = vector.load %arg4[%c0_5, %c0_6] : memref<1x4xf32, #tpu.memory_space<vmem>>, vector<1x4xf32>
    %7 = vector.broadcast %6 : vector<1x4xf32> to vector<512x4xf32>
    %8 = arith.addf %5, %7 : vector<512x4xf32>
    %cst_7 = arith.constant 0.000000e+00 : f32
    %9 = vector.broadcast %cst_7 : f32 to vector<512x4xf32>
    %10 = arith.maximumf %8, %9 : vector<512x4xf32>
    %c0_8 = arith.constant 0 : index
    %c0_9 = arith.constant 0 : index
    %11 = vector.load %arg5[%c0_8, %c0_9] : memref<512x4xf32, #tpu.memory_space<vmem>>, vector<512x4xf32>
    tpu.vector_store %arg5[%c0_8, %c0_9], %10 {strides = array<i32>} : memref<512x4xf32, #tpu.memory_space<vmem>>, vector<512x4xf32>,
    return
  }
  func.func @transform_0(%arg0: i32) -> (i32, i32) {
    %c0_i32 = arith.constant 0 : i32
    %c0_i32_0 = arith.constant 0 : i32
    return %arg0, %c0_i32 : i32, i32
  }
  func.func @transform_1(%arg0: i32) -> (i32, i32) {
    %c0_i32 = arith.constant 0 : i32
    %c0_i32_0 = arith.constant 0 : i32
    %c0_i32_1 = arith.constant 0 : i32
    return %c0_i32, %c0_i32_0 : i32, i32
  }
  func.func @transform_2(%arg0: i32) -> (i32, i32) {
    %c0_i32 = arith.constant 0 : i32
    %c0_i32_0 = arith.constant 0 : i32
    %c0_i32_1 = arith.constant 0 : i32
    return %c0_i32, %c0_i32_0 : i32, i32
  }
  func.func @transform_3(%arg0: i32) -> (i32, i32) {
    %c0_i32 = arith.constant 0 : i32
    %c0_i32_0 = arith.constant 0 : i32
    %c0_i32_1 = arith.constant 0 : i32
    return %c0_i32, %c0_i32_0 : i32, i32
  }
  func.func @transform_4(%arg0: i32) -> (i32, i32) {
    %c0_i32 = arith.constant 0 : i32
    %c0_i32_0 = arith.constant 0 : i32
    return %arg0, %c0_i32 : i32, i32
  }
}

module attributes {stable_mosaic.version = 11 : i64} {
  func.func @_matmul_affine_kernel(%arg0: i32, %arg1: memref<512x36xf32, #tpu.memory_space<vmem>>, %arg2: memref<36x4xf32, #tpu.memory_space<vmem>>, %arg3: memref<1x4xf32, #tpu.memory_space<vmem>>, %arg4: memref<1x4xf32, #tpu.memory_space<vmem>>, %arg5: memref<512x4xf32, #tpu.memory_space<vmem>>) attributes {dimension_semantics = [#tpu.dimension_semantics<parallel>], iteration_bounds = array<i64: 1>, scalar_prefetch = 0 : i64, scratch_operands = 0 : i64, tpu.core_type = #tpu.core_type<tc>, window_params = [{transform_indices = @transform_0, window_bounds = array<i64: 512, 36>}, {pipeline_mode = #tpu.pipeline_mode<synchronous>, transform_indices = @transform_1, window_bounds = array<i64: 36, 4>}, {pipeline_mode = #tpu.pipeline_mode<synchronous>, transform_indices = @transform_2, window_bounds = array<i64: 1, 4>}, {pipeline_mode = #tpu.pipeline_mode<synchronous>, transform_indices = @transform_3, window_bounds = array<i64: 1, 4>}, {transform_indices = @transform_4, window_bounds = array<i64: 512, 4>}]} {
    %c0 = arith.constant 0 : index
    %c0_0 = arith.constant 0 : index
    %0 = vector.load %arg1[%c0, %c0_0] : memref<512x36xf32, #tpu.memory_space<vmem>>, vector<512x36xf32>
    %c0_1 = arith.constant 0 : index
    %c0_2 = arith.constant 0 : index
    %1 = vector.load %arg2[%c0_1, %c0_2] : memref<36x4xf32, #tpu.memory_space<vmem>>, vector<36x4xf32>
    %cst = arith.constant dense<0.000000e+00> : vector<512x4xf32>
    %2 = tpu.matmul %0, %1, %cst {dimension_numbers = #tpu.dot_dimension_numbers<[1], [0], [0], [1], [0, 0, 1, 1], [], []>} : vector<512x36xf32>, vector<36x4xf32>, vector<512x4xf32> -> vector<512x4xf32>
    %c0_3 = arith.constant 0 : index
    %c0_4 = arith.constant 0 : index
    %3 = vector.load %arg3[%c0_3, %c0_4] : memref<1x4xf32, #tpu.memory_space<vmem>>, vector<1x4xf32>
    %4 = vector.broadcast %3 : vector<1x4xf32> to vector<512x4xf32>
    %5 = arith.mulf %2, %4 : vector<512x4xf32>
    %c0_5 = arith.constant 0 : index
    %c0_6 = arith.constant 0 : index
    %6 = vector.load %arg4[%c0_5, %c0_6] : memref<1x4xf32, #tpu.memory_space<vmem>>, vector<1x4xf32>
    %7 = vector.broadcast %6 : vector<1x4xf32> to vector<512x4xf32>
    %8 = arith.addf %5, %7 : vector<512x4xf32>
    %cst_7 = arith.constant 0.000000e+00 : f32
    %9 = vector.broadcast %cst_7 : f32 to vector<512x4xf32>
    %10 = arith.maximumf %8, %9 : vector<512x4xf32>
    %c0_8 = arith.constant 0 : index
    %c0_9 = arith.constant 0 : index
    %11 = vector.load %arg5[%c0_8, %c0_9] : memref<512x4xf32, #tpu.memory_space<vmem>>, vector<512x4xf32>
    tpu.vector_store %arg5[%c0_8, %c0_9], %10 {strides = array<i32>} : memref<512x4xf32, #tpu.memory_space<vmem>>, vector<512x4xf32>,
    return
  }
  func.func @transform_0(%arg0: i32) -> (i32, i32) {
    %c0_i32 = arith.constant 0 : i32
    %c0_i32_0 = arith.constant 0 : i32
    return %arg0, %c0_i32 : i32, i32
  }
  func.func @transform_1(%arg0: i32) -> (i32, i32) {
    %c0_i32 = arith.constant 0 : i32
    %c0_i32_0 = arith.constant 0 : i32
    %c0_i32_1 = arith.constant 0 : i32
    return %c0_i32, %c0_i32_0 : i32, i32
  }
  func.func @transform_2(%arg0: i32) -> (i32, i32) {
    %c0_i32 = arith.constant 0 : i32
    %c0_i32_0 = arith.constant 0 : i32
    %c0_i32_1 = arith.constant 0 : i32
    return %c0_i32, %c0_i32_0 : i32, i32
  }
  func.func @transform_3(%arg0: i32) -> (i32, i32) {
    %c0_i32 = arith.constant 0 : i32
    %c0_i32_0 = arith.constant 0 : i32
    %c0_i32_1 = arith.constant 0 : i32
    return %c0_i32, %c0_i32_0 : i32, i32
  }
  func.func @transform_4(%arg0: i32) -> (i32, i32) {
    %c0_i32 = arith.constant 0 : i32
    %c0_i32_0 = arith.constant 0 : i32
    return %arg0, %c0_i32 : i32, i32
  }
}

module attributes {stable_mosaic.version = 11 : i64} {
  func.func @_max4_kernel(%arg0: i32, %arg1: memref<128x4xf32, #tpu.memory_space<vmem>>, %arg2: memref<128x4xf32, #tpu.memory_space<vmem>>, %arg3: memref<128x4xf32, #tpu.memory_space<vmem>>, %arg4: memref<128x4xf32, #tpu.memory_space<vmem>>, %arg5: memref<128x4xf32, #tpu.memory_space<vmem>>) attributes {dimension_semantics = [#tpu.dimension_semantics<parallel>], iteration_bounds = array<i64: 1>, scalar_prefetch = 0 : i64, scratch_operands = 0 : i64, tpu.core_type = #tpu.core_type<tc>, window_params = [{transform_indices = @transform_0, window_bounds = array<i64: 128, 4>}, {transform_indices = @transform_1, window_bounds = array<i64: 128, 4>}, {transform_indices = @transform_2, window_bounds = array<i64: 128, 4>}, {transform_indices = @transform_3, window_bounds = array<i64: 128, 4>}, {transform_indices = @transform_4, window_bounds = array<i64: 128, 4>}]} {
    %c0 = arith.constant 0 : index
    %c0_0 = arith.constant 0 : index
    %0 = vector.load %arg1[%c0, %c0_0] : memref<128x4xf32, #tpu.memory_space<vmem>>, vector<128x4xf32>
    %c0_1 = arith.constant 0 : index
    %c0_2 = arith.constant 0 : index
    %1 = vector.load %arg2[%c0_1, %c0_2] : memref<128x4xf32, #tpu.memory_space<vmem>>, vector<128x4xf32>
    %2 = arith.maximumf %0, %1 : vector<128x4xf32>
    %c0_3 = arith.constant 0 : index
    %c0_4 = arith.constant 0 : index
    %3 = vector.load %arg3[%c0_3, %c0_4] : memref<128x4xf32, #tpu.memory_space<vmem>>, vector<128x4xf32>
    %c0_5 = arith.constant 0 : index
    %c0_6 = arith.constant 0 : index
    %4 = vector.load %arg4[%c0_5, %c0_6] : memref<128x4xf32, #tpu.memory_space<vmem>>, vector<128x4xf32>
    %5 = arith.maximumf %3, %4 : vector<128x4xf32>
    %6 = arith.maximumf %2, %5 : vector<128x4xf32>
    %c0_7 = arith.constant 0 : index
    %c0_8 = arith.constant 0 : index
    %7 = vector.load %arg5[%c0_7, %c0_8] : memref<128x4xf32, #tpu.memory_space<vmem>>, vector<128x4xf32>
    tpu.vector_store %arg5[%c0_7, %c0_8], %6 {strides = array<i32>} : memref<128x4xf32, #tpu.memory_space<vmem>>, vector<128x4xf32>,
    return
  }
  func.func @transform_0(%arg0: i32) -> (i32, i32) {
    %c0_i32 = arith.constant 0 : i32
    %c0_i32_0 = arith.constant 0 : i32
    return %arg0, %c0_i32 : i32, i32
  }
  func.func @transform_1(%arg0: i32) -> (i32, i32) {
    %c0_i32 = arith.constant 0 : i32
    %c0_i32_0 = arith.constant 0 : i32
    return %arg0, %c0_i32 : i32, i32
  }
  func.func @transform_2(%arg0: i32) -> (i32, i32) {
    %c0_i32 = arith.constant 0 : i32
    %c0_i32_0 = arith.constant 0 : i32
    return %arg0, %c0_i32 : i32, i32
  }
  func.func @transform_3(%arg0: i32) -> (i32, i32) {
    %c0_i32 = arith.constant 0 : i32
    %c0_i32_0 = arith.constant 0 : i32
    return %arg0, %c0_i32 : i32, i32
  }
  func.func @transform_4(%arg0: i32) -> (i32, i32) {
    %c0_i32 = arith.constant 0 : i32
    %c0_i32_0 = arith.constant 0 : i32
    return %arg0, %c0_i32 : i32, i32
  }
}

module attributes {stable_mosaic.version = 11 : i64} {
  func.func @_matmul_affine_kernel(%arg0: i32, %arg1: memref<128x36xf32, #tpu.memory_space<vmem>>, %arg2: memref<36x8xf32, #tpu.memory_space<vmem>>, %arg3: memref<1x8xf32, #tpu.memory_space<vmem>>, %arg4: memref<1x8xf32, #tpu.memory_space<vmem>>, %arg5: memref<128x8xf32, #tpu.memory_space<vmem>>) attributes {dimension_semantics = [#tpu.dimension_semantics<parallel>], iteration_bounds = array<i64: 1>, scalar_prefetch = 0 : i64, scratch_operands = 0 : i64, tpu.core_type = #tpu.core_type<tc>, window_params = [{transform_indices = @transform_0, window_bounds = array<i64: 128, 36>}, {pipeline_mode = #tpu.pipeline_mode<synchronous>, transform_indices = @transform_1, window_bounds = array<i64: 36, 8>}, {pipeline_mode = #tpu.pipeline_mode<synchronous>, transform_indices = @transform_2, window_bounds = array<i64: 1, 8>}, {pipeline_mode = #tpu.pipeline_mode<synchronous>, transform_indices = @transform_3, window_bounds = array<i64: 1, 8>}, {transform_indices = @transform_4, window_bounds = array<i64: 128, 8>}]} {
    %c0 = arith.constant 0 : index
    %c0_0 = arith.constant 0 : index
    %0 = vector.load %arg1[%c0, %c0_0] : memref<128x36xf32, #tpu.memory_space<vmem>>, vector<128x36xf32>
    %c0_1 = arith.constant 0 : index
    %c0_2 = arith.constant 0 : index
    %1 = vector.load %arg2[%c0_1, %c0_2] : memref<36x8xf32, #tpu.memory_space<vmem>>, vector<36x8xf32>
    %cst = arith.constant dense<0.000000e+00> : vector<128x8xf32>
    %2 = tpu.matmul %0, %1, %cst {dimension_numbers = #tpu.dot_dimension_numbers<[1], [0], [0], [1], [0, 0, 1, 1], [], []>} : vector<128x36xf32>, vector<36x8xf32>, vector<128x8xf32> -> vector<128x8xf32>
    %c0_3 = arith.constant 0 : index
    %c0_4 = arith.constant 0 : index
    %3 = vector.load %arg3[%c0_3, %c0_4] : memref<1x8xf32, #tpu.memory_space<vmem>>, vector<1x8xf32>
    %4 = vector.broadcast %3 : vector<1x8xf32> to vector<128x8xf32>
    %5 = arith.mulf %2, %4 : vector<128x8xf32>
    %c0_5 = arith.constant 0 : index
    %c0_6 = arith.constant 0 : index
    %6 = vector.load %arg4[%c0_5, %c0_6] : memref<1x8xf32, #tpu.memory_space<vmem>>, vector<1x8xf32>
    %7 = vector.broadcast %6 : vector<1x8xf32> to vector<128x8xf32>
    %8 = arith.addf %5, %7 : vector<128x8xf32>
    %cst_7 = arith.constant 0.000000e+00 : f32
    %9 = vector.broadcast %cst_7 : f32 to vector<128x8xf32>
    %10 = arith.maximumf %8, %9 : vector<128x8xf32>
    %c0_8 = arith.constant 0 : index
    %c0_9 = arith.constant 0 : index
    %11 = vector.load %arg5[%c0_8, %c0_9] : memref<128x8xf32, #tpu.memory_space<vmem>>, vector<128x8xf32>
    tpu.vector_store %arg5[%c0_8, %c0_9], %10 {strides = array<i32>} : memref<128x8xf32, #tpu.memory_space<vmem>>, vector<128x8xf32>,
    return
  }
  func.func @transform_0(%arg0: i32) -> (i32, i32) {
    %c0_i32 = arith.constant 0 : i32
    %c0_i32_0 = arith.constant 0 : i32
    return %arg0, %c0_i32 : i32, i32
  }
  func.func @transform_1(%arg0: i32) -> (i32, i32) {
    %c0_i32 = arith.constant 0 : i32
    %c0_i32_0 = arith.constant 0 : i32
    %c0_i32_1 = arith.constant 0 : i32
    return %c0_i32, %c0_i32_0 : i32, i32
  }
  func.func @transform_2(%arg0: i32) -> (i32, i32) {
    %c0_i32 = arith.constant 0 : i32
    %c0_i32_0 = arith.constant 0 : i32
    %c0_i32_1 = arith.constant 0 : i32
    return %c0_i32, %c0_i32_0 : i32, i32
  }
  func.func @transform_3(%arg0: i32) -> (i32, i32) {
    %c0_i32 = arith.constant 0 : i32
    %c0_i32_0 = arith.constant 0 : i32
    %c0_i32_1 = arith.constant 0 : i32
    return %c0_i32, %c0_i32_0 : i32, i32
  }
  func.func @transform_4(%arg0: i32) -> (i32, i32) {
    %c0_i32 = arith.constant 0 : i32
    %c0_i32_0 = arith.constant 0 : i32
    return %arg0, %c0_i32 : i32, i32
  }
}

module attributes {stable_mosaic.version = 11 : i64} {
  func.func @_matmul_affine_kernel(%arg0: i32, %arg1: memref<128x72xf32, #tpu.memory_space<vmem>>, %arg2: memref<72x8xf32, #tpu.memory_space<vmem>>, %arg3: memref<1x8xf32, #tpu.memory_space<vmem>>, %arg4: memref<1x8xf32, #tpu.memory_space<vmem>>, %arg5: memref<128x8xf32, #tpu.memory_space<vmem>>) attributes {dimension_semantics = [#tpu.dimension_semantics<parallel>], iteration_bounds = array<i64: 1>, scalar_prefetch = 0 : i64, scratch_operands = 0 : i64, tpu.core_type = #tpu.core_type<tc>, window_params = [{transform_indices = @transform_0, window_bounds = array<i64: 128, 72>}, {pipeline_mode = #tpu.pipeline_mode<synchronous>, transform_indices = @transform_1, window_bounds = array<i64: 72, 8>}, {pipeline_mode = #tpu.pipeline_mode<synchronous>, transform_indices = @transform_2, window_bounds = array<i64: 1, 8>}, {pipeline_mode = #tpu.pipeline_mode<synchronous>, transform_indices = @transform_3, window_bounds = array<i64: 1, 8>}, {transform_indices = @transform_4, window_bounds = array<i64: 128, 8>}]} {
    %c0 = arith.constant 0 : index
    %c0_0 = arith.constant 0 : index
    %0 = vector.load %arg1[%c0, %c0_0] : memref<128x72xf32, #tpu.memory_space<vmem>>, vector<128x72xf32>
    %c0_1 = arith.constant 0 : index
    %c0_2 = arith.constant 0 : index
    %1 = vector.load %arg2[%c0_1, %c0_2] : memref<72x8xf32, #tpu.memory_space<vmem>>, vector<72x8xf32>
    %cst = arith.constant dense<0.000000e+00> : vector<128x8xf32>
    %2 = tpu.matmul %0, %1, %cst {dimension_numbers = #tpu.dot_dimension_numbers<[1], [0], [0], [1], [0, 0, 1, 1], [], []>} : vector<128x72xf32>, vector<72x8xf32>, vector<128x8xf32> -> vector<128x8xf32>
    %c0_3 = arith.constant 0 : index
    %c0_4 = arith.constant 0 : index
    %3 = vector.load %arg3[%c0_3, %c0_4] : memref<1x8xf32, #tpu.memory_space<vmem>>, vector<1x8xf32>
    %4 = vector.broadcast %3 : vector<1x8xf32> to vector<128x8xf32>
    %5 = arith.mulf %2, %4 : vector<128x8xf32>
    %c0_5 = arith.constant 0 : index
    %c0_6 = arith.constant 0 : index
    %6 = vector.load %arg4[%c0_5, %c0_6] : memref<1x8xf32, #tpu.memory_space<vmem>>, vector<1x8xf32>
    %7 = vector.broadcast %6 : vector<1x8xf32> to vector<128x8xf32>
    %8 = arith.addf %5, %7 : vector<128x8xf32>
    %cst_7 = arith.constant 0.000000e+00 : f32
    %9 = vector.broadcast %cst_7 : f32 to vector<128x8xf32>
    %10 = arith.maximumf %8, %9 : vector<128x8xf32>
    %c0_8 = arith.constant 0 : index
    %c0_9 = arith.constant 0 : index
    %11 = vector.load %arg5[%c0_8, %c0_9] : memref<128x8xf32, #tpu.memory_space<vmem>>, vector<128x8xf32>
    tpu.vector_store %arg5[%c0_8, %c0_9], %10 {strides = array<i32>} : memref<128x8xf32, #tpu.memory_space<vmem>>, vector<128x8xf32>,
    return
  }
  func.func @transform_0(%arg0: i32) -> (i32, i32) {
    %c0_i32 = arith.constant 0 : i32
    %c0_i32_0 = arith.constant 0 : i32
    return %arg0, %c0_i32 : i32, i32
  }
  func.func @transform_1(%arg0: i32) -> (i32, i32) {
    %c0_i32 = arith.constant 0 : i32
    %c0_i32_0 = arith.constant 0 : i32
    %c0_i32_1 = arith.constant 0 : i32
    return %c0_i32, %c0_i32_0 : i32, i32
  }
  func.func @transform_2(%arg0: i32) -> (i32, i32) {
    %c0_i32 = arith.constant 0 : i32
    %c0_i32_0 = arith.constant 0 : i32
    %c0_i32_1 = arith.constant 0 : i32
    return %c0_i32, %c0_i32_0 : i32, i32
  }
  func.func @transform_3(%arg0: i32) -> (i32, i32) {
    %c0_i32 = arith.constant 0 : i32
    %c0_i32_0 = arith.constant 0 : i32
    %c0_i32_1 = arith.constant 0 : i32
    return %c0_i32, %c0_i32_0 : i32, i32
  }
  func.func @transform_4(%arg0: i32) -> (i32, i32) {
    %c0_i32 = arith.constant 0 : i32
    %c0_i32_0 = arith.constant 0 : i32
    return %arg0, %c0_i32 : i32, i32
  }
}

module attributes {stable_mosaic.version = 11 : i64} {
  func.func @_max4_kernel(%arg0: i32, %arg1: memref<32x8xf32, #tpu.memory_space<vmem>>, %arg2: memref<32x8xf32, #tpu.memory_space<vmem>>, %arg3: memref<32x8xf32, #tpu.memory_space<vmem>>, %arg4: memref<32x8xf32, #tpu.memory_space<vmem>>, %arg5: memref<32x8xf32, #tpu.memory_space<vmem>>) attributes {dimension_semantics = [#tpu.dimension_semantics<parallel>], iteration_bounds = array<i64: 1>, scalar_prefetch = 0 : i64, scratch_operands = 0 : i64, tpu.core_type = #tpu.core_type<tc>, window_params = [{transform_indices = @transform_0, window_bounds = array<i64: 32, 8>}, {transform_indices = @transform_1, window_bounds = array<i64: 32, 8>}, {transform_indices = @transform_2, window_bounds = array<i64: 32, 8>}, {transform_indices = @transform_3, window_bounds = array<i64: 32, 8>}, {transform_indices = @transform_4, window_bounds = array<i64: 32, 8>}]} {
    %c0 = arith.constant 0 : index
    %c0_0 = arith.constant 0 : index
    %0 = vector.load %arg1[%c0, %c0_0] : memref<32x8xf32, #tpu.memory_space<vmem>>, vector<32x8xf32>
    %c0_1 = arith.constant 0 : index
    %c0_2 = arith.constant 0 : index
    %1 = vector.load %arg2[%c0_1, %c0_2] : memref<32x8xf32, #tpu.memory_space<vmem>>, vector<32x8xf32>
    %2 = arith.maximumf %0, %1 : vector<32x8xf32>
    %c0_3 = arith.constant 0 : index
    %c0_4 = arith.constant 0 : index
    %3 = vector.load %arg3[%c0_3, %c0_4] : memref<32x8xf32, #tpu.memory_space<vmem>>, vector<32x8xf32>
    %c0_5 = arith.constant 0 : index
    %c0_6 = arith.constant 0 : index
    %4 = vector.load %arg4[%c0_5, %c0_6] : memref<32x8xf32, #tpu.memory_space<vmem>>, vector<32x8xf32>
    %5 = arith.maximumf %3, %4 : vector<32x8xf32>
    %6 = arith.maximumf %2, %5 : vector<32x8xf32>
    %c0_7 = arith.constant 0 : index
    %c0_8 = arith.constant 0 : index
    %7 = vector.load %arg5[%c0_7, %c0_8] : memref<32x8xf32, #tpu.memory_space<vmem>>, vector<32x8xf32>
    tpu.vector_store %arg5[%c0_7, %c0_8], %6 {strides = array<i32>} : memref<32x8xf32, #tpu.memory_space<vmem>>, vector<32x8xf32>,
    return
  }
  func.func @transform_0(%arg0: i32) -> (i32, i32) {
    %c0_i32 = arith.constant 0 : i32
    %c0_i32_0 = arith.constant 0 : i32
    return %arg0, %c0_i32 : i32, i32
  }
  func.func @transform_1(%arg0: i32) -> (i32, i32) {
    %c0_i32 = arith.constant 0 : i32
    %c0_i32_0 = arith.constant 0 : i32
    return %arg0, %c0_i32 : i32, i32
  }
  func.func @transform_2(%arg0: i32) -> (i32, i32) {
    %c0_i32 = arith.constant 0 : i32
    %c0_i32_0 = arith.constant 0 : i32
    return %arg0, %c0_i32 : i32, i32
  }
  func.func @transform_3(%arg0: i32) -> (i32, i32) {
    %c0_i32 = arith.constant 0 : i32
    %c0_i32_0 = arith.constant 0 : i32
    return %arg0, %c0_i32 : i32, i32
  }
  func.func @transform_4(%arg0: i32) -> (i32, i32) {
    %c0_i32 = arith.constant 0 : i32
    %c0_i32_0 = arith.constant 0 : i32
    return %arg0, %c0_i32 : i32, i32
  }
}

module attributes {stable_mosaic.version = 11 : i64} {
  func.func @_matmul_affine_kernel(%arg0: i32, %arg1: memref<32x72xf32, #tpu.memory_space<vmem>>, %arg2: memref<72x16xf32, #tpu.memory_space<vmem>>, %arg3: memref<1x16xf32, #tpu.memory_space<vmem>>, %arg4: memref<1x16xf32, #tpu.memory_space<vmem>>, %arg5: memref<32x16xf32, #tpu.memory_space<vmem>>) attributes {dimension_semantics = [#tpu.dimension_semantics<parallel>], iteration_bounds = array<i64: 1>, scalar_prefetch = 0 : i64, scratch_operands = 0 : i64, tpu.core_type = #tpu.core_type<tc>, window_params = [{transform_indices = @transform_0, window_bounds = array<i64: 32, 72>}, {pipeline_mode = #tpu.pipeline_mode<synchronous>, transform_indices = @transform_1, window_bounds = array<i64: 72, 16>}, {pipeline_mode = #tpu.pipeline_mode<synchronous>, transform_indices = @transform_2, window_bounds = array<i64: 1, 16>}, {pipeline_mode = #tpu.pipeline_mode<synchronous>, transform_indices = @transform_3, window_bounds = array<i64: 1, 16>}, {transform_indices = @transform_4, window_bounds = array<i64: 32, 16>}]} {
    %c0 = arith.constant 0 : index
    %c0_0 = arith.constant 0 : index
    %0 = vector.load %arg1[%c0, %c0_0] : memref<32x72xf32, #tpu.memory_space<vmem>>, vector<32x72xf32>
    %c0_1 = arith.constant 0 : index
    %c0_2 = arith.constant 0 : index
    %1 = vector.load %arg2[%c0_1, %c0_2] : memref<72x16xf32, #tpu.memory_space<vmem>>, vector<72x16xf32>
    %cst = arith.constant dense<0.000000e+00> : vector<32x16xf32>
    %2 = tpu.matmul %0, %1, %cst {dimension_numbers = #tpu.dot_dimension_numbers<[1], [0], [0], [1], [0, 0, 1, 1], [], []>} : vector<32x72xf32>, vector<72x16xf32>, vector<32x16xf32> -> vector<32x16xf32>
    %c0_3 = arith.constant 0 : index
    %c0_4 = arith.constant 0 : index
    %3 = vector.load %arg3[%c0_3, %c0_4] : memref<1x16xf32, #tpu.memory_space<vmem>>, vector<1x16xf32>
    %4 = vector.broadcast %3 : vector<1x16xf32> to vector<32x16xf32>
    %5 = arith.mulf %2, %4 : vector<32x16xf32>
    %c0_5 = arith.constant 0 : index
    %c0_6 = arith.constant 0 : index
    %6 = vector.load %arg4[%c0_5, %c0_6] : memref<1x16xf32, #tpu.memory_space<vmem>>, vector<1x16xf32>
    %7 = vector.broadcast %6 : vector<1x16xf32> to vector<32x16xf32>
    %8 = arith.addf %5, %7 : vector<32x16xf32>
    %cst_7 = arith.constant 0.000000e+00 : f32
    %9 = vector.broadcast %cst_7 : f32 to vector<32x16xf32>
    %10 = arith.maximumf %8, %9 : vector<32x16xf32>
    %c0_8 = arith.constant 0 : index
    %c0_9 = arith.constant 0 : index
    %11 = vector.load %arg5[%c0_8, %c0_9] : memref<32x16xf32, #tpu.memory_space<vmem>>, vector<32x16xf32>
    tpu.vector_store %arg5[%c0_8, %c0_9], %10 {strides = array<i32>} : memref<32x16xf32, #tpu.memory_space<vmem>>, vector<32x16xf32>,
    return
  }
  func.func @transform_0(%arg0: i32) -> (i32, i32) {
    %c0_i32 = arith.constant 0 : i32
    %c0_i32_0 = arith.constant 0 : i32
    return %arg0, %c0_i32 : i32, i32
  }
  func.func @transform_1(%arg0: i32) -> (i32, i32) {
    %c0_i32 = arith.constant 0 : i32
    %c0_i32_0 = arith.constant 0 : i32
    %c0_i32_1 = arith.constant 0 : i32
    return %c0_i32, %c0_i32_0 : i32, i32
  }
  func.func @transform_2(%arg0: i32) -> (i32, i32) {
    %c0_i32 = arith.constant 0 : i32
    %c0_i32_0 = arith.constant 0 : i32
    %c0_i32_1 = arith.constant 0 : i32
    return %c0_i32, %c0_i32_0 : i32, i32
  }
  func.func @transform_3(%arg0: i32) -> (i32, i32) {
    %c0_i32 = arith.constant 0 : i32
    %c0_i32_0 = arith.constant 0 : i32
    %c0_i32_1 = arith.constant 0 : i32
    return %c0_i32, %c0_i32_0 : i32, i32
  }
  func.func @transform_4(%arg0: i32) -> (i32, i32) {
    %c0_i32 = arith.constant 0 : i32
    %c0_i32_0 = arith.constant 0 : i32
    return %arg0, %c0_i32 : i32, i32
  }
}

module attributes {stable_mosaic.version = 11 : i64} {
  func.func @_matmul_affine_kernel(%arg0: i32, %arg1: memref<32x144xf32, #tpu.memory_space<vmem>>, %arg2: memref<144x16xf32, #tpu.memory_space<vmem>>, %arg3: memref<1x16xf32, #tpu.memory_space<vmem>>, %arg4: memref<1x16xf32, #tpu.memory_space<vmem>>, %arg5: memref<32x16xf32, #tpu.memory_space<vmem>>) attributes {dimension_semantics = [#tpu.dimension_semantics<parallel>], iteration_bounds = array<i64: 1>, scalar_prefetch = 0 : i64, scratch_operands = 0 : i64, tpu.core_type = #tpu.core_type<tc>, window_params = [{transform_indices = @transform_0, window_bounds = array<i64: 32, 144>}, {pipeline_mode = #tpu.pipeline_mode<synchronous>, transform_indices = @transform_1, window_bounds = array<i64: 144, 16>}, {pipeline_mode = #tpu.pipeline_mode<synchronous>, transform_indices = @transform_2, window_bounds = array<i64: 1, 16>}, {pipeline_mode = #tpu.pipeline_mode<synchronous>, transform_indices = @transform_3, window_bounds = array<i64: 1, 16>}, {transform_indices = @transform_4, window_bounds = array<i64: 32, 16>}]} {
    %c0 = arith.constant 0 : index
    %c0_0 = arith.constant 0 : index
    %0 = vector.load %arg1[%c0, %c0_0] : memref<32x144xf32, #tpu.memory_space<vmem>>, vector<32x144xf32>
    %c0_1 = arith.constant 0 : index
    %c0_2 = arith.constant 0 : index
    %1 = vector.load %arg2[%c0_1, %c0_2] : memref<144x16xf32, #tpu.memory_space<vmem>>, vector<144x16xf32>
    %cst = arith.constant dense<0.000000e+00> : vector<32x16xf32>
    %2 = tpu.matmul %0, %1, %cst {dimension_numbers = #tpu.dot_dimension_numbers<[1], [0], [0], [1], [0, 0, 1, 1], [], []>} : vector<32x144xf32>, vector<144x16xf32>, vector<32x16xf32> -> vector<32x16xf32>
    %c0_3 = arith.constant 0 : index
    %c0_4 = arith.constant 0 : index
    %3 = vector.load %arg3[%c0_3, %c0_4] : memref<1x16xf32, #tpu.memory_space<vmem>>, vector<1x16xf32>
    %4 = vector.broadcast %3 : vector<1x16xf32> to vector<32x16xf32>
    %5 = arith.mulf %2, %4 : vector<32x16xf32>
    %c0_5 = arith.constant 0 : index
    %c0_6 = arith.constant 0 : index
    %6 = vector.load %arg4[%c0_5, %c0_6] : memref<1x16xf32, #tpu.memory_space<vmem>>, vector<1x16xf32>
    %7 = vector.broadcast %6 : vector<1x16xf32> to vector<32x16xf32>
    %8 = arith.addf %5, %7 : vector<32x16xf32>
    %cst_7 = arith.constant 0.000000e+00 : f32
    %9 = vector.broadcast %cst_7 : f32 to vector<32x16xf32>
    %10 = arith.maximumf %8, %9 : vector<32x16xf32>
    %c0_8 = arith.constant 0 : index
    %c0_9 = arith.constant 0 : index
    %11 = vector.load %arg5[%c0_8, %c0_9] : memref<32x16xf32, #tpu.memory_space<vmem>>, vector<32x16xf32>
    tpu.vector_store %arg5[%c0_8, %c0_9], %10 {strides = array<i32>} : memref<32x16xf32, #tpu.memory_space<vmem>>, vector<32x16xf32>,
    return
  }
  func.func @transform_0(%arg0: i32) -> (i32, i32) {
    %c0_i32 = arith.constant 0 : i32
    %c0_i32_0 = arith.constant 0 : i32
    return %arg0, %c0_i32 : i32, i32
  }
  func.func @transform_1(%arg0: i32) -> (i32, i32) {
    %c0_i32 = arith.constant 0 : i32
    %c0_i32_0 = arith.constant 0 : i32
    %c0_i32_1 = arith.constant 0 : i32
    return %c0_i32, %c0_i32_0 : i32, i32
  }
  func.func @transform_2(%arg0: i32) -> (i32, i32) {
    %c0_i32 = arith.constant 0 : i32
    %c0_i32_0 = arith.constant 0 : i32
    %c0_i32_1 = arith.constant 0 : i32
    return %c0_i32, %c0_i32_0 : i32, i32
  }
  func.func @transform_3(%arg0: i32) -> (i32, i32) {
    %c0_i32 = arith.constant 0 : i32
    %c0_i32_0 = arith.constant 0 : i32
    %c0_i32_1 = arith.constant 0 : i32
    return %c0_i32, %c0_i32_0 : i32, i32
  }
  func.func @transform_4(%arg0: i32) -> (i32, i32) {
    %c0_i32 = arith.constant 0 : i32
    %c0_i32_0 = arith.constant 0 : i32
    return %arg0, %c0_i32 : i32, i32
  }
}

module attributes {stable_mosaic.version = 11 : i64} {
  func.func @_max4_kernel(%arg0: i32, %arg1: memref<8x16xf32, #tpu.memory_space<vmem>>, %arg2: memref<8x16xf32, #tpu.memory_space<vmem>>, %arg3: memref<8x16xf32, #tpu.memory_space<vmem>>, %arg4: memref<8x16xf32, #tpu.memory_space<vmem>>, %arg5: memref<8x16xf32, #tpu.memory_space<vmem>>) attributes {dimension_semantics = [#tpu.dimension_semantics<parallel>], iteration_bounds = array<i64: 1>, scalar_prefetch = 0 : i64, scratch_operands = 0 : i64, tpu.core_type = #tpu.core_type<tc>, window_params = [{transform_indices = @transform_0, window_bounds = array<i64: 8, 16>}, {transform_indices = @transform_1, window_bounds = array<i64: 8, 16>}, {transform_indices = @transform_2, window_bounds = array<i64: 8, 16>}, {transform_indices = @transform_3, window_bounds = array<i64: 8, 16>}, {transform_indices = @transform_4, window_bounds = array<i64: 8, 16>}]} {
    %c0 = arith.constant 0 : index
    %c0_0 = arith.constant 0 : index
    %0 = vector.load %arg1[%c0, %c0_0] : memref<8x16xf32, #tpu.memory_space<vmem>>, vector<8x16xf32>
    %c0_1 = arith.constant 0 : index
    %c0_2 = arith.constant 0 : index
    %1 = vector.load %arg2[%c0_1, %c0_2] : memref<8x16xf32, #tpu.memory_space<vmem>>, vector<8x16xf32>
    %2 = arith.maximumf %0, %1 : vector<8x16xf32>
    %c0_3 = arith.constant 0 : index
    %c0_4 = arith.constant 0 : index
    %3 = vector.load %arg3[%c0_3, %c0_4] : memref<8x16xf32, #tpu.memory_space<vmem>>, vector<8x16xf32>
    %c0_5 = arith.constant 0 : index
    %c0_6 = arith.constant 0 : index
    %4 = vector.load %arg4[%c0_5, %c0_6] : memref<8x16xf32, #tpu.memory_space<vmem>>, vector<8x16xf32>
    %5 = arith.maximumf %3, %4 : vector<8x16xf32>
    %6 = arith.maximumf %2, %5 : vector<8x16xf32>
    %c0_7 = arith.constant 0 : index
    %c0_8 = arith.constant 0 : index
    %7 = vector.load %arg5[%c0_7, %c0_8] : memref<8x16xf32, #tpu.memory_space<vmem>>, vector<8x16xf32>
    tpu.vector_store %arg5[%c0_7, %c0_8], %6 {strides = array<i32>} : memref<8x16xf32, #tpu.memory_space<vmem>>, vector<8x16xf32>,
    return
  }
  func.func @transform_0(%arg0: i32) -> (i32, i32) {
    %c0_i32 = arith.constant 0 : i32
    %c0_i32_0 = arith.constant 0 : i32
    return %arg0, %c0_i32 : i32, i32
  }
  func.func @transform_1(%arg0: i32) -> (i32, i32) {
    %c0_i32 = arith.constant 0 : i32
    %c0_i32_0 = arith.constant 0 : i32
    return %arg0, %c0_i32 : i32, i32
  }
  func.func @transform_2(%arg0: i32) -> (i32, i32) {
    %c0_i32 = arith.constant 0 : i32
    %c0_i32_0 = arith.constant 0 : i32
    return %arg0, %c0_i32 : i32, i32
  }
  func.func @transform_3(%arg0: i32) -> (i32, i32) {
    %c0_i32 = arith.constant 0 : i32
    %c0_i32_0 = arith.constant 0 : i32
    return %arg0, %c0_i32 : i32, i32
  }
  func.func @transform_4(%arg0: i32) -> (i32, i32) {
    %c0_i32 = arith.constant 0 : i32
    %c0_i32_0 = arith.constant 0 : i32
    return %arg0, %c0_i32 : i32, i32
  }
}

module attributes {stable_mosaic.version = 11 : i64} {
  func.func @_matmul_affine_kernel(%arg0: i32, %arg1: memref<8x144xf32, #tpu.memory_space<vmem>>, %arg2: memref<144x32xf32, #tpu.memory_space<vmem>>, %arg3: memref<1x32xf32, #tpu.memory_space<vmem>>, %arg4: memref<1x32xf32, #tpu.memory_space<vmem>>, %arg5: memref<8x32xf32, #tpu.memory_space<vmem>>) attributes {dimension_semantics = [#tpu.dimension_semantics<parallel>], iteration_bounds = array<i64: 1>, scalar_prefetch = 0 : i64, scratch_operands = 0 : i64, tpu.core_type = #tpu.core_type<tc>, window_params = [{transform_indices = @transform_0, window_bounds = array<i64: 8, 144>}, {pipeline_mode = #tpu.pipeline_mode<synchronous>, transform_indices = @transform_1, window_bounds = array<i64: 144, 32>}, {pipeline_mode = #tpu.pipeline_mode<synchronous>, transform_indices = @transform_2, window_bounds = array<i64: 1, 32>}, {pipeline_mode = #tpu.pipeline_mode<synchronous>, transform_indices = @transform_3, window_bounds = array<i64: 1, 32>}, {transform_indices = @transform_4, window_bounds = array<i64: 8, 32>}]} {
    %c0 = arith.constant 0 : index
    %c0_0 = arith.constant 0 : index
    %0 = vector.load %arg1[%c0, %c0_0] : memref<8x144xf32, #tpu.memory_space<vmem>>, vector<8x144xf32>
    %c0_1 = arith.constant 0 : index
    %c0_2 = arith.constant 0 : index
    %1 = vector.load %arg2[%c0_1, %c0_2] : memref<144x32xf32, #tpu.memory_space<vmem>>, vector<144x32xf32>
    %cst = arith.constant dense<0.000000e+00> : vector<8x32xf32>
    %2 = tpu.matmul %0, %1, %cst {dimension_numbers = #tpu.dot_dimension_numbers<[1], [0], [0], [1], [0, 0, 1, 1], [], []>} : vector<8x144xf32>, vector<144x32xf32>, vector<8x32xf32> -> vector<8x32xf32>
    %c0_3 = arith.constant 0 : index
    %c0_4 = arith.constant 0 : index
    %3 = vector.load %arg3[%c0_3, %c0_4] : memref<1x32xf32, #tpu.memory_space<vmem>>, vector<1x32xf32>
    %4 = vector.broadcast %3 : vector<1x32xf32> to vector<8x32xf32>
    %5 = arith.mulf %2, %4 : vector<8x32xf32>
    %c0_5 = arith.constant 0 : index
    %c0_6 = arith.constant 0 : index
    %6 = vector.load %arg4[%c0_5, %c0_6] : memref<1x32xf32, #tpu.memory_space<vmem>>, vector<1x32xf32>
    %7 = vector.broadcast %6 : vector<1x32xf32> to vector<8x32xf32>
    %8 = arith.addf %5, %7 : vector<8x32xf32>
    %cst_7 = arith.constant 0.000000e+00 : f32
    %9 = vector.broadcast %cst_7 : f32 to vector<8x32xf32>
    %10 = arith.maximumf %8, %9 : vector<8x32xf32>
    %c0_8 = arith.constant 0 : index
    %c0_9 = arith.constant 0 : index
    %11 = vector.load %arg5[%c0_8, %c0_9] : memref<8x32xf32, #tpu.memory_space<vmem>>, vector<8x32xf32>
    tpu.vector_store %arg5[%c0_8, %c0_9], %10 {strides = array<i32>} : memref<8x32xf32, #tpu.memory_space<vmem>>, vector<8x32xf32>,
    return
  }
  func.func @transform_0(%arg0: i32) -> (i32, i32) {
    %c0_i32 = arith.constant 0 : i32
    %c0_i32_0 = arith.constant 0 : i32
    return %arg0, %c0_i32 : i32, i32
  }
  func.func @transform_1(%arg0: i32) -> (i32, i32) {
    %c0_i32 = arith.constant 0 : i32
    %c0_i32_0 = arith.constant 0 : i32
    %c0_i32_1 = arith.constant 0 : i32
    return %c0_i32, %c0_i32_0 : i32, i32
  }
  func.func @transform_2(%arg0: i32) -> (i32, i32) {
    %c0_i32 = arith.constant 0 : i32
    %c0_i32_0 = arith.constant 0 : i32
    %c0_i32_1 = arith.constant 0 : i32
    return %c0_i32, %c0_i32_0 : i32, i32
  }
  func.func @transform_3(%arg0: i32) -> (i32, i32) {
    %c0_i32 = arith.constant 0 : i32
    %c0_i32_0 = arith.constant 0 : i32
    %c0_i32_1 = arith.constant 0 : i32
    return %c0_i32, %c0_i32_0 : i32, i32
  }
  func.func @transform_4(%arg0: i32) -> (i32, i32) {
    %c0_i32 = arith.constant 0 : i32
    %c0_i32_0 = arith.constant 0 : i32
    return %arg0, %c0_i32 : i32, i32
  }
}

module attributes {stable_mosaic.version = 11 : i64} {
  func.func @_matmul_affine_kernel(%arg0: i32, %arg1: memref<8x288xf32, #tpu.memory_space<vmem>>, %arg2: memref<288x32xf32, #tpu.memory_space<vmem>>, %arg3: memref<1x32xf32, #tpu.memory_space<vmem>>, %arg4: memref<1x32xf32, #tpu.memory_space<vmem>>, %arg5: memref<8x32xf32, #tpu.memory_space<vmem>>) attributes {dimension_semantics = [#tpu.dimension_semantics<parallel>], iteration_bounds = array<i64: 1>, scalar_prefetch = 0 : i64, scratch_operands = 0 : i64, tpu.core_type = #tpu.core_type<tc>, window_params = [{transform_indices = @transform_0, window_bounds = array<i64: 8, 288>}, {pipeline_mode = #tpu.pipeline_mode<synchronous>, transform_indices = @transform_1, window_bounds = array<i64: 288, 32>}, {pipeline_mode = #tpu.pipeline_mode<synchronous>, transform_indices = @transform_2, window_bounds = array<i64: 1, 32>}, {pipeline_mode = #tpu.pipeline_mode<synchronous>, transform_indices = @transform_3, window_bounds = array<i64: 1, 32>}, {transform_indices = @transform_4, window_bounds = array<i64: 8, 32>}]} {
    %c0 = arith.constant 0 : index
    %c0_0 = arith.constant 0 : index
    %0 = vector.load %arg1[%c0, %c0_0] : memref<8x288xf32, #tpu.memory_space<vmem>>, vector<8x288xf32>
    %c0_1 = arith.constant 0 : index
    %c0_2 = arith.constant 0 : index
    %1 = vector.load %arg2[%c0_1, %c0_2] : memref<288x32xf32, #tpu.memory_space<vmem>>, vector<288x32xf32>
    %cst = arith.constant dense<0.000000e+00> : vector<8x32xf32>
    %2 = tpu.matmul %0, %1, %cst {dimension_numbers = #tpu.dot_dimension_numbers<[1], [0], [0], [1], [0, 0, 1, 1], [], []>} : vector<8x288xf32>, vector<288x32xf32>, vector<8x32xf32> -> vector<8x32xf32>
    %c0_3 = arith.constant 0 : index
    %c0_4 = arith.constant 0 : index
    %3 = vector.load %arg3[%c0_3, %c0_4] : memref<1x32xf32, #tpu.memory_space<vmem>>, vector<1x32xf32>
    %4 = vector.broadcast %3 : vector<1x32xf32> to vector<8x32xf32>
    %5 = arith.mulf %2, %4 : vector<8x32xf32>
    %c0_5 = arith.constant 0 : index
    %c0_6 = arith.constant 0 : index
    %6 = vector.load %arg4[%c0_5, %c0_6] : memref<1x32xf32, #tpu.memory_space<vmem>>, vector<1x32xf32>
    %7 = vector.broadcast %6 : vector<1x32xf32> to vector<8x32xf32>
    %8 = arith.addf %5, %7 : vector<8x32xf32>
    %cst_7 = arith.constant 0.000000e+00 : f32
    %9 = vector.broadcast %cst_7 : f32 to vector<8x32xf32>
    %10 = arith.maximumf %8, %9 : vector<8x32xf32>
    %c0_8 = arith.constant 0 : index
    %c0_9 = arith.constant 0 : index
    %11 = vector.load %arg5[%c0_8, %c0_9] : memref<8x32xf32, #tpu.memory_space<vmem>>, vector<8x32xf32>
    tpu.vector_store %arg5[%c0_8, %c0_9], %10 {strides = array<i32>} : memref<8x32xf32, #tpu.memory_space<vmem>>, vector<8x32xf32>,
    return
  }
  func.func @transform_0(%arg0: i32) -> (i32, i32) {
    %c0_i32 = arith.constant 0 : i32
    %c0_i32_0 = arith.constant 0 : i32
    return %arg0, %c0_i32 : i32, i32
  }
  func.func @transform_1(%arg0: i32) -> (i32, i32) {
    %c0_i32 = arith.constant 0 : i32
    %c0_i32_0 = arith.constant 0 : i32
    %c0_i32_1 = arith.constant 0 : i32
    return %c0_i32, %c0_i32_0 : i32, i32
  }
  func.func @transform_2(%arg0: i32) -> (i32, i32) {
    %c0_i32 = arith.constant 0 : i32
    %c0_i32_0 = arith.constant 0 : i32
    %c0_i32_1 = arith.constant 0 : i32
    return %c0_i32, %c0_i32_0 : i32, i32
  }
  func.func @transform_3(%arg0: i32) -> (i32, i32) {
    %c0_i32 = arith.constant 0 : i32
    %c0_i32_0 = arith.constant 0 : i32
    %c0_i32_1 = arith.constant 0 : i32
    return %c0_i32, %c0_i32_0 : i32, i32
  }
  func.func @transform_4(%arg0: i32) -> (i32, i32) {
    %c0_i32 = arith.constant 0 : i32
    %c0_i32_0 = arith.constant 0 : i32
    return %arg0, %c0_i32 : i32, i32
  }
}

module attributes {stable_mosaic.version = 11 : i64} {
  func.func @_max4_kernel(%arg0: i32, %arg1: memref<2x32xf32, #tpu.memory_space<vmem>>, %arg2: memref<2x32xf32, #tpu.memory_space<vmem>>, %arg3: memref<2x32xf32, #tpu.memory_space<vmem>>, %arg4: memref<2x32xf32, #tpu.memory_space<vmem>>, %arg5: memref<2x32xf32, #tpu.memory_space<vmem>>) attributes {dimension_semantics = [#tpu.dimension_semantics<parallel>], iteration_bounds = array<i64: 1>, scalar_prefetch = 0 : i64, scratch_operands = 0 : i64, tpu.core_type = #tpu.core_type<tc>, window_params = [{transform_indices = @transform_0, window_bounds = array<i64: 2, 32>}, {transform_indices = @transform_1, window_bounds = array<i64: 2, 32>}, {transform_indices = @transform_2, window_bounds = array<i64: 2, 32>}, {transform_indices = @transform_3, window_bounds = array<i64: 2, 32>}, {transform_indices = @transform_4, window_bounds = array<i64: 2, 32>}]} {
    %c0 = arith.constant 0 : index
    %c0_0 = arith.constant 0 : index
    %0 = vector.load %arg1[%c0, %c0_0] : memref<2x32xf32, #tpu.memory_space<vmem>>, vector<2x32xf32>
    %c0_1 = arith.constant 0 : index
    %c0_2 = arith.constant 0 : index
    %1 = vector.load %arg2[%c0_1, %c0_2] : memref<2x32xf32, #tpu.memory_space<vmem>>, vector<2x32xf32>
    %2 = arith.maximumf %0, %1 : vector<2x32xf32>
    %c0_3 = arith.constant 0 : index
    %c0_4 = arith.constant 0 : index
    %3 = vector.load %arg3[%c0_3, %c0_4] : memref<2x32xf32, #tpu.memory_space<vmem>>, vector<2x32xf32>
    %c0_5 = arith.constant 0 : index
    %c0_6 = arith.constant 0 : index
    %4 = vector.load %arg4[%c0_5, %c0_6] : memref<2x32xf32, #tpu.memory_space<vmem>>, vector<2x32xf32>
    %5 = arith.maximumf %3, %4 : vector<2x32xf32>
    %6 = arith.maximumf %2, %5 : vector<2x32xf32>
    %c0_7 = arith.constant 0 : index
    %c0_8 = arith.constant 0 : index
    %7 = vector.load %arg5[%c0_7, %c0_8] : memref<2x32xf32, #tpu.memory_space<vmem>>, vector<2x32xf32>
    tpu.vector_store %arg5[%c0_7, %c0_8], %6 {strides = array<i32>} : memref<2x32xf32, #tpu.memory_space<vmem>>, vector<2x32xf32>,
    return
  }
  func.func @transform_0(%arg0: i32) -> (i32, i32) {
    %c0_i32 = arith.constant 0 : i32
    %c0_i32_0 = arith.constant 0 : i32
    return %arg0, %c0_i32 : i32, i32
  }
  func.func @transform_1(%arg0: i32) -> (i32, i32) {
    %c0_i32 = arith.constant 0 : i32
    %c0_i32_0 = arith.constant 0 : i32
    return %arg0, %c0_i32 : i32, i32
  }
  func.func @transform_2(%arg0: i32) -> (i32, i32) {
    %c0_i32 = arith.constant 0 : i32
    %c0_i32_0 = arith.constant 0 : i32
    return %arg0, %c0_i32 : i32, i32
  }
  func.func @transform_3(%arg0: i32) -> (i32, i32) {
    %c0_i32 = arith.constant 0 : i32
    %c0_i32_0 = arith.constant 0 : i32
    return %arg0, %c0_i32 : i32, i32
  }
  func.func @transform_4(%arg0: i32) -> (i32, i32) {
    %c0_i32 = arith.constant 0 : i32
    %c0_i32_0 = arith.constant 0 : i32
    return %arg0, %c0_i32 : i32, i32
  }
}

module attributes {stable_mosaic.version = 11 : i64} {
  func.func @_matmul_affine_kernel(%arg0: i32, %arg1: memref<2x288xf32, #tpu.memory_space<vmem>>, %arg2: memref<288x64xf32, #tpu.memory_space<vmem>>, %arg3: memref<1x64xf32, #tpu.memory_space<vmem>>, %arg4: memref<1x64xf32, #tpu.memory_space<vmem>>, %arg5: memref<2x64xf32, #tpu.memory_space<vmem>>) attributes {dimension_semantics = [#tpu.dimension_semantics<parallel>], iteration_bounds = array<i64: 1>, scalar_prefetch = 0 : i64, scratch_operands = 0 : i64, tpu.core_type = #tpu.core_type<tc>, window_params = [{transform_indices = @transform_0, window_bounds = array<i64: 2, 288>}, {pipeline_mode = #tpu.pipeline_mode<synchronous>, transform_indices = @transform_1, window_bounds = array<i64: 288, 64>}, {pipeline_mode = #tpu.pipeline_mode<synchronous>, transform_indices = @transform_2, window_bounds = array<i64: 1, 64>}, {pipeline_mode = #tpu.pipeline_mode<synchronous>, transform_indices = @transform_3, window_bounds = array<i64: 1, 64>}, {transform_indices = @transform_4, window_bounds = array<i64: 2, 64>}]} {
    %c0 = arith.constant 0 : index
    %c0_0 = arith.constant 0 : index
    %0 = vector.load %arg1[%c0, %c0_0] : memref<2x288xf32, #tpu.memory_space<vmem>>, vector<2x288xf32>
    %c0_1 = arith.constant 0 : index
    %c0_2 = arith.constant 0 : index
    %1 = vector.load %arg2[%c0_1, %c0_2] : memref<288x64xf32, #tpu.memory_space<vmem>>, vector<288x64xf32>
    %cst = arith.constant dense<0.000000e+00> : vector<2x64xf32>
    %2 = tpu.matmul %0, %1, %cst {dimension_numbers = #tpu.dot_dimension_numbers<[1], [0], [0], [1], [0, 0, 1, 1], [], []>} : vector<2x288xf32>, vector<288x64xf32>, vector<2x64xf32> -> vector<2x64xf32>
    %c0_3 = arith.constant 0 : index
    %c0_4 = arith.constant 0 : index
    %3 = vector.load %arg3[%c0_3, %c0_4] : memref<1x64xf32, #tpu.memory_space<vmem>>, vector<1x64xf32>
    %4 = vector.broadcast %3 : vector<1x64xf32> to vector<2x64xf32>
    %5 = arith.mulf %2, %4 : vector<2x64xf32>
    %c0_5 = arith.constant 0 : index
    %c0_6 = arith.constant 0 : index
    %6 = vector.load %arg4[%c0_5, %c0_6] : memref<1x64xf32, #tpu.memory_space<vmem>>, vector<1x64xf32>
    %7 = vector.broadcast %6 : vector<1x64xf32> to vector<2x64xf32>
    %8 = arith.addf %5, %7 : vector<2x64xf32>
    %cst_7 = arith.constant 0.000000e+00 : f32
    %9 = vector.broadcast %cst_7 : f32 to vector<2x64xf32>
    %10 = arith.maximumf %8, %9 : vector<2x64xf32>
    %c0_8 = arith.constant 0 : index
    %c0_9 = arith.constant 0 : index
    %11 = vector.load %arg5[%c0_8, %c0_9] : memref<2x64xf32, #tpu.memory_space<vmem>>, vector<2x64xf32>
    tpu.vector_store %arg5[%c0_8, %c0_9], %10 {strides = array<i32>} : memref<2x64xf32, #tpu.memory_space<vmem>>, vector<2x64xf32>,
    return
  }
  func.func @transform_0(%arg0: i32) -> (i32, i32) {
    %c0_i32 = arith.constant 0 : i32
    %c0_i32_0 = arith.constant 0 : i32
    return %arg0, %c0_i32 : i32, i32
  }
  func.func @transform_1(%arg0: i32) -> (i32, i32) {
    %c0_i32 = arith.constant 0 : i32
    %c0_i32_0 = arith.constant 0 : i32
    %c0_i32_1 = arith.constant 0 : i32
    return %c0_i32, %c0_i32_0 : i32, i32
  }
  func.func @transform_2(%arg0: i32) -> (i32, i32) {
    %c0_i32 = arith.constant 0 : i32
    %c0_i32_0 = arith.constant 0 : i32
    %c0_i32_1 = arith.constant 0 : i32
    return %c0_i32, %c0_i32_0 : i32, i32
  }
  func.func @transform_3(%arg0: i32) -> (i32, i32) {
    %c0_i32 = arith.constant 0 : i32
    %c0_i32_0 = arith.constant 0 : i32
    %c0_i32_1 = arith.constant 0 : i32
    return %c0_i32, %c0_i32_0 : i32, i32
  }
  func.func @transform_4(%arg0: i32) -> (i32, i32) {
    %c0_i32 = arith.constant 0 : i32
    %c0_i32_0 = arith.constant 0 : i32
    return %arg0, %c0_i32 : i32, i32
  }
}

module attributes {stable_mosaic.version = 11 : i64} {
  func.func @_matmul_affine_kernel(%arg0: i32, %arg1: memref<2x576xf32, #tpu.memory_space<vmem>>, %arg2: memref<576x64xf32, #tpu.memory_space<vmem>>, %arg3: memref<1x64xf32, #tpu.memory_space<vmem>>, %arg4: memref<1x64xf32, #tpu.memory_space<vmem>>, %arg5: memref<2x64xf32, #tpu.memory_space<vmem>>) attributes {dimension_semantics = [#tpu.dimension_semantics<parallel>], iteration_bounds = array<i64: 1>, scalar_prefetch = 0 : i64, scratch_operands = 0 : i64, tpu.core_type = #tpu.core_type<tc>, window_params = [{transform_indices = @transform_0, window_bounds = array<i64: 2, 576>}, {pipeline_mode = #tpu.pipeline_mode<synchronous>, transform_indices = @transform_1, window_bounds = array<i64: 576, 64>}, {pipeline_mode = #tpu.pipeline_mode<synchronous>, transform_indices = @transform_2, window_bounds = array<i64: 1, 64>}, {pipeline_mode = #tpu.pipeline_mode<synchronous>, transform_indices = @transform_3, window_bounds = array<i64: 1, 64>}, {transform_indices = @transform_4, window_bounds = array<i64: 2, 64>}]} {
    %c0 = arith.constant 0 : index
    %c0_0 = arith.constant 0 : index
    %0 = vector.load %arg1[%c0, %c0_0] : memref<2x576xf32, #tpu.memory_space<vmem>>, vector<2x576xf32>
    %c0_1 = arith.constant 0 : index
    %c0_2 = arith.constant 0 : index
    %1 = vector.load %arg2[%c0_1, %c0_2] : memref<576x64xf32, #tpu.memory_space<vmem>>, vector<576x64xf32>
    %cst = arith.constant dense<0.000000e+00> : vector<2x64xf32>
    %2 = tpu.matmul %0, %1, %cst {dimension_numbers = #tpu.dot_dimension_numbers<[1], [0], [0], [1], [0, 0, 1, 1], [], []>} : vector<2x576xf32>, vector<576x64xf32>, vector<2x64xf32> -> vector<2x64xf32>
    %c0_3 = arith.constant 0 : index
    %c0_4 = arith.constant 0 : index
    %3 = vector.load %arg3[%c0_3, %c0_4] : memref<1x64xf32, #tpu.memory_space<vmem>>, vector<1x64xf32>
    %4 = vector.broadcast %3 : vector<1x64xf32> to vector<2x64xf32>
    %5 = arith.mulf %2, %4 : vector<2x64xf32>
    %c0_5 = arith.constant 0 : index
    %c0_6 = arith.constant 0 : index
    %6 = vector.load %arg4[%c0_5, %c0_6] : memref<1x64xf32, #tpu.memory_space<vmem>>, vector<1x64xf32>
    %7 = vector.broadcast %6 : vector<1x64xf32> to vector<2x64xf32>
    %8 = arith.addf %5, %7 : vector<2x64xf32>
    %cst_7 = arith.constant 0.000000e+00 : f32
    %9 = vector.broadcast %cst_7 : f32 to vector<2x64xf32>
    %10 = arith.maximumf %8, %9 : vector<2x64xf32>
    %c0_8 = arith.constant 0 : index
    %c0_9 = arith.constant 0 : index
    %11 = vector.load %arg5[%c0_8, %c0_9] : memref<2x64xf32, #tpu.memory_space<vmem>>, vector<2x64xf32>
    tpu.vector_store %arg5[%c0_8, %c0_9], %10 {strides = array<i32>} : memref<2x64xf32, #tpu.memory_space<vmem>>, vector<2x64xf32>,
    return
  }
  func.func @transform_0(%arg0: i32) -> (i32, i32) {
    %c0_i32 = arith.constant 0 : i32
    %c0_i32_0 = arith.constant 0 : i32
    return %arg0, %c0_i32 : i32, i32
  }
  func.func @transform_1(%arg0: i32) -> (i32, i32) {
    %c0_i32 = arith.constant 0 : i32
    %c0_i32_0 = arith.constant 0 : i32
    %c0_i32_1 = arith.constant 0 : i32
    return %c0_i32, %c0_i32_0 : i32, i32
  }
  func.func @transform_2(%arg0: i32) -> (i32, i32) {
    %c0_i32 = arith.constant 0 : i32
    %c0_i32_0 = arith.constant 0 : i32
    %c0_i32_1 = arith.constant 0 : i32
    return %c0_i32, %c0_i32_0 : i32, i32
  }
  func.func @transform_3(%arg0: i32) -> (i32, i32) {
    %c0_i32 = arith.constant 0 : i32
    %c0_i32_0 = arith.constant 0 : i32
    %c0_i32_1 = arith.constant 0 : i32
    return %c0_i32, %c0_i32_0 : i32, i32
  }
  func.func @transform_4(%arg0: i32) -> (i32, i32) {
    %c0_i32 = arith.constant 0 : i32
    %c0_i32_0 = arith.constant 0 : i32
    return %arg0, %c0_i32 : i32, i32
  }
}

module attributes {stable_mosaic.version = 11 : i64} {
  func.func @_matmul_affine_kernel(%arg0: i32, %arg1: memref<2x64xf32, #tpu.memory_space<vmem>>, %arg2: memref<64x128xf32, #tpu.memory_space<vmem>>, %arg3: memref<1x128xf32, #tpu.memory_space<vmem>>, %arg4: memref<1x128xf32, #tpu.memory_space<vmem>>, %arg5: memref<2x128xf32, #tpu.memory_space<vmem>>) attributes {dimension_semantics = [#tpu.dimension_semantics<parallel>], iteration_bounds = array<i64: 1>, scalar_prefetch = 0 : i64, scratch_operands = 0 : i64, tpu.core_type = #tpu.core_type<tc>, window_params = [{transform_indices = @transform_0, window_bounds = array<i64: 2, 64>}, {pipeline_mode = #tpu.pipeline_mode<synchronous>, transform_indices = @transform_1, window_bounds = array<i64: 64, 128>}, {pipeline_mode = #tpu.pipeline_mode<synchronous>, transform_indices = @transform_2, window_bounds = array<i64: 1, 128>}, {pipeline_mode = #tpu.pipeline_mode<synchronous>, transform_indices = @transform_3, window_bounds = array<i64: 1, 128>}, {transform_indices = @transform_4, window_bounds = array<i64: 2, 128>}]} {
    %c0 = arith.constant 0 : index
    %c0_0 = arith.constant 0 : index
    %0 = vector.load %arg1[%c0, %c0_0] : memref<2x64xf32, #tpu.memory_space<vmem>>, vector<2x64xf32>
    %c0_1 = arith.constant 0 : index
    %c0_2 = arith.constant 0 : index
    %1 = vector.load %arg2[%c0_1, %c0_2] : memref<64x128xf32, #tpu.memory_space<vmem>>, vector<64x128xf32>
    %cst = arith.constant dense<0.000000e+00> : vector<2x128xf32>
    %2 = tpu.matmul %0, %1, %cst {dimension_numbers = #tpu.dot_dimension_numbers<[1], [0], [0], [1], [0, 0, 1, 1], [], []>} : vector<2x64xf32>, vector<64x128xf32>, vector<2x128xf32> -> vector<2x128xf32>
    %c0_3 = arith.constant 0 : index
    %c0_4 = arith.constant 0 : index
    %3 = vector.load %arg3[%c0_3, %c0_4] : memref<1x128xf32, #tpu.memory_space<vmem>>, vector<1x128xf32>
    %4 = vector.broadcast %3 : vector<1x128xf32> to vector<2x128xf32>
    %5 = arith.mulf %2, %4 : vector<2x128xf32>
    %c0_5 = arith.constant 0 : index
    %c0_6 = arith.constant 0 : index
    %6 = vector.load %arg4[%c0_5, %c0_6] : memref<1x128xf32, #tpu.memory_space<vmem>>, vector<1x128xf32>
    %7 = vector.broadcast %6 : vector<1x128xf32> to vector<2x128xf32>
    %8 = arith.addf %5, %7 : vector<2x128xf32>
    %c0_7 = arith.constant 0 : index
    %c0_8 = arith.constant 0 : index
    %9 = vector.load %arg5[%c0_7, %c0_8] : memref<2x128xf32, #tpu.memory_space<vmem>>, vector<2x128xf32>
    tpu.vector_store %arg5[%c0_7, %c0_8], %8 {strides = array<i32>} : memref<2x128xf32, #tpu.memory_space<vmem>>, vector<2x128xf32>,
    return
  }
  func.func @transform_0(%arg0: i32) -> (i32, i32) {
    %c0_i32 = arith.constant 0 : i32
    %c0_i32_0 = arith.constant 0 : i32
    return %arg0, %c0_i32 : i32, i32
  }
  func.func @transform_1(%arg0: i32) -> (i32, i32) {
    %c0_i32 = arith.constant 0 : i32
    %c0_i32_0 = arith.constant 0 : i32
    %c0_i32_1 = arith.constant 0 : i32
    return %c0_i32, %c0_i32_0 : i32, i32
  }
  func.func @transform_2(%arg0: i32) -> (i32, i32) {
    %c0_i32 = arith.constant 0 : i32
    %c0_i32_0 = arith.constant 0 : i32
    %c0_i32_1 = arith.constant 0 : i32
    return %c0_i32, %c0_i32_0 : i32, i32
  }
  func.func @transform_3(%arg0: i32) -> (i32, i32) {
    %c0_i32 = arith.constant 0 : i32
    %c0_i32_0 = arith.constant 0 : i32
    %c0_i32_1 = arith.constant 0 : i32
    return %c0_i32, %c0_i32_0 : i32, i32
  }
  func.func @transform_4(%arg0: i32) -> (i32, i32) {
    %c0_i32 = arith.constant 0 : i32
    %c0_i32_0 = arith.constant 0 : i32
    return %arg0, %c0_i32 : i32, i32
  }
}

module attributes {stable_mosaic.version = 11 : i64} {
  func.func @_matmul_affine_kernel(%arg0: i32, %arg1: memref<8x576xf32, #tpu.memory_space<vmem>>, %arg2: memref<576x32xf32, #tpu.memory_space<vmem>>, %arg3: memref<1x32xf32, #tpu.memory_space<vmem>>, %arg4: memref<1x32xf32, #tpu.memory_space<vmem>>, %arg5: memref<8x32xf32, #tpu.memory_space<vmem>>) attributes {dimension_semantics = [#tpu.dimension_semantics<parallel>], iteration_bounds = array<i64: 1>, scalar_prefetch = 0 : i64, scratch_operands = 0 : i64, tpu.core_type = #tpu.core_type<tc>, window_params = [{transform_indices = @transform_0, window_bounds = array<i64: 8, 576>}, {pipeline_mode = #tpu.pipeline_mode<synchronous>, transform_indices = @transform_1, window_bounds = array<i64: 576, 32>}, {pipeline_mode = #tpu.pipeline_mode<synchronous>, transform_indices = @transform_2, window_bounds = array<i64: 1, 32>}, {pipeline_mode = #tpu.pipeline_mode<synchronous>, transform_indices = @transform_3, window_bounds = array<i64: 1, 32>}, {transform_indices = @transform_4, window_bounds = array<i64: 8, 32>}]} {
    %c0 = arith.constant 0 : index
    %c0_0 = arith.constant 0 : index
    %0 = vector.load %arg1[%c0, %c0_0] : memref<8x576xf32, #tpu.memory_space<vmem>>, vector<8x576xf32>
    %c0_1 = arith.constant 0 : index
    %c0_2 = arith.constant 0 : index
    %1 = vector.load %arg2[%c0_1, %c0_2] : memref<576x32xf32, #tpu.memory_space<vmem>>, vector<576x32xf32>
    %cst = arith.constant dense<0.000000e+00> : vector<8x32xf32>
    %2 = tpu.matmul %0, %1, %cst {dimension_numbers = #tpu.dot_dimension_numbers<[1], [0], [0], [1], [0, 0, 1, 1], [], []>} : vector<8x576xf32>, vector<576x32xf32>, vector<8x32xf32> -> vector<8x32xf32>
    %c0_3 = arith.constant 0 : index
    %c0_4 = arith.constant 0 : index
    %3 = vector.load %arg3[%c0_3, %c0_4] : memref<1x32xf32, #tpu.memory_space<vmem>>, vector<1x32xf32>
    %4 = vector.broadcast %3 : vector<1x32xf32> to vector<8x32xf32>
    %5 = arith.mulf %2, %4 : vector<8x32xf32>
    %c0_5 = arith.constant 0 : index
    %c0_6 = arith.constant 0 : index
    %6 = vector.load %arg4[%c0_5, %c0_6] : memref<1x32xf32, #tpu.memory_space<vmem>>, vector<1x32xf32>
    %7 = vector.broadcast %6 : vector<1x32xf32> to vector<8x32xf32>
    %8 = arith.addf %5, %7 : vector<8x32xf32>
    %cst_7 = arith.constant 0.000000e+00 : f32
    %9 = vector.broadcast %cst_7 : f32 to vector<8x32xf32>
    %10 = arith.maximumf %8, %9 : vector<8x32xf32>
    %c0_8 = arith.constant 0 : index
    %c0_9 = arith.constant 0 : index
    %11 = vector.load %arg5[%c0_8, %c0_9] : memref<8x32xf32, #tpu.memory_space<vmem>>, vector<8x32xf32>
    tpu.vector_store %arg5[%c0_8, %c0_9], %10 {strides = array<i32>} : memref<8x32xf32, #tpu.memory_space<vmem>>, vector<8x32xf32>,
    return
  }
  func.func @transform_0(%arg0: i32) -> (i32, i32) {
    %c0_i32 = arith.constant 0 : i32
    %c0_i32_0 = arith.constant 0 : i32
    return %arg0, %c0_i32 : i32, i32
  }
  func.func @transform_1(%arg0: i32) -> (i32, i32) {
    %c0_i32 = arith.constant 0 : i32
    %c0_i32_0 = arith.constant 0 : i32
    %c0_i32_1 = arith.constant 0 : i32
    return %c0_i32, %c0_i32_0 : i32, i32
  }
  func.func @transform_2(%arg0: i32) -> (i32, i32) {
    %c0_i32 = arith.constant 0 : i32
    %c0_i32_0 = arith.constant 0 : i32
    %c0_i32_1 = arith.constant 0 : i32
    return %c0_i32, %c0_i32_0 : i32, i32
  }
  func.func @transform_3(%arg0: i32) -> (i32, i32) {
    %c0_i32 = arith.constant 0 : i32
    %c0_i32_0 = arith.constant 0 : i32
    %c0_i32_1 = arith.constant 0 : i32
    return %c0_i32, %c0_i32_0 : i32, i32
  }
  func.func @transform_4(%arg0: i32) -> (i32, i32) {
    %c0_i32 = arith.constant 0 : i32
    %c0_i32_0 = arith.constant 0 : i32
    return %arg0, %c0_i32 : i32, i32
  }
}

module attributes {stable_mosaic.version = 11 : i64} {
  func.func @_matmul_affine_kernel(%arg0: i32, %arg1: memref<8x32xf32, #tpu.memory_space<vmem>>, %arg2: memref<32x64xf32, #tpu.memory_space<vmem>>, %arg3: memref<1x64xf32, #tpu.memory_space<vmem>>, %arg4: memref<1x64xf32, #tpu.memory_space<vmem>>, %arg5: memref<8x64xf32, #tpu.memory_space<vmem>>) attributes {dimension_semantics = [#tpu.dimension_semantics<parallel>], iteration_bounds = array<i64: 1>, scalar_prefetch = 0 : i64, scratch_operands = 0 : i64, tpu.core_type = #tpu.core_type<tc>, window_params = [{transform_indices = @transform_0, window_bounds = array<i64: 8, 32>}, {pipeline_mode = #tpu.pipeline_mode<synchronous>, transform_indices = @transform_1, window_bounds = array<i64: 32, 64>}, {pipeline_mode = #tpu.pipeline_mode<synchronous>, transform_indices = @transform_2, window_bounds = array<i64: 1, 64>}, {pipeline_mode = #tpu.pipeline_mode<synchronous>, transform_indices = @transform_3, window_bounds = array<i64: 1, 64>}, {transform_indices = @transform_4, window_bounds = array<i64: 8, 64>}]} {
    %c0 = arith.constant 0 : index
    %c0_0 = arith.constant 0 : index
    %0 = vector.load %arg1[%c0, %c0_0] : memref<8x32xf32, #tpu.memory_space<vmem>>, vector<8x32xf32>
    %c0_1 = arith.constant 0 : index
    %c0_2 = arith.constant 0 : index
    %1 = vector.load %arg2[%c0_1, %c0_2] : memref<32x64xf32, #tpu.memory_space<vmem>>, vector<32x64xf32>
    %cst = arith.constant dense<0.000000e+00> : vector<8x64xf32>
    %2 = tpu.matmul %0, %1, %cst {dimension_numbers = #tpu.dot_dimension_numbers<[1], [0], [0], [1], [0, 0, 1, 1], [], []>} : vector<8x32xf32>, vector<32x64xf32>, vector<8x64xf32> -> vector<8x64xf32>
    %c0_3 = arith.constant 0 : index
    %c0_4 = arith.constant 0 : index
    %3 = vector.load %arg3[%c0_3, %c0_4] : memref<1x64xf32, #tpu.memory_space<vmem>>, vector<1x64xf32>
    %4 = vector.broadcast %3 : vector<1x64xf32> to vector<8x64xf32>
    %5 = arith.mulf %2, %4 : vector<8x64xf32>
    %c0_5 = arith.constant 0 : index
    %c0_6 = arith.constant 0 : index
    %6 = vector.load %arg4[%c0_5, %c0_6] : memref<1x64xf32, #tpu.memory_space<vmem>>, vector<1x64xf32>
    %7 = vector.broadcast %6 : vector<1x64xf32> to vector<8x64xf32>
    %8 = arith.addf %5, %7 : vector<8x64xf32>
    %c0_7 = arith.constant 0 : index
    %c0_8 = arith.constant 0 : index
    %9 = vector.load %arg5[%c0_7, %c0_8] : memref<8x64xf32, #tpu.memory_space<vmem>>, vector<8x64xf32>
    tpu.vector_store %arg5[%c0_7, %c0_8], %8 {strides = array<i32>} : memref<8x64xf32, #tpu.memory_space<vmem>>, vector<8x64xf32>,
    return
  }
  func.func @transform_0(%arg0: i32) -> (i32, i32) {
    %c0_i32 = arith.constant 0 : i32
    %c0_i32_0 = arith.constant 0 : i32
    return %arg0, %c0_i32 : i32, i32
  }
  func.func @transform_1(%arg0: i32) -> (i32, i32) {
    %c0_i32 = arith.constant 0 : i32
    %c0_i32_0 = arith.constant 0 : i32
    %c0_i32_1 = arith.constant 0 : i32
    return %c0_i32, %c0_i32_0 : i32, i32
  }
  func.func @transform_2(%arg0: i32) -> (i32, i32) {
    %c0_i32 = arith.constant 0 : i32
    %c0_i32_0 = arith.constant 0 : i32
    %c0_i32_1 = arith.constant 0 : i32
    return %c0_i32, %c0_i32_0 : i32, i32
  }
  func.func @transform_3(%arg0: i32) -> (i32, i32) {
    %c0_i32 = arith.constant 0 : i32
    %c0_i32_0 = arith.constant 0 : i32
    %c0_i32_1 = arith.constant 0 : i32
    return %c0_i32, %c0_i32_0 : i32, i32
  }
  func.func @transform_4(%arg0: i32) -> (i32, i32) {
    %c0_i32 = arith.constant 0 : i32
    %c0_i32_0 = arith.constant 0 : i32
    return %arg0, %c0_i32 : i32, i32
  }
}

module attributes {stable_mosaic.version = 11 : i64} {
  func.func @_matmul_affine_kernel(%arg0: i32, %arg1: memref<32x288xf32, #tpu.memory_space<vmem>>, %arg2: memref<288x16xf32, #tpu.memory_space<vmem>>, %arg3: memref<1x16xf32, #tpu.memory_space<vmem>>, %arg4: memref<1x16xf32, #tpu.memory_space<vmem>>, %arg5: memref<32x16xf32, #tpu.memory_space<vmem>>) attributes {dimension_semantics = [#tpu.dimension_semantics<parallel>], iteration_bounds = array<i64: 1>, scalar_prefetch = 0 : i64, scratch_operands = 0 : i64, tpu.core_type = #tpu.core_type<tc>, window_params = [{transform_indices = @transform_0, window_bounds = array<i64: 32, 288>}, {pipeline_mode = #tpu.pipeline_mode<synchronous>, transform_indices = @transform_1, window_bounds = array<i64: 288, 16>}, {pipeline_mode = #tpu.pipeline_mode<synchronous>, transform_indices = @transform_2, window_bounds = array<i64: 1, 16>}, {pipeline_mode = #tpu.pipeline_mode<synchronous>, transform_indices = @transform_3, window_bounds = array<i64: 1, 16>}, {transform_indices = @transform_4, window_bounds = array<i64: 32, 16>}]} {
    %c0 = arith.constant 0 : index
    %c0_0 = arith.constant 0 : index
    %0 = vector.load %arg1[%c0, %c0_0] : memref<32x288xf32, #tpu.memory_space<vmem>>, vector<32x288xf32>
    %c0_1 = arith.constant 0 : index
    %c0_2 = arith.constant 0 : index
    %1 = vector.load %arg2[%c0_1, %c0_2] : memref<288x16xf32, #tpu.memory_space<vmem>>, vector<288x16xf32>
    %cst = arith.constant dense<0.000000e+00> : vector<32x16xf32>
    %2 = tpu.matmul %0, %1, %cst {dimension_numbers = #tpu.dot_dimension_numbers<[1], [0], [0], [1], [0, 0, 1, 1], [], []>} : vector<32x288xf32>, vector<288x16xf32>, vector<32x16xf32> -> vector<32x16xf32>
    %c0_3 = arith.constant 0 : index
    %c0_4 = arith.constant 0 : index
    %3 = vector.load %arg3[%c0_3, %c0_4] : memref<1x16xf32, #tpu.memory_space<vmem>>, vector<1x16xf32>
    %4 = vector.broadcast %3 : vector<1x16xf32> to vector<32x16xf32>
    %5 = arith.mulf %2, %4 : vector<32x16xf32>
    %c0_5 = arith.constant 0 : index
    %c0_6 = arith.constant 0 : index
    %6 = vector.load %arg4[%c0_5, %c0_6] : memref<1x16xf32, #tpu.memory_space<vmem>>, vector<1x16xf32>
    %7 = vector.broadcast %6 : vector<1x16xf32> to vector<32x16xf32>
    %8 = arith.addf %5, %7 : vector<32x16xf32>
    %cst_7 = arith.constant 0.000000e+00 : f32
    %9 = vector.broadcast %cst_7 : f32 to vector<32x16xf32>
    %10 = arith.maximumf %8, %9 : vector<32x16xf32>
    %c0_8 = arith.constant 0 : index
    %c0_9 = arith.constant 0 : index
    %11 = vector.load %arg5[%c0_8, %c0_9] : memref<32x16xf32, #tpu.memory_space<vmem>>, vector<32x16xf32>
    tpu.vector_store %arg5[%c0_8, %c0_9], %10 {strides = array<i32>} : memref<32x16xf32, #tpu.memory_space<vmem>>, vector<32x16xf32>,
    return
  }
  func.func @transform_0(%arg0: i32) -> (i32, i32) {
    %c0_i32 = arith.constant 0 : i32
    %c0_i32_0 = arith.constant 0 : i32
    return %arg0, %c0_i32 : i32, i32
  }
  func.func @transform_1(%arg0: i32) -> (i32, i32) {
    %c0_i32 = arith.constant 0 : i32
    %c0_i32_0 = arith.constant 0 : i32
    %c0_i32_1 = arith.constant 0 : i32
    return %c0_i32, %c0_i32_0 : i32, i32
  }
  func.func @transform_2(%arg0: i32) -> (i32, i32) {
    %c0_i32 = arith.constant 0 : i32
    %c0_i32_0 = arith.constant 0 : i32
    %c0_i32_1 = arith.constant 0 : i32
    return %c0_i32, %c0_i32_0 : i32, i32
  }
  func.func @transform_3(%arg0: i32) -> (i32, i32) {
    %c0_i32 = arith.constant 0 : i32
    %c0_i32_0 = arith.constant 0 : i32
    %c0_i32_1 = arith.constant 0 : i32
    return %c0_i32, %c0_i32_0 : i32, i32
  }
  func.func @transform_4(%arg0: i32) -> (i32, i32) {
    %c0_i32 = arith.constant 0 : i32
    %c0_i32_0 = arith.constant 0 : i32
    return %arg0, %c0_i32 : i32, i32
  }
}

module attributes {stable_mosaic.version = 11 : i64} {
  func.func @_matmul_affine_kernel(%arg0: i32, %arg1: memref<32x16xf32, #tpu.memory_space<vmem>>, %arg2: memref<16x32xf32, #tpu.memory_space<vmem>>, %arg3: memref<1x32xf32, #tpu.memory_space<vmem>>, %arg4: memref<1x32xf32, #tpu.memory_space<vmem>>, %arg5: memref<32x32xf32, #tpu.memory_space<vmem>>) attributes {dimension_semantics = [#tpu.dimension_semantics<parallel>], iteration_bounds = array<i64: 1>, scalar_prefetch = 0 : i64, scratch_operands = 0 : i64, tpu.core_type = #tpu.core_type<tc>, window_params = [{transform_indices = @transform_0, window_bounds = array<i64: 32, 16>}, {pipeline_mode = #tpu.pipeline_mode<synchronous>, transform_indices = @transform_1, window_bounds = array<i64: 16, 32>}, {pipeline_mode = #tpu.pipeline_mode<synchronous>, transform_indices = @transform_2, window_bounds = array<i64: 1, 32>}, {pipeline_mode = #tpu.pipeline_mode<synchronous>, transform_indices = @transform_3, window_bounds = array<i64: 1, 32>}, {transform_indices = @transform_4, window_bounds = array<i64: 32, 32>}]} {
    %c0 = arith.constant 0 : index
    %c0_0 = arith.constant 0 : index
    %0 = vector.load %arg1[%c0, %c0_0] : memref<32x16xf32, #tpu.memory_space<vmem>>, vector<32x16xf32>
    %c0_1 = arith.constant 0 : index
    %c0_2 = arith.constant 0 : index
    %1 = vector.load %arg2[%c0_1, %c0_2] : memref<16x32xf32, #tpu.memory_space<vmem>>, vector<16x32xf32>
    %cst = arith.constant dense<0.000000e+00> : vector<32x32xf32>
    %2 = tpu.matmul %0, %1, %cst {dimension_numbers = #tpu.dot_dimension_numbers<[1], [0], [0], [1], [0, 0, 1, 1], [], []>} : vector<32x16xf32>, vector<16x32xf32>, vector<32x32xf32> -> vector<32x32xf32>
    %c0_3 = arith.constant 0 : index
    %c0_4 = arith.constant 0 : index
    %3 = vector.load %arg3[%c0_3, %c0_4] : memref<1x32xf32, #tpu.memory_space<vmem>>, vector<1x32xf32>
    %4 = vector.broadcast %3 : vector<1x32xf32> to vector<32x32xf32>
    %5 = arith.mulf %2, %4 : vector<32x32xf32>
    %c0_5 = arith.constant 0 : index
    %c0_6 = arith.constant 0 : index
    %6 = vector.load %arg4[%c0_5, %c0_6] : memref<1x32xf32, #tpu.memory_space<vmem>>, vector<1x32xf32>
    %7 = vector.broadcast %6 : vector<1x32xf32> to vector<32x32xf32>
    %8 = arith.addf %5, %7 : vector<32x32xf32>
    %c0_7 = arith.constant 0 : index
    %c0_8 = arith.constant 0 : index
    %9 = vector.load %arg5[%c0_7, %c0_8] : memref<32x32xf32, #tpu.memory_space<vmem>>, vector<32x32xf32>
    tpu.vector_store %arg5[%c0_7, %c0_8], %8 {strides = array<i32>} : memref<32x32xf32, #tpu.memory_space<vmem>>, vector<32x32xf32>,
    return
  }
  func.func @transform_0(%arg0: i32) -> (i32, i32) {
    %c0_i32 = arith.constant 0 : i32
    %c0_i32_0 = arith.constant 0 : i32
    return %arg0, %c0_i32 : i32, i32
  }
  func.func @transform_1(%arg0: i32) -> (i32, i32) {
    %c0_i32 = arith.constant 0 : i32
    %c0_i32_0 = arith.constant 0 : i32
    %c0_i32_1 = arith.constant 0 : i32
    return %c0_i32, %c0_i32_0 : i32, i32
  }
  func.func @transform_2(%arg0: i32) -> (i32, i32) {
    %c0_i32 = arith.constant 0 : i32
    %c0_i32_0 = arith.constant 0 : i32
    %c0_i32_1 = arith.constant 0 : i32
    return %c0_i32, %c0_i32_0 : i32, i32
  }
  func.func @transform_3(%arg0: i32) -> (i32, i32) {
    %c0_i32 = arith.constant 0 : i32
    %c0_i32_0 = arith.constant 0 : i32
    %c0_i32_1 = arith.constant 0 : i32
    return %c0_i32, %c0_i32_0 : i32, i32
  }
  func.func @transform_4(%arg0: i32) -> (i32, i32) {
    %c0_i32 = arith.constant 0 : i32
    %c0_i32_0 = arith.constant 0 : i32
    return %arg0, %c0_i32 : i32, i32
  }
}

module attributes {stable_mosaic.version = 11 : i64} {
  func.func @_matmul_affine_kernel(%arg0: i32, %arg1: memref<128x144xf32, #tpu.memory_space<vmem>>, %arg2: memref<144x8xf32, #tpu.memory_space<vmem>>, %arg3: memref<1x8xf32, #tpu.memory_space<vmem>>, %arg4: memref<1x8xf32, #tpu.memory_space<vmem>>, %arg5: memref<128x8xf32, #tpu.memory_space<vmem>>) attributes {dimension_semantics = [#tpu.dimension_semantics<parallel>], iteration_bounds = array<i64: 1>, scalar_prefetch = 0 : i64, scratch_operands = 0 : i64, tpu.core_type = #tpu.core_type<tc>, window_params = [{transform_indices = @transform_0, window_bounds = array<i64: 128, 144>}, {pipeline_mode = #tpu.pipeline_mode<synchronous>, transform_indices = @transform_1, window_bounds = array<i64: 144, 8>}, {pipeline_mode = #tpu.pipeline_mode<synchronous>, transform_indices = @transform_2, window_bounds = array<i64: 1, 8>}, {pipeline_mode = #tpu.pipeline_mode<synchronous>, transform_indices = @transform_3, window_bounds = array<i64: 1, 8>}, {transform_indices = @transform_4, window_bounds = array<i64: 128, 8>}]} {
    %c0 = arith.constant 0 : index
    %c0_0 = arith.constant 0 : index
    %0 = vector.load %arg1[%c0, %c0_0] : memref<128x144xf32, #tpu.memory_space<vmem>>, vector<128x144xf32>
    %c0_1 = arith.constant 0 : index
    %c0_2 = arith.constant 0 : index
    %1 = vector.load %arg2[%c0_1, %c0_2] : memref<144x8xf32, #tpu.memory_space<vmem>>, vector<144x8xf32>
    %cst = arith.constant dense<0.000000e+00> : vector<128x8xf32>
    %2 = tpu.matmul %0, %1, %cst {dimension_numbers = #tpu.dot_dimension_numbers<[1], [0], [0], [1], [0, 0, 1, 1], [], []>} : vector<128x144xf32>, vector<144x8xf32>, vector<128x8xf32> -> vector<128x8xf32>
    %c0_3 = arith.constant 0 : index
    %c0_4 = arith.constant 0 : index
    %3 = vector.load %arg3[%c0_3, %c0_4] : memref<1x8xf32, #tpu.memory_space<vmem>>, vector<1x8xf32>
    %4 = vector.broadcast %3 : vector<1x8xf32> to vector<128x8xf32>
    %5 = arith.mulf %2, %4 : vector<128x8xf32>
    %c0_5 = arith.constant 0 : index
    %c0_6 = arith.constant 0 : index
    %6 = vector.load %arg4[%c0_5, %c0_6] : memref<1x8xf32, #tpu.memory_space<vmem>>, vector<1x8xf32>
    %7 = vector.broadcast %6 : vector<1x8xf32> to vector<128x8xf32>
    %8 = arith.addf %5, %7 : vector<128x8xf32>
    %cst_7 = arith.constant 0.000000e+00 : f32
    %9 = vector.broadcast %cst_7 : f32 to vector<128x8xf32>
    %10 = arith.maximumf %8, %9 : vector<128x8xf32>
    %c0_8 = arith.constant 0 : index
    %c0_9 = arith.constant 0 : index
    %11 = vector.load %arg5[%c0_8, %c0_9] : memref<128x8xf32, #tpu.memory_space<vmem>>, vector<128x8xf32>
    tpu.vector_store %arg5[%c0_8, %c0_9], %10 {strides = array<i32>} : memref<128x8xf32, #tpu.memory_space<vmem>>, vector<128x8xf32>,
    return
  }
  func.func @transform_0(%arg0: i32) -> (i32, i32) {
    %c0_i32 = arith.constant 0 : i32
    %c0_i32_0 = arith.constant 0 : i32
    return %arg0, %c0_i32 : i32, i32
  }
  func.func @transform_1(%arg0: i32) -> (i32, i32) {
    %c0_i32 = arith.constant 0 : i32
    %c0_i32_0 = arith.constant 0 : i32
    %c0_i32_1 = arith.constant 0 : i32
    return %c0_i32, %c0_i32_0 : i32, i32
  }
  func.func @transform_2(%arg0: i32) -> (i32, i32) {
    %c0_i32 = arith.constant 0 : i32
    %c0_i32_0 = arith.constant 0 : i32
    %c0_i32_1 = arith.constant 0 : i32
    return %c0_i32, %c0_i32_0 : i32, i32
  }
  func.func @transform_3(%arg0: i32) -> (i32, i32) {
    %c0_i32 = arith.constant 0 : i32
    %c0_i32_0 = arith.constant 0 : i32
    %c0_i32_1 = arith.constant 0 : i32
    return %c0_i32, %c0_i32_0 : i32, i32
  }
  func.func @transform_4(%arg0: i32) -> (i32, i32) {
    %c0_i32 = arith.constant 0 : i32
    %c0_i32_0 = arith.constant 0 : i32
    return %arg0, %c0_i32 : i32, i32
  }
}

module attributes {stable_mosaic.version = 11 : i64} {
  func.func @_matmul_affine_kernel(%arg0: i32, %arg1: memref<128x8xf32, #tpu.memory_space<vmem>>, %arg2: memref<8x16xf32, #tpu.memory_space<vmem>>, %arg3: memref<1x16xf32, #tpu.memory_space<vmem>>, %arg4: memref<1x16xf32, #tpu.memory_space<vmem>>, %arg5: memref<128x16xf32, #tpu.memory_space<vmem>>) attributes {dimension_semantics = [#tpu.dimension_semantics<parallel>], iteration_bounds = array<i64: 1>, scalar_prefetch = 0 : i64, scratch_operands = 0 : i64, tpu.core_type = #tpu.core_type<tc>, window_params = [{transform_indices = @transform_0, window_bounds = array<i64: 128, 8>}, {pipeline_mode = #tpu.pipeline_mode<synchronous>, transform_indices = @transform_1, window_bounds = array<i64: 8, 16>}, {pipeline_mode = #tpu.pipeline_mode<synchronous>, transform_indices = @transform_2, window_bounds = array<i64: 1, 16>}, {pipeline_mode = #tpu.pipeline_mode<synchronous>, transform_indices = @transform_3, window_bounds = array<i64: 1, 16>}, {transform_indices = @transform_4, window_bounds = array<i64: 128, 16>}]} {
    %c0 = arith.constant 0 : index
    %c0_0 = arith.constant 0 : index
    %0 = vector.load %arg1[%c0, %c0_0] : memref<128x8xf32, #tpu.memory_space<vmem>>, vector<128x8xf32>
    %c0_1 = arith.constant 0 : index
    %c0_2 = arith.constant 0 : index
    %1 = vector.load %arg2[%c0_1, %c0_2] : memref<8x16xf32, #tpu.memory_space<vmem>>, vector<8x16xf32>
    %cst = arith.constant dense<0.000000e+00> : vector<128x16xf32>
    %2 = tpu.matmul %0, %1, %cst {dimension_numbers = #tpu.dot_dimension_numbers<[1], [0], [0], [1], [0, 0, 1, 1], [], []>} : vector<128x8xf32>, vector<8x16xf32>, vector<128x16xf32> -> vector<128x16xf32>
    %c0_3 = arith.constant 0 : index
    %c0_4 = arith.constant 0 : index
    %3 = vector.load %arg3[%c0_3, %c0_4] : memref<1x16xf32, #tpu.memory_space<vmem>>, vector<1x16xf32>
    %4 = vector.broadcast %3 : vector<1x16xf32> to vector<128x16xf32>
    %5 = arith.mulf %2, %4 : vector<128x16xf32>
    %c0_5 = arith.constant 0 : index
    %c0_6 = arith.constant 0 : index
    %6 = vector.load %arg4[%c0_5, %c0_6] : memref<1x16xf32, #tpu.memory_space<vmem>>, vector<1x16xf32>
    %7 = vector.broadcast %6 : vector<1x16xf32> to vector<128x16xf32>
    %8 = arith.addf %5, %7 : vector<128x16xf32>
    %c0_7 = arith.constant 0 : index
    %c0_8 = arith.constant 0 : index
    %9 = vector.load %arg5[%c0_7, %c0_8] : memref<128x16xf32, #tpu.memory_space<vmem>>, vector<128x16xf32>
    tpu.vector_store %arg5[%c0_7, %c0_8], %8 {strides = array<i32>} : memref<128x16xf32, #tpu.memory_space<vmem>>, vector<128x16xf32>,
    return
  }
  func.func @transform_0(%arg0: i32) -> (i32, i32) {
    %c0_i32 = arith.constant 0 : i32
    %c0_i32_0 = arith.constant 0 : i32
    return %arg0, %c0_i32 : i32, i32
  }
  func.func @transform_1(%arg0: i32) -> (i32, i32) {
    %c0_i32 = arith.constant 0 : i32
    %c0_i32_0 = arith.constant 0 : i32
    %c0_i32_1 = arith.constant 0 : i32
    return %c0_i32, %c0_i32_0 : i32, i32
  }
  func.func @transform_2(%arg0: i32) -> (i32, i32) {
    %c0_i32 = arith.constant 0 : i32
    %c0_i32_0 = arith.constant 0 : i32
    %c0_i32_1 = arith.constant 0 : i32
    return %c0_i32, %c0_i32_0 : i32, i32
  }
  func.func @transform_3(%arg0: i32) -> (i32, i32) {
    %c0_i32 = arith.constant 0 : i32
    %c0_i32_0 = arith.constant 0 : i32
    %c0_i32_1 = arith.constant 0 : i32
    return %c0_i32, %c0_i32_0 : i32, i32
  }
  func.func @transform_4(%arg0: i32) -> (i32, i32) {
    %c0_i32 = arith.constant 0 : i32
    %c0_i32_0 = arith.constant 0 : i32
    return %arg0, %c0_i32 : i32, i32
  }
}

module attributes {stable_mosaic.version = 11 : i64} {
  func.func @_matmul_affine_kernel(%arg0: i32, %arg1: memref<512x72xf32, #tpu.memory_space<vmem>>, %arg2: memref<72x4xf32, #tpu.memory_space<vmem>>, %arg3: memref<1x4xf32, #tpu.memory_space<vmem>>, %arg4: memref<1x4xf32, #tpu.memory_space<vmem>>, %arg5: memref<512x4xf32, #tpu.memory_space<vmem>>) attributes {dimension_semantics = [#tpu.dimension_semantics<parallel>], iteration_bounds = array<i64: 1>, scalar_prefetch = 0 : i64, scratch_operands = 0 : i64, tpu.core_type = #tpu.core_type<tc>, window_params = [{transform_indices = @transform_0, window_bounds = array<i64: 512, 72>}, {pipeline_mode = #tpu.pipeline_mode<synchronous>, transform_indices = @transform_1, window_bounds = array<i64: 72, 4>}, {pipeline_mode = #tpu.pipeline_mode<synchronous>, transform_indices = @transform_2, window_bounds = array<i64: 1, 4>}, {pipeline_mode = #tpu.pipeline_mode<synchronous>, transform_indices = @transform_3, window_bounds = array<i64: 1, 4>}, {transform_indices = @transform_4, window_bounds = array<i64: 512, 4>}]} {
    %c0 = arith.constant 0 : index
    %c0_0 = arith.constant 0 : index
    %0 = vector.load %arg1[%c0, %c0_0] : memref<512x72xf32, #tpu.memory_space<vmem>>, vector<512x72xf32>
    %c0_1 = arith.constant 0 : index
    %c0_2 = arith.constant 0 : index
    %1 = vector.load %arg2[%c0_1, %c0_2] : memref<72x4xf32, #tpu.memory_space<vmem>>, vector<72x4xf32>
    %cst = arith.constant dense<0.000000e+00> : vector<512x4xf32>
    %2 = tpu.matmul %0, %1, %cst {dimension_numbers = #tpu.dot_dimension_numbers<[1], [0], [0], [1], [0, 0, 1, 1], [], []>} : vector<512x72xf32>, vector<72x4xf32>, vector<512x4xf32> -> vector<512x4xf32>
    %c0_3 = arith.constant 0 : index
    %c0_4 = arith.constant 0 : index
    %3 = vector.load %arg3[%c0_3, %c0_4] : memref<1x4xf32, #tpu.memory_space<vmem>>, vector<1x4xf32>
    %4 = vector.broadcast %3 : vector<1x4xf32> to vector<512x4xf32>
    %5 = arith.mulf %2, %4 : vector<512x4xf32>
    %c0_5 = arith.constant 0 : index
    %c0_6 = arith.constant 0 : index
    %6 = vector.load %arg4[%c0_5, %c0_6] : memref<1x4xf32, #tpu.memory_space<vmem>>, vector<1x4xf32>
    %7 = vector.broadcast %6 : vector<1x4xf32> to vector<512x4xf32>
    %8 = arith.addf %5, %7 : vector<512x4xf32>
    %cst_7 = arith.constant 0.000000e+00 : f32
    %9 = vector.broadcast %cst_7 : f32 to vector<512x4xf32>
    %10 = arith.maximumf %8, %9 : vector<512x4xf32>
    %c0_8 = arith.constant 0 : index
    %c0_9 = arith.constant 0 : index
    %11 = vector.load %arg5[%c0_8, %c0_9] : memref<512x4xf32, #tpu.memory_space<vmem>>, vector<512x4xf32>
    tpu.vector_store %arg5[%c0_8, %c0_9], %10 {strides = array<i32>} : memref<512x4xf32, #tpu.memory_space<vmem>>, vector<512x4xf32>,
    return
  }
  func.func @transform_0(%arg0: i32) -> (i32, i32) {
    %c0_i32 = arith.constant 0 : i32
    %c0_i32_0 = arith.constant 0 : i32
    return %arg0, %c0_i32 : i32, i32
  }
  func.func @transform_1(%arg0: i32) -> (i32, i32) {
    %c0_i32 = arith.constant 0 : i32
    %c0_i32_0 = arith.constant 0 : i32
    %c0_i32_1 = arith.constant 0 : i32
    return %c0_i32, %c0_i32_0 : i32, i32
  }
  func.func @transform_2(%arg0: i32) -> (i32, i32) {
    %c0_i32 = arith.constant 0 : i32
    %c0_i32_0 = arith.constant 0 : i32
    %c0_i32_1 = arith.constant 0 : i32
    return %c0_i32, %c0_i32_0 : i32, i32
  }
  func.func @transform_3(%arg0: i32) -> (i32, i32) {
    %c0_i32 = arith.constant 0 : i32
    %c0_i32_0 = arith.constant 0 : i32
    %c0_i32_1 = arith.constant 0 : i32
    return %c0_i32, %c0_i32_0 : i32, i32
  }
  func.func @transform_4(%arg0: i32) -> (i32, i32) {
    %c0_i32 = arith.constant 0 : i32
    %c0_i32_0 = arith.constant 0 : i32
    return %arg0, %c0_i32 : i32, i32
  }
}

module attributes {stable_mosaic.version = 11 : i64} {
  func.func @_matmul_affine_kernel(%arg0: i32, %arg1: memref<512x4xf32, #tpu.memory_space<vmem>>, %arg2: memref<4x2xf32, #tpu.memory_space<vmem>>, %arg3: memref<1x2xf32, #tpu.memory_space<vmem>>, %arg4: memref<1x2xf32, #tpu.memory_space<vmem>>, %arg5: memref<512x2xf32, #tpu.memory_space<vmem>>) attributes {dimension_semantics = [#tpu.dimension_semantics<parallel>], iteration_bounds = array<i64: 1>, scalar_prefetch = 0 : i64, scratch_operands = 0 : i64, tpu.core_type = #tpu.core_type<tc>, window_params = [{transform_indices = @transform_0, window_bounds = array<i64: 512, 4>}, {pipeline_mode = #tpu.pipeline_mode<synchronous>, transform_indices = @transform_1, window_bounds = array<i64: 4, 2>}, {pipeline_mode = #tpu.pipeline_mode<synchronous>, transform_indices = @transform_2, window_bounds = array<i64: 1, 2>}, {pipeline_mode = #tpu.pipeline_mode<synchronous>, transform_indices = @transform_3, window_bounds = array<i64: 1, 2>}, {transform_indices = @transform_4, window_bounds = array<i64: 512, 2>}]} {
    %c0 = arith.constant 0 : index
    %c0_0 = arith.constant 0 : index
    %0 = vector.load %arg1[%c0, %c0_0] : memref<512x4xf32, #tpu.memory_space<vmem>>, vector<512x4xf32>
    %c0_1 = arith.constant 0 : index
    %c0_2 = arith.constant 0 : index
    %1 = vector.load %arg2[%c0_1, %c0_2] : memref<4x2xf32, #tpu.memory_space<vmem>>, vector<4x2xf32>
    %cst = arith.constant dense<0.000000e+00> : vector<512x2xf32>
    %2 = tpu.matmul %0, %1, %cst {dimension_numbers = #tpu.dot_dimension_numbers<[1], [0], [0], [1], [0, 0, 1, 1], [], []>} : vector<512x4xf32>, vector<4x2xf32>, vector<512x2xf32> -> vector<512x2xf32>
    %c0_3 = arith.constant 0 : index
    %c0_4 = arith.constant 0 : index
    %3 = vector.load %arg3[%c0_3, %c0_4] : memref<1x2xf32, #tpu.memory_space<vmem>>, vector<1x2xf32>
    %4 = vector.broadcast %3 : vector<1x2xf32> to vector<512x2xf32>
    %5 = arith.mulf %2, %4 : vector<512x2xf32>
    %c0_5 = arith.constant 0 : index
    %c0_6 = arith.constant 0 : index
    %6 = vector.load %arg4[%c0_5, %c0_6] : memref<1x2xf32, #tpu.memory_space<vmem>>, vector<1x2xf32>
    %7 = vector.broadcast %6 : vector<1x2xf32> to vector<512x2xf32>
    %8 = arith.addf %5, %7 : vector<512x2xf32>
    %c0_7 = arith.constant 0 : index
    %c0_8 = arith.constant 0 : index
    %9 = vector.load %arg5[%c0_7, %c0_8] : memref<512x2xf32, #tpu.memory_space<vmem>>, vector<512x2xf32>
    tpu.vector_store %arg5[%c0_7, %c0_8], %8 {strides = array<i32>} : memref<512x2xf32, #tpu.memory_space<vmem>>, vector<512x2xf32>,
    return
  }
  func.func @transform_0(%arg0: i32) -> (i32, i32) {
    %c0_i32 = arith.constant 0 : i32
    %c0_i32_0 = arith.constant 0 : i32
    return %arg0, %c0_i32 : i32, i32
  }
  func.func @transform_1(%arg0: i32) -> (i32, i32) {
    %c0_i32 = arith.constant 0 : i32
    %c0_i32_0 = arith.constant 0 : i32
    %c0_i32_1 = arith.constant 0 : i32
    return %c0_i32, %c0_i32_0 : i32, i32
  }
  func.func @transform_2(%arg0: i32) -> (i32, i32) {
    %c0_i32 = arith.constant 0 : i32
    %c0_i32_0 = arith.constant 0 : i32
    %c0_i32_1 = arith.constant 0 : i32
    return %c0_i32, %c0_i32_0 : i32, i32
  }
  func.func @transform_3(%arg0: i32) -> (i32, i32) {
    %c0_i32 = arith.constant 0 : i32
    %c0_i32_0 = arith.constant 0 : i32
    %c0_i32_1 = arith.constant 0 : i32
    return %c0_i32, %c0_i32_0 : i32, i32
  }
  func.func @transform_4(%arg0: i32) -> (i32, i32) {
    %c0_i32 = arith.constant 0 : i32
    %c0_i32_0 = arith.constant 0 : i32
    return %arg0, %c0_i32 : i32, i32
  }
}

</mosaic_0001>

<llo_original>
// kernel: unet_forward.27
$region0: #{unet_forward.27}
  #allocation0 [shape = 'u32[]', space=smem, size = 0x4, offset = 0x4, fixed_abs, tag = 'smem constant byte address 0x4 - core index']
  #allocation1 [shape = 'u32[72,128]{1,0:T(1,128)}', space=vmem, size = 0x9000, scoped, tag = 'internal scratch']
  %s0 = inlined_call_operand.vmem [shape: f32[512,27], index: 0, kind: input, shape index: {}]
  %s1 = inlined_call_operand.vmem [shape: f32[27,4], index: 1, kind: input, shape index: {}]
  %s2 = inlined_call_operand.vmem [shape: f32[1,4], index: 2, kind: input, shape index: {}]
  %s3 = inlined_call_operand.vmem [shape: f32[1,4], index: 3, kind: input, shape index: {}]
  %s4 = inlined_call_operand.vmem [shape: f32[512,4], index: 4, kind: output, shape index: {}]
  %s5 = sld [smem:[#allocation0]]
  $region26: #{unet_forward.27} parent=0
    _
  %s7 = ssub.s32 1, %s5
  %s8 = scalar_select 0, %s7, %s5
  // Predicated region
  $region2: #{unet_forward.27} parent=0 // pred_check
    _
  $region3: #{unet_forward.27} parent=0 // pred_check_branch
    %10 = sbr.rel (0) target = $region5
  $region4: #{unet_forward.27} parent=0 // pred_region
    _
  $region5: #{unet_forward.27} parent=0 // pred_fallthru
    _
  // Predicated region
  $region6: #{unet_forward.27} parent=0 // pred_check
    _
  $region7: #{unet_forward.27} parent=0 // pred_check_branch
    %12 = sbr.rel (0) target = $region9
  $region8: #{unet_forward.27} parent=0 // pred_region
    _
  $region9: #{unet_forward.27} parent=0 // pred_fallthru
    _
  // Predicated region
  $region10: #{unet_forward.27} parent=0 // pred_check
    _
  $region11: #{unet_forward.27} parent=0 // pred_check_branch
    %14 = sbr.rel (0) target = $region13
  $region12: #{unet_forward.27} parent=0 // pred_region
    _
  $region13: #{unet_forward.27} parent=0 // pred_fallthru
    _
  // Predicated region
  $region14: #{unet_forward.27} parent=0 // pred_check
    _
  $region15: #{unet_forward.27} parent=0 // pred_check_branch
    %16 = sbr.rel (0) target = $region17
  $region16: #{unet_forward.27} parent=0 // pred_region
    _
  $region17: #{unet_forward.27} parent=0 // pred_fallthru
    _
  %v17 = vld [vmem:[%s0] sm:$0xff]
  %v18 = vld [vmem:[%s0 + $0x8] sm:$0xff]
  %v19 = vld [vmem:[%s0 + $0x10] sm:$0xff]
  %v20 = vld [vmem:[%s0 + $0x18] sm:$0xff]
  %v21 = vld [vmem:[%s0 + $0x20] sm:$0xff]
  %v22 = vld [vmem:[%s0 + $0x28] sm:$0xff]
  %v23 = vld [vmem:[%s0 + $0x30] sm:$0xff]
  %v24 = vld [vmem:[%s0 + $0x38] sm:$0xff]
  %v25 = vld [vmem:[%s0 + $0x40] sm:$0xff]
  %v26 = vld [vmem:[%s0 + $0x48] sm:$0xff]
  %v27 = vld [vmem:[%s0 + $0x50] sm:$0xff]
  %v28 = vld [vmem:[%s0 + $0x58] sm:$0xff]
  %v29 = vld [vmem:[%s0 + $0x60] sm:$0xff]
  %v30 = vld [vmem:[%s0 + $0x68] sm:$0xff]
  %v31 = vld [vmem:[%s0 + $0x70] sm:$0xff]
  %v32 = vld [vmem:[%s0 + $0x78] sm:$0xff]
  %v33 = vld [vmem:[%s0 + $0x80] sm:$0xff]
  %v34 = vld [vmem:[%s0 + $0x88] sm:$0xff]
  %v35 = vld [vmem:[%s0 + $0x90] sm:$0xff]
  %v36 = vld [vmem:[%s0 + $0x98] sm:$0xff]
  %v37 = vld [vmem:[%s0 + $0xa0] sm:$0xff]
  %v38 = vld [vmem:[%s0 + $0xa8] sm:$0xff]
  %v39 = vld [vmem:[%s0 + $0xb0] sm:$0xff]
  %v40 = vld [vmem:[%s0 + $0xb8] sm:$0xff]
  %v41 = vld [vmem:[%s0 + $0xc0] sm:$0xff]
  %v42 = vld [vmem:[%s0 + $0xc8] sm:$0xff]
  %v43 = vld [vmem:[%s0 + $0xd0] sm:$0xff]
  %v44 = vld [vmem:[%s0 + $0xd8] sm:$0xff]
  %v45 = vld [vmem:[%s0 + $0xe0] sm:$0xff]
  %v46 = vld [vmem:[%s0 + $0xe8] sm:$0xff]
  %v47 = vld [vmem:[%s0 + $0xf0] sm:$0xff]
  %v48 = vld [vmem:[%s0 + $0xf8] sm:$0xff]
  %v49 = vld [vmem:[%s0 + $0x100] sm:$0xff]
  %v50 = vld [vmem:[%s0 + $0x108] sm:$0xff]
  %v51 = vld [vmem:[%s0 + $0x110] sm:$0xff]
  %v52 = vld [vmem:[%s0 + $0x118] sm:$0xff]
  %v53 = vld [vmem:[%s0 + $0x120] sm:$0xff]
  %v54 = vld [vmem:[%s0 + $0x128] sm:$0xff]
  %v55 = vld [vmem:[%s0 + $0x130] sm:$0xff]
  %v56 = vld [vmem:[%s0 + $0x138] sm:$0xff]
  %v57 = vld [vmem:[%s0 + $0x140] sm:$0xff]
  %v58 = vld [vmem:[%s0 + $0x148] sm:$0xff]
  %v59 = vld [vmem:[%s0 + $0x150] sm:$0xff]
  %v60 = vld [vmem:[%s0 + $0x158] sm:$0xff]
  %v61 = vld [vmem:[%s0 + $0x160] sm:$0xff]
  %v62 = vld [vmem:[%s0 + $0x168] sm:$0xff]
  %v63 = vld [vmem:[%s0 + $0x170] sm:$0xff]
  %v64 = vld [vmem:[%s0 + $0x178] sm:$0xff]
  %v65 = vld [vmem:[%s0 + $0x180] sm:$0xff]
  %v66 = vld [vmem:[%s0 + $0x188] sm:$0xff]
  %v67 = vld [vmem:[%s0 + $0x190] sm:$0xff]
  %v68 = vld [vmem:[%s0 + $0x198] sm:$0xff]
  %v69 = vld [vmem:[%s0 + $0x1a0] sm:$0xff]
  %v70 = vld [vmem:[%s0 + $0x1a8] sm:$0xff]
  %v71 = vld [vmem:[%s0 + $0x1b0] sm:$0xff]
  %v72 = vld [vmem:[%s0 + $0x1b8] sm:$0xff]
  %v73 = vld [vmem:[%s0 + $0x1c0] sm:$0xff]
  %v74 = vld [vmem:[%s0 + $0x1c8] sm:$0xff]
  %v75 = vld [vmem:[%s0 + $0x1d0] sm:$0xff]
  %v76 = vld [vmem:[%s0 + $0x1d8] sm:$0xff]
  %v77 = vld [vmem:[%s0 + $0x1e0] sm:$0xff]
  %v78 = vld [vmem:[%s0 + $0x1e8] sm:$0xff]
  %v79 = vld [vmem:[%s0 + $0x1f0] sm:$0xff]
  %v80 = vld [vmem:[%s0 + $0x1f8] sm:$0xff]
  %v81 = vld [vmem:[%s1] sm:$0xff]
  %v82 = vld [vmem:[%s1 + $0x8] sm:$0xff]
  %v83 = vld [vmem:[%s1 + $0x10] sm:$0xff]
  %v84 = vld [vmem:[%s1 + $0x18] sm:$0x7]
  %vm85 = vcmask 220160
  %v87 = vsel %vm85, %v17, 0
  %v90 = vsel %vm85, %v18, 0
  %v93 = vsel %vm85, %v19, 0
  %v96 = vsel %vm85, %v20, 0
  %v99 = vsel %vm85, %v21, 0
  %v102 = vsel %vm85, %v22, 0
  %v105 = vsel %vm85, %v23, 0
  %v108 = vsel %vm85, %v24, 0
  %v111 = vsel %vm85, %v25, 0
  %v114 = vsel %vm85, %v26, 0
  %v117 = vsel %vm85, %v27, 0
  %v120 = vsel %vm85, %v28, 0
  %v123 = vsel %vm85, %v29, 0
  %v126 = vsel %vm85, %v30, 0
  %v129 = vsel %vm85, %v31, 0
  %v132 = vsel %vm85, %v32, 0
  %v135 = vsel %vm85, %v33, 0
  %v138 = vsel %vm85, %v34, 0
  %v141 = vsel %vm85, %v35, 0
  %v144 = vsel %vm85, %v36, 0
  %v147 = vsel %vm85, %v37, 0
  %v150 = vsel %vm85, %v38, 0
  %v153 = vsel %vm85, %v39, 0
  %v156 = vsel %vm85, %v40, 0
  %v159 = vsel %vm85, %v41, 0
  %v162 = vsel %vm85, %v42, 0
  %v165 = vsel %vm85, %v43, 0
  %v168 = vsel %vm85, %v44, 0
  %v171 = vsel %vm85, %v45, 0
  %v174 = vsel %vm85, %v46, 0
  %v177 = vsel %vm85, %v47, 0
  %v180 = vsel %vm85, %v48, 0
  %v183 = vsel %vm85, %v49, 0
  %v186 = vsel %vm85, %v50, 0
  %v189 = vsel %vm85, %v51, 0
  %v192 = vsel %vm85, %v52, 0
  %v195 = vsel %vm85, %v53, 0
  %v198 = vsel %vm85, %v54, 0
  %v201 = vsel %vm85, %v55, 0
  %v204 = vsel %vm85, %v56, 0
  %v207 = vsel %vm85, %v57, 0
  %v210 = vsel %vm85, %v58, 0
  %v213 = vsel %vm85, %v59, 0
  %v216 = vsel %vm85, %v60, 0
  %v219 = vsel %vm85, %v61, 0
  %v222 = vsel %vm85, %v62, 0
  %v225 = vsel %vm85, %v63, 0
  %v228 = vsel %vm85, %v64, 0
  %v231 = vsel %vm85, %v65, 0
  %v234 = vsel %vm85, %v66, 0
  %v237 = vsel %vm85, %v67, 0
  %v240 = vsel %vm85, %v68, 0
  %v243 = vsel %vm85, %v69, 0
  %v246 = vsel %vm85, %v70, 0
  %v249 = vsel %vm85, %v71, 0
  %v252 = vsel %vm85, %v72, 0
  %v255 = vsel %vm85, %v73, 0
  %v258 = vsel %vm85, %v74, 0
  %v261 = vsel %vm85, %v75, 0
  %v264 = vsel %vm85, %v76, 0
  %v267 = vsel %vm85, %v77, 0
  %v270 = vsel %vm85, %v78, 0
  %v273 = vsel %vm85, %v79, 0
  %v276 = vsel %vm85, %v80, 0
  %vm278 = vcmask 1042432
  %v280 = vsel %vm278, %v84, 0
  %282 = vmatpush.msra.mxu0 0.0
  %283 = vmatpush.msra.mxu0 0.0
  %284 = vmatpush.msra.mxu0 0.0
  %285 = vmatpush.msra.mxu0 0.0
  %286 = vmatpush.msra.mxu0 0.0
  %287 = vmatpush.msra.mxu0 0.0
  %288 = vmatpush.msra.mxu0 0.0
  %289 = vmatpush.msra.mxu0 0.0
  %290 = vmatpush.msra.mxu0 0.0
  %291 = vmatpush.msra.mxu0 0.0
  %292 = vmatpush.msra.mxu0 0.0
  %293 = vmatpush.msra.mxu0 0.0
  %294 = vmatpush.msra.mxu0 %v280
  %295 = vmatpush.msra.mxu0 %v83
  %296 = vmatpush.msra.mxu0 %v82
  %297 = vmatpush.msra.mxu0 %v81
  %298 = vmatmul.f32.gmra.mxu0 %v87
  %v299 = vpop.f32.mrf.mxu0
  %v300 = vadd.f32 0.0, %v299
  %301 = vmatmul.f32.gmra.mxu0 %v90
  %v302 = vpop.f32.mrf.mxu0
  %v303 = vadd.f32 0.0, %v302
  %304 = vmatmul.f32.gmra.mxu0 %v93
  %v305 = vpop.f32.mrf.mxu0
  %v306 = vadd.f32 0.0, %v305
  %307 = vmatmul.f32.gmra.mxu0 %v96
  %v308 = vpop.f32.mrf.mxu0
  %v309 = vadd.f32 0.0, %v308
  %310 = vmatmul.f32.gmra.mxu0 %v99
  %v311 = vpop.f32.mrf.mxu0
  %v312 = vadd.f32 0.0, %v311
  %313 = vmatmul.f32.gmra.mxu0 %v102
  %v314 = vpop.f32.mrf.mxu0
  %v315 = vadd.f32 0.0, %v314
  %316 = vmatmul.f32.gmra.mxu0 %v105
  %v317 = vpop.f32.mrf.mxu0
  %v318 = vadd.f32 0.0, %v317
  %319 = vmatmul.f32.gmra.mxu0 %v108
  %v320 = vpop.f32.mrf.mxu0
  %v321 = vadd.f32 0.0, %v320
  %322 = vmatmul.f32.gmra.mxu0 %v111
  %v323 = vpop.f32.mrf.mxu0
  %v324 = vadd.f32 0.0, %v323
  %325 = vmatmul.f32.gmra.mxu0 %v114
  %v326 = vpop.f32.mrf.mxu0
  %v327 = vadd.f32 0.0, %v326
  %328 = vmatmul.f32.gmra.mxu0 %v117
  %v329 = vpop.f32.mrf.mxu0
  %v330 = vadd.f32 0.0, %v329
  %331 = vmatmul.f32.gmra.mxu0 %v120
  %v332 = vpop.f32.mrf.mxu0
  %v333 = vadd.f32 0.0, %v332
  %334 = vmatmul.f32.gmra.mxu0 %v123
  %v335 = vpop.f32.mrf.mxu0
  %v336 = vadd.f32 0.0, %v335
  %337 = vmatmul.f32.gmra.mxu0 %v126
  %v338 = vpop.f32.mrf.mxu0
  %v339 = vadd.f32 0.0, %v338
  %340 = vmatmul.f32.gmra.mxu0 %v129
  %v341 = vpop.f32.mrf.mxu0
  %v342 = vadd.f32 0.0, %v341
  %343 = vmatmul.f32.gmra.mxu0 %v132
  %v344 = vpop.f32.mrf.mxu0
  %v345 = vadd.f32 0.0, %v344
  %346 = vmatmul.f32.gmra.mxu0 %v135
  %v347 = vpop.f32.mrf.mxu0
  %v348 = vadd.f32 0.0, %v347
  %349 = vmatmul.f32.gmra.mxu0 %v138
  %v350 = vpop.f32.mrf.mxu0
  %v351 = vadd.f32 0.0, %v350
  %352 = vmatmul.f32.gmra.mxu0 %v141
  %v353 = vpop.f32.mrf.mxu0
  %v354 = vadd.f32 0.0, %v353
  %355 = vmatmul.f32.gmra.mxu0 %v144
  %v356 = vpop.f32.mrf.mxu0
  %v357 = vadd.f32 0.0, %v356
  %358 = vmatmul.f32.gmra.mxu0 %v147
  %v359 = vpop.f32.mrf.mxu0
  %v360 = vadd.f32 0.0, %v359
  %361 = vmatmul.f32.gmra.mxu0 %v150
  %v362 = vpop.f32.mrf.mxu0
  %v363 = vadd.f32 0.0, %v362
  %364 = vmatmul.f32.gmra.mxu0 %v153
  %v365 = vpop.f32.mrf.mxu0
  %v366 = vadd.f32 0.0, %v365
  %367 = vmatmul.f32.gmra.mxu0 %v156
  %v368 = vpop.f32.mrf.mxu0
  %v369 = vadd.f32 0.0, %v368
  %370 = vmatmul.f32.gmra.mxu0 %v159
  %v371 = vpop.f32.mrf.mxu0
  %v372 = vadd.f32 0.0, %v371
  %373 = vmatmul.f32.gmra.mxu0 %v162
  %v374 = vpop.f32.mrf.mxu0
  %v375 = vadd.f32 0.0, %v374
  %376 = vmatmul.f32.gmra.mxu0 %v165
  %v377 = vpop.f32.mrf.mxu0
  %v378 = vadd.f32 0.0, %v377
  %379 = vmatmul.f32.gmra.mxu0 %v168
  %v380 = vpop.f32.mrf.mxu0
  %v381 = vadd.f32 0.0, %v380
  %382 = vmatmul.f32.gmra.mxu0 %v171
  %v383 = vpop.f32.mrf.mxu0
  %v384 = vadd.f32 0.0, %v383
  %385 = vmatmul.f32.gmra.mxu0 %v174
  %v386 = vpop.f32.mrf.mxu0
  %v387 = vadd.f32 0.0, %v386
  %388 = vmatmul.f32.gmra.mxu0 %v177
  %v389 = vpop.f32.mrf.mxu0
  %v390 = vadd.f32 0.0, %v389
  %391 = vmatmul.f32.gmra.mxu0 %v180
  %v392 = vpop.f32.mrf.mxu0
  %v393 = vadd.f32 0.0, %v392
  %394 = vmatmul.f32.gmra.mxu0 %v183
  %v395 = vpop.f32.mrf.mxu0
  %v396 = vadd.f32 0.0, %v395
  %397 = vmatmul.f32.gmra.mxu0 %v186
  %v398 = vpop.f32.mrf.mxu0
  %v399 = vadd.f32 0.0, %v398
  %400 = vmatmul.f32.gmra.mxu0 %v189
  %v401 = vpop.f32.mrf.mxu0
  %v402 = vadd.f32 0.0, %v401
  %403 = vmatmul.f32.gmra.mxu0 %v192
  %v404 = vpop.f32.mrf.mxu0
  %v405 = vadd.f32 0.0, %v404
  %406 = vmatmul.f32.gmra.mxu0 %v195
  %v407 = vpop.f32.mrf.mxu0
  %v408 = vadd.f32 0.0, %v407
  %409 = vmatmul.f32.gmra.mxu0 %v198
  %v410 = vpop.f32.mrf.mxu0
  %v411 = vadd.f32 0.0, %v410
  %412 = vmatmul.f32.gmra.mxu0 %v201
  %v413 = vpop.f32.mrf.mxu0
  %v414 = vadd.f32 0.0, %v413
  %415 = vmatmul.f32.gmra.mxu0 %v204
  %v416 = vpop.f32.mrf.mxu0
  %v417 = vadd.f32 0.0, %v416
  %418 = vmatmul.f32.gmra.mxu0 %v207
  %v419 = vpop.f32.mrf.mxu0
  %v420 = vadd.f32 0.0, %v419
  %421 = vmatmul.f32.gmra.mxu0 %v210
  %v422 = vpop.f32.mrf.mxu0
  %v423 = vadd.f32 0.0, %v422
  %424 = vmatmul.f32.gmra.mxu0 %v213
  %v425 = vpop.f32.mrf.mxu0
  %v426 = vadd.f32 0.0, %v425
  %427 = vmatmul.f32.gmra.mxu0 %v216
  %v428 = vpop.f32.mrf.mxu0
  %v429 = vadd.f32 0.0, %v428
  %430 = vmatmul.f32.gmra.mxu0 %v219
  %v431 = vpop.f32.mrf.mxu0
  %v432 = vadd.f32 0.0, %v431
  %433 = vmatmul.f32.gmra.mxu0 %v222
  %v434 = vpop.f32.mrf.mxu0
  %v435 = vadd.f32 0.0, %v434
  %436 = vmatmul.f32.gmra.mxu0 %v225
  %v437 = vpop.f32.mrf.mxu0
  %v438 = vadd.f32 0.0, %v437
  %439 = vmatmul.f32.gmra.mxu0 %v228
  %v440 = vpop.f32.mrf.mxu0
  %v441 = vadd.f32 0.0, %v440
  %442 = vmatmul.f32.gmra.mxu0 %v231
  %v443 = vpop.f32.mrf.mxu0
  %v444 = vadd.f32 0.0, %v443
  %445 = vmatmul.f32.gmra.mxu0 %v234
  %v446 = vpop.f32.mrf.mxu0
  %v447 = vadd.f32 0.0, %v446
  %448 = vmatmul.f32.gmra.mxu0 %v237
  %v449 = vpop.f32.mrf.mxu0
  %v450 = vadd.f32 0.0, %v449
  %451 = vmatmul.f32.gmra.mxu0 %v240
  %v452 = vpop.f32.mrf.mxu0
  %v453 = vadd.f32 0.0, %v452
  %454 = vmatmul.f32.gmra.mxu0 %v243
  %v455 = vpop.f32.mrf.mxu0
  %v456 = vadd.f32 0.0, %v455
  %457 = vmatmul.f32.gmra.mxu0 %v246
  %v458 = vpop.f32.mrf.mxu0
  %v459 = vadd.f32 0.0, %v458
  %460 = vmatmul.f32.gmra.mxu0 %v249
  %v461 = vpop.f32.mrf.mxu0
  %v462 = vadd.f32 0.0, %v461
  %463 = vmatmul.f32.gmra.mxu0 %v252
  %v464 = vpop.f32.mrf.mxu0
  %v465 = vadd.f32 0.0, %v464
  %466 = vmatmul.f32.gmra.mxu0 %v255
  %v467 = vpop.f32.mrf.mxu0
  %v468 = vadd.f32 0.0, %v467
  %469 = vmatmul.f32.gmra.mxu0 %v258
  %v470 = vpop.f32.mrf.mxu0
  %v471 = vadd.f32 0.0, %v470
  %472 = vmatmul.f32.gmra.mxu0 %v261
  %v473 = vpop.f32.mrf.mxu0
  %v474 = vadd.f32 0.0, %v473
  %475 = vmatmul.f32.gmra.mxu0 %v264
  %v476 = vpop.f32.mrf.mxu0
  %v477 = vadd.f32 0.0, %v476
  %478 = vmatmul.f32.gmra.mxu0 %v267
  %v479 = vpop.f32.mrf.mxu0
  %v480 = vadd.f32 0.0, %v479
  %481 = vmatmul.f32.gmra.mxu0 %v270
  %v482 = vpop.f32.mrf.mxu0
  %v483 = vadd.f32 0.0, %v482
  %484 = vmatmul.f32.gmra.mxu0 %v273
  %v485 = vpop.f32.mrf.mxu0
  %v486 = vadd.f32 0.0, %v485
  %487 = vmatmul.f32.gmra.mxu0 %v276
  %v488 = vpop.f32.mrf.mxu0
  %v489 = vadd.f32 0.0, %v488
  %490 = vdwg.mxu0
  %v491 = vld [vmem:[%s2] sm:$0x1]
  %v493 = vperm.slane %v491, 0
  %v495 = vmul.f32 %v300, %v493
  %v496 = vmul.f32 %v303, %v493
  %v497 = vmul.f32 %v306, %v493
  %v498 = vmul.f32 %v309, %v493
  %v499 = vmul.f32 %v312, %v493
  %v500 = vmul.f32 %v315, %v493
  %v501 = vmul.f32 %v318, %v493
  %v502 = vmul.f32 %v321, %v493
  %v503 = vmul.f32 %v324, %v493
  %v504 = vmul.f32 %v327, %v493
  %v505 = vmul.f32 %v330, %v493
  %v506 = vmul.f32 %v333, %v493
  %v507 = vmul.f32 %v336, %v493
  %v508 = vmul.f32 %v339, %v493
  %v509 = vmul.f32 %v342, %v493
  %v510 = vmul.f32 %v345, %v493
  %v511 = vmul.f32 %v348, %v493
  %v512 = vmul.f32 %v351, %v493
  %v513 = vmul.f32 %v354, %v493
  %v514 = vmul.f32 %v357, %v493
  %v515 = vmul.f32 %v360, %v493
  %v516 = vmul.f32 %v363, %v493
  %v517 = vmul.f32 %v366, %v493
  %v518 = vmul.f32 %v369, %v493
  %v519 = vmul.f32 %v372, %v493
  %v520 = vmul.f32 %v375, %v493
  %v521 = vmul.f32 %v378, %v493
  %v522 = vmul.f32 %v381, %v493
  %v523 = vmul.f32 %v384, %v493
  %v524 = vmul.f32 %v387, %v493
  %v525 = vmul.f32 %v390, %v493
  %v526 = vmul.f32 %v393, %v493
  %v527 = vmul.f32 %v396, %v493
  %v528 = vmul.f32 %v399, %v493
  %v529 = vmul.f32 %v402, %v493
  %v530 = vmul.f32 %v405, %v493
  %v531 = vmul.f32 %v408, %v493
  %v532 = vmul.f32 %v411, %v493
  %v533 = vmul.f32 %v414, %v493
  %v534 = vmul.f32 %v417, %v493
  %v535 = vmul.f32 %v420, %v493
  %v536 = vmul.f32 %v423, %v493
  %v537 = vmul.f32 %v426, %v493
  %v538 = vmul.f32 %v429, %v493
  %v539 = vmul.f32 %v432, %v493
  %v540 = vmul.f32 %v435, %v493
  %v541 = vmul.f32 %v438, %v493
  %v542 = vmul.f32 %v441, %v493
  %v543 = vmul.f32 %v444, %v493
  %v544 = vmul.f32 %v447, %v493
  %v545 = vmul.f32 %v450, %v493
  %v546 = vmul.f32 %v453, %v493
  %v547 = vmul.f32 %v456, %v493
  %v548 = vmul.f32 %v459, %v493
  %v549 = vmul.f32 %v462, %v493
  %v550 = vmul.f32 %v465, %v493
  %v551 = vmul.f32 %v468, %v493
  %v552 = vmul.f32 %v471, %v493
  %v553 = vmul.f32 %v474, %v493
  %v554 = vmul.f32 %v477, %v493
  %v555 = vmul.f32 %v480, %v493
  %v556 = vmul.f32 %v483, %v493
  %v557 = vmul.f32 %v486, %v493
  %v558 = vmul.f32 %v489, %v493
  %v559 = vld [vmem:[%s3] sm:$0x1]
  %v561 = vperm.slane %v559, 0
  %v563 = vadd.f32 %v495, %v561
  %v564 = vadd.f32 %v496, %v561
  %v565 = vadd.f32 %v497, %v561
  %v566 = vadd.f32 %v498, %v561
  %v567 = vadd.f32 %v499, %v561
  %v568 = vadd.f32 %v500, %v561
  %v569 = vadd.f32 %v501, %v561
  %v570 = vadd.f32 %v502, %v561
  %v571 = vadd.f32 %v503, %v561
  %v572 = vadd.f32 %v504, %v561
  %v573 = vadd.f32 %v505, %v561
  %v574 = vadd.f32 %v506, %v561
  %v575 = vadd.f32 %v507, %v561
  %v576 = vadd.f32 %v508, %v561
  %v577 = vadd.f32 %v509, %v561
  %v578 = vadd.f32 %v510, %v561
  %v579 = vadd.f32 %v511, %v561
  %v580 = vadd.f32 %v512, %v561
  %v581 = vadd.f32 %v513, %v561
  %v582 = vadd.f32 %v514, %v561
  %v583 = vadd.f32 %v515, %v561
  %v584 = vadd.f32 %v516, %v561
  %v585 = vadd.f32 %v517, %v561
  %v586 = vadd.f32 %v518, %v561
  %v587 = vadd.f32 %v519, %v561
  %v588 = vadd.f32 %v520, %v561
  %v589 = vadd.f32 %v521, %v561
  %v590 = vadd.f32 %v522, %v561
  %v591 = vadd.f32 %v523, %v561
  %v592 = vadd.f32 %v524, %v561
  %v593 = vadd.f32 %v525, %v561
  %v594 = vadd.f32 %v526, %v561
  %v595 = vadd.f32 %v527, %v561
  %v596 = vadd.f32 %v528, %v561
  %v597 = vadd.f32 %v529, %v561
  %v598 = vadd.f32 %v530, %v561
  %v599 = vadd.f32 %v531, %v561
  %v600 = vadd.f32 %v532, %v561
  %v601 = vadd.f32 %v533, %v561
  %v602 = vadd.f32 %v534, %v561
  %v603 = vadd.f32 %v535, %v561
  %v604 = vadd.f32 %v536, %v561
  %v605 = vadd.f32 %v537, %v561
  %v606 = vadd.f32 %v538, %v561
  %v607 = vadd.f32 %v539, %v561
  %v608 = vadd.f32 %v540, %v561
  %v609 = vadd.f32 %v541, %v561
  %v610 = vadd.f32 %v542, %v561
  %v611 = vadd.f32 %v543, %v561
  %v612 = vadd.f32 %v544, %v561
  %v613 = vadd.f32 %v545, %v561
  %v614 = vadd.f32 %v546, %v561
  %v615 = vadd.f32 %v547, %v561
  %v616 = vadd.f32 %v548, %v561
  %v617 = vadd.f32 %v549, %v561
  %v618 = vadd.f32 %v550, %v561
  %v619 = vadd.f32 %v551, %v561
  %v620 = vadd.f32 %v552, %v561
  %v621 = vadd.f32 %v553, %v561
  %v622 = vadd.f32 %v554, %v561
  %v623 = vadd.f32 %v555, %v561
  %v624 = vadd.f32 %v556, %v561
  %v625 = vadd.f32 %v557, %v561
  %v626 = vadd.f32 %v558, %v561
  %v627 = vmax.f32 %v563, 0.0
  %v628 = vmax.f32 %v564, 0.0
  %v629 = vmax.f32 %v565, 0.0
  %v630 = vmax.f32 %v566, 0.0
  %v631 = vmax.f32 %v567, 0.0
  %v632 = vmax.f32 %v568, 0.0
  %v633 = vmax.f32 %v569, 0.0
  %v634 = vmax.f32 %v570, 0.0
  %v635 = vmax.f32 %v571, 0.0
  %v636 = vmax.f32 %v572, 0.0
  %v637 = vmax.f32 %v573, 0.0
  %v638 = vmax.f32 %v574, 0.0
  %v639 = vmax.f32 %v575, 0.0
  %v640 = vmax.f32 %v576, 0.0
  %v641 = vmax.f32 %v577, 0.0
  %v642 = vmax.f32 %v578, 0.0
  %v643 = vmax.f32 %v579, 0.0
  %v644 = vmax.f32 %v580, 0.0
  %v645 = vmax.f32 %v581, 0.0
  %v646 = vmax.f32 %v582, 0.0
  %v647 = vmax.f32 %v583, 0.0
  %v648 = vmax.f32 %v584, 0.0
  %v649 = vmax.f32 %v585, 0.0
  %v650 = vmax.f32 %v586, 0.0
  %v651 = vmax.f32 %v587, 0.0
  %v652 = vmax.f32 %v588, 0.0
  %v653 = vmax.f32 %v589, 0.0
  %v654 = vmax.f32 %v590, 0.0
  %v655 = vmax.f32 %v591, 0.0
  %v656 = vmax.f32 %v592, 0.0
  %v657 = vmax.f32 %v593, 0.0
  %v658 = vmax.f32 %v594, 0.0
  %v659 = vmax.f32 %v595, 0.0
  %v660 = vmax.f32 %v596, 0.0
  %v661 = vmax.f32 %v597, 0.0
  %v662 = vmax.f32 %v598, 0.0
  %v663 = vmax.f32 %v599, 0.0
  %v664 = vmax.f32 %v600, 0.0
  %v665 = vmax.f32 %v601, 0.0
  %v666 = vmax.f32 %v602, 0.0
  %v667 = vmax.f32 %v603, 0.0
  %v668 = vmax.f32 %v604, 0.0
  %v669 = vmax.f32 %v605, 0.0
  %v670 = vmax.f32 %v606, 0.0
  %v671 = vmax.f32 %v607, 0.0
  %v672 = vmax.f32 %v608, 0.0
  %v673 = vmax.f32 %v609, 0.0
  %v674 = vmax.f32 %v610, 0.0
  %v675 = vmax.f32 %v611, 0.0
  %v676 = vmax.f32 %v612, 0.0
  %v677 = vmax.f32 %v613, 0.0
  %v678 = vmax.f32 %v614, 0.0
  %v679 = vmax.f32 %v615, 0.0
  %v680 = vmax.f32 %v616, 0.0
  %v681 = vmax.f32 %v617, 0.0
  %v682 = vmax.f32 %v618, 0.0
  %v683 = vmax.f32 %v619, 0.0
  %v684 = vmax.f32 %v620, 0.0
  %v685 = vmax.f32 %v621, 0.0
  %v686 = vmax.f32 %v622, 0.0
  %v687 = vmax.f32 %v623, 0.0
  %v688 = vmax.f32 %v624, 0.0
  %v689 = vmax.f32 %v625, 0.0
  %v690 = vmax.f32 %v626, 0.0
  %vm691 = vcmask 31744
  %692 = vst.msk [vmem:[%s4] sm:$0xff] %vm691, %v627
  %693 = vst.msk [vmem:[%s4 + $0x8] sm:$0xff] %vm691, %v628
  %694 = vst.msk [vmem:[%s4 + $0x10] sm:$0xff] %vm691, %v629
  %695 = vst.msk [vmem:[%s4 + $0x18] sm:$0xff] %vm691, %v630
  %696 = vst.msk [vmem:[%s4 + $0x20] sm:$0xff] %vm691, %v631
  %697 = vst.msk [vmem:[%s4 + $0x28] sm:$0xff] %vm691, %v632
  %698 = vst.msk [vmem:[%s4 + $0x30] sm:$0xff] %vm691, %v633
  %699 = vst.msk [vmem:[%s4 + $0x38] sm:$0xff] %vm691, %v634
  %700 = vst.msk [vmem:[%s4 + $0x40] sm:$0xff] %vm691, %v635
  %701 = vst.msk [vmem:[%s4 + $0x48] sm:$0xff] %vm691, %v636
  %702 = vst.msk [vmem:[%s4 + $0x50] sm:$0xff] %vm691, %v637
  %703 = vst.msk [vmem:[%s4 + $0x58] sm:$0xff] %vm691, %v638
  %704 = vst.msk [vmem:[%s4 + $0x60] sm:$0xff] %vm691, %v639
  %705 = vst.msk [vmem:[%s4 + $0x68] sm:$0xff] %vm691, %v640
  %706 = vst.msk [vmem:[%s4 + $0x70] sm:$0xff] %vm691, %v641
  %707 = vst.msk [vmem:[%s4 + $0x78] sm:$0xff] %vm691, %v642
  %708 = vst.msk [vmem:[%s4 + $0x80] sm:$0xff] %vm691, %v643
  %709 = vst.msk [vmem:[%s4 + $0x88] sm:$0xff] %vm691, %v644
  %710 = vst.msk [vmem:[%s4 + $0x90] sm:$0xff] %vm691, %v645
  %711 = vst.msk [vmem:[%s4 + $0x98] sm:$0xff] %vm691, %v646
  %712 = vst.msk [vmem:[%s4 + $0xa0] sm:$0xff] %vm691, %v647
  %713 = vst.msk [vmem:[%s4 + $0xa8] sm:$0xff] %vm691, %v648
  %714 = vst.msk [vmem:[%s4 + $0xb0] sm:$0xff] %vm691, %v649
  %715 = vst.msk [vmem:[%s4 + $0xb8] sm:$0xff] %vm691, %v650
  %716 = vst.msk [vmem:[%s4 + $0xc0] sm:$0xff] %vm691, %v651
  %717 = vst.msk [vmem:[%s4 + $0xc8] sm:$0xff] %vm691, %v652
  %718 = vst.msk [vmem:[%s4 + $0xd0] sm:$0xff] %vm691, %v653
  %719 = vst.msk [vmem:[%s4 + $0xd8] sm:$0xff] %vm691, %v654
  %720 = vst.msk [vmem:[%s4 + $0xe0] sm:$0xff] %vm691, %v655
  %721 = vst.msk [vmem:[%s4 + $0xe8] sm:$0xff] %vm691, %v656
  %722 = vst.msk [vmem:[%s4 + $0xf0] sm:$0xff] %vm691, %v657
  %723 = vst.msk [vmem:[%s4 + $0xf8] sm:$0xff] %vm691, %v658
  %724 = vst.msk [vmem:[%s4 + $0x100] sm:$0xff] %vm691, %v659
  %725 = vst.msk [vmem:[%s4 + $0x108] sm:$0xff] %vm691, %v660
  %726 = vst.msk [vmem:[%s4 + $0x110] sm:$0xff] %vm691, %v661
  %727 = vst.msk [vmem:[%s4 + $0x118] sm:$0xff] %vm691, %v662
  %728 = vst.msk [vmem:[%s4 + $0x120] sm:$0xff] %vm691, %v663
  %729 = vst.msk [vmem:[%s4 + $0x128] sm:$0xff] %vm691, %v664
  %730 = vst.msk [vmem:[%s4 + $0x130] sm:$0xff] %vm691, %v665
  %731 = vst.msk [vmem:[%s4 + $0x138] sm:$0xff] %vm691, %v666
  %732 = vst.msk [vmem:[%s4 + $0x140] sm:$0xff] %vm691, %v667
  %733 = vst.msk [vmem:[%s4 + $0x148] sm:$0xff] %vm691, %v668
  %734 = vst.msk [vmem:[%s4 + $0x150] sm:$0xff] %vm691, %v669
  %735 = vst.msk [vmem:[%s4 + $0x158] sm:$0xff] %vm691, %v670
  %736 = vst.msk [vmem:[%s4 + $0x160] sm:$0xff] %vm691, %v671
  %737 = vst.msk [vmem:[%s4 + $0x168] sm:$0xff] %vm691, %v672
  %738 = vst.msk [vmem:[%s4 + $0x170] sm:$0xff] %vm691, %v673
  %739 = vst.msk [vmem:[%s4 + $0x178] sm:$0xff] %vm691, %v674
  %740 = vst.msk [vmem:[%s4 + $0x180] sm:$0xff] %vm691, %v675
  %741 = vst.msk [vmem:[%s4 + $0x188] sm:$0xff] %vm691, %v676
  %742 = vst.msk [vmem:[%s4 + $0x190] sm:$0xff] %vm691, %v677
  %743 = vst.msk [vmem:[%s4 + $0x198] sm:$0xff] %vm691, %v678
  %744 = vst.msk [vmem:[%s4 + $0x1a0] sm:$0xff] %vm691, %v679
  %745 = vst.msk [vmem:[%s4 + $0x1a8] sm:$0xff] %vm691, %v680
  %746 = vst.msk [vmem:[%s4 + $0x1b0] sm:$0xff] %vm691, %v681
  %747 = vst.msk [vmem:[%s4 + $0x1b8] sm:$0xff] %vm691, %v682
  %748 = vst.msk [vmem:[%s4 + $0x1c0] sm:$0xff] %vm691, %v683
  %749 = vst.msk [vmem:[%s4 + $0x1c8] sm:$0xff] %vm691, %v684
  %750 = vst.msk [vmem:[%s4 + $0x1d0] sm:$0xff] %vm691, %v685
  %751 = vst.msk [vmem:[%s4 + $0x1d8] sm:$0xff] %vm691, %v686
  %752 = vst.msk [vmem:[%s4 + $0x1e0] sm:$0xff] %vm691, %v687
  %753 = vst.msk [vmem:[%s4 + $0x1e8] sm:$0xff] %vm691, %v688
  %754 = vst.msk [vmem:[%s4 + $0x1f0] sm:$0xff] %vm691, %v689
  %755 = vst.msk [vmem:[%s4 + $0x1f8] sm:$0xff] %vm691, %v690
  // Predicated region
  $region18: #{unet_forward.27} parent=0 // pred_check
    _
  $region19: #{unet_forward.27} parent=0 // pred_check_branch
    %757 = sbr.rel (0) target = $region21
  $region20: #{unet_forward.27} parent=0 // pred_region
    _
  $region21: #{unet_forward.27} parent=0 // pred_fallthru
    _
  // Predicated region
  $region22: #{unet_forward.27} parent=0 // pred_check
    _
  $region23: #{unet_forward.27} parent=0 // pred_check_branch
    %759 = sbr.rel (0) target = $region25
  $region24: #{unet_forward.27} parent=0 // pred_region
    _
  $region25: #{unet_forward.27} parent=0 // pred_fallthru
    _

// kernel: unet_forward.29
$region0: #{unet_forward.29}
  #allocation0 [shape = 'u32[]', space=smem, size = 0x4, offset = 0x4, fixed_abs, tag = 'smem constant byte address 0x4 - core index']
  #allocation1 [shape = 'u32[72,128]{1,0:T(1,128)}', space=vmem, size = 0x9000, scoped, tag = 'internal scratch']
  %s0 = inlined_call_operand.vmem [shape: f32[128,4], index: 0, kind: input, shape index: {}]
  %s1 = inlined_call_operand.vmem [shape: f32[128,4], index: 1, kind: input, shape index: {}]
  %s2 = inlined_call_operand.vmem [shape: f32[128,4], index: 2, kind: input, shape index: {}]
  %s3 = inlined_call_operand.vmem [shape: f32[128,4], index: 3, kind: input, shape index: {}]
  %s4 = inlined_call_operand.vmem [shape: f32[128,4], index: 4, kind: output, shape index: {}]
  %s5 = sld [smem:[#allocation0]]
  $region26: #{unet_forward.29} parent=0
    _
  %s7 = ssub.s32 1, %s5
  %s8 = scalar_select 0, %s7, %s5
  // Predicated region
  $region2: #{unet_forward.29} parent=0 // pred_check
    _
  $region3: #{unet_forward.29} parent=0 // pred_check_branch
    %10 = sbr.rel (0) target = $region5
  $region4: #{unet_forward.29} parent=0 // pred_region
    _
  $region5: #{unet_forward.29} parent=0 // pred_fallthru
    _
  // Predicated region
  $region6: #{unet_forward.29} parent=0 // pred_check
    _
  $region7: #{unet_forward.29} parent=0 // pred_check_branch
    %12 = sbr.rel (0) target = $region9
  $region8: #{unet_forward.29} parent=0 // pred_region
    _
  $region9: #{unet_forward.29} parent=0 // pred_fallthru
    _
  // Predicated region
  $region10: #{unet_forward.29} parent=0 // pred_check
    _
  $region11: #{unet_forward.29} parent=0 // pred_check_branch
    %14 = sbr.rel (0) target = $region13
  $region12: #{unet_forward.29} parent=0 // pred_region
    _
  $region13: #{unet_forward.29} parent=0 // pred_fallthru
    _
  // Predicated region
  $region14: #{unet_forward.29} parent=0 // pred_check
    _
  $region15: #{unet_forward.29} parent=0 // pred_check_branch
    %16 = sbr.rel (0) target = $region17
  $region16: #{unet_forward.29} parent=0 // pred_region
    _
  $region17: #{unet_forward.29} parent=0 // pred_fallthru
    _
  %v17 = vld [vmem:[%s0] sm:$0xff]
  %v18 = vld [vmem:[%s0 + $0x8] sm:$0xff]
  %v19 = vld [vmem:[%s0 + $0x10] sm:$0xff]
  %v20 = vld [vmem:[%s0 + $0x18] sm:$0xff]
  %v21 = vld [vmem:[%s0 + $0x20] sm:$0xff]
  %v22 = vld [vmem:[%s0 + $0x28] sm:$0xff]
  %v23 = vld [vmem:[%s0 + $0x30] sm:$0xff]
  %v24 = vld [vmem:[%s0 + $0x38] sm:$0xff]
  %v25 = vld [vmem:[%s0 + $0x40] sm:$0xff]
  %v26 = vld [vmem:[%s0 + $0x48] sm:$0xff]
  %v27 = vld [vmem:[%s0 + $0x50] sm:$0xff]
  %v28 = vld [vmem:[%s0 + $0x58] sm:$0xff]
  %v29 = vld [vmem:[%s0 + $0x60] sm:$0xff]
  %v30 = vld [vmem:[%s0 + $0x68] sm:$0xff]
  %v31 = vld [vmem:[%s0 + $0x70] sm:$0xff]
  %v32 = vld [vmem:[%s0 + $0x78] sm:$0xff]
  %v33 = vld [vmem:[%s1] sm:$0xff]
  %v34 = vld [vmem:[%s1 + $0x8] sm:$0xff]
  %v35 = vld [vmem:[%s1 + $0x10] sm:$0xff]
  %v36 = vld [vmem:[%s1 + $0x18] sm:$0xff]
  %v37 = vld [vmem:[%s1 + $0x20] sm:$0xff]
  %v38 = vld [vmem:[%s1 + $0x28] sm:$0xff]
  %v39 = vld [vmem:[%s1 + $0x30] sm:$0xff]
  %v40 = vld [vmem:[%s1 + $0x38] sm:$0xff]
  %v41 = vld [vmem:[%s1 + $0x40] sm:$0xff]
  %v42 = vld [vmem:[%s1 + $0x48] sm:$0xff]
  %v43 = vld [vmem:[%s1 + $0x50] sm:$0xff]
  %v44 = vld [vmem:[%s1 + $0x58] sm:$0xff]
  %v45 = vld [vmem:[%s1 + $0x60] sm:$0xff]
  %v46 = vld [vmem:[%s1 + $0x68] sm:$0xff]
  %v47 = vld [vmem:[%s1 + $0x70] sm:$0xff]
  %v48 = vld [vmem:[%s1 + $0x78] sm:$0xff]
  %v49 = vmax.f32 %v17, %v33
  %v50 = vmax.f32 %v18, %v34
  %v51 = vmax.f32 %v19, %v35
  %v52 = vmax.f32 %v20, %v36
  %v53 = vmax.f32 %v21, %v37
  %v54 = vmax.f32 %v22, %v38
  %v55 = vmax.f32 %v23, %v39
  %v56 = vmax.f32 %v24, %v40
  %v57 = vmax.f32 %v25, %v41
  %v58 = vmax.f32 %v26, %v42
  %v59 = vmax.f32 %v27, %v43
  %v60 = vmax.f32 %v28, %v44
  %v61 = vmax.f32 %v29, %v45
  %v62 = vmax.f32 %v30, %v46
  %v63 = vmax.f32 %v31, %v47
  %v64 = vmax.f32 %v32, %v48
  %v65 = vld [vmem:[%s2] sm:$0xff]
  %v66 = vld [vmem:[%s2 + $0x8] sm:$0xff]
  %v67 = vld [vmem:[%s2 + $0x10] sm:$0xff]
  %v68 = vld [vmem:[%s2 + $0x18] sm:$0xff]
  %v69 = vld [vmem:[%s2 + $0x20] sm:$0xff]
  %v70 = vld [vmem:[%s2 + $0x28] sm:$0xff]
  %v71 = vld [vmem:[%s2 + $0x30] sm:$0xff]
  %v72 = vld [vmem:[%s2 + $0x38] sm:$0xff]
  %v73 = vld [vmem:[%s2 + $0x40] sm:$0xff]
  %v74 = vld [vmem:[%s2 + $0x48] sm:$0xff]
  %v75 = vld [vmem:[%s2 + $0x50] sm:$0xff]
  %v76 = vld [vmem:[%s2 + $0x58] sm:$0xff]
  %v77 = vld [vmem:[%s2 + $0x60] sm:$0xff]
  %v78 = vld [vmem:[%s2 + $0x68] sm:$0xff]
  %v79 = vld [vmem:[%s2 + $0x70] sm:$0xff]
  %v80 = vld [vmem:[%s2 + $0x78] sm:$0xff]
  %v81 = vld [vmem:[%s3] sm:$0xff]
  %v82 = vld [vmem:[%s3 + $0x8] sm:$0xff]
  %v83 = vld [vmem:[%s3 + $0x10] sm:$0xff]
  %v84 = vld [vmem:[%s3 + $0x18] sm:$0xff]
  %v85 = vld [vmem:[%s3 + $0x20] sm:$0xff]
  %v86 = vld [vmem:[%s3 + $0x28] sm:$0xff]
  %v87 = vld [vmem:[%s3 + $0x30] sm:$0xff]
  %v88 = vld [vmem:[%s3 + $0x38] sm:$0xff]
  %v89 = vld [vmem:[%s3 + $0x40] sm:$0xff]
  %v90 = vld [vmem:[%s3 + $0x48] sm:$0xff]
  %v91 = vld [vmem:[%s3 + $0x50] sm:$0xff]
  %v92 = vld [vmem:[%s3 + $0x58] sm:$0xff]
  %v93 = vld [vmem:[%s3 + $0x60] sm:$0xff]
  %v94 = vld [vmem:[%s3 + $0x68] sm:$0xff]
  %v95 = vld [vmem:[%s3 + $0x70] sm:$0xff]
  %v96 = vld [vmem:[%s3 + $0x78] sm:$0xff]
  %v97 = vmax.f32 %v65, %v81
  %v98 = vmax.f32 %v66, %v82
  %v99 = vmax.f32 %v67, %v83
  %v100 = vmax.f32 %v68, %v84
  %v101 = vmax.f32 %v69, %v85
  %v102 = vmax.f32 %v70, %v86
  %v103 = vmax.f32 %v71, %v87
  %v104 = vmax.f32 %v72, %v88
  %v105 = vmax.f32 %v73, %v89
  %v106 = vmax.f32 %v74, %v90
  %v107 = vmax.f32 %v75, %v91
  %v108 = vmax.f32 %v76, %v92
  %v109 = vmax.f32 %v77, %v93
  %v110 = vmax.f32 %v78, %v94
  %v111 = vmax.f32 %v79, %v95
  %v112 = vmax.f32 %v80, %v96
  %v113 = vmax.f32 %v49, %v97
  %v114 = vmax.f32 %v50, %v98
  %v115 = vmax.f32 %v51, %v99
  %v116 = vmax.f32 %v52, %v100
  %v117 = vmax.f32 %v53, %v101
  %v118 = vmax.f32 %v54, %v102
  %v119 = vmax.f32 %v55, %v103
  %v120 = vmax.f32 %v56, %v104
  %v121 = vmax.f32 %v57, %v105
  %v122 = vmax.f32 %v58, %v106
  %v123 = vmax.f32 %v59, %v107
  %v124 = vmax.f32 %v60, %v108
  %v125 = vmax.f32 %v61, %v109
  %v126 = vmax.f32 %v62, %v110
  %v127 = vmax.f32 %v63, %v111
  %v128 = vmax.f32 %v64, %v112
  %vm129 = vcmask 31744
  %130 = vst.msk [vmem:[%s4] sm:$0xff] %vm129, %v113
  %131 = vst.msk [vmem:[%s4 + $0x8] sm:$0xff] %vm129, %v114
  %132 = vst.msk [vmem:[%s4 + $0x10] sm:$0xff] %vm129, %v115
  %133 = vst.msk [vmem:[%s4 + $0x18] sm:$0xff] %vm129, %v116
  %134 = vst.msk [vmem:[%s4 + $0x20] sm:$0xff] %vm129, %v117
  %135 = vst.msk [vmem:[%s4 + $0x28] sm:$0xff] %vm129, %v118
  %136 = vst.msk [vmem:[%s4 + $0x30] sm:$0xff] %vm129, %v119
  %137 = vst.msk [vmem:[%s4 + $0x38] sm:$0xff] %vm129, %v120
  %138 = vst.msk [vmem:[%s4 + $0x40] sm:$0xff] %vm129, %v121
  %139 = vst.msk [vmem:[%s4 + $0x48] sm:$0xff] %vm129, %v122
  %140 = vst.msk [vmem:[%s4 + $0x50] sm:$0xff] %vm129, %v123
  %141 = vst.msk [vmem:[%s4 + $0x58] sm:$0xff] %vm129, %v124
  %142 = vst.msk [vmem:[%s4 + $0x60] sm:$0xff] %vm129, %v125
  %143 = vst.msk [vmem:[%s4 + $0x68] sm:$0xff] %vm129, %v126
  %144 = vst.msk [vmem:[%s4 + $0x70] sm:$0xff] %vm129, %v127
  %145 = vst.msk [vmem:[%s4 + $0x78] sm:$0xff] %vm129, %v128
  // Predicated region
  $region18: #{unet_forward.29} parent=0 // pred_check
    _
  $region19: #{unet_forward.29} parent=0 // pred_check_branch
    %147 = sbr.rel (0) target = $region21
  $region20: #{unet_forward.29} parent=0 // pred_region
    _
  $region21: #{unet_forward.29} parent=0 // pred_fallthru
    _
  // Predicated region
  $region22: #{unet_forward.29} parent=0 // pred_check
    _
  $region23: #{unet_forward.29} parent=0 // pred_check_branch
    %149 = sbr.rel (0) target = $region25
  $region24: #{unet_forward.29} parent=0 // pred_region
    _
  $region25: #{unet_forward.29} parent=0 // pred_fallthru
    _

// kernel: unet_forward.28
$region0: #{unet_forward.28}
  #allocation0 [shape = 'u32[]', space=smem, size = 0x4, offset = 0x4, fixed_abs, tag = 'smem constant byte address 0x4 - core index']
  #allocation1 [shape = 'u32[72,128]{1,0:T(1,128)}', space=vmem, size = 0x9000, scoped, tag = 'internal scratch']
  %s0 = inlined_call_operand.vmem [shape: f32[512,36], index: 0, kind: input, shape index: {}]
  %s1 = inlined_call_operand.vmem [shape: f32[36,4], index: 1, kind: input, shape index: {}]
  %s2 = inlined_call_operand.vmem [shape: f32[1,4], index: 2, kind: input, shape index: {}]
  %s3 = inlined_call_operand.vmem [shape: f32[1,4], index: 3, kind: input, shape index: {}]
  %s4 = inlined_call_operand.vmem [shape: f32[512,4], index: 4, kind: output, shape index: {}]
  %s5 = sld [smem:[#allocation0]]
  $region26: #{unet_forward.28} parent=0
    _
  %s7 = ssub.s32 1, %s5
  %s8 = scalar_select 0, %s7, %s5
  // Predicated region
  $region2: #{unet_forward.28} parent=0 // pred_check
    _
  $region3: #{unet_forward.28} parent=0 // pred_check_branch
    %10 = sbr.rel (0) target = $region5
  $region4: #{unet_forward.28} parent=0 // pred_region
    _
  $region5: #{unet_forward.28} parent=0 // pred_fallthru
    _
  // Predicated region
  $region6: #{unet_forward.28} parent=0 // pred_check
    _
  $region7: #{unet_forward.28} parent=0 // pred_check_branch
    %12 = sbr.rel (0) target = $region9
  $region8: #{unet_forward.28} parent=0 // pred_region
    _
  $region9: #{unet_forward.28} parent=0 // pred_fallthru
    _
  // Predicated region
  $region10: #{unet_forward.28} parent=0 // pred_check
    _
  $region11: #{unet_forward.28} parent=0 // pred_check_branch
    %14 = sbr.rel (0) target = $region13
  $region12: #{unet_forward.28} parent=0 // pred_region
    _
  $region13: #{unet_forward.28} parent=0 // pred_fallthru
    _
  // Predicated region
  $region14: #{unet_forward.28} parent=0 // pred_check
    _
  $region15: #{unet_forward.28} parent=0 // pred_check_branch
    %16 = sbr.rel (0) target = $region17
  $region16: #{unet_forward.28} parent=0 // pred_region
    _
  $region17: #{unet_forward.28} parent=0 // pred_fallthru
    _
  %v17 = vld [vmem:[%s0] sm:$0xff]
  %v18 = vld [vmem:[%s0 + $0x8] sm:$0xff]
  %v19 = vld [vmem:[%s0 + $0x10] sm:$0xff]
  %v20 = vld [vmem:[%s0 + $0x18] sm:$0xff]
  %v21 = vld [vmem:[%s0 + $0x20] sm:$0xff]
  %v22 = vld [vmem:[%s0 + $0x28] sm:$0xff]
  %v23 = vld [vmem:[%s0 + $0x30] sm:$0xff]
  %v24 = vld [vmem:[%s0 + $0x38] sm:$0xff]
  %v25 = vld [vmem:[%s0 + $0x40] sm:$0xff]
  %v26 = vld [vmem:[%s0 + $0x48] sm:$0xff]
  %v27 = vld [vmem:[%s0 + $0x50] sm:$0xff]
  %v28 = vld [vmem:[%s0 + $0x58] sm:$0xff]
  %v29 = vld [vmem:[%s0 + $0x60] sm:$0xff]
  %v30 = vld [vmem:[%s0 + $0x68] sm:$0xff]
  %v31 = vld [vmem:[%s0 + $0x70] sm:$0xff]
  %v32 = vld [vmem:[%s0 + $0x78] sm:$0xff]
  %v33 = vld [vmem:[%s0 + $0x80] sm:$0xff]
  %v34 = vld [vmem:[%s0 + $0x88] sm:$0xff]
  %v35 = vld [vmem:[%s0 + $0x90] sm:$0xff]
  %v36 = vld [vmem:[%s0 + $0x98] sm:$0xff]
  %v37 = vld [vmem:[%s0 + $0xa0] sm:$0xff]
  %v38 = vld [vmem:[%s0 + $0xa8] sm:$0xff]
  %v39 = vld [vmem:[%s0 + $0xb0] sm:$0xff]
  %v40 = vld [vmem:[%s0 + $0xb8] sm:$0xff]
  %v41 = vld [vmem:[%s0 + $0xc0] sm:$0xff]
  %v42 = vld [vmem:[%s0 + $0xc8] sm:$0xff]
  %v43 = vld [vmem:[%s0 + $0xd0] sm:$0xff]
  %v44 = vld [vmem:[%s0 + $0xd8] sm:$0xff]
  %v45 = vld [vmem:[%s0 + $0xe0] sm:$0xff]
  %v46 = vld [vmem:[%s0 + $0xe8] sm:$0xff]
  %v47 = vld [vmem:[%s0 + $0xf0] sm:$0xff]
  %v48 = vld [vmem:[%s0 + $0xf8] sm:$0xff]
  %v49 = vld [vmem:[%s0 + $0x100] sm:$0xff]
  %v50 = vld [vmem:[%s0 + $0x108] sm:$0xff]
  %v51 = vld [vmem:[%s0 + $0x110] sm:$0xff]
  %v52 = vld [vmem:[%s0 + $0x118] sm:$0xff]
  %v53 = vld [vmem:[%s0 + $0x120] sm:$0xff]
  %v54 = vld [vmem:[%s0 + $0x128] sm:$0xff]
  %v55 = vld [vmem:[%s0 + $0x130] sm:$0xff]
  %v56 = vld [vmem:[%s0 + $0x138] sm:$0xff]
  %v57 = vld [vmem:[%s0 + $0x140] sm:$0xff]
  %v58 = vld [vmem:[%s0 + $0x148] sm:$0xff]
  %v59 = vld [vmem:[%s0 + $0x150] sm:$0xff]
  %v60 = vld [vmem:[%s0 + $0x158] sm:$0xff]
  %v61 = vld [vmem:[%s0 + $0x160] sm:$0xff]
  %v62 = vld [vmem:[%s0 + $0x168] sm:$0xff]
  %v63 = vld [vmem:[%s0 + $0x170] sm:$0xff]
  %v64 = vld [vmem:[%s0 + $0x178] sm:$0xff]
  %v65 = vld [vmem:[%s0 + $0x180] sm:$0xff]
  %v66 = vld [vmem:[%s0 + $0x188] sm:$0xff]
  %v67 = vld [vmem:[%s0 + $0x190] sm:$0xff]
  %v68 = vld [vmem:[%s0 + $0x198] sm:$0xff]
  %v69 = vld [vmem:[%s0 + $0x1a0] sm:$0xff]
  %v70 = vld [vmem:[%s0 + $0x1a8] sm:$0xff]
  %v71 = vld [vmem:[%s0 + $0x1b0] sm:$0xff]
  %v72 = vld [vmem:[%s0 + $0x1b8] sm:$0xff]
  %v73 = vld [vmem:[%s0 + $0x1c0] sm:$0xff]
  %v74 = vld [vmem:[%s0 + $0x1c8] sm:$0xff]
  %v75 = vld [vmem:[%s0 + $0x1d0] sm:$0xff]
  %v76 = vld [vmem:[%s0 + $0x1d8] sm:$0xff]
  %v77 = vld [vmem:[%s0 + $0x1e0] sm:$0xff]
  %v78 = vld [vmem:[%s0 + $0x1e8] sm:$0xff]
  %v79 = vld [vmem:[%s0 + $0x1f0] sm:$0xff]
  %v80 = vld [vmem:[%s0 + $0x1f8] sm:$0xff]
  %v81 = vld [vmem:[%s1] sm:$0xff]
  %v82 = vld [vmem:[%s1 + $0x8] sm:$0xff]
  %v83 = vld [vmem:[%s1 + $0x10] sm:$0xff]
  %v84 = vld [vmem:[%s1 + $0x18] sm:$0xff]
  %v85 = vld [vmem:[%s1 + $0x20] sm:$0xf]
  %vm86 = vcmask 293888
  %v88 = vsel %vm86, %v17, 0
  %v91 = vsel %vm86, %v18, 0
  %v94 = vsel %vm86, %v19, 0
  %v97 = vsel %vm86, %v20, 0
  %v100 = vsel %vm86, %v21, 0
  %v103 = vsel %vm86, %v22, 0
  %v106 = vsel %vm86, %v23, 0
  %v109 = vsel %vm86, %v24, 0
  %v112 = vsel %vm86, %v25, 0
  %v115 = vsel %vm86, %v26, 0
  %v118 = vsel %vm86, %v27, 0
  %v121 = vsel %vm86, %v28, 0
  %v124 = vsel %vm86, %v29, 0
  %v127 = vsel %vm86, %v30, 0
  %v130 = vsel %vm86, %v31, 0
  %v133 = vsel %vm86, %v32, 0
  %v136 = vsel %vm86, %v33, 0
  %v139 = vsel %vm86, %v34, 0
  %v142 = vsel %vm86, %v35, 0
  %v145 = vsel %vm86, %v36, 0
  %v148 = vsel %vm86, %v37, 0
  %v151 = vsel %vm86, %v38, 0
  %v154 = vsel %vm86, %v39, 0
  %v157 = vsel %vm86, %v40, 0
  %v160 = vsel %vm86, %v41, 0
  %v163 = vsel %vm86, %v42, 0
  %v166 = vsel %vm86, %v43, 0
  %v169 = vsel %vm86, %v44, 0
  %v172 = vsel %vm86, %v45, 0
  %v175 = vsel %vm86, %v46, 0
  %v178 = vsel %vm86, %v47, 0
  %v181 = vsel %vm86, %v48, 0
  %v184 = vsel %vm86, %v49, 0
  %v187 = vsel %vm86, %v50, 0
  %v190 = vsel %vm86, %v51, 0
  %v193 = vsel %vm86, %v52, 0
  %v196 = vsel %vm86, %v53, 0
  %v199 = vsel %vm86, %v54, 0
  %v202 = vsel %vm86, %v55, 0
  %v205 = vsel %vm86, %v56, 0
  %v208 = vsel %vm86, %v57, 0
  %v211 = vsel %vm86, %v58, 0
  %v214 = vsel %vm86, %v59, 0
  %v217 = vsel %vm86, %v60, 0
  %v220 = vsel %vm86, %v61, 0
  %v223 = vsel %vm86, %v62, 0
  %v226 = vsel %vm86, %v63, 0
  %v229 = vsel %vm86, %v64, 0
  %v232 = vsel %vm86, %v65, 0
  %v235 = vsel %vm86, %v66, 0
  %v238 = vsel %vm86, %v67, 0
  %v241 = vsel %vm86, %v68, 0
  %v244 = vsel %vm86, %v69, 0
  %v247 = vsel %vm86, %v70, 0
  %v250 = vsel %vm86, %v71, 0
  %v253 = vsel %vm86, %v72, 0
  %v256 = vsel %vm86, %v73, 0
  %v259 = vsel %vm86, %v74, 0
  %v262 = vsel %vm86, %v75, 0
  %v265 = vsel %vm86, %v76, 0
  %v268 = vsel %vm86, %v77, 0
  %v271 = vsel %vm86, %v78, 0
  %v274 = vsel %vm86, %v79, 0
  %v277 = vsel %vm86, %v80, 0
  %vm279 = vcmask 1043456
  %v281 = vsel %vm279, %v85, 0
  %283 = vmatpush.msra.mxu0 0.0
  %284 = vmatpush.msra.mxu0 0.0
  %285 = vmatpush.msra.mxu0 0.0
  %286 = vmatpush.msra.mxu0 0.0
  %287 = vmatpush.msra.mxu0 0.0
  %288 = vmatpush.msra.mxu0 0.0
  %289 = vmatpush.msra.mxu0 0.0
  %290 = vmatpush.msra.mxu0 0.0
  %291 = vmatpush.msra.mxu0 0.0
  %292 = vmatpush.msra.mxu0 0.0
  %293 = vmatpush.msra.mxu0 0.0
  %294 = vmatpush.msra.mxu0 %v281
  %295 = vmatpush.msra.mxu0 %v84
  %296 = vmatpush.msra.mxu0 %v83
  %297 = vmatpush.msra.mxu0 %v82
  %298 = vmatpush.msra.mxu0 %v81
  %299 = vmatmul.f32.gmra.mxu0 %v88
  %v300 = vpop.f32.mrf.mxu0
  %v301 = vadd.f32 0.0, %v300
  %302 = vmatmul.f32.gmra.mxu0 %v91
  %v303 = vpop.f32.mrf.mxu0
  %v304 = vadd.f32 0.0, %v303
  %305 = vmatmul.f32.gmra.mxu0 %v94
  %v306 = vpop.f32.mrf.mxu0
  %v307 = vadd.f32 0.0, %v306
  %308 = vmatmul.f32.gmra.mxu0 %v97
  %v309 = vpop.f32.mrf.mxu0
  %v310 = vadd.f32 0.0, %v309
  %311 = vmatmul.f32.gmra.mxu0 %v100
  %v312 = vpop.f32.mrf.mxu0
  %v313 = vadd.f32 0.0, %v312
  %314 = vmatmul.f32.gmra.mxu0 %v103
  %v315 = vpop.f32.mrf.mxu0
  %v316 = vadd.f32 0.0, %v315
  %317 = vmatmul.f32.gmra.mxu0 %v106
  %v318 = vpop.f32.mrf.mxu0
  %v319 = vadd.f32 0.0, %v318
  %320 = vmatmul.f32.gmra.mxu0 %v109
  %v321 = vpop.f32.mrf.mxu0
  %v322 = vadd.f32 0.0, %v321
  %323 = vmatmul.f32.gmra.mxu0 %v112
  %v324 = vpop.f32.mrf.mxu0
  %v325 = vadd.f32 0.0, %v324
  %326 = vmatmul.f32.gmra.mxu0 %v115
  %v327 = vpop.f32.mrf.mxu0
  %v328 = vadd.f32 0.0, %v327
  %329 = vmatmul.f32.gmra.mxu0 %v118
  %v330 = vpop.f32.mrf.mxu0
  %v331 = vadd.f32 0.0, %v330
  %332 = vmatmul.f32.gmra.mxu0 %v121
  %v333 = vpop.f32.mrf.mxu0
  %v334 = vadd.f32 0.0, %v333
  %335 = vmatmul.f32.gmra.mxu0 %v124
  %v336 = vpop.f32.mrf.mxu0
  %v337 = vadd.f32 0.0, %v336
  %338 = vmatmul.f32.gmra.mxu0 %v127
  %v339 = vpop.f32.mrf.mxu0
  %v340 = vadd.f32 0.0, %v339
  %341 = vmatmul.f32.gmra.mxu0 %v130
  %v342 = vpop.f32.mrf.mxu0
  %v343 = vadd.f32 0.0, %v342
  %344 = vmatmul.f32.gmra.mxu0 %v133
  %v345 = vpop.f32.mrf.mxu0
  %v346 = vadd.f32 0.0, %v345
  %347 = vmatmul.f32.gmra.mxu0 %v136
  %v348 = vpop.f32.mrf.mxu0
  %v349 = vadd.f32 0.0, %v348
  %350 = vmatmul.f32.gmra.mxu0 %v139
  %v351 = vpop.f32.mrf.mxu0
  %v352 = vadd.f32 0.0, %v351
  %353 = vmatmul.f32.gmra.mxu0 %v142
  %v354 = vpop.f32.mrf.mxu0
  %v355 = vadd.f32 0.0, %v354
  %356 = vmatmul.f32.gmra.mxu0 %v145
  %v357 = vpop.f32.mrf.mxu0
  %v358 = vadd.f32 0.0, %v357
  %359 = vmatmul.f32.gmra.mxu0 %v148
  %v360 = vpop.f32.mrf.mxu0
  %v361 = vadd.f32 0.0, %v360
  %362 = vmatmul.f32.gmra.mxu0 %v151
  %v363 = vpop.f32.mrf.mxu0
  %v364 = vadd.f32 0.0, %v363
  %365 = vmatmul.f32.gmra.mxu0 %v154
  %v366 = vpop.f32.mrf.mxu0
  %v367 = vadd.f32 0.0, %v366
  %368 = vmatmul.f32.gmra.mxu0 %v157
  %v369 = vpop.f32.mrf.mxu0
  %v370 = vadd.f32 0.0, %v369
  %371 = vmatmul.f32.gmra.mxu0 %v160
  %v372 = vpop.f32.mrf.mxu0
  %v373 = vadd.f32 0.0, %v372
  %374 = vmatmul.f32.gmra.mxu0 %v163
  %v375 = vpop.f32.mrf.mxu0
  %v376 = vadd.f32 0.0, %v375
  %377 = vmatmul.f32.gmra.mxu0 %v166
  %v378 = vpop.f32.mrf.mxu0
  %v379 = vadd.f32 0.0, %v378
  %380 = vmatmul.f32.gmra.mxu0 %v169
  %v381 = vpop.f32.mrf.mxu0
  %v382 = vadd.f32 0.0, %v381
  %383 = vmatmul.f32.gmra.mxu0 %v172
  %v384 = vpop.f32.mrf.mxu0
  %v385 = vadd.f32 0.0, %v384
  %386 = vmatmul.f32.gmra.mxu0 %v175
  %v387 = vpop.f32.mrf.mxu0
  %v388 = vadd.f32 0.0, %v387
  %389 = vmatmul.f32.gmra.mxu0 %v178
  %v390 = vpop.f32.mrf.mxu0
  %v391 = vadd.f32 0.0, %v390
  %392 = vmatmul.f32.gmra.mxu0 %v181
  %v393 = vpop.f32.mrf.mxu0
  %v394 = vadd.f32 0.0, %v393
  %395 = vmatmul.f32.gmra.mxu0 %v184
  %v396 = vpop.f32.mrf.mxu0
  %v397 = vadd.f32 0.0, %v396
  %398 = vmatmul.f32.gmra.mxu0 %v187
  %v399 = vpop.f32.mrf.mxu0
  %v400 = vadd.f32 0.0, %v399
  %401 = vmatmul.f32.gmra.mxu0 %v190
  %v402 = vpop.f32.mrf.mxu0
  %v403 = vadd.f32 0.0, %v402
  %404 = vmatmul.f32.gmra.mxu0 %v193
  %v405 = vpop.f32.mrf.mxu0
  %v406 = vadd.f32 0.0, %v405
  %407 = vmatmul.f32.gmra.mxu0 %v196
  %v408 = vpop.f32.mrf.mxu0
  %v409 = vadd.f32 0.0, %v408
  %410 = vmatmul.f32.gmra.mxu0 %v199
  %v411 = vpop.f32.mrf.mxu0
  %v412 = vadd.f32 0.0, %v411
  %413 = vmatmul.f32.gmra.mxu0 %v202
  %v414 = vpop.f32.mrf.mxu0
  %v415 = vadd.f32 0.0, %v414
  %416 = vmatmul.f32.gmra.mxu0 %v205
  %v417 = vpop.f32.mrf.mxu0
  %v418 = vadd.f32 0.0, %v417
  %419 = vmatmul.f32.gmra.mxu0 %v208
  %v420 = vpop.f32.mrf.mxu0
  %v421 = vadd.f32 0.0, %v420
  %422 = vmatmul.f32.gmra.mxu0 %v211
  %v423 = vpop.f32.mrf.mxu0
  %v424 = vadd.f32 0.0, %v423
  %425 = vmatmul.f32.gmra.mxu0 %v214
  %v426 = vpop.f32.mrf.mxu0
  %v427 = vadd.f32 0.0, %v426
  %428 = vmatmul.f32.gmra.mxu0 %v217
  %v429 = vpop.f32.mrf.mxu0
  %v430 = vadd.f32 0.0, %v429
  %431 = vmatmul.f32.gmra.mxu0 %v220
  %v432 = vpop.f32.mrf.mxu0
  %v433 = vadd.f32 0.0, %v432
  %434 = vmatmul.f32.gmra.mxu0 %v223
  %v435 = vpop.f32.mrf.mxu0
  %v436 = vadd.f32 0.0, %v435
  %437 = vmatmul.f32.gmra.mxu0 %v226
  %v438 = vpop.f32.mrf.mxu0
  %v439 = vadd.f32 0.0, %v438
  %440 = vmatmul.f32.gmra.mxu0 %v229
  %v441 = vpop.f32.mrf.mxu0
  %v442 = vadd.f32 0.0, %v441
  %443 = vmatmul.f32.gmra.mxu0 %v232
  %v444 = vpop.f32.mrf.mxu0
  %v445 = vadd.f32 0.0, %v444
  %446 = vmatmul.f32.gmra.mxu0 %v235
  %v447 = vpop.f32.mrf.mxu0
  %v448 = vadd.f32 0.0, %v447
  %449 = vmatmul.f32.gmra.mxu0 %v238
  %v450 = vpop.f32.mrf.mxu0
  %v451 = vadd.f32 0.0, %v450
  %452 = vmatmul.f32.gmra.mxu0 %v241
  %v453 = vpop.f32.mrf.mxu0
  %v454 = vadd.f32 0.0, %v453
  %455 = vmatmul.f32.gmra.mxu0 %v244
  %v456 = vpop.f32.mrf.mxu0
  %v457 = vadd.f32 0.0, %v456
  %458 = vmatmul.f32.gmra.mxu0 %v247
  %v459 = vpop.f32.mrf.mxu0
  %v460 = vadd.f32 0.0, %v459
  %461 = vmatmul.f32.gmra.mxu0 %v250
  %v462 = vpop.f32.mrf.mxu0
  %v463 = vadd.f32 0.0, %v462
  %464 = vmatmul.f32.gmra.mxu0 %v253
  %v465 = vpop.f32.mrf.mxu0
  %v466 = vadd.f32 0.0, %v465
  %467 = vmatmul.f32.gmra.mxu0 %v256
  %v468 = vpop.f32.mrf.mxu0
  %v469 = vadd.f32 0.0, %v468
  %470 = vmatmul.f32.gmra.mxu0 %v259
  %v471 = vpop.f32.mrf.mxu0
  %v472 = vadd.f32 0.0, %v471
  %473 = vmatmul.f32.gmra.mxu0 %v262
  %v474 = vpop.f32.mrf.mxu0
  %v475 = vadd.f32 0.0, %v474
  %476 = vmatmul.f32.gmra.mxu0 %v265
  %v477 = vpop.f32.mrf.mxu0
  %v478 = vadd.f32 0.0, %v477
  %479 = vmatmul.f32.gmra.mxu0 %v268
  %v480 = vpop.f32.mrf.mxu0
  %v481 = vadd.f32 0.0, %v480
  %482 = vmatmul.f32.gmra.mxu0 %v271
  %v483 = vpop.f32.mrf.mxu0
  %v484 = vadd.f32 0.0, %v483
  %485 = vmatmul.f32.gmra.mxu0 %v274
  %v486 = vpop.f32.mrf.mxu0
  %v487 = vadd.f32 0.0, %v486
  %488 = vmatmul.f32.gmra.mxu0 %v277
  %v489 = vpop.f32.mrf.mxu0
  %v490 = vadd.f32 0.0, %v489
  %491 = vdwg.mxu0
  %v492 = vld [vmem:[%s2] sm:$0x1]
  %v494 = vperm.slane %v492, 0
  %v496 = vmul.f32 %v301, %v494
  %v497 = vmul.f32 %v304, %v494
  %v498 = vmul.f32 %v307, %v494
  %v499 = vmul.f32 %v310, %v494
  %v500 = vmul.f32 %v313, %v494
  %v501 = vmul.f32 %v316, %v494
  %v502 = vmul.f32 %v319, %v494
  %v503 = vmul.f32 %v322, %v494
  %v504 = vmul.f32 %v325, %v494
  %v505 = vmul.f32 %v328, %v494
  %v506 = vmul.f32 %v331, %v494
  %v507 = vmul.f32 %v334, %v494
  %v508 = vmul.f32 %v337, %v494
  %v509 = vmul.f32 %v340, %v494
  %v510 = vmul.f32 %v343, %v494
  %v511 = vmul.f32 %v346, %v494
  %v512 = vmul.f32 %v349, %v494
  %v513 = vmul.f32 %v352, %v494
  %v514 = vmul.f32 %v355, %v494
  %v515 = vmul.f32 %v358, %v494
  %v516 = vmul.f32 %v361, %v494
  %v517 = vmul.f32 %v364, %v494
  %v518 = vmul.f32 %v367, %v494
  %v519 = vmul.f32 %v370, %v494
  %v520 = vmul.f32 %v373, %v494
  %v521 = vmul.f32 %v376, %v494
  %v522 = vmul.f32 %v379, %v494
  %v523 = vmul.f32 %v382, %v494
  %v524 = vmul.f32 %v385, %v494
  %v525 = vmul.f32 %v388, %v494
  %v526 = vmul.f32 %v391, %v494
  %v527 = vmul.f32 %v394, %v494
  %v528 = vmul.f32 %v397, %v494
  %v529 = vmul.f32 %v400, %v494
  %v530 = vmul.f32 %v403, %v494
  %v531 = vmul.f32 %v406, %v494
  %v532 = vmul.f32 %v409, %v494
  %v533 = vmul.f32 %v412, %v494
  %v534 = vmul.f32 %v415, %v494
  %v535 = vmul.f32 %v418, %v494
  %v536 = vmul.f32 %v421, %v494
  %v537 = vmul.f32 %v424, %v494
  %v538 = vmul.f32 %v427, %v494
  %v539 = vmul.f32 %v430, %v494
  %v540 = vmul.f32 %v433, %v494
  %v541 = vmul.f32 %v436, %v494
  %v542 = vmul.f32 %v439, %v494
  %v543 = vmul.f32 %v442, %v494
  %v544 = vmul.f32 %v445, %v494
  %v545 = vmul.f32 %v448, %v494
  %v546 = vmul.f32 %v451, %v494
  %v547 = vmul.f32 %v454, %v494
  %v548 = vmul.f32 %v457, %v494
  %v549 = vmul.f32 %v460, %v494
  %v550 = vmul.f32 %v463, %v494
  %v551 = vmul.f32 %v466, %v494
  %v552 = vmul.f32 %v469, %v494
  %v553 = vmul.f32 %v472, %v494
  %v554 = vmul.f32 %v475, %v494
  %v555 = vmul.f32 %v478, %v494
  %v556 = vmul.f32 %v481, %v494
  %v557 = vmul.f32 %v484, %v494
  %v558 = vmul.f32 %v487, %v494
  %v559 = vmul.f32 %v490, %v494
  %v560 = vld [vmem:[%s3] sm:$0x1]
  %v562 = vperm.slane %v560, 0
  %v564 = vadd.f32 %v496, %v562
  %v565 = vadd.f32 %v497, %v562
  %v566 = vadd.f32 %v498, %v562
  %v567 = vadd.f32 %v499, %v562
  %v568 = vadd.f32 %v500, %v562
  %v569 = vadd.f32 %v501, %v562
  %v570 = vadd.f32 %v502, %v562
  %v571 = vadd.f32 %v503, %v562
  %v572 = vadd.f32 %v504, %v562
  %v573 = vadd.f32 %v505, %v562
  %v574 = vadd.f32 %v506, %v562
  %v575 = vadd.f32 %v507, %v562
  %v576 = vadd.f32 %v508, %v562
  %v577 = vadd.f32 %v509, %v562
  %v578 = vadd.f32 %v510, %v562
  %v579 = vadd.f32 %v511, %v562
  %v580 = vadd.f32 %v512, %v562
  %v581 = vadd.f32 %v513, %v562
  %v582 = vadd.f32 %v514, %v562
  %v583 = vadd.f32 %v515, %v562
  %v584 = vadd.f32 %v516, %v562
  %v585 = vadd.f32 %v517, %v562
  %v586 = vadd.f32 %v518, %v562
  %v587 = vadd.f32 %v519, %v562
  %v588 = vadd.f32 %v520, %v562
  %v589 = vadd.f32 %v521, %v562
  %v590 = vadd.f32 %v522, %v562
  %v591 = vadd.f32 %v523, %v562
  %v592 = vadd.f32 %v524, %v562
  %v593 = vadd.f32 %v525, %v562
  %v594 = vadd.f32 %v526, %v562
  %v595 = vadd.f32 %v527, %v562
  %v596 = vadd.f32 %v528, %v562
  %v597 = vadd.f32 %v529, %v562
  %v598 = vadd.f32 %v530, %v562
  %v599 = vadd.f32 %v531, %v562
  %v600 = vadd.f32 %v532, %v562
  %v601 = vadd.f32 %v533, %v562
  %v602 = vadd.f32 %v534, %v562
  %v603 = vadd.f32 %v535, %v562
  %v604 = vadd.f32 %v536, %v562
  %v605 = vadd.f32 %v537, %v562
  %v606 = vadd.f32 %v538, %v562
  %v607 = vadd.f32 %v539, %v562
  %v608 = vadd.f32 %v540, %v562
  %v609 = vadd.f32 %v541, %v562
  %v610 = vadd.f32 %v542, %v562
  %v611 = vadd.f32 %v543, %v562
  %v612 = vadd.f32 %v544, %v562
  %v613 = vadd.f32 %v545, %v562
  %v614 = vadd.f32 %v546, %v562
  %v615 = vadd.f32 %v547, %v562
  %v616 = vadd.f32 %v548, %v562
  %v617 = vadd.f32 %v549, %v562
  %v618 = vadd.f32 %v550, %v562
  %v619 = vadd.f32 %v551, %v562
  %v620 = vadd.f32 %v552, %v562
  %v621 = vadd.f32 %v553, %v562
  %v622 = vadd.f32 %v554, %v562
  %v623 = vadd.f32 %v555, %v562
  %v624 = vadd.f32 %v556, %v562
  %v625 = vadd.f32 %v557, %v562
  %v626 = vadd.f32 %v558, %v562
  %v627 = vadd.f32 %v559, %v562
  %v628 = vmax.f32 %v564, 0.0
  %v629 = vmax.f32 %v565, 0.0
  %v630 = vmax.f32 %v566, 0.0
  %v631 = vmax.f32 %v567, 0.0
  %v632 = vmax.f32 %v568, 0.0
  %v633 = vmax.f32 %v569, 0.0
  %v634 = vmax.f32 %v570, 0.0
  %v635 = vmax.f32 %v571, 0.0
  %v636 = vmax.f32 %v572, 0.0
  %v637 = vmax.f32 %v573, 0.0
  %v638 = vmax.f32 %v574, 0.0
  %v639 = vmax.f32 %v575, 0.0
  %v640 = vmax.f32 %v576, 0.0
  %v641 = vmax.f32 %v577, 0.0
  %v642 = vmax.f32 %v578, 0.0
  %v643 = vmax.f32 %v579, 0.0
  %v644 = vmax.f32 %v580, 0.0
  %v645 = vmax.f32 %v581, 0.0
  %v646 = vmax.f32 %v582, 0.0
  %v647 = vmax.f32 %v583, 0.0
  %v648 = vmax.f32 %v584, 0.0
  %v649 = vmax.f32 %v585, 0.0
  %v650 = vmax.f32 %v586, 0.0
  %v651 = vmax.f32 %v587, 0.0
  %v652 = vmax.f32 %v588, 0.0
  %v653 = vmax.f32 %v589, 0.0
  %v654 = vmax.f32 %v590, 0.0
  %v655 = vmax.f32 %v591, 0.0
  %v656 = vmax.f32 %v592, 0.0
  %v657 = vmax.f32 %v593, 0.0
  %v658 = vmax.f32 %v594, 0.0
  %v659 = vmax.f32 %v595, 0.0
  %v660 = vmax.f32 %v596, 0.0
  %v661 = vmax.f32 %v597, 0.0
  %v662 = vmax.f32 %v598, 0.0
  %v663 = vmax.f32 %v599, 0.0
  %v664 = vmax.f32 %v600, 0.0
  %v665 = vmax.f32 %v601, 0.0
  %v666 = vmax.f32 %v602, 0.0
  %v667 = vmax.f32 %v603, 0.0
  %v668 = vmax.f32 %v604, 0.0
  %v669 = vmax.f32 %v605, 0.0
  %v670 = vmax.f32 %v606, 0.0
  %v671 = vmax.f32 %v607, 0.0
  %v672 = vmax.f32 %v608, 0.0
  %v673 = vmax.f32 %v609, 0.0
  %v674 = vmax.f32 %v610, 0.0
  %v675 = vmax.f32 %v611, 0.0
  %v676 = vmax.f32 %v612, 0.0
  %v677 = vmax.f32 %v613, 0.0
  %v678 = vmax.f32 %v614, 0.0
  %v679 = vmax.f32 %v615, 0.0
  %v680 = vmax.f32 %v616, 0.0
  %v681 = vmax.f32 %v617, 0.0
  %v682 = vmax.f32 %v618, 0.0
  %v683 = vmax.f32 %v619, 0.0
  %v684 = vmax.f32 %v620, 0.0
  %v685 = vmax.f32 %v621, 0.0
  %v686 = vmax.f32 %v622, 0.0
  %v687 = vmax.f32 %v623, 0.0
  %v688 = vmax.f32 %v624, 0.0
  %v689 = vmax.f32 %v625, 0.0
  %v690 = vmax.f32 %v626, 0.0
  %v691 = vmax.f32 %v627, 0.0
  %vm692 = vcmask 31744
  %693 = vst.msk [vmem:[%s4] sm:$0xff] %vm692, %v628
  %694 = vst.msk [vmem:[%s4 + $0x8] sm:$0xff] %vm692, %v629
  %695 = vst.msk [vmem:[%s4 + $0x10] sm:$0xff] %vm692, %v630
  %696 = vst.msk [vmem:[%s4 + $0x18] sm:$0xff] %vm692, %v631
  %697 = vst.msk [vmem:[%s4 + $0x20] sm:$0xff] %vm692, %v632
  %698 = vst.msk [vmem:[%s4 + $0x28] sm:$0xff] %vm692, %v633
  %699 = vst.msk [vmem:[%s4 + $0x30] sm:$0xff] %vm692, %v634
  %700 = vst.msk [vmem:[%s4 + $0x38] sm:$0xff] %vm692, %v635
  %701 = vst.msk [vmem:[%s4 + $0x40] sm:$0xff] %vm692, %v636
  %702 = vst.msk [vmem:[%s4 + $0x48] sm:$0xff] %vm692, %v637
  %703 = vst.msk [vmem:[%s4 + $0x50] sm:$0xff] %vm692, %v638
  %704 = vst.msk [vmem:[%s4 + $0x58] sm:$0xff] %vm692, %v639
  %705 = vst.msk [vmem:[%s4 + $0x60] sm:$0xff] %vm692, %v640
  %706 = vst.msk [vmem:[%s4 + $0x68] sm:$0xff] %vm692, %v641
  %707 = vst.msk [vmem:[%s4 + $0x70] sm:$0xff] %vm692, %v642
  %708 = vst.msk [vmem:[%s4 + $0x78] sm:$0xff] %vm692, %v643
  %709 = vst.msk [vmem:[%s4 + $0x80] sm:$0xff] %vm692, %v644
  %710 = vst.msk [vmem:[%s4 + $0x88] sm:$0xff] %vm692, %v645
  %711 = vst.msk [vmem:[%s4 + $0x90] sm:$0xff] %vm692, %v646
  %712 = vst.msk [vmem:[%s4 + $0x98] sm:$0xff] %vm692, %v647
  %713 = vst.msk [vmem:[%s4 + $0xa0] sm:$0xff] %vm692, %v648
  %714 = vst.msk [vmem:[%s4 + $0xa8] sm:$0xff] %vm692, %v649
  %715 = vst.msk [vmem:[%s4 + $0xb0] sm:$0xff] %vm692, %v650
  %716 = vst.msk [vmem:[%s4 + $0xb8] sm:$0xff] %vm692, %v651
  %717 = vst.msk [vmem:[%s4 + $0xc0] sm:$0xff] %vm692, %v652
  %718 = vst.msk [vmem:[%s4 + $0xc8] sm:$0xff] %vm692, %v653
  %719 = vst.msk [vmem:[%s4 + $0xd0] sm:$0xff] %vm692, %v654
  %720 = vst.msk [vmem:[%s4 + $0xd8] sm:$0xff] %vm692, %v655
  %721 = vst.msk [vmem:[%s4 + $0xe0] sm:$0xff] %vm692, %v656
  %722 = vst.msk [vmem:[%s4 + $0xe8] sm:$0xff] %vm692, %v657
  %723 = vst.msk [vmem:[%s4 + $0xf0] sm:$0xff] %vm692, %v658
  %724 = vst.msk [vmem:[%s4 + $0xf8] sm:$0xff] %vm692, %v659
  %725 = vst.msk [vmem:[%s4 + $0x100] sm:$0xff] %vm692, %v660
  %726 = vst.msk [vmem:[%s4 + $0x108] sm:$0xff] %vm692, %v661
  %727 = vst.msk [vmem:[%s4 + $0x110] sm:$0xff] %vm692, %v662
  %728 = vst.msk [vmem:[%s4 + $0x118] sm:$0xff] %vm692, %v663
  %729 = vst.msk [vmem:[%s4 + $0x120] sm:$0xff] %vm692, %v664
  %730 = vst.msk [vmem:[%s4 + $0x128] sm:$0xff] %vm692, %v665
  %731 = vst.msk [vmem:[%s4 + $0x130] sm:$0xff] %vm692, %v666
  %732 = vst.msk [vmem:[%s4 + $0x138] sm:$0xff] %vm692, %v667
  %733 = vst.msk [vmem:[%s4 + $0x140] sm:$0xff] %vm692, %v668
  %734 = vst.msk [vmem:[%s4 + $0x148] sm:$0xff] %vm692, %v669
  %735 = vst.msk [vmem:[%s4 + $0x150] sm:$0xff] %vm692, %v670
  %736 = vst.msk [vmem:[%s4 + $0x158] sm:$0xff] %vm692, %v671
  %737 = vst.msk [vmem:[%s4 + $0x160] sm:$0xff] %vm692, %v672
  %738 = vst.msk [vmem:[%s4 + $0x168] sm:$0xff] %vm692, %v673
  %739 = vst.msk [vmem:[%s4 + $0x170] sm:$0xff] %vm692, %v674
  %740 = vst.msk [vmem:[%s4 + $0x178] sm:$0xff] %vm692, %v675
  %741 = vst.msk [vmem:[%s4 + $0x180] sm:$0xff] %vm692, %v676
  %742 = vst.msk [vmem:[%s4 + $0x188] sm:$0xff] %vm692, %v677
  %743 = vst.msk [vmem:[%s4 + $0x190] sm:$0xff] %vm692, %v678
  %744 = vst.msk [vmem:[%s4 + $0x198] sm:$0xff] %vm692, %v679
  %745 = vst.msk [vmem:[%s4 + $0x1a0] sm:$0xff] %vm692, %v680
  %746 = vst.msk [vmem:[%s4 + $0x1a8] sm:$0xff] %vm692, %v681
  %747 = vst.msk [vmem:[%s4 + $0x1b0] sm:$0xff] %vm692, %v682
  %748 = vst.msk [vmem:[%s4 + $0x1b8] sm:$0xff] %vm692, %v683
  %749 = vst.msk [vmem:[%s4 + $0x1c0] sm:$0xff] %vm692, %v684
  %750 = vst.msk [vmem:[%s4 + $0x1c8] sm:$0xff] %vm692, %v685
  %751 = vst.msk [vmem:[%s4 + $0x1d0] sm:$0xff] %vm692, %v686
  %752 = vst.msk [vmem:[%s4 + $0x1d8] sm:$0xff] %vm692, %v687
  %753 = vst.msk [vmem:[%s4 + $0x1e0] sm:$0xff] %vm692, %v688
  %754 = vst.msk [vmem:[%s4 + $0x1e8] sm:$0xff] %vm692, %v689
  %755 = vst.msk [vmem:[%s4 + $0x1f0] sm:$0xff] %vm692, %v690
  %756 = vst.msk [vmem:[%s4 + $0x1f8] sm:$0xff] %vm692, %v691
  // Predicated region
  $region18: #{unet_forward.28} parent=0 // pred_check
    _
  $region19: #{unet_forward.28} parent=0 // pred_check_branch
    %758 = sbr.rel (0) target = $region21
  $region20: #{unet_forward.28} parent=0 // pred_region
    _
  $region21: #{unet_forward.28} parent=0 // pred_fallthru
    _
  // Predicated region
  $region22: #{unet_forward.28} parent=0 // pred_check
    _
  $region23: #{unet_forward.28} parent=0 // pred_check_branch
    %760 = sbr.rel (0) target = $region25
  $region24: #{unet_forward.28} parent=0 // pred_region
    _
  $region25: #{unet_forward.28} parent=0 // pred_fallthru
    _

// kernel: unet_forward.30
$region0: #{unet_forward.30}
  #allocation0 [shape = 'u32[]', space=smem, size = 0x4, offset = 0x4, fixed_abs, tag = 'smem constant byte address 0x4 - core index']
  #allocation1 [shape = 'u32[72,128]{1,0:T(1,128)}', space=vmem, size = 0x9000, scoped, tag = 'internal scratch']
  %s0 = inlined_call_operand.vmem [shape: f32[128,36], index: 0, kind: input, shape index: {}]
  %s1 = inlined_call_operand.vmem [shape: f32[36,8], index: 1, kind: input, shape index: {}]
  %s2 = inlined_call_operand.vmem [shape: f32[1,8], index: 2, kind: input, shape index: {}]
  %s3 = inlined_call_operand.vmem [shape: f32[1,8], index: 3, kind: input, shape index: {}]
  %s4 = inlined_call_operand.vmem [shape: f32[128,8], index: 4, kind: output, shape index: {}]
  %s5 = sld [smem:[#allocation0]]
  $region26: #{unet_forward.30} parent=0
    _
  %s7 = ssub.s32 1, %s5
  %s8 = scalar_select 0, %s7, %s5
  // Predicated region
  $region2: #{unet_forward.30} parent=0 // pred_check
    _
  $region3: #{unet_forward.30} parent=0 // pred_check_branch
    %10 = sbr.rel (0) target = $region5
  $region4: #{unet_forward.30} parent=0 // pred_region
    _
  $region5: #{unet_forward.30} parent=0 // pred_fallthru
    _
  // Predicated region
  $region6: #{unet_forward.30} parent=0 // pred_check
    _
  $region7: #{unet_forward.30} parent=0 // pred_check_branch
    %12 = sbr.rel (0) target = $region9
  $region8: #{unet_forward.30} parent=0 // pred_region
    _
  $region9: #{unet_forward.30} parent=0 // pred_fallthru
    _
  // Predicated region
  $region10: #{unet_forward.30} parent=0 // pred_check
    _
  $region11: #{unet_forward.30} parent=0 // pred_check_branch
    %14 = sbr.rel (0) target = $region13
  $region12: #{unet_forward.30} parent=0 // pred_region
    _
  $region13: #{unet_forward.30} parent=0 // pred_fallthru
    _
  // Predicated region
  $region14: #{unet_forward.30} parent=0 // pred_check
    _
  $region15: #{unet_forward.30} parent=0 // pred_check_branch
    %16 = sbr.rel (0) target = $region17
  $region16: #{unet_forward.30} parent=0 // pred_region
    _
  $region17: #{unet_forward.30} parent=0 // pred_fallthru
    _
  %v17 = vld [vmem:[%s0] sm:$0xff]
  %v18 = vld [vmem:[%s0 + $0x8] sm:$0xff]
  %v19 = vld [vmem:[%s0 + $0x10] sm:$0xff]
  %v20 = vld [vmem:[%s0 + $0x18] sm:$0xff]
  %v21 = vld [vmem:[%s0 + $0x20] sm:$0xff]
  %v22 = vld [vmem:[%s0 + $0x28] sm:$0xff]
  %v23 = vld [vmem:[%s0 + $0x30] sm:$0xff]
  %v24 = vld [vmem:[%s0 + $0x38] sm:$0xff]
  %v25 = vld [vmem:[%s0 + $0x40] sm:$0xff]
  %v26 = vld [vmem:[%s0 + $0x48] sm:$0xff]
  %v27 = vld [vmem:[%s0 + $0x50] sm:$0xff]
  %v28 = vld [vmem:[%s0 + $0x58] sm:$0xff]
  %v29 = vld [vmem:[%s0 + $0x60] sm:$0xff]
  %v30 = vld [vmem:[%s0 + $0x68] sm:$0xff]
  %v31 = vld [vmem:[%s0 + $0x70] sm:$0xff]
  %v32 = vld [vmem:[%s0 + $0x78] sm:$0xff]
  %v33 = vld [vmem:[%s1] sm:$0xff]
  %v34 = vld [vmem:[%s1 + $0x8] sm:$0xff]
  %v35 = vld [vmem:[%s1 + $0x10] sm:$0xff]
  %v36 = vld [vmem:[%s1 + $0x18] sm:$0xff]
  %v37 = vld [vmem:[%s1 + $0x20] sm:$0xf]
  %vm38 = vcmask 293888
  %v40 = vsel %vm38, %v17, 0
  %v43 = vsel %vm38, %v18, 0
  %v46 = vsel %vm38, %v19, 0
  %v49 = vsel %vm38, %v20, 0
  %v52 = vsel %vm38, %v21, 0
  %v55 = vsel %vm38, %v22, 0
  %v58 = vsel %vm38, %v23, 0
  %v61 = vsel %vm38, %v24, 0
  %v64 = vsel %vm38, %v25, 0
  %v67 = vsel %vm38, %v26, 0
  %v70 = vsel %vm38, %v27, 0
  %v73 = vsel %vm38, %v28, 0
  %v76 = vsel %vm38, %v29, 0
  %v79 = vsel %vm38, %v30, 0
  %v82 = vsel %vm38, %v31, 0
  %v85 = vsel %vm38, %v32, 0
  %vm87 = vcmask 1043456
  %v89 = vsel %vm87, %v37, 0
  %91 = vmatpush.msra.mxu0 0.0
  %92 = vmatpush.msra.mxu0 0.0
  %93 = vmatpush.msra.mxu0 0.0
  %94 = vmatpush.msra.mxu0 0.0
  %95 = vmatpush.msra.mxu0 0.0
  %96 = vmatpush.msra.mxu0 0.0
  %97 = vmatpush.msra.mxu0 0.0
  %98 = vmatpush.msra.mxu0 0.0
  %99 = vmatpush.msra.mxu0 0.0
  %100 = vmatpush.msra.mxu0 0.0
  %101 = vmatpush.msra.mxu0 0.0
  %102 = vmatpush.msra.mxu0 %v89
  %103 = vmatpush.msra.mxu0 %v36
  %104 = vmatpush.msra.mxu0 %v35
  %105 = vmatpush.msra.mxu0 %v34
  %106 = vmatpush.msra.mxu0 %v33
  %107 = vmatmul.f32.gmra.mxu0 %v40
  %v108 = vpop.f32.mrf.mxu0
  %v109 = vadd.f32 0.0, %v108
  %110 = vmatmul.f32.gmra.mxu0 %v43
  %v111 = vpop.f32.mrf.mxu0
  %v112 = vadd.f32 0.0, %v111
  %113 = vmatmul.f32.gmra.mxu0 %v46
  %v114 = vpop.f32.mrf.mxu0
  %v115 = vadd.f32 0.0, %v114
  %116 = vmatmul.f32.gmra.mxu0 %v49
  %v117 = vpop.f32.mrf.mxu0
  %v118 = vadd.f32 0.0, %v117
  %119 = vmatmul.f32.gmra.mxu0 %v52
  %v120 = vpop.f32.mrf.mxu0
  %v121 = vadd.f32 0.0, %v120
  %122 = vmatmul.f32.gmra.mxu0 %v55
  %v123 = vpop.f32.mrf.mxu0
  %v124 = vadd.f32 0.0, %v123
  %125 = vmatmul.f32.gmra.mxu0 %v58
  %v126 = vpop.f32.mrf.mxu0
  %v127 = vadd.f32 0.0, %v126
  %128 = vmatmul.f32.gmra.mxu0 %v61
  %v129 = vpop.f32.mrf.mxu0
  %v130 = vadd.f32 0.0, %v129
  %131 = vmatmul.f32.gmra.mxu0 %v64
  %v132 = vpop.f32.mrf.mxu0
  %v133 = vadd.f32 0.0, %v132
  %134 = vmatmul.f32.gmra.mxu0 %v67
  %v135 = vpop.f32.mrf.mxu0
  %v136 = vadd.f32 0.0, %v135
  %137 = vmatmul.f32.gmra.mxu0 %v70
  %v138 = vpop.f32.mrf.mxu0
  %v139 = vadd.f32 0.0, %v138
  %140 = vmatmul.f32.gmra.mxu0 %v73
  %v141 = vpop.f32.mrf.mxu0
  %v142 = vadd.f32 0.0, %v141
  %143 = vmatmul.f32.gmra.mxu0 %v76
  %v144 = vpop.f32.mrf.mxu0
  %v145 = vadd.f32 0.0, %v144
  %146 = vmatmul.f32.gmra.mxu0 %v79
  %v147 = vpop.f32.mrf.mxu0
  %v148 = vadd.f32 0.0, %v147
  %149 = vmatmul.f32.gmra.mxu0 %v82
  %v150 = vpop.f32.mrf.mxu0
  %v151 = vadd.f32 0.0, %v150
  %152 = vmatmul.f32.gmra.mxu0 %v85
  %v153 = vpop.f32.mrf.mxu0
  %v154 = vadd.f32 0.0, %v153
  %155 = vdwg.mxu0
  %v156 = vld [vmem:[%s2] sm:$0x1]
  %v158 = vperm.slane %v156, 0
  %v160 = vmul.f32 %v109, %v158
  %v161 = vmul.f32 %v112, %v158
  %v162 = vmul.f32 %v115, %v158
  %v163 = vmul.f32 %v118, %v158
  %v164 = vmul.f32 %v121, %v158
  %v165 = vmul.f32 %v124, %v158
  %v166 = vmul.f32 %v127, %v158
  %v167 = vmul.f32 %v130, %v158
  %v168 = vmul.f32 %v133, %v158
  %v169 = vmul.f32 %v136, %v158
  %v170 = vmul.f32 %v139, %v158
  %v171 = vmul.f32 %v142, %v158
  %v172 = vmul.f32 %v145, %v158
  %v173 = vmul.f32 %v148, %v158
  %v174 = vmul.f32 %v151, %v158
  %v175 = vmul.f32 %v154, %v158
  %v176 = vld [vmem:[%s3] sm:$0x1]
  %v178 = vperm.slane %v176, 0
  %v180 = vadd.f32 %v160, %v178
  %v181 = vadd.f32 %v161, %v178
  %v182 = vadd.f32 %v162, %v178
  %v183 = vadd.f32 %v163, %v178
  %v184 = vadd.f32 %v164, %v178
  %v185 = vadd.f32 %v165, %v178
  %v186 = vadd.f32 %v166, %v178
  %v187 = vadd.f32 %v167, %v178
  %v188 = vadd.f32 %v168, %v178
  %v189 = vadd.f32 %v169, %v178
  %v190 = vadd.f32 %v170, %v178
  %v191 = vadd.f32 %v171, %v178
  %v192 = vadd.f32 %v172, %v178
  %v193 = vadd.f32 %v173, %v178
  %v194 = vadd.f32 %v174, %v178
  %v195 = vadd.f32 %v175, %v178
  %v196 = vmax.f32 %v180, 0.0
  %v197 = vmax.f32 %v181, 0.0
  %v198 = vmax.f32 %v182, 0.0
  %v199 = vmax.f32 %v183, 0.0
  %v200 = vmax.f32 %v184, 0.0
  %v201 = vmax.f32 %v185, 0.0
  %v202 = vmax.f32 %v186, 0.0
  %v203 = vmax.f32 %v187, 0.0
  %v204 = vmax.f32 %v188, 0.0
  %v205 = vmax.f32 %v189, 0.0
  %v206 = vmax.f32 %v190, 0.0
  %v207 = vmax.f32 %v191, 0.0
  %v208 = vmax.f32 %v192, 0.0
  %v209 = vmax.f32 %v193, 0.0
  %v210 = vmax.f32 %v194, 0.0
  %v211 = vmax.f32 %v195, 0.0
  %vm212 = vcmask 64512
  %213 = vst.msk [vmem:[%s4] sm:$0xff] %vm212, %v196
  %214 = vst.msk [vmem:[%s4 + $0x8] sm:$0xff] %vm212, %v197
  %215 = vst.msk [vmem:[%s4 + $0x10] sm:$0xff] %vm212, %v198
  %216 = vst.msk [vmem:[%s4 + $0x18] sm:$0xff] %vm212, %v199
  %217 = vst.msk [vmem:[%s4 + $0x20] sm:$0xff] %vm212, %v200
  %218 = vst.msk [vmem:[%s4 + $0x28] sm:$0xff] %vm212, %v201
  %219 = vst.msk [vmem:[%s4 + $0x30] sm:$0xff] %vm212, %v202
  %220 = vst.msk [vmem:[%s4 + $0x38] sm:$0xff] %vm212, %v203
  %221 = vst.msk [vmem:[%s4 + $0x40] sm:$0xff] %vm212, %v204
  %222 = vst.msk [vmem:[%s4 + $0x48] sm:$0xff] %vm212, %v205
  %223 = vst.msk [vmem:[%s4 + $0x50] sm:$0xff] %vm212, %v206
  %224 = vst.msk [vmem:[%s4 + $0x58] sm:$0xff] %vm212, %v207
  %225 = vst.msk [vmem:[%s4 + $0x60] sm:$0xff] %vm212, %v208
  %226 = vst.msk [vmem:[%s4 + $0x68] sm:$0xff] %vm212, %v209
  %227 = vst.msk [vmem:[%s4 + $0x70] sm:$0xff] %vm212, %v210
  %228 = vst.msk [vmem:[%s4 + $0x78] sm:$0xff] %vm212, %v211
  // Predicated region
  $region18: #{unet_forward.30} parent=0 // pred_check
    _
  $region19: #{unet_forward.30} parent=0 // pred_check_branch
    %230 = sbr.rel (0) target = $region21
  $region20: #{unet_forward.30} parent=0 // pred_region
    _
  $region21: #{unet_forward.30} parent=0 // pred_fallthru
    _
  // Predicated region
  $region22: #{unet_forward.30} parent=0 // pred_check
    _
  $region23: #{unet_forward.30} parent=0 // pred_check_branch
    %232 = sbr.rel (0) target = $region25
  $region24: #{unet_forward.30} parent=0 // pred_region
    _
  $region25: #{unet_forward.30} parent=0 // pred_fallthru
    _

// kernel: unet_forward.31
$region0: #{unet_forward.31}
  #allocation0 [shape = 'u32[]', space=smem, size = 0x4, offset = 0x4, fixed_abs, tag = 'smem constant byte address 0x4 - core index']
  #allocation1 [shape = 'u32[72,128]{1,0:T(1,128)}', space=vmem, size = 0x9000, scoped, tag = 'internal scratch']
  %s0 = inlined_call_operand.vmem [shape: f32[128,72], index: 0, kind: input, shape index: {}]
  %s1 = inlined_call_operand.vmem [shape: f32[72,8], index: 1, kind: input, shape index: {}]
  %s2 = inlined_call_operand.vmem [shape: f32[1,8], index: 2, kind: input, shape index: {}]
  %s3 = inlined_call_operand.vmem [shape: f32[1,8], index: 3, kind: input, shape index: {}]
  %s4 = inlined_call_operand.vmem [shape: f32[128,8], index: 4, kind: output, shape index: {}]
  %s5 = sld [smem:[#allocation0]]
  $region26: #{unet_forward.31} parent=0
    _
  %s7 = ssub.s32 1, %s5
  %s8 = scalar_select 0, %s7, %s5
  // Predicated region
  $region2: #{unet_forward.31} parent=0 // pred_check
    _
  $region3: #{unet_forward.31} parent=0 // pred_check_branch
    %10 = sbr.rel (0) target = $region5
  $region4: #{unet_forward.31} parent=0 // pred_region
    _
  $region5: #{unet_forward.31} parent=0 // pred_fallthru
    _
  // Predicated region
  $region6: #{unet_forward.31} parent=0 // pred_check
    _
  $region7: #{unet_forward.31} parent=0 // pred_check_branch
    %12 = sbr.rel (0) target = $region9
  $region8: #{unet_forward.31} parent=0 // pred_region
    _
  $region9: #{unet_forward.31} parent=0 // pred_fallthru
    _
  // Predicated region
  $region10: #{unet_forward.31} parent=0 // pred_check
    _
  $region11: #{unet_forward.31} parent=0 // pred_check_branch
    %14 = sbr.rel (0) target = $region13
  $region12: #{unet_forward.31} parent=0 // pred_region
    _
  $region13: #{unet_forward.31} parent=0 // pred_fallthru
    _
  // Predicated region
  $region14: #{unet_forward.31} parent=0 // pred_check
    _
  $region15: #{unet_forward.31} parent=0 // pred_check_branch
    %16 = sbr.rel (0) target = $region17
  $region16: #{unet_forward.31} parent=0 // pred_region
    _
  $region17: #{unet_forward.31} parent=0 // pred_fallthru
    _
  %v17 = vld [vmem:[%s0] sm:$0xff]
  %v18 = vld [vmem:[%s0 + $0x8] sm:$0xff]
  %v19 = vld [vmem:[%s0 + $0x10] sm:$0xff]
  %v20 = vld [vmem:[%s0 + $0x18] sm:$0xff]
  %v21 = vld [vmem:[%s0 + $0x20] sm:$0xff]
  %v22 = vld [vmem:[%s0 + $0x28] sm:$0xff]
  %v23 = vld [vmem:[%s0 + $0x30] sm:$0xff]
  %v24 = vld [vmem:[%s0 + $0x38] sm:$0xff]
  %v25 = vld [vmem:[%s0 + $0x40] sm:$0xff]
  %v26 = vld [vmem:[%s0 + $0x48] sm:$0xff]
  %v27 = vld [vmem:[%s0 + $0x50] sm:$0xff]
  %v28 = vld [vmem:[%s0 + $0x58] sm:$0xff]
  %v29 = vld [vmem:[%s0 + $0x60] sm:$0xff]
  %v30 = vld [vmem:[%s0 + $0x68] sm:$0xff]
  %v31 = vld [vmem:[%s0 + $0x70] sm:$0xff]
  %v32 = vld [vmem:[%s0 + $0x78] sm:$0xff]
  %v33 = vld [vmem:[%s1] sm:$0xff]
  %v34 = vld [vmem:[%s1 + $0x8] sm:$0xff]
  %v35 = vld [vmem:[%s1 + $0x10] sm:$0xff]
  %v36 = vld [vmem:[%s1 + $0x18] sm:$0xff]
  %v37 = vld [vmem:[%s1 + $0x20] sm:$0xff]
  %v38 = vld [vmem:[%s1 + $0x28] sm:$0xff]
  %v39 = vld [vmem:[%s1 + $0x30] sm:$0xff]
  %v40 = vld [vmem:[%s1 + $0x38] sm:$0xff]
  %v41 = vld [vmem:[%s1 + $0x40] sm:$0xff]
  %vm42 = vcmask 588800
  %v44 = vsel %vm42, %v17, 0
  %v47 = vsel %vm42, %v18, 0
  %v50 = vsel %vm42, %v19, 0
  %v53 = vsel %vm42, %v20, 0
  %v56 = vsel %vm42, %v21, 0
  %v59 = vsel %vm42, %v22, 0
  %v62 = vsel %vm42, %v23, 0
  %v65 = vsel %vm42, %v24, 0
  %v68 = vsel %vm42, %v25, 0
  %v71 = vsel %vm42, %v26, 0
  %v74 = vsel %vm42, %v27, 0
  %v77 = vsel %vm42, %v28, 0
  %v80 = vsel %vm42, %v29, 0
  %v83 = vsel %vm42, %v30, 0
  %v86 = vsel %vm42, %v31, 0
  %v89 = vsel %vm42, %v32, 0
  %91 = vmatpush.msra.mxu0 0.0
  %92 = vmatpush.msra.mxu0 0.0
  %93 = vmatpush.msra.mxu0 0.0
  %94 = vmatpush.msra.mxu0 0.0
  %95 = vmatpush.msra.mxu0 0.0
  %96 = vmatpush.msra.mxu0 0.0
  %97 = vmatpush.msra.mxu0 0.0
  %98 = vmatpush.msra.mxu0 %v41
  %99 = vmatpush.msra.mxu0 %v40
  %100 = vmatpush.msra.mxu0 %v39
  %101 = vmatpush.msra.mxu0 %v38
  %102 = vmatpush.msra.mxu0 %v37
  %103 = vmatpush.msra.mxu0 %v36
  %104 = vmatpush.msra.mxu0 %v35
  %105 = vmatpush.msra.mxu0 %v34
  %106 = vmatpush.msra.mxu0 %v33
  %107 = vmatmul.f32.gmra.mxu0 %v44
  %v108 = vpop.f32.mrf.mxu0
  %v109 = vadd.f32 0.0, %v108
  %110 = vmatmul.f32.gmra.mxu0 %v47
  %v111 = vpop.f32.mrf.mxu0
  %v112 = vadd.f32 0.0, %v111
  %113 = vmatmul.f32.gmra.mxu0 %v50
  %v114 = vpop.f32.mrf.mxu0
  %v115 = vadd.f32 0.0, %v114
  %116 = vmatmul.f32.gmra.mxu0 %v53
  %v117 = vpop.f32.mrf.mxu0
  %v118 = vadd.f32 0.0, %v117
  %119 = vmatmul.f32.gmra.mxu0 %v56
  %v120 = vpop.f32.mrf.mxu0
  %v121 = vadd.f32 0.0, %v120
  %122 = vmatmul.f32.gmra.mxu0 %v59
  %v123 = vpop.f32.mrf.mxu0
  %v124 = vadd.f32 0.0, %v123
  %125 = vmatmul.f32.gmra.mxu0 %v62
  %v126 = vpop.f32.mrf.mxu0
  %v127 = vadd.f32 0.0, %v126
  %128 = vmatmul.f32.gmra.mxu0 %v65
  %v129 = vpop.f32.mrf.mxu0
  %v130 = vadd.f32 0.0, %v129
  %131 = vmatmul.f32.gmra.mxu0 %v68
  %v132 = vpop.f32.mrf.mxu0
  %v133 = vadd.f32 0.0, %v132
  %134 = vmatmul.f32.gmra.mxu0 %v71
  %v135 = vpop.f32.mrf.mxu0
  %v136 = vadd.f32 0.0, %v135
  %137 = vmatmul.f32.gmra.mxu0 %v74
  %v138 = vpop.f32.mrf.mxu0
  %v139 = vadd.f32 0.0, %v138
  %140 = vmatmul.f32.gmra.mxu0 %v77
  %v141 = vpop.f32.mrf.mxu0
  %v142 = vadd.f32 0.0, %v141
  %143 = vmatmul.f32.gmra.mxu0 %v80
  %v144 = vpop.f32.mrf.mxu0
  %v145 = vadd.f32 0.0, %v144
  %146 = vmatmul.f32.gmra.mxu0 %v83
  %v147 = vpop.f32.mrf.mxu0
  %v148 = vadd.f32 0.0, %v147
  %149 = vmatmul.f32.gmra.mxu0 %v86
  %v150 = vpop.f32.mrf.mxu0
  %v151 = vadd.f32 0.0, %v150
  %152 = vmatmul.f32.gmra.mxu0 %v89
  %v153 = vpop.f32.mrf.mxu0
  %v154 = vadd.f32 0.0, %v153
  %155 = vdwg.mxu0
  %v156 = vld [vmem:[%s2] sm:$0x1]
  %v158 = vperm.slane %v156, 0
  %v160 = vmul.f32 %v109, %v158
  %v161 = vmul.f32 %v112, %v158
  %v162 = vmul.f32 %v115, %v158
  %v163 = vmul.f32 %v118, %v158
  %v164 = vmul.f32 %v121, %v158
  %v165 = vmul.f32 %v124, %v158
  %v166 = vmul.f32 %v127, %v158
  %v167 = vmul.f32 %v130, %v158
  %v168 = vmul.f32 %v133, %v158
  %v169 = vmul.f32 %v136, %v158
  %v170 = vmul.f32 %v139, %v158
  %v171 = vmul.f32 %v142, %v158
  %v172 = vmul.f32 %v145, %v158
  %v173 = vmul.f32 %v148, %v158
  %v174 = vmul.f32 %v151, %v158
  %v175 = vmul.f32 %v154, %v158
  %v176 = vld [vmem:[%s3] sm:$0x1]
  %v178 = vperm.slane %v176, 0
  %v180 = vadd.f32 %v160, %v178
  %v181 = vadd.f32 %v161, %v178
  %v182 = vadd.f32 %v162, %v178
  %v183 = vadd.f32 %v163, %v178
  %v184 = vadd.f32 %v164, %v178
  %v185 = vadd.f32 %v165, %v178
  %v186 = vadd.f32 %v166, %v178
  %v187 = vadd.f32 %v167, %v178
  %v188 = vadd.f32 %v168, %v178
  %v189 = vadd.f32 %v169, %v178
  %v190 = vadd.f32 %v170, %v178
  %v191 = vadd.f32 %v171, %v178
  %v192 = vadd.f32 %v172, %v178
  %v193 = vadd.f32 %v173, %v178
  %v194 = vadd.f32 %v174, %v178
  %v195 = vadd.f32 %v175, %v178
  %v196 = vmax.f32 %v180, 0.0
  %v197 = vmax.f32 %v181, 0.0
  %v198 = vmax.f32 %v182, 0.0
  %v199 = vmax.f32 %v183, 0.0
  %v200 = vmax.f32 %v184, 0.0
  %v201 = vmax.f32 %v185, 0.0
  %v202 = vmax.f32 %v186, 0.0
  %v203 = vmax.f32 %v187, 0.0
  %v204 = vmax.f32 %v188, 0.0
  %v205 = vmax.f32 %v189, 0.0
  %v206 = vmax.f32 %v190, 0.0
  %v207 = vmax.f32 %v191, 0.0
  %v208 = vmax.f32 %v192, 0.0
  %v209 = vmax.f32 %v193, 0.0
  %v210 = vmax.f32 %v194, 0.0
  %v211 = vmax.f32 %v195, 0.0
  %vm212 = vcmask 64512
  %213 = vst.msk [vmem:[%s4] sm:$0xff] %vm212, %v196
  %214 = vst.msk [vmem:[%s4 + $0x8] sm:$0xff] %vm212, %v197
  %215 = vst.msk [vmem:[%s4 + $0x10] sm:$0xff] %vm212, %v198
  %216 = vst.msk [vmem:[%s4 + $0x18] sm:$0xff] %vm212, %v199
  %217 = vst.msk [vmem:[%s4 + $0x20] sm:$0xff] %vm212, %v200
  %218 = vst.msk [vmem:[%s4 + $0x28] sm:$0xff] %vm212, %v201
  %219 = vst.msk [vmem:[%s4 + $0x30] sm:$0xff] %vm212, %v202
  %220 = vst.msk [vmem:[%s4 + $0x38] sm:$0xff] %vm212, %v203
  %221 = vst.msk [vmem:[%s4 + $0x40] sm:$0xff] %vm212, %v204
  %222 = vst.msk [vmem:[%s4 + $0x48] sm:$0xff] %vm212, %v205
  %223 = vst.msk [vmem:[%s4 + $0x50] sm:$0xff] %vm212, %v206
  %224 = vst.msk [vmem:[%s4 + $0x58] sm:$0xff] %vm212, %v207
  %225 = vst.msk [vmem:[%s4 + $0x60] sm:$0xff] %vm212, %v208
  %226 = vst.msk [vmem:[%s4 + $0x68] sm:$0xff] %vm212, %v209
  %227 = vst.msk [vmem:[%s4 + $0x70] sm:$0xff] %vm212, %v210
  %228 = vst.msk [vmem:[%s4 + $0x78] sm:$0xff] %vm212, %v211
  // Predicated region
  $region18: #{unet_forward.31} parent=0 // pred_check
    _
  $region19: #{unet_forward.31} parent=0 // pred_check_branch
    %230 = sbr.rel (0) target = $region21
  $region20: #{unet_forward.31} parent=0 // pred_region
    _
  $region21: #{unet_forward.31} parent=0 // pred_fallthru
    _
  // Predicated region
  $region22: #{unet_forward.31} parent=0 // pred_check
    _
  $region23: #{unet_forward.31} parent=0 // pred_check_branch
    %232 = sbr.rel (0) target = $region25
  $region24: #{unet_forward.31} parent=0 // pred_region
    _
  $region25: #{unet_forward.31} parent=0 // pred_fallthru
    _

// kernel: unet_forward.32
$region0: #{unet_forward.32}
  #allocation0 [shape = 'u32[]', space=smem, size = 0x4, offset = 0x4, fixed_abs, tag = 'smem constant byte address 0x4 - core index']
  #allocation1 [shape = 'u32[72,128]{1,0:T(1,128)}', space=vmem, size = 0x9000, scoped, tag = 'internal scratch']
  %s0 = inlined_call_operand.vmem [shape: f32[32,8], index: 0, kind: input, shape index: {}]
  %s1 = inlined_call_operand.vmem [shape: f32[32,8], index: 1, kind: input, shape index: {}]
  %s2 = inlined_call_operand.vmem [shape: f32[32,8], index: 2, kind: input, shape index: {}]
  %s3 = inlined_call_operand.vmem [shape: f32[32,8], index: 3, kind: input, shape index: {}]
  %s4 = inlined_call_operand.vmem [shape: f32[32,8], index: 4, kind: output, shape index: {}]
  %s5 = sld [smem:[#allocation0]]
  $region26: #{unet_forward.32} parent=0
    _
  %s7 = ssub.s32 1, %s5
  %s8 = scalar_select 0, %s7, %s5
  // Predicated region
  $region2: #{unet_forward.32} parent=0 // pred_check
    _
  $region3: #{unet_forward.32} parent=0 // pred_check_branch
    %10 = sbr.rel (0) target = $region5
  $region4: #{unet_forward.32} parent=0 // pred_region
    _
  $region5: #{unet_forward.32} parent=0 // pred_fallthru
    _
  // Predicated region
  $region6: #{unet_forward.32} parent=0 // pred_check
    _
  $region7: #{unet_forward.32} parent=0 // pred_check_branch
    %12 = sbr.rel (0) target = $region9
  $region8: #{unet_forward.32} parent=0 // pred_region
    _
  $region9: #{unet_forward.32} parent=0 // pred_fallthru
    _
  // Predicated region
  $region10: #{unet_forward.32} parent=0 // pred_check
    _
  $region11: #{unet_forward.32} parent=0 // pred_check_branch
    %14 = sbr.rel (0) target = $region13
  $region12: #{unet_forward.32} parent=0 // pred_region
    _
  $region13: #{unet_forward.32} parent=0 // pred_fallthru
    _
  // Predicated region
  $region14: #{unet_forward.32} parent=0 // pred_check
    _
  $region15: #{unet_forward.32} parent=0 // pred_check_branch
    %16 = sbr.rel (0) target = $region17
  $region16: #{unet_forward.32} parent=0 // pred_region
    _
  $region17: #{unet_forward.32} parent=0 // pred_fallthru
    _
  %v17 = vld [vmem:[%s0] sm:$0xff]
  %v18 = vld [vmem:[%s0 + $0x8] sm:$0xff]
  %v19 = vld [vmem:[%s0 + $0x10] sm:$0xff]
  %v20 = vld [vmem:[%s0 + $0x18] sm:$0xff]
  %v21 = vld [vmem:[%s1] sm:$0xff]
  %v22 = vld [vmem:[%s1 + $0x8] sm:$0xff]
  %v23 = vld [vmem:[%s1 + $0x10] sm:$0xff]
  %v24 = vld [vmem:[%s1 + $0x18] sm:$0xff]
  %v25 = vmax.f32 %v17, %v21
  %v26 = vmax.f32 %v18, %v22
  %v27 = vmax.f32 %v19, %v23
  %v28 = vmax.f32 %v20, %v24
  %v29 = vld [vmem:[%s2] sm:$0xff]
  %v30 = vld [vmem:[%s2 + $0x8] sm:$0xff]
  %v31 = vld [vmem:[%s2 + $0x10] sm:$0xff]
  %v32 = vld [vmem:[%s2 + $0x18] sm:$0xff]
  %v33 = vld [vmem:[%s3] sm:$0xff]
  %v34 = vld [vmem:[%s3 + $0x8] sm:$0xff]
  %v35 = vld [vmem:[%s3 + $0x10] sm:$0xff]
  %v36 = vld [vmem:[%s3 + $0x18] sm:$0xff]
  %v37 = vmax.f32 %v29, %v33
  %v38 = vmax.f32 %v30, %v34
  %v39 = vmax.f32 %v31, %v35
  %v40 = vmax.f32 %v32, %v36
  %v41 = vmax.f32 %v25, %v37
  %v42 = vmax.f32 %v26, %v38
  %v43 = vmax.f32 %v27, %v39
  %v44 = vmax.f32 %v28, %v40
  %vm45 = vcmask 64512
  %46 = vst.msk [vmem:[%s4] sm:$0xff] %vm45, %v41
  %47 = vst.msk [vmem:[%s4 + $0x8] sm:$0xff] %vm45, %v42
  %48 = vst.msk [vmem:[%s4 + $0x10] sm:$0xff] %vm45, %v43
  %49 = vst.msk [vmem:[%s4 + $0x18] sm:$0xff] %vm45, %v44
  // Predicated region
  $region18: #{unet_forward.32} parent=0 // pred_check
    _
  $region19: #{unet_forward.32} parent=0 // pred_check_branch
    %51 = sbr.rel (0) target = $region21
  $region20: #{unet_forward.32} parent=0 // pred_region
    _
  $region21: #{unet_forward.32} parent=0 // pred_fallthru
    _
  // Predicated region
  $region22: #{unet_forward.32} parent=0 // pred_check
    _
  $region23: #{unet_forward.32} parent=0 // pred_check_branch
    %53 = sbr.rel (0) target = $region25
  $region24: #{unet_forward.32} parent=0 // pred_region
    _
  $region25: #{unet_forward.32} parent=0 // pred_fallthru
    _

// kernel: unet_forward.33
$region0: #{unet_forward.33}
  #allocation0 [shape = 'u32[]', space=smem, size = 0x4, offset = 0x4, fixed_abs, tag = 'smem constant byte address 0x4 - core index']
  #allocation1 [shape = 'u32[72,128]{1,0:T(1,128)}', space=vmem, size = 0x9000, scoped, tag = 'internal scratch']
  %s0 = inlined_call_operand.vmem [shape: f32[32,72], index: 0, kind: input, shape index: {}]
  %s1 = inlined_call_operand.vmem [shape: f32[72,16], index: 1, kind: input, shape index: {}]
  %s2 = inlined_call_operand.vmem [shape: f32[1,16], index: 2, kind: input, shape index: {}]
  %s3 = inlined_call_operand.vmem [shape: f32[1,16], index: 3, kind: input, shape index: {}]
  %s4 = inlined_call_operand.vmem [shape: f32[32,16], index: 4, kind: output, shape index: {}]
  %s5 = sld [smem:[#allocation0]]
  $region26: #{unet_forward.33} parent=0
    _
  %s7 = ssub.s32 1, %s5
  %s8 = scalar_select 0, %s7, %s5
  // Predicated region
  $region2: #{unet_forward.33} parent=0 // pred_check
    _
  $region3: #{unet_forward.33} parent=0 // pred_check_branch
    %10 = sbr.rel (0) target = $region5
  $region4: #{unet_forward.33} parent=0 // pred_region
    _
  $region5: #{unet_forward.33} parent=0 // pred_fallthru
    _
  // Predicated region
  $region6: #{unet_forward.33} parent=0 // pred_check
    _
  $region7: #{unet_forward.33} parent=0 // pred_check_branch
    %12 = sbr.rel (0) target = $region9
  $region8: #{unet_forward.33} parent=0 // pred_region
    _
  $region9: #{unet_forward.33} parent=0 // pred_fallthru
    _
  // Predicated region
  $region10: #{unet_forward.33} parent=0 // pred_check
    _
  $region11: #{unet_forward.33} parent=0 // pred_check_branch
    %14 = sbr.rel (0) target = $region13
  $region12: #{unet_forward.33} parent=0 // pred_region
    _
  $region13: #{unet_forward.33} parent=0 // pred_fallthru
    _
  // Predicated region
  $region14: #{unet_forward.33} parent=0 // pred_check
    _
  $region15: #{unet_forward.33} parent=0 // pred_check_branch
    %16 = sbr.rel (0) target = $region17
  $region16: #{unet_forward.33} parent=0 // pred_region
    _
  $region17: #{unet_forward.33} parent=0 // pred_fallthru
    _
  %v17 = vld [vmem:[%s0] sm:$0xff]
  %v18 = vld [vmem:[%s0 + $0x8] sm:$0xff]
  %v19 = vld [vmem:[%s0 + $0x10] sm:$0xff]
  %v20 = vld [vmem:[%s0 + $0x18] sm:$0xff]
  %v21 = vld [vmem:[%s1] sm:$0xff]
  %v22 = vld [vmem:[%s1 + $0x8] sm:$0xff]
  %v23 = vld [vmem:[%s1 + $0x10] sm:$0xff]
  %v24 = vld [vmem:[%s1 + $0x18] sm:$0xff]
  %v25 = vld [vmem:[%s1 + $0x20] sm:$0xff]
  %v26 = vld [vmem:[%s1 + $0x28] sm:$0xff]
  %v27 = vld [vmem:[%s1 + $0x30] sm:$0xff]
  %v28 = vld [vmem:[%s1 + $0x38] sm:$0xff]
  %v29 = vld [vmem:[%s1 + $0x40] sm:$0xff]
  %vm30 = vcmask 588800
  %v32 = vsel %vm30, %v17, 0
  %v35 = vsel %vm30, %v18, 0
  %v38 = vsel %vm30, %v19, 0
  %v41 = vsel %vm30, %v20, 0
  %43 = vmatpush.msra.mxu0 0.0
  %44 = vmatpush.msra.mxu0 0.0
  %45 = vmatpush.msra.mxu0 0.0
  %46 = vmatpush.msra.mxu0 0.0
  %47 = vmatpush.msra.mxu0 0.0
  %48 = vmatpush.msra.mxu0 0.0
  %49 = vmatpush.msra.mxu0 0.0
  %50 = vmatpush.msra.mxu0 %v29
  %51 = vmatpush.msra.mxu0 %v28
  %52 = vmatpush.msra.mxu0 %v27
  %53 = vmatpush.msra.mxu0 %v26
  %54 = vmatpush.msra.mxu0 %v25
  %55 = vmatpush.msra.mxu0 %v24
  %56 = vmatpush.msra.mxu0 %v23
  %57 = vmatpush.msra.mxu0 %v22
  %58 = vmatpush.msra.mxu0 %v21
  %59 = vmatmul.f32.gmra.mxu0 %v32
  %v60 = vpop.f32.mrf.mxu0
  %v61 = vadd.f32 0.0, %v60
  %62 = vmatmul.f32.gmra.mxu0 %v35
  %v63 = vpop.f32.mrf.mxu0
  %v64 = vadd.f32 0.0, %v63
  %65 = vmatmul.f32.gmra.mxu0 %v38
  %v66 = vpop.f32.mrf.mxu0
  %v67 = vadd.f32 0.0, %v66
  %68 = vmatmul.f32.gmra.mxu0 %v41
  %v69 = vpop.f32.mrf.mxu0
  %v70 = vadd.f32 0.0, %v69
  %71 = vdwg.mxu0
  %v72 = vld [vmem:[%s2] sm:$0x1]
  %v74 = vperm.slane %v72, 0
  %v76 = vmul.f32 %v61, %v74
  %v77 = vmul.f32 %v64, %v74
  %v78 = vmul.f32 %v67, %v74
  %v79 = vmul.f32 %v70, %v74
  %v80 = vld [vmem:[%s3] sm:$0x1]
  %v82 = vperm.slane %v80, 0
  %v84 = vadd.f32 %v76, %v82
  %v85 = vadd.f32 %v77, %v82
  %v86 = vadd.f32 %v78, %v82
  %v87 = vadd.f32 %v79, %v82
  %v88 = vmax.f32 %v84, 0.0
  %v89 = vmax.f32 %v85, 0.0
  %v90 = vmax.f32 %v86, 0.0
  %v91 = vmax.f32 %v87, 0.0
  %vm92 = vcmask 130048
  %93 = vst.msk [vmem:[%s4] sm:$0xff] %vm92, %v88
  %94 = vst.msk [vmem:[%s4 + $0x8] sm:$0xff] %vm92, %v89
  %95 = vst.msk [vmem:[%s4 + $0x10] sm:$0xff] %vm92, %v90
  %96 = vst.msk [vmem:[%s4 + $0x18] sm:$0xff] %vm92, %v91
  // Predicated region
  $region18: #{unet_forward.33} parent=0 // pred_check
    _
  $region19: #{unet_forward.33} parent=0 // pred_check_branch
    %98 = sbr.rel (0) target = $region21
  $region20: #{unet_forward.33} parent=0 // pred_region
    _
  $region21: #{unet_forward.33} parent=0 // pred_fallthru
    _
  // Predicated region
  $region22: #{unet_forward.33} parent=0 // pred_check
    _
  $region23: #{unet_forward.33} parent=0 // pred_check_branch
    %100 = sbr.rel (0) target = $region25
  $region24: #{unet_forward.33} parent=0 // pred_region
    _
  $region25: #{unet_forward.33} parent=0 // pred_fallthru
    _

// kernel: unet_forward.34
$region0: #{unet_forward.34}
  #allocation0 [shape = 'u32[]', space=smem, size = 0x4, offset = 0x4, fixed_abs, tag = 'smem constant byte address 0x4 - core index']
  #allocation1 [shape = 'u32[72,128]{1,0:T(1,128)}', space=vmem, size = 0x9000, scoped, tag = 'internal scratch']
  %s0 = inlined_call_operand.vmem [shape: f32[32,144], index: 0, kind: input, shape index: {}]
  %s1 = inlined_call_operand.vmem [shape: f32[144,16], index: 1, kind: input, shape index: {}]
  %s2 = inlined_call_operand.vmem [shape: f32[1,16], index: 2, kind: input, shape index: {}]
  %s3 = inlined_call_operand.vmem [shape: f32[1,16], index: 3, kind: input, shape index: {}]
  %s4 = inlined_call_operand.vmem [shape: f32[32,16], index: 4, kind: output, shape index: {}]
  %s5 = sld [smem:[#allocation0]]
  $region26: #{unet_forward.34} parent=0
    _
  %s7 = ssub.s32 1, %s5
  %s8 = scalar_select 0, %s7, %s5
  // Predicated region
  $region2: #{unet_forward.34} parent=0 // pred_check
    _
  $region3: #{unet_forward.34} parent=0 // pred_check_branch
    %10 = sbr.rel (0) target = $region5
  $region4: #{unet_forward.34} parent=0 // pred_region
    _
  $region5: #{unet_forward.34} parent=0 // pred_fallthru
    _
  // Predicated region
  $region6: #{unet_forward.34} parent=0 // pred_check
    _
  $region7: #{unet_forward.34} parent=0 // pred_check_branch
    %12 = sbr.rel (0) target = $region9
  $region8: #{unet_forward.34} parent=0 // pred_region
    _
  $region9: #{unet_forward.34} parent=0 // pred_fallthru
    _
  // Predicated region
  $region10: #{unet_forward.34} parent=0 // pred_check
    _
  $region11: #{unet_forward.34} parent=0 // pred_check_branch
    %14 = sbr.rel (0) target = $region13
  $region12: #{unet_forward.34} parent=0 // pred_region
    _
  $region13: #{unet_forward.34} parent=0 // pred_fallthru
    _
  // Predicated region
  $region14: #{unet_forward.34} parent=0 // pred_check
    _
  $region15: #{unet_forward.34} parent=0 // pred_check_branch
    %16 = sbr.rel (0) target = $region17
  $region16: #{unet_forward.34} parent=0 // pred_region
    _
  $region17: #{unet_forward.34} parent=0 // pred_fallthru
    _
  %v17 = vld [vmem:[%s0] sm:$0xff]
  %v18 = vld [vmem:[%s0 + $0x8] sm:$0xff]
  %v19 = vld [vmem:[%s0 + $0x10] sm:$0xff]
  %v20 = vld [vmem:[%s0 + $0x18] sm:$0xff]
  %v21 = vld [vmem:[%s0 + $0x20] sm:$0xff]
  %v22 = vld [vmem:[%s0 + $0x28] sm:$0xff]
  %v23 = vld [vmem:[%s0 + $0x30] sm:$0xff]
  %v24 = vld [vmem:[%s0 + $0x38] sm:$0xff]
  %v25 = vld [vmem:[%s1] sm:$0xff]
  %v26 = vld [vmem:[%s1 + $0x8] sm:$0xff]
  %v27 = vld [vmem:[%s1 + $0x10] sm:$0xff]
  %v28 = vld [vmem:[%s1 + $0x18] sm:$0xff]
  %v29 = vld [vmem:[%s1 + $0x20] sm:$0xff]
  %v30 = vld [vmem:[%s1 + $0x28] sm:$0xff]
  %v31 = vld [vmem:[%s1 + $0x30] sm:$0xff]
  %v32 = vld [vmem:[%s1 + $0x38] sm:$0xff]
  %v33 = vld [vmem:[%s1 + $0x40] sm:$0xff]
  %v34 = vld [vmem:[%s1 + $0x48] sm:$0xff]
  %v35 = vld [vmem:[%s1 + $0x50] sm:$0xff]
  %v36 = vld [vmem:[%s1 + $0x58] sm:$0xff]
  %v37 = vld [vmem:[%s1 + $0x60] sm:$0xff]
  %v38 = vld [vmem:[%s1 + $0x68] sm:$0xff]
  %v39 = vld [vmem:[%s1 + $0x70] sm:$0xff]
  %v40 = vld [vmem:[%s1 + $0x78] sm:$0xff]
  %v41 = vld [vmem:[%s1 + $0x80] sm:$0xff]
  %v42 = vld [vmem:[%s1 + $0x88] sm:$0xff]
  %vm43 = vcmask 130048
  %v45 = vsel %vm43, %v18, 0
  %v48 = vsel %vm43, %v20, 0
  %v51 = vsel %vm43, %v22, 0
  %v54 = vsel %vm43, %v24, 0
  %56 = vmatpush.msra.mxu0 %v40
  %57 = vmatpush.msra.mxu0 %v39
  %58 = vmatpush.msra.mxu0 %v38
  %59 = vmatpush.msra.mxu0 %v37
  %60 = vmatpush.msra.mxu0 %v36
  %61 = vmatpush.msra.mxu0 %v35
  %62 = vmatpush.msra.mxu0 %v34
  %63 = vmatpush.msra.mxu0 %v33
  %64 = vmatpush.msra.mxu0 %v32
  %65 = vmatpush.msra.mxu0 %v31
  %66 = vmatpush.msra.mxu0 %v30
  %67 = vmatpush.msra.mxu0 %v29
  %68 = vmatpush.msra.mxu0 %v28
  %69 = vmatpush.msra.mxu0 %v27
  %70 = vmatpush.msra.mxu0 %v26
  %71 = vmatpush.msra.mxu0 %v25
  %72 = vmatmul.f32.gmra.mxu0 %v17
  %v73 = vpop.f32.mrf.mxu0
  %v74 = vadd.f32 0.0, %v73
  %75 = vmatmul.f32.gmra.mxu0 %v19
  %v76 = vpop.f32.mrf.mxu0
  %v77 = vadd.f32 0.0, %v76
  %78 = vmatmul.f32.gmra.mxu0 %v21
  %v79 = vpop.f32.mrf.mxu0
  %v80 = vadd.f32 0.0, %v79
  %81 = vmatmul.f32.gmra.mxu0 %v23
  %v82 = vpop.f32.mrf.mxu0
  %v83 = vadd.f32 0.0, %v82
  %84 = vdwg.mxu0
  %85 = vmatpush.msra.mxu0 0.0
  %86 = vmatpush.msra.mxu0 0.0
  %87 = vmatpush.msra.mxu0 0.0
  %88 = vmatpush.msra.mxu0 0.0
  %89 = vmatpush.msra.mxu0 0.0
  %90 = vmatpush.msra.mxu0 0.0
  %91 = vmatpush.msra.mxu0 0.0
  %92 = vmatpush.msra.mxu0 0.0
  %93 = vmatpush.msra.mxu0 0.0
  %94 = vmatpush.msra.mxu0 0.0
  %95 = vmatpush.msra.mxu0 0.0
  %96 = vmatpush.msra.mxu0 0.0
  %97 = vmatpush.msra.mxu0 0.0
  %98 = vmatpush.msra.mxu0 0.0
  %99 = vmatpush.msra.mxu0 %v42
  %100 = vmatpush.msra.mxu0 %v41
  %101 = vmatmul.f32.gmra.mxu0 %v45
  %v102 = vpop.f32.mrf.mxu0
  %v103 = vadd.f32 %v74, %v102
  %104 = vmatmul.f32.gmra.mxu0 %v48
  %v105 = vpop.f32.mrf.mxu0
  %v106 = vadd.f32 %v77, %v105
  %107 = vmatmul.f32.gmra.mxu0 %v51
  %v108 = vpop.f32.mrf.mxu0
  %v109 = vadd.f32 %v80, %v108
  %110 = vmatmul.f32.gmra.mxu0 %v54
  %v111 = vpop.f32.mrf.mxu0
  %v112 = vadd.f32 %v83, %v111
  %113 = vdwg.mxu0
  %v114 = vld [vmem:[%s2] sm:$0x1]
  %v116 = vperm.slane %v114, 0
  %v118 = vmul.f32 %v103, %v116
  %v119 = vmul.f32 %v106, %v116
  %v120 = vmul.f32 %v109, %v116
  %v121 = vmul.f32 %v112, %v116
  %v122 = vld [vmem:[%s3] sm:$0x1]
  %v124 = vperm.slane %v122, 0
  %v126 = vadd.f32 %v118, %v124
  %v127 = vadd.f32 %v119, %v124
  %v128 = vadd.f32 %v120, %v124
  %v129 = vadd.f32 %v121, %v124
  %v130 = vmax.f32 %v126, 0.0
  %v131 = vmax.f32 %v127, 0.0
  %v132 = vmax.f32 %v128, 0.0
  %v133 = vmax.f32 %v129, 0.0
  %134 = vst.msk [vmem:[%s4] sm:$0xff] %vm43, %v130
  %135 = vst.msk [vmem:[%s4 + $0x8] sm:$0xff] %vm43, %v131
  %136 = vst.msk [vmem:[%s4 + $0x10] sm:$0xff] %vm43, %v132
  %137 = vst.msk [vmem:[%s4 + $0x18] sm:$0xff] %vm43, %v133
  // Predicated region
  $region18: #{unet_forward.34} parent=0 // pred_check
    _
  $region19: #{unet_forward.34} parent=0 // pred_check_branch
    %139 = sbr.rel (0) target = $region21
  $region20: #{unet_forward.34} parent=0 // pred_region
    _
  $region21: #{unet_forward.34} parent=0 // pred_fallthru
    _
  // Predicated region
  $region22: #{unet_forward.34} parent=0 // pred_check
    _
  $region23: #{unet_forward.34} parent=0 // pred_check_branch
    %141 = sbr.rel (0) target = $region25
  $region24: #{unet_forward.34} parent=0 // pred_region
    _
  $region25: #{unet_forward.34} parent=0 // pred_fallthru
    _

// kernel: unet_forward.35
$region0: #{unet_forward.35}
  #allocation0 [shape = 'u32[]', space=smem, size = 0x4, offset = 0x4, fixed_abs, tag = 'smem constant byte address 0x4 - core index']
  #allocation1 [shape = 'u32[72,128]{1,0:T(1,128)}', space=vmem, size = 0x9000, scoped, tag = 'internal scratch']
  %s0 = inlined_call_operand.vmem [shape: f32[8,16], index: 0, kind: input, shape index: {}]
  %s1 = inlined_call_operand.vmem [shape: f32[8,16], index: 1, kind: input, shape index: {}]
  %s2 = inlined_call_operand.vmem [shape: f32[8,16], index: 2, kind: input, shape index: {}]
  %s3 = inlined_call_operand.vmem [shape: f32[8,16], index: 3, kind: input, shape index: {}]
  %s4 = inlined_call_operand.vmem [shape: f32[8,16], index: 4, kind: output, shape index: {}]
  %s5 = sld [smem:[#allocation0]]
  $region26: #{unet_forward.35} parent=0
    _
  %s7 = ssub.s32 1, %s5
  %s8 = scalar_select 0, %s7, %s5
  // Predicated region
  $region2: #{unet_forward.35} parent=0 // pred_check
    _
  $region3: #{unet_forward.35} parent=0 // pred_check_branch
    %10 = sbr.rel (0) target = $region5
  $region4: #{unet_forward.35} parent=0 // pred_region
    _
  $region5: #{unet_forward.35} parent=0 // pred_fallthru
    _
  // Predicated region
  $region6: #{unet_forward.35} parent=0 // pred_check
    _
  $region7: #{unet_forward.35} parent=0 // pred_check_branch
    %12 = sbr.rel (0) target = $region9
  $region8: #{unet_forward.35} parent=0 // pred_region
    _
  $region9: #{unet_forward.35} parent=0 // pred_fallthru
    _
  // Predicated region
  $region10: #{unet_forward.35} parent=0 // pred_check
    _
  $region11: #{unet_forward.35} parent=0 // pred_check_branch
    %14 = sbr.rel (0) target = $region13
  $region12: #{unet_forward.35} parent=0 // pred_region
    _
  $region13: #{unet_forward.35} parent=0 // pred_fallthru
    _
  // Predicated region
  $region14: #{unet_forward.35} parent=0 // pred_check
    _
  $region15: #{unet_forward.35} parent=0 // pred_check_branch
    %16 = sbr.rel (0) target = $region17
  $region16: #{unet_forward.35} parent=0 // pred_region
    _
  $region17: #{unet_forward.35} parent=0 // pred_fallthru
    _
  %v17 = vld [vmem:[%s0] sm:$0xff]
  %v18 = vld [vmem:[%s1] sm:$0xff]
  %v19 = vmax.f32 %v17, %v18
  %v20 = vld [vmem:[%s2] sm:$0xff]
  %v21 = vld [vmem:[%s3] sm:$0xff]
  %v22 = vmax.f32 %v20, %v21
  %v23 = vmax.f32 %v19, %v22
  %vm24 = vcmask 130048
  %25 = vst.msk [vmem:[%s4] sm:$0xff] %vm24, %v23
  // Predicated region
  $region18: #{unet_forward.35} parent=0 // pred_check
    _
  $region19: #{unet_forward.35} parent=0 // pred_check_branch
    %27 = sbr.rel (0) target = $region21
  $region20: #{unet_forward.35} parent=0 // pred_region
    _
  $region21: #{unet_forward.35} parent=0 // pred_fallthru
    _
  // Predicated region
  $region22: #{unet_forward.35} parent=0 // pred_check
    _
  $region23: #{unet_forward.35} parent=0 // pred_check_branch
    %29 = sbr.rel (0) target = $region25
  $region24: #{unet_forward.35} parent=0 // pred_region
    _
  $region25: #{unet_forward.35} parent=0 // pred_fallthru
    _

// kernel: unet_forward.36
$region0: #{unet_forward.36}
  #allocation0 [shape = 'u32[]', space=smem, size = 0x4, offset = 0x4, fixed_abs, tag = 'smem constant byte address 0x4 - core index']
  #allocation1 [shape = 'u32[72,128]{1,0:T(1,128)}', space=vmem, size = 0x9000, scoped, tag = 'internal scratch']
  %s0 = inlined_call_operand.vmem [shape: f32[8,144], index: 0, kind: input, shape index: {}]
  %s1 = inlined_call_operand.vmem [shape: f32[144,32], index: 1, kind: input, shape index: {}]
  %s2 = inlined_call_operand.vmem [shape: f32[1,32], index: 2, kind: input, shape index: {}]
  %s3 = inlined_call_operand.vmem [shape: f32[1,32], index: 3, kind: input, shape index: {}]
  %s4 = inlined_call_operand.vmem [shape: f32[8,32], index: 4, kind: output, shape index: {}]
  %s5 = sld [smem:[#allocation0]]
  $region26: #{unet_forward.36} parent=0
    _
  %s7 = ssub.s32 1, %s5
  %s8 = scalar_select 0, %s7, %s5
  // Predicated region
  $region2: #{unet_forward.36} parent=0 // pred_check
    _
  $region3: #{unet_forward.36} parent=0 // pred_check_branch
    %10 = sbr.rel (0) target = $region5
  $region4: #{unet_forward.36} parent=0 // pred_region
    _
  $region5: #{unet_forward.36} parent=0 // pred_fallthru
    _
  // Predicated region
  $region6: #{unet_forward.36} parent=0 // pred_check
    _
  $region7: #{unet_forward.36} parent=0 // pred_check_branch
    %12 = sbr.rel (0) target = $region9
  $region8: #{unet_forward.36} parent=0 // pred_region
    _
  $region9: #{unet_forward.36} parent=0 // pred_fallthru
    _
  // Predicated region
  $region10: #{unet_forward.36} parent=0 // pred_check
    _
  $region11: #{unet_forward.36} parent=0 // pred_check_branch
    %14 = sbr.rel (0) target = $region13
  $region12: #{unet_forward.36} parent=0 // pred_region
    _
  $region13: #{unet_forward.36} parent=0 // pred_fallthru
    _
  // Predicated region
  $region14: #{unet_forward.36} parent=0 // pred_check
    _
  $region15: #{unet_forward.36} parent=0 // pred_check_branch
    %16 = sbr.rel (0) target = $region17
  $region16: #{unet_forward.36} parent=0 // pred_region
    _
  $region17: #{unet_forward.36} parent=0 // pred_fallthru
    _
  %v17 = vld [vmem:[%s0] sm:$0xff]
  %v18 = vld [vmem:[%s0 + $0x8] sm:$0xff]
  %v19 = vld [vmem:[%s1] sm:$0xff]
  %v20 = vld [vmem:[%s1 + $0x8] sm:$0xff]
  %v21 = vld [vmem:[%s1 + $0x10] sm:$0xff]
  %v22 = vld [vmem:[%s1 + $0x18] sm:$0xff]
  %v23 = vld [vmem:[%s1 + $0x20] sm:$0xff]
  %v24 = vld [vmem:[%s1 + $0x28] sm:$0xff]
  %v25 = vld [vmem:[%s1 + $0x30] sm:$0xff]
  %v26 = vld [vmem:[%s1 + $0x38] sm:$0xff]
  %v27 = vld [vmem:[%s1 + $0x40] sm:$0xff]
  %v28 = vld [vmem:[%s1 + $0x48] sm:$0xff]
  %v29 = vld [vmem:[%s1 + $0x50] sm:$0xff]
  %v30 = vld [vmem:[%s1 + $0x58] sm:$0xff]
  %v31 = vld [vmem:[%s1 + $0x60] sm:$0xff]
  %v32 = vld [vmem:[%s1 + $0x68] sm:$0xff]
  %v33 = vld [vmem:[%s1 + $0x70] sm:$0xff]
  %v34 = vld [vmem:[%s1 + $0x78] sm:$0xff]
  %v35 = vld [vmem:[%s1 + $0x80] sm:$0xff]
  %v36 = vld [vmem:[%s1 + $0x88] sm:$0xff]
  %vm37 = vcmask 130048
  %v39 = vsel %vm37, %v18, 0
  %41 = vmatpush.msra.mxu0 %v34
  %42 = vmatpush.msra.mxu0 %v33
  %43 = vmatpush.msra.mxu0 %v32
  %44 = vmatpush.msra.mxu0 %v31
  %45 = vmatpush.msra.mxu0 %v30
  %46 = vmatpush.msra.mxu0 %v29
  %47 = vmatpush.msra.mxu0 %v28
  %48 = vmatpush.msra.mxu0 %v27
  %49 = vmatpush.msra.mxu0 %v26
  %50 = vmatpush.msra.mxu0 %v25
  %51 = vmatpush.msra.mxu0 %v24
  %52 = vmatpush.msra.mxu0 %v23
  %53 = vmatpush.msra.mxu0 %v22
  %54 = vmatpush.msra.mxu0 %v21
  %55 = vmatpush.msra.mxu0 %v20
  %56 = vmatpush.msra.mxu0 %v19
  %57 = vmatmul.f32.gmra.mxu0 %v17
  %v58 = vpop.f32.mrf.mxu0
  %v59 = vadd.f32 0.0, %v58
  %60 = vdwg.mxu0
  %61 = vmatpush.msra.mxu0 0.0
  %62 = vmatpush.msra.mxu0 0.0
  %63 = vmatpush.msra.mxu0 0.0
  %64 = vmatpush.msra.mxu0 0.0
  %65 = vmatpush.msra.mxu0 0.0
  %66 = vmatpush.msra.mxu0 0.0
  %67 = vmatpush.msra.mxu0 0.0
  %68 = vmatpush.msra.mxu0 0.0
  %69 = vmatpush.msra.mxu0 0.0
  %70 = vmatpush.msra.mxu0 0.0
  %71 = vmatpush.msra.mxu0 0.0
  %72 = vmatpush.msra.mxu0 0.0
  %73 = vmatpush.msra.mxu0 0.0
  %74 = vmatpush.msra.mxu0 0.0
  %75 = vmatpush.msra.mxu0 %v36
  %76 = vmatpush.msra.mxu0 %v35
  %77 = vmatmul.f32.gmra.mxu0 %v39
  %v78 = vpop.f32.mrf.mxu0
  %v79 = vadd.f32 %v59, %v78
  %80 = vdwg.mxu0
  %v81 = vld [vmem:[%s2] sm:$0x1]
  %v83 = vperm.slane %v81, 0
  %v85 = vmul.f32 %v79, %v83
  %v86 = vld [vmem:[%s3] sm:$0x1]
  %v88 = vperm.slane %v86, 0
  %v90 = vadd.f32 %v85, %v88
  %v91 = vmax.f32 %v90, 0.0
  %vm92 = vcmask 261120
  %93 = vst.msk [vmem:[%s4] sm:$0xff] %vm92, %v91
  // Predicated region
  $region18: #{unet_forward.36} parent=0 // pred_check
    _
  $region19: #{unet_forward.36} parent=0 // pred_check_branch
    %95 = sbr.rel (0) target = $region21
  $region20: #{unet_forward.36} parent=0 // pred_region
    _
  $region21: #{unet_forward.36} parent=0 // pred_fallthru
    _
  // Predicated region
  $region22: #{unet_forward.36} parent=0 // pred_check
    _
  $region23: #{unet_forward.36} parent=0 // pred_check_branch
    %97 = sbr.rel (0) target = $region25
  $region24: #{unet_forward.36} parent=0 // pred_region
    _
  $region25: #{unet_forward.36} parent=0 // pred_fallthru
    _

// kernel: unet_forward.37
$region0: #{unet_forward.37}
  #allocation0 [shape = 'u32[]', space=smem, size = 0x4, offset = 0x4, fixed_abs, tag = 'smem constant byte address 0x4 - core index']
  #allocation1 [shape = 'u32[72,128]{1,0:T(1,128)}', space=vmem, size = 0x9000, scoped, tag = 'internal scratch']
  %s0 = inlined_call_operand.vmem [shape: f32[8,288], index: 0, kind: input, shape index: {}]
  %s1 = inlined_call_operand.vmem [shape: f32[288,32], index: 1, kind: input, shape index: {}]
  %s2 = inlined_call_operand.vmem [shape: f32[1,32], index: 2, kind: input, shape index: {}]
  %s3 = inlined_call_operand.vmem [shape: f32[1,32], index: 3, kind: input, shape index: {}]
  %s4 = inlined_call_operand.vmem [shape: f32[8,32], index: 4, kind: output, shape index: {}]
  %s5 = sld [smem:[#allocation0]]
  $region26: #{unet_forward.37} parent=0
    _
  %s7 = ssub.s32 1, %s5
  %s8 = scalar_select 0, %s7, %s5
  // Predicated region
  $region2: #{unet_forward.37} parent=0 // pred_check
    _
  $region3: #{unet_forward.37} parent=0 // pred_check_branch
    %10 = sbr.rel (0) target = $region5
  $region4: #{unet_forward.37} parent=0 // pred_region
    _
  $region5: #{unet_forward.37} parent=0 // pred_fallthru
    _
  // Predicated region
  $region6: #{unet_forward.37} parent=0 // pred_check
    _
  $region7: #{unet_forward.37} parent=0 // pred_check_branch
    %12 = sbr.rel (0) target = $region9
  $region8: #{unet_forward.37} parent=0 // pred_region
    _
  $region9: #{unet_forward.37} parent=0 // pred_fallthru
    _
  // Predicated region
  $region10: #{unet_forward.37} parent=0 // pred_check
    _
  $region11: #{unet_forward.37} parent=0 // pred_check_branch
    %14 = sbr.rel (0) target = $region13
  $region12: #{unet_forward.37} parent=0 // pred_region
    _
  $region13: #{unet_forward.37} parent=0 // pred_fallthru
    _
  // Predicated region
  $region14: #{unet_forward.37} parent=0 // pred_check
    _
  $region15: #{unet_forward.37} parent=0 // pred_check_branch
    %16 = sbr.rel (0) target = $region17
  $region16: #{unet_forward.37} parent=0 // pred_region
    _
  $region17: #{unet_forward.37} parent=0 // pred_fallthru
    _
  %v17 = vld [vmem:[%s0] sm:$0xff]
  %v18 = vld [vmem:[%s0 + $0x8] sm:$0xff]
  %v19 = vld [vmem:[%s0 + $0x10] sm:$0xff]
  %v20 = vld [vmem:[%s1] sm:$0xff]
  %v21 = vld [vmem:[%s1 + $0x8] sm:$0xff]
  %v22 = vld [vmem:[%s1 + $0x10] sm:$0xff]
  %v23 = vld [vmem:[%s1 + $0x18] sm:$0xff]
  %v24 = vld [vmem:[%s1 + $0x20] sm:$0xff]
  %v25 = vld [vmem:[%s1 + $0x28] sm:$0xff]
  %v26 = vld [vmem:[%s1 + $0x30] sm:$0xff]
  %v27 = vld [vmem:[%s1 + $0x38] sm:$0xff]
  %v28 = vld [vmem:[%s1 + $0x40] sm:$0xff]
  %v29 = vld [vmem:[%s1 + $0x48] sm:$0xff]
  %v30 = vld [vmem:[%s1 + $0x50] sm:$0xff]
  %v31 = vld [vmem:[%s1 + $0x58] sm:$0xff]
  %v32 = vld [vmem:[%s1 + $0x60] sm:$0xff]
  %v33 = vld [vmem:[%s1 + $0x68] sm:$0xff]
  %v34 = vld [vmem:[%s1 + $0x70] sm:$0xff]
  %v35 = vld [vmem:[%s1 + $0x78] sm:$0xff]
  %v36 = vld [vmem:[%s1 + $0x80] sm:$0xff]
  %v37 = vld [vmem:[%s1 + $0x88] sm:$0xff]
  %v38 = vld [vmem:[%s1 + $0x90] sm:$0xff]
  %v39 = vld [vmem:[%s1 + $0x98] sm:$0xff]
  %v40 = vld [vmem:[%s1 + $0xa0] sm:$0xff]
  %v41 = vld [vmem:[%s1 + $0xa8] sm:$0xff]
  %v42 = vld [vmem:[%s1 + $0xb0] sm:$0xff]
  %v43 = vld [vmem:[%s1 + $0xb8] sm:$0xff]
  %v44 = vld [vmem:[%s1 + $0xc0] sm:$0xff]
  %v45 = vld [vmem:[%s1 + $0xc8] sm:$0xff]
  %v46 = vld [vmem:[%s1 + $0xd0] sm:$0xff]
  %v47 = vld [vmem:[%s1 + $0xd8] sm:$0xff]
  %v48 = vld [vmem:[%s1 + $0xe0] sm:$0xff]
  %v49 = vld [vmem:[%s1 + $0xe8] sm:$0xff]
  %v50 = vld [vmem:[%s1 + $0xf0] sm:$0xff]
  %v51 = vld [vmem:[%s1 + $0xf8] sm:$0xff]
  %v52 = vld [vmem:[%s1 + $0x100] sm:$0xff]
  %v53 = vld [vmem:[%s1 + $0x108] sm:$0xff]
  %v54 = vld [vmem:[%s1 + $0x110] sm:$0xff]
  %v55 = vld [vmem:[%s1 + $0x118] sm:$0xff]
  %vm56 = vcmask 261120
  %v58 = vsel %vm56, %v19, 0
  %60 = vmatpush.msra.mxu0 %v35
  %61 = vmatpush.msra.mxu0 %v34
  %62 = vmatpush.msra.mxu0 %v33
  %63 = vmatpush.msra.mxu0 %v32
  %64 = vmatpush.msra.mxu0 %v31
  %65 = vmatpush.msra.mxu0 %v30
  %66 = vmatpush.msra.mxu0 %v29
  %67 = vmatpush.msra.mxu0 %v28
  %68 = vmatpush.msra.mxu0 %v27
  %69 = vmatpush.msra.mxu0 %v26
  %70 = vmatpush.msra.mxu0 %v25
  %71 = vmatpush.msra.mxu0 %v24
  %72 = vmatpush.msra.mxu0 %v23
  %73 = vmatpush.msra.mxu0 %v22
  %74 = vmatpush.msra.mxu0 %v21
  %75 = vmatpush.msra.mxu0 %v20
  %76 = vmatmul.f32.gmra.mxu0 %v17
  %v77 = vpop.f32.mrf.mxu0
  %v78 = vadd.f32 0.0, %v77
  %79 = vdwg.mxu0
  %80 = vmatpush.msra.mxu0 %v51
  %81 = vmatpush.msra.mxu0 %v50
  %82 = vmatpush.msra.mxu0 %v49
  %83 = vmatpush.msra.mxu0 %v48
  %84 = vmatpush.msra.mxu0 %v47
  %85 = vmatpush.msra.mxu0 %v46
  %86 = vmatpush.msra.mxu0 %v45
  %87 = vmatpush.msra.mxu0 %v44
  %88 = vmatpush.msra.mxu0 %v43
  %89 = vmatpush.msra.mxu0 %v42
  %90 = vmatpush.msra.mxu0 %v41
  %91 = vmatpush.msra.mxu0 %v40
  %92 = vmatpush.msra.mxu0 %v39
  %93 = vmatpush.msra.mxu0 %v38
  %94 = vmatpush.msra.mxu0 %v37
  %95 = vmatpush.msra.mxu0 %v36
  %96 = vmatmul.f32.gmra.mxu0 %v18
  %v97 = vpop.f32.mrf.mxu0
  %v98 = vadd.f32 %v78, %v97
  %99 = vdwg.mxu0
  %100 = vmatpush.msra.mxu0 0.0
  %101 = vmatpush.msra.mxu0 0.0
  %102 = vmatpush.msra.mxu0 0.0
  %103 = vmatpush.msra.mxu0 0.0
  %104 = vmatpush.msra.mxu0 0.0
  %105 = vmatpush.msra.mxu0 0.0
  %106 = vmatpush.msra.mxu0 0.0
  %107 = vmatpush.msra.mxu0 0.0
  %108 = vmatpush.msra.mxu0 0.0
  %109 = vmatpush.msra.mxu0 0.0
  %110 = vmatpush.msra.mxu0 0.0
  %111 = vmatpush.msra.mxu0 0.0
  %112 = vmatpush.msra.mxu0 %v55
  %113 = vmatpush.msra.mxu0 %v54
  %114 = vmatpush.msra.mxu0 %v53
  %115 = vmatpush.msra.mxu0 %v52
  %116 = vmatmul.f32.gmra.mxu0 %v58
  %v117 = vpop.f32.mrf.mxu0
  %v118 = vadd.f32 %v98, %v117
  %119 = vdwg.mxu0
  %v120 = vld [vmem:[%s2] sm:$0x1]
  %v122 = vperm.slane %v120, 0
  %v124 = vmul.f32 %v118, %v122
  %v125 = vld [vmem:[%s3] sm:$0x1]
  %v127 = vperm.slane %v125, 0
  %v129 = vadd.f32 %v124, %v127
  %v130 = vmax.f32 %v129, 0.0
  %131 = vst.msk [vmem:[%s4] sm:$0xff] %vm56, %v130
  // Predicated region
  $region18: #{unet_forward.37} parent=0 // pred_check
    _
  $region19: #{unet_forward.37} parent=0 // pred_check_branch
    %133 = sbr.rel (0) target = $region21
  $region20: #{unet_forward.37} parent=0 // pred_region
    _
  $region21: #{unet_forward.37} parent=0 // pred_fallthru
    _
  // Predicated region
  $region22: #{unet_forward.37} parent=0 // pred_check
    _
  $region23: #{unet_forward.37} parent=0 // pred_check_branch
    %135 = sbr.rel (0) target = $region25
  $region24: #{unet_forward.37} parent=0 // pred_region
    _
  $region25: #{unet_forward.37} parent=0 // pred_fallthru
    _

// kernel: unet_forward.38
$region0: #{unet_forward.38}
  #allocation0 [shape = 'u32[]', space=smem, size = 0x4, offset = 0x4, fixed_abs, tag = 'smem constant byte address 0x4 - core index']
  #allocation1 [shape = 'u32[72,128]{1,0:T(1,128)}', space=vmem, size = 0x9000, scoped, tag = 'internal scratch']
  %s0 = inlined_call_operand.vmem [shape: f32[2,32], index: 0, kind: input, shape index: {}]
  %s1 = inlined_call_operand.vmem [shape: f32[2,32], index: 1, kind: input, shape index: {}]
  %s2 = inlined_call_operand.vmem [shape: f32[2,32], index: 2, kind: input, shape index: {}]
  %s3 = inlined_call_operand.vmem [shape: f32[2,32], index: 3, kind: input, shape index: {}]
  %s4 = inlined_call_operand.vmem [shape: f32[2,32], index: 4, kind: output, shape index: {}]
  %s5 = sld [smem:[#allocation0]]
  $region26: #{unet_forward.38} parent=0
    _
  %s7 = ssub.s32 1, %s5
  %s8 = scalar_select 0, %s7, %s5
  // Predicated region
  $region2: #{unet_forward.38} parent=0 // pred_check
    _
  $region3: #{unet_forward.38} parent=0 // pred_check_branch
    %10 = sbr.rel (0) target = $region5
  $region4: #{unet_forward.38} parent=0 // pred_region
    _
  $region5: #{unet_forward.38} parent=0 // pred_fallthru
    _
  // Predicated region
  $region6: #{unet_forward.38} parent=0 // pred_check
    _
  $region7: #{unet_forward.38} parent=0 // pred_check_branch
    %12 = sbr.rel (0) target = $region9
  $region8: #{unet_forward.38} parent=0 // pred_region
    _
  $region9: #{unet_forward.38} parent=0 // pred_fallthru
    _
  // Predicated region
  $region10: #{unet_forward.38} parent=0 // pred_check
    _
  $region11: #{unet_forward.38} parent=0 // pred_check_branch
    %14 = sbr.rel (0) target = $region13
  $region12: #{unet_forward.38} parent=0 // pred_region
    _
  $region13: #{unet_forward.38} parent=0 // pred_fallthru
    _
  // Predicated region
  $region14: #{unet_forward.38} parent=0 // pred_check
    _
  $region15: #{unet_forward.38} parent=0 // pred_check_branch
    %16 = sbr.rel (0) target = $region17
  $region16: #{unet_forward.38} parent=0 // pred_region
    _
  $region17: #{unet_forward.38} parent=0 // pred_fallthru
    _
  %v17 = vld [vmem:[%s0] sm:$0x3]
  %v18 = vld [vmem:[%s1] sm:$0x3]
  %v19 = vmax.f32 %v17, %v18
  %v20 = vld [vmem:[%s2] sm:$0x3]
  %v21 = vld [vmem:[%s3] sm:$0x3]
  %v22 = vmax.f32 %v20, %v21
  %v23 = vmax.f32 %v19, %v22
  %vm24 = vcmask 254976
  %25 = vst.msk [vmem:[%s4] sm:$0x3] %vm24, %v23
  // Predicated region
  $region18: #{unet_forward.38} parent=0 // pred_check
    _
  $region19: #{unet_forward.38} parent=0 // pred_check_branch
    %27 = sbr.rel (0) target = $region21
  $region20: #{unet_forward.38} parent=0 // pred_region
    _
  $region21: #{unet_forward.38} parent=0 // pred_fallthru
    _
  // Predicated region
  $region22: #{unet_forward.38} parent=0 // pred_check
    _
  $region23: #{unet_forward.38} parent=0 // pred_check_branch
    %29 = sbr.rel (0) target = $region25
  $region24: #{unet_forward.38} parent=0 // pred_region
    _
  $region25: #{unet_forward.38} parent=0 // pred_fallthru
    _

// kernel: tile.23
$region0: #{tile.23}
  #allocation0 [shape = 's32[1]{0}', space=sflag, size = 0x4, scoped, tag = 'scoped memory for tile.23']
  %s0 = inlined_call_operand.vmem [shape: f32[32], index: 0, kind: input, shape index: {}]
  %s1 = inlined_call_operand.vmem [shape: f32[4,32], index: 1, kind: output, shape index: {}]
  // Predicated region
  $region2: #{tile.23} parent=0 // pred_check
    _
  $region3: #{tile.23} parent=0 // pred_check_branch
    %3 = sbr.rel (0) target = $region5
  $region4: #{tile.23} parent=0 // pred_region
    _
  $region5: #{tile.23} parent=0 // pred_fallthru
    _
  %v4 = vld [vmem:[%s0] ss:$0 sm:$0xff]
  %5 = vst [vmem:[%s1] sm:$0xf] %v4

// kernel: tile.24
$region0: #{tile.24}
  %s0 = inlined_call_operand.vmem [shape: f32[4,32], index: 0, kind: input, shape index: {}]
  %s1 = inlined_call_operand.vmem [shape: f32[1,128], index: 1, kind: output, shape index: {}]
  $region1: #{tile.24} parent=0
    #allocation0 [shape = 'u8[4096]{0}', space=vmem, size = 0x1000, scoped, tag = 'scoped mem for output reshape']
    #allocation1 [shape = 'u8[4096]{0}', space=vmem, size = 0x1000, scoped, tag = 'scoped mem for input reshape']
    %s3 = ssub.s32 16, 1
    %v4 = vld [vmem:[%s0] sm:%s3]
    %5 = vst [vmem:[#allocation1] sm:%s3] %v4
    %v6 = vld [vmem:[#allocation1] sm:$0x1]
    %vm7 = vcmask 261120
    %8 = vst.msk [vmem:[#allocation0] sm:$0x1] %vm7, %v6
    %s9 = scalar_lea.vmem [#allocation1], 3
    %v10 = vld [vmem:[%s9] sm:$0x1]
    %11 = vrot.lane.b32.xlu0 %v10, 96
    %v12 = vpop.permute.xlu0 %11
    %vm13 = vcmask 1048320
    %14 = vst.msk [vmem:[#allocation0] sm:$0x1] %vm13, %v12
    %s15 = scalar_lea.vmem [#allocation1], 2
    %v16 = vld [vmem:[%s15] sm:$0x1]
    %17 = vrot.lane.b32.xlu0 %v16, 64
    %v18 = vpop.permute.xlu0 %17
    %vm19 = vcmask 785920
    %20 = vst.msk [vmem:[#allocation0] sm:$0x1] %vm19, %v18
    %s21 = scalar_lea.vmem [#allocation1], 1
    %v22 = vld [vmem:[%s21] sm:$0x1]
    %23 = vrot.lane.b32.xlu0 %v22, 32
    %v24 = vpop.permute.xlu0 %23
    %vm25 = vcmask 523520
    %26 = vst.msk [vmem:[#allocation0] sm:$0x1] %vm25, %v24
    %s28 = ssub.s32 2, 1
    %v29 = vld [vmem:[#allocation0] sm:%s28]
    %s31 = ssub.s32 2, 1
    %32 = vst [vmem:[%s1] sm:%s31] %v29

// kernel: unet_forward.39
$region0: #{unet_forward.39}
  #allocation0 [shape = 'u32[]', space=smem, size = 0x4, offset = 0x4, fixed_abs, tag = 'smem constant byte address 0x4 - core index']
  #allocation1 [shape = 'u32[72,128]{1,0:T(1,128)}', space=vmem, size = 0x9000, scoped, tag = 'internal scratch']
  %s0 = inlined_call_operand.vmem [shape: f32[2,288], index: 0, kind: input, shape index: {}]
  %s1 = inlined_call_operand.vmem [shape: f32[288,64], index: 1, kind: input, shape index: {}]
  %s2 = inlined_call_operand.vmem [shape: f32[1,64], index: 2, kind: input, shape index: {}]
  %s3 = inlined_call_operand.vmem [shape: f32[1,64], index: 3, kind: input, shape index: {}]
  %s4 = inlined_call_operand.vmem [shape: f32[2,64], index: 4, kind: output, shape index: {}]
  %s5 = sld [smem:[#allocation0]]
  $region26: #{unet_forward.39} parent=0
    _
  %s7 = ssub.s32 1, %s5
  %s8 = scalar_select 0, %s7, %s5
  // Predicated region
  $region2: #{unet_forward.39} parent=0 // pred_check
    _
  $region3: #{unet_forward.39} parent=0 // pred_check_branch
    %10 = sbr.rel (0) target = $region5
  $region4: #{unet_forward.39} parent=0 // pred_region
    _
  $region5: #{unet_forward.39} parent=0 // pred_fallthru
    _
  // Predicated region
  $region6: #{unet_forward.39} parent=0 // pred_check
    _
  $region7: #{unet_forward.39} parent=0 // pred_check_branch
    %12 = sbr.rel (0) target = $region9
  $region8: #{unet_forward.39} parent=0 // pred_region
    _
  $region9: #{unet_forward.39} parent=0 // pred_fallthru
    _
  // Predicated region
  $region10: #{unet_forward.39} parent=0 // pred_check
    _
  $region11: #{unet_forward.39} parent=0 // pred_check_branch
    %14 = sbr.rel (0) target = $region13
  $region12: #{unet_forward.39} parent=0 // pred_region
    _
  $region13: #{unet_forward.39} parent=0 // pred_fallthru
    _
  // Predicated region
  $region14: #{unet_forward.39} parent=0 // pred_check
    _
  $region15: #{unet_forward.39} parent=0 // pred_check_branch
    %16 = sbr.rel (0) target = $region17
  $region16: #{unet_forward.39} parent=0 // pred_region
    _
  $region17: #{unet_forward.39} parent=0 // pred_fallthru
    _
  %v17 = vld [vmem:[%s0] sm:$0x3f]
  %v18 = vld [vmem:[%s1] sm:$0xff]
  %v19 = vld [vmem:[%s1 + $0x8] sm:$0xff]
  %v20 = vld [vmem:[%s1 + $0x10] sm:$0xff]
  %v21 = vld [vmem:[%s1 + $0x18] sm:$0xff]
  %v22 = vld [vmem:[%s1 + $0x20] sm:$0xff]
  %v23 = vld [vmem:[%s1 + $0x28] sm:$0xff]
  %v24 = vld [vmem:[%s1 + $0x30] sm:$0xff]
  %v25 = vld [vmem:[%s1 + $0x38] sm:$0xff]
  %v26 = vld [vmem:[%s1 + $0x40] sm:$0xff]
  %v27 = vld [vmem:[%s1 + $0x48] sm:$0xff]
  %v28 = vld [vmem:[%s1 + $0x50] sm:$0xff]
  %v29 = vld [vmem:[%s1 + $0x58] sm:$0xff]
  %v30 = vld [vmem:[%s1 + $0x60] sm:$0xff]
  %v31 = vld [vmem:[%s1 + $0x68] sm:$0xff]
  %v32 = vld [vmem:[%s1 + $0x70] sm:$0xff]
  %v33 = vld [vmem:[%s1 + $0x78] sm:$0xff]
  %v34 = vld [vmem:[%s1 + $0x80] sm:$0xff]
  %v35 = vld [vmem:[%s1 + $0x88] sm:$0xff]
  %v36 = vld [vmem:[%s1 + $0x90] sm:$0xff]
  %v37 = vld [vmem:[%s1 + $0x98] sm:$0xff]
  %v38 = vld [vmem:[%s1 + $0xa0] sm:$0xff]
  %v39 = vld [vmem:[%s1 + $0xa8] sm:$0xff]
  %v40 = vld [vmem:[%s1 + $0xb0] sm:$0xff]
  %v41 = vld [vmem:[%s1 + $0xb8] sm:$0xff]
  %v42 = vld [vmem:[%s1 + $0xc0] sm:$0xff]
  %v43 = vld [vmem:[%s1 + $0xc8] sm:$0xff]
  %v44 = vld [vmem:[%s1 + $0xd0] sm:$0xff]
  %v45 = vld [vmem:[%s1 + $0xd8] sm:$0xff]
  %v46 = vld [vmem:[%s1 + $0xe0] sm:$0xff]
  %v47 = vld [vmem:[%s1 + $0xe8] sm:$0xff]
  %v48 = vld [vmem:[%s1 + $0xf0] sm:$0xff]
  %v49 = vld [vmem:[%s1 + $0xf8] sm:$0xff]
  %v50 = vld [vmem:[%s1 + $0x100] sm:$0xff]
  %v51 = vld [vmem:[%s1 + $0x108] sm:$0xff]
  %v52 = vld [vmem:[%s1 + $0x110] sm:$0xff]
  %v53 = vld [vmem:[%s1 + $0x118] sm:$0xff]
  %55 = vst [vmem:[#allocation1] ss:$4 sm:$0xff] %v17
  %v56 = vld.sshfl [vmem:[#allocation1] sm:$0xff pattern:$0x73625140]
  %v57 = vld.sshfl [vmem:[#allocation1 + $0x8] sm:$0xff pattern:$0x73625140]
  %v58 = vld.sshfl [vmem:[#allocation1 + $0x10] sm:$0xff pattern:$0x73625140]
  %vm61 = vcmask 261120
  %v62 = vsel %vm61, %v58, 0
  %64 = vmatpush.msra.mxu0 %v33
  %65 = vmatpush.msra.mxu0 %v32
  %66 = vmatpush.msra.mxu0 %v31
  %67 = vmatpush.msra.mxu0 %v30
  %68 = vmatpush.msra.mxu0 %v29
  %69 = vmatpush.msra.mxu0 %v28
  %70 = vmatpush.msra.mxu0 %v27
  %71 = vmatpush.msra.mxu0 %v26
  %72 = vmatpush.msra.mxu0 %v25
  %73 = vmatpush.msra.mxu0 %v24
  %74 = vmatpush.msra.mxu0 %v23
  %75 = vmatpush.msra.mxu0 %v22
  %76 = vmatpush.msra.mxu0 %v21
  %77 = vmatpush.msra.mxu0 %v20
  %78 = vmatpush.msra.mxu0 %v19
  %79 = vmatpush.msra.mxu0 %v18
  %80 = vmatmul.f32.gmra.mxu0 %v56
  %v81 = vpop.f32.mrf.mxu0
  %v82 = vadd.f32 0.0, %v81
  %83 = vdwg.mxu0
  %84 = vmatpush.msra.mxu0 %v49
  %85 = vmatpush.msra.mxu0 %v48
  %86 = vmatpush.msra.mxu0 %v47
  %87 = vmatpush.msra.mxu0 %v46
  %88 = vmatpush.msra.mxu0 %v45
  %89 = vmatpush.msra.mxu0 %v44
  %90 = vmatpush.msra.mxu0 %v43
  %91 = vmatpush.msra.mxu0 %v42
  %92 = vmatpush.msra.mxu0 %v41
  %93 = vmatpush.msra.mxu0 %v40
  %94 = vmatpush.msra.mxu0 %v39
  %95 = vmatpush.msra.mxu0 %v38
  %96 = vmatpush.msra.mxu0 %v37
  %97 = vmatpush.msra.mxu0 %v36
  %98 = vmatpush.msra.mxu0 %v35
  %99 = vmatpush.msra.mxu0 %v34
  %100 = vmatmul.f32.gmra.mxu0 %v57
  %v101 = vpop.f32.mrf.mxu0
  %v102 = vadd.f32 %v82, %v101
  %103 = vdwg.mxu0
  %104 = vmatpush.msra.mxu0 0.0
  %105 = vmatpush.msra.mxu0 0.0
  %106 = vmatpush.msra.mxu0 0.0
  %107 = vmatpush.msra.mxu0 0.0
  %108 = vmatpush.msra.mxu0 0.0
  %109 = vmatpush.msra.mxu0 0.0
  %110 = vmatpush.msra.mxu0 0.0
  %111 = vmatpush.msra.mxu0 0.0
  %112 = vmatpush.msra.mxu0 0.0
  %113 = vmatpush.msra.mxu0 0.0
  %114 = vmatpush.msra.mxu0 0.0
  %115 = vmatpush.msra.mxu0 0.0
  %116 = vmatpush.msra.mxu0 %v53
  %117 = vmatpush.msra.mxu0 %v52
  %118 = vmatpush.msra.mxu0 %v51
  %119 = vmatpush.msra.mxu0 %v50
  %120 = vmatmul.f32.gmra.mxu0 %v62
  %v121 = vpop.f32.mrf.mxu0
  %v122 = vadd.f32 %v102, %v121
  %123 = vdwg.mxu0
  %v124 = vld [vmem:[%s2] sm:$0x1]
  %v126 = vperm.slane %v124, 0
  %v128 = vmul.f32 %v122, %v126
  %v129 = vld [vmem:[%s3] sm:$0x1]
  %v131 = vperm.slane %v129, 0
  %v133 = vadd.f32 %v128, %v131
  %v134 = vmax.f32 %v133, 0.0
  %vm135 = vcmask 517120
  %136 = vst.msk [vmem:[%s4] sm:$0x3] %vm135, %v134
  // Predicated region
  $region18: #{unet_forward.39} parent=0 // pred_check
    _
  $region19: #{unet_forward.39} parent=0 // pred_check_branch
    %138 = sbr.rel (0) target = $region21
  $region20: #{unet_forward.39} parent=0 // pred_region
    _
  $region21: #{unet_forward.39} parent=0 // pred_fallthru
    _
  // Predicated region
  $region22: #{unet_forward.39} parent=0 // pred_check
    _
  $region23: #{unet_forward.39} parent=0 // pred_check_branch
    %140 = sbr.rel (0) target = $region25
  $region24: #{unet_forward.39} parent=0 // pred_region
    _
  $region25: #{unet_forward.39} parent=0 // pred_fallthru
    _

// kernel: unet_forward.41
$region0: #{unet_forward.41}
  #allocation0 [shape = 'u32[]', space=smem, size = 0x4, offset = 0x4, fixed_abs, tag = 'smem constant byte address 0x4 - core index']
  #allocation1 [shape = 'u32[72,128]{1,0:T(1,128)}', space=vmem, size = 0x9000, scoped, tag = 'internal scratch']
  %s0 = inlined_call_operand.vmem [shape: f32[2,64], index: 0, kind: input, shape index: {}]
  %s1 = inlined_call_operand.vmem [shape: f32[64,128], index: 1, kind: input, shape index: {}]
  %s2 = inlined_call_operand.vmem [shape: f32[1,128], index: 2, kind: input, shape index: {}]
  %s3 = inlined_call_operand.vmem [shape: f32[1,128], index: 3, kind: input, shape index: {}]
  %s4 = inlined_call_operand.vmem [shape: f32[2,128], index: 4, kind: output, shape index: {}]
  %s5 = sld [smem:[#allocation0]]
  $region26: #{unet_forward.41} parent=0
    _
  %s7 = ssub.s32 1, %s5
  %s8 = scalar_select 0, %s7, %s5
  // Predicated region
  $region2: #{unet_forward.41} parent=0 // pred_check
    _
  $region3: #{unet_forward.41} parent=0 // pred_check_branch
    %10 = sbr.rel (0) target = $region5
  $region4: #{unet_forward.41} parent=0 // pred_region
    _
  $region5: #{unet_forward.41} parent=0 // pred_fallthru
    _
  // Predicated region
  $region6: #{unet_forward.41} parent=0 // pred_check
    _
  $region7: #{unet_forward.41} parent=0 // pred_check_branch
    %12 = sbr.rel (0) target = $region9
  $region8: #{unet_forward.41} parent=0 // pred_region
    _
  $region9: #{unet_forward.41} parent=0 // pred_fallthru
    _
  // Predicated region
  $region10: #{unet_forward.41} parent=0 // pred_check
    _
  $region11: #{unet_forward.41} parent=0 // pred_check_branch
    %14 = sbr.rel (0) target = $region13
  $region12: #{unet_forward.41} parent=0 // pred_region
    _
  $region13: #{unet_forward.41} parent=0 // pred_fallthru
    _
  // Predicated region
  $region14: #{unet_forward.41} parent=0 // pred_check
    _
  $region15: #{unet_forward.41} parent=0 // pred_check_branch
    %16 = sbr.rel (0) target = $region17
  $region16: #{unet_forward.41} parent=0 // pred_region
    _
  $region17: #{unet_forward.41} parent=0 // pred_fallthru
    _
  %v17 = vld [vmem:[%s0] sm:$0x3]
  %v18 = vld [vmem:[%s1] sm:$0xff]
  %v19 = vld [vmem:[%s1 + $0x8] sm:$0xff]
  %v20 = vld [vmem:[%s1 + $0x10] sm:$0xff]
  %v21 = vld [vmem:[%s1 + $0x18] sm:$0xff]
  %v22 = vld [vmem:[%s1 + $0x20] sm:$0xff]
  %v23 = vld [vmem:[%s1 + $0x28] sm:$0xff]
  %v24 = vld [vmem:[%s1 + $0x30] sm:$0xff]
  %v25 = vld [vmem:[%s1 + $0x38] sm:$0xff]
  %vm26 = vcmask 523264
  %v28 = vsel %vm26, %v17, 0
  %30 = vmatpush.msra.mxu0 0.0
  %31 = vmatpush.msra.mxu0 0.0
  %32 = vmatpush.msra.mxu0 0.0
  %33 = vmatpush.msra.mxu0 0.0
  %34 = vmatpush.msra.mxu0 0.0
  %35 = vmatpush.msra.mxu0 0.0
  %36 = vmatpush.msra.mxu0 0.0
  %37 = vmatpush.msra.mxu0 0.0
  %38 = vmatpush.msra.mxu0 %v25
  %39 = vmatpush.msra.mxu0 %v24
  %40 = vmatpush.msra.mxu0 %v23
  %41 = vmatpush.msra.mxu0 %v22
  %42 = vmatpush.msra.mxu0 %v21
  %43 = vmatpush.msra.mxu0 %v20
  %44 = vmatpush.msra.mxu0 %v19
  %45 = vmatpush.msra.mxu0 %v18
  %46 = vmatmul.f32.gmra.mxu0 %v28
  %v47 = vpop.f32.mrf.mxu0
  %v48 = vadd.f32 0.0, %v47
  %49 = vdwg.mxu0
  %v50 = vld [vmem:[%s2] sm:$0x1]
  %v52 = vperm.slane %v50, 0
  %v54 = vmul.f32 %v48, %v52
  %v55 = vld [vmem:[%s3] sm:$0x1]
  %v57 = vperm.slane %v55, 0
  %v59 = vadd.f32 %v54, %v57
  %60 = vst [vmem:[%s4] sm:$0x3] %v59
  // Predicated region
  $region18: #{unet_forward.41} parent=0 // pred_check
    _
  $region19: #{unet_forward.41} parent=0 // pred_check_branch
    %62 = sbr.rel (0) target = $region21
  $region20: #{unet_forward.41} parent=0 // pred_region
    _
  $region21: #{unet_forward.41} parent=0 // pred_fallthru
    _
  // Predicated region
  $region22: #{unet_forward.41} parent=0 // pred_check
    _
  $region23: #{unet_forward.41} parent=0 // pred_check_branch
    %64 = sbr.rel (0) target = $region25
  $region24: #{unet_forward.41} parent=0 // pred_region
    _
  $region25: #{unet_forward.41} parent=0 // pred_fallthru
    _

// kernel: tile.28
$region0: #{tile.28}
  #allocation0 [shape = 's32[1]{0}', space=sflag, size = 0x4, scoped, tag = 'scoped memory for tile.28']
  %s0 = inlined_call_operand.vmem [shape: f32[16], index: 0, kind: input, shape index: {}]
  %s1 = inlined_call_operand.vmem [shape: f32[4,16], index: 1, kind: output, shape index: {}]
  // Predicated region
  $region2: #{tile.28} parent=0 // pred_check
    _
  $region3: #{tile.28} parent=0 // pred_check_branch
    %3 = sbr.rel (0) target = $region5
  $region4: #{tile.28} parent=0 // pred_region
    _
  $region5: #{tile.28} parent=0 // pred_fallthru
    _
  %v4 = vld [vmem:[%s0] ss:$0 sm:$0xff]
  %5 = vst [vmem:[%s1] sm:$0xf] %v4

// kernel: tile.29
$region0: #{tile.29}
  %s0 = inlined_call_operand.vmem [shape: f32[4,16], index: 0, kind: input, shape index: {}]
  %s1 = inlined_call_operand.vmem [shape: f32[1,64], index: 1, kind: output, shape index: {}]
  $region1: #{tile.29} parent=0
    #allocation0 [shape = 'u8[4096]{0}', space=vmem, size = 0x1000, scoped, tag = 'scoped mem for output reshape']
    #allocation1 [shape = 'u8[4096]{0}', space=vmem, size = 0x1000, scoped, tag = 'scoped mem for input reshape']
    %s3 = ssub.s32 16, 1
    %v4 = vld [vmem:[%s0] sm:%s3]
    %5 = vst [vmem:[#allocation1] sm:%s3] %v4
    %v6 = vld [vmem:[#allocation1] sm:$0x1]
    %vm7 = vcmask 130048
    %8 = vst.msk [vmem:[#allocation0] sm:$0x1] %vm7, %v6
    %s9 = scalar_lea.vmem [#allocation1], 3
    %v10 = vld [vmem:[%s9] sm:$0x1]
    %11 = vrot.lane.b32.xlu0 %v10, 48
    %v12 = vpop.permute.xlu0 %11
    %vm13 = vcmask 523648
    %14 = vst.msk [vmem:[#allocation0] sm:$0x1] %vm13, %v12
    %s15 = scalar_lea.vmem [#allocation1], 2
    %v16 = vld [vmem:[%s15] sm:$0x1]
    %17 = vrot.lane.b32.xlu0 %v16, 32
    %v18 = vpop.permute.xlu0 %17
    %vm19 = vcmask 392448
    %20 = vst.msk [vmem:[#allocation0] sm:$0x1] %vm19, %v18
    %s21 = scalar_lea.vmem [#allocation1], 1
    %v22 = vld [vmem:[%s21] sm:$0x1]
    %23 = vrot.lane.b32.xlu0 %v22, 16
    %v24 = vpop.permute.xlu0 %23
    %vm25 = vcmask 261248
    %26 = vst.msk [vmem:[#allocation0] sm:$0x1] %vm25, %v24
    %s28 = ssub.s32 2, 1
    %v29 = vld [vmem:[#allocation0] sm:%s28]
    %s31 = ssub.s32 2, 1
    %32 = vst [vmem:[%s1] sm:%s31] %v29

// kernel: unet_forward.40
$region0: #{unet_forward.40}
  #allocation0 [shape = 'u32[]', space=smem, size = 0x4, offset = 0x4, fixed_abs, tag = 'smem constant byte address 0x4 - core index']
  #allocation1 [shape = 'u32[72,128]{1,0:T(1,128)}', space=vmem, size = 0x9000, scoped, tag = 'internal scratch']
  %s0 = inlined_call_operand.vmem [shape: f32[2,576], index: 0, kind: input, shape index: {}]
  %s1 = inlined_call_operand.vmem [shape: f32[576,64], index: 1, kind: input, shape index: {}]
  %s2 = inlined_call_operand.vmem [shape: f32[1,64], index: 2, kind: input, shape index: {}]
  %s3 = inlined_call_operand.vmem [shape: f32[1,64], index: 3, kind: input, shape index: {}]
  %s4 = inlined_call_operand.vmem [shape: f32[2,64], index: 4, kind: output, shape index: {}]
  %s5 = sld [smem:[#allocation0]]
  $region26: #{unet_forward.40} parent=0
    _
  %s7 = ssub.s32 1, %s5
  %s8 = scalar_select 0, %s7, %s5
  // Predicated region
  $region2: #{unet_forward.40} parent=0 // pred_check
    _
  $region3: #{unet_forward.40} parent=0 // pred_check_branch
    %10 = sbr.rel (0) target = $region5
  $region4: #{unet_forward.40} parent=0 // pred_region
    _
  $region5: #{unet_forward.40} parent=0 // pred_fallthru
    _
  // Predicated region
  $region6: #{unet_forward.40} parent=0 // pred_check
    _
  $region7: #{unet_forward.40} parent=0 // pred_check_branch
    %12 = sbr.rel (0) target = $region9
  $region8: #{unet_forward.40} parent=0 // pred_region
    _
  $region9: #{unet_forward.40} parent=0 // pred_fallthru
    _
  // Predicated region
  $region10: #{unet_forward.40} parent=0 // pred_check
    _
  $region11: #{unet_forward.40} parent=0 // pred_check_branch
    %14 = sbr.rel (0) target = $region13
  $region12: #{unet_forward.40} parent=0 // pred_region
    _
  $region13: #{unet_forward.40} parent=0 // pred_fallthru
    _
  // Predicated region
  $region14: #{unet_forward.40} parent=0 // pred_check
    _
  $region15: #{unet_forward.40} parent=0 // pred_check_branch
    %16 = sbr.rel (0) target = $region17
  $region16: #{unet_forward.40} parent=0 // pred_region
    _
  $region17: #{unet_forward.40} parent=0 // pred_fallthru
    _
  %v17 = vld [vmem:[%s0] sm:$0xff]
  %v18 = vld [vmem:[%s0 + $0x8] sm:$0x3]
  %v19 = vld [vmem:[%s1] sm:$0xff]
  %v20 = vld [vmem:[%s1 + $0x8] sm:$0xff]
  %v21 = vld [vmem:[%s1 + $0x10] sm:$0xff]
  %v22 = vld [vmem:[%s1 + $0x18] sm:$0xff]
  %v23 = vld [vmem:[%s1 + $0x20] sm:$0xff]
  %v24 = vld [vmem:[%s1 + $0x28] sm:$0xff]
  %v25 = vld [vmem:[%s1 + $0x30] sm:$0xff]
  %v26 = vld [vmem:[%s1 + $0x38] sm:$0xff]
  %v27 = vld [vmem:[%s1 + $0x40] sm:$0xff]
  %v28 = vld [vmem:[%s1 + $0x48] sm:$0xff]
  %v29 = vld [vmem:[%s1 + $0x50] sm:$0xff]
  %v30 = vld [vmem:[%s1 + $0x58] sm:$0xff]
  %v31 = vld [vmem:[%s1 + $0x60] sm:$0xff]
  %v32 = vld [vmem:[%s1 + $0x68] sm:$0xff]
  %v33 = vld [vmem:[%s1 + $0x70] sm:$0xff]
  %v34 = vld [vmem:[%s1 + $0x78] sm:$0xff]
  %v35 = vld [vmem:[%s1 + $0x80] sm:$0xff]
  %v36 = vld [vmem:[%s1 + $0x88] sm:$0xff]
  %v37 = vld [vmem:[%s1 + $0x90] sm:$0xff]
  %v38 = vld [vmem:[%s1 + $0x98] sm:$0xff]
  %v39 = vld [vmem:[%s1 + $0xa0] sm:$0xff]
  %v40 = vld [vmem:[%s1 + $0xa8] sm:$0xff]
  %v41 = vld [vmem:[%s1 + $0xb0] sm:$0xff]
  %v42 = vld [vmem:[%s1 + $0xb8] sm:$0xff]
  %v43 = vld [vmem:[%s1 + $0xc0] sm:$0xff]
  %v44 = vld [vmem:[%s1 + $0xc8] sm:$0xff]
  %v45 = vld [vmem:[%s1 + $0xd0] sm:$0xff]
  %v46 = vld [vmem:[%s1 + $0xd8] sm:$0xff]
  %v47 = vld [vmem:[%s1 + $0xe0] sm:$0xff]
  %v48 = vld [vmem:[%s1 + $0xe8] sm:$0xff]
  %v49 = vld [vmem:[%s1 + $0xf0] sm:$0xff]
  %v50 = vld [vmem:[%s1 + $0xf8] sm:$0xff]
  %v51 = vld [vmem:[%s1 + $0x100] sm:$0xff]
  %v52 = vld [vmem:[%s1 + $0x108] sm:$0xff]
  %v53 = vld [vmem:[%s1 + $0x110] sm:$0xff]
  %v54 = vld [vmem:[%s1 + $0x118] sm:$0xff]
  %v55 = vld [vmem:[%s1 + $0x120] sm:$0xff]
  %v56 = vld [vmem:[%s1 + $0x128] sm:$0xff]
  %v57 = vld [vmem:[%s1 + $0x130] sm:$0xff]
  %v58 = vld [vmem:[%s1 + $0x138] sm:$0xff]
  %v59 = vld [vmem:[%s1 + $0x140] sm:$0xff]
  %v60 = vld [vmem:[%s1 + $0x148] sm:$0xff]
  %v61 = vld [vmem:[%s1 + $0x150] sm:$0xff]
  %v62 = vld [vmem:[%s1 + $0x158] sm:$0xff]
  %v63 = vld [vmem:[%s1 + $0x160] sm:$0xff]
  %v64 = vld [vmem:[%s1 + $0x168] sm:$0xff]
  %v65 = vld [vmem:[%s1 + $0x170] sm:$0xff]
  %v66 = vld [vmem:[%s1 + $0x178] sm:$0xff]
  %v67 = vld [vmem:[%s1 + $0x180] sm:$0xff]
  %v68 = vld [vmem:[%s1 + $0x188] sm:$0xff]
  %v69 = vld [vmem:[%s1 + $0x190] sm:$0xff]
  %v70 = vld [vmem:[%s1 + $0x198] sm:$0xff]
  %v71 = vld [vmem:[%s1 + $0x1a0] sm:$0xff]
  %v72 = vld [vmem:[%s1 + $0x1a8] sm:$0xff]
  %v73 = vld [vmem:[%s1 + $0x1b0] sm:$0xff]
  %v74 = vld [vmem:[%s1 + $0x1b8] sm:$0xff]
  %v75 = vld [vmem:[%s1 + $0x1c0] sm:$0xff]
  %v76 = vld [vmem:[%s1 + $0x1c8] sm:$0xff]
  %v77 = vld [vmem:[%s1 + $0x1d0] sm:$0xff]
  %v78 = vld [vmem:[%s1 + $0x1d8] sm:$0xff]
  %v79 = vld [vmem:[%s1 + $0x1e0] sm:$0xff]
  %v80 = vld [vmem:[%s1 + $0x1e8] sm:$0xff]
  %v81 = vld [vmem:[%s1 + $0x1f0] sm:$0xff]
  %v82 = vld [vmem:[%s1 + $0x1f8] sm:$0xff]
  %v83 = vld [vmem:[%s1 + $0x200] sm:$0xff]
  %v84 = vld [vmem:[%s1 + $0x208] sm:$0xff]
  %v85 = vld [vmem:[%s1 + $0x210] sm:$0xff]
  %v86 = vld [vmem:[%s1 + $0x218] sm:$0xff]
  %v87 = vld [vmem:[%s1 + $0x220] sm:$0xff]
  %v88 = vld [vmem:[%s1 + $0x228] sm:$0xff]
  %v89 = vld [vmem:[%s1 + $0x230] sm:$0xff]
  %v90 = vld [vmem:[%s1 + $0x238] sm:$0xff]
  %93 = vst [vmem:[#allocation1] ss:$4 sm:$0xff] %v17
  %s94 = scalar_lea.vmem [#allocation1], 32
  %95 = vst [vmem:[%s94] ss:$4 sm:$0xff] %v18
  %v96 = vld.sshfl [vmem:[#allocation1] sm:$0xff pattern:$0x73625140]
  %v97 = vld.sshfl [vmem:[#allocation1 + $0x8] sm:$0xff pattern:$0x73625140]
  %v98 = vld.sshfl [vmem:[#allocation1 + $0x10] sm:$0xff pattern:$0x73625140]
  %v99 = vld.sshfl [vmem:[#allocation1 + $0x18] sm:$0xff pattern:$0x73625140]
  %v100 = vld.sshfl [vmem:[#allocation1 + $0x20] sm:$0xff pattern:$0x73625140]
  %vm105 = vcmask 523264
  %v106 = vsel %vm105, %v100, 0
  %108 = vmatpush.msra.mxu0 %v34
  %109 = vmatpush.msra.mxu0 %v33
  %110 = vmatpush.msra.mxu0 %v32
  %111 = vmatpush.msra.mxu0 %v31
  %112 = vmatpush.msra.mxu0 %v30
  %113 = vmatpush.msra.mxu0 %v29
  %114 = vmatpush.msra.mxu0 %v28
  %115 = vmatpush.msra.mxu0 %v27
  %116 = vmatpush.msra.mxu0 %v26
  %117 = vmatpush.msra.mxu0 %v25
  %118 = vmatpush.msra.mxu0 %v24
  %119 = vmatpush.msra.mxu0 %v23
  %120 = vmatpush.msra.mxu0 %v22
  %121 = vmatpush.msra.mxu0 %v21
  %122 = vmatpush.msra.mxu0 %v20
  %123 = vmatpush.msra.mxu0 %v19
  %124 = vmatmul.f32.gmra.mxu0 %v96
  %v125 = vpop.f32.mrf.mxu0
  %v126 = vadd.f32 0.0, %v125
  %127 = vdwg.mxu0
  %128 = vmatpush.msra.mxu0 %v50
  %129 = vmatpush.msra.mxu0 %v49
  %130 = vmatpush.msra.mxu0 %v48
  %131 = vmatpush.msra.mxu0 %v47
  %132 = vmatpush.msra.mxu0 %v46
  %133 = vmatpush.msra.mxu0 %v45
  %134 = vmatpush.msra.mxu0 %v44
  %135 = vmatpush.msra.mxu0 %v43
  %136 = vmatpush.msra.mxu0 %v42
  %137 = vmatpush.msra.mxu0 %v41
  %138 = vmatpush.msra.mxu0 %v40
  %139 = vmatpush.msra.mxu0 %v39
  %140 = vmatpush.msra.mxu0 %v38
  %141 = vmatpush.msra.mxu0 %v37
  %142 = vmatpush.msra.mxu0 %v36
  %143 = vmatpush.msra.mxu0 %v35
  %144 = vmatmul.f32.gmra.mxu0 %v97
  %v145 = vpop.f32.mrf.mxu0
  %v146 = vadd.f32 %v126, %v145
  %147 = vdwg.mxu0
  %148 = vmatpush.msra.mxu0 %v66
  %149 = vmatpush.msra.mxu0 %v65
  %150 = vmatpush.msra.mxu0 %v64
  %151 = vmatpush.msra.mxu0 %v63
  %152 = vmatpush.msra.mxu0 %v62
  %153 = vmatpush.msra.mxu0 %v61
  %154 = vmatpush.msra.mxu0 %v60
  %155 = vmatpush.msra.mxu0 %v59
  %156 = vmatpush.msra.mxu0 %v58
  %157 = vmatpush.msra.mxu0 %v57
  %158 = vmatpush.msra.mxu0 %v56
  %159 = vmatpush.msra.mxu0 %v55
  %160 = vmatpush.msra.mxu0 %v54
  %161 = vmatpush.msra.mxu0 %v53
  %162 = vmatpush.msra.mxu0 %v52
  %163 = vmatpush.msra.mxu0 %v51
  %164 = vmatmul.f32.gmra.mxu0 %v98
  %v165 = vpop.f32.mrf.mxu0
  %v166 = vadd.f32 %v146, %v165
  %167 = vdwg.mxu0
  %168 = vmatpush.msra.mxu0 %v82
  %169 = vmatpush.msra.mxu0 %v81
  %170 = vmatpush.msra.mxu0 %v80
  %171 = vmatpush.msra.mxu0 %v79
  %172 = vmatpush.msra.mxu0 %v78
  %173 = vmatpush.msra.mxu0 %v77
  %174 = vmatpush.msra.mxu0 %v76
  %175 = vmatpush.msra.mxu0 %v75
  %176 = vmatpush.msra.mxu0 %v74
  %177 = vmatpush.msra.mxu0 %v73
  %178 = vmatpush.msra.mxu0 %v72
  %179 = vmatpush.msra.mxu0 %v71
  %180 = vmatpush.msra.mxu0 %v70
  %181 = vmatpush.msra.mxu0 %v69
  %182 = vmatpush.msra.mxu0 %v68
  %183 = vmatpush.msra.mxu0 %v67
  %184 = vmatmul.f32.gmra.mxu0 %v99
  %v185 = vpop.f32.mrf.mxu0
  %v186 = vadd.f32 %v166, %v185
  %187 = vdwg.mxu0
  %188 = vmatpush.msra.mxu0 0.0
  %189 = vmatpush.msra.mxu0 0.0
  %190 = vmatpush.msra.mxu0 0.0
  %191 = vmatpush.msra.mxu0 0.0
  %192 = vmatpush.msra.mxu0 0.0
  %193 = vmatpush.msra.mxu0 0.0
  %194 = vmatpush.msra.mxu0 0.0
  %195 = vmatpush.msra.mxu0 0.0
  %196 = vmatpush.msra.mxu0 %v90
  %197 = vmatpush.msra.mxu0 %v89
  %198 = vmatpush.msra.mxu0 %v88
  %199 = vmatpush.msra.mxu0 %v87
  %200 = vmatpush.msra.mxu0 %v86
  %201 = vmatpush.msra.mxu0 %v85
  %202 = vmatpush.msra.mxu0 %v84
  %203 = vmatpush.msra.mxu0 %v83
  %204 = vmatmul.f32.gmra.mxu0 %v106
  %v205 = vpop.f32.mrf.mxu0
  %v206 = vadd.f32 %v186, %v205
  %207 = vdwg.mxu0
  %v208 = vld [vmem:[%s2] sm:$0x1]
  %v210 = vperm.slane %v208, 0
  %v212 = vmul.f32 %v206, %v210
  %v213 = vld [vmem:[%s3] sm:$0x1]
  %v215 = vperm.slane %v213, 0
  %v217 = vadd.f32 %v212, %v215
  %v218 = vmax.f32 %v217, 0.0
  %vm219 = vcmask 517120
  %220 = vst.msk [vmem:[%s4] sm:$0x3] %vm219, %v218
  // Predicated region
  $region18: #{unet_forward.40} parent=0 // pred_check
    _
  $region19: #{unet_forward.40} parent=0 // pred_check_branch
    %222 = sbr.rel (0) target = $region21
  $region20: #{unet_forward.40} parent=0 // pred_region
    _
  $region21: #{unet_forward.40} parent=0 // pred_fallthru
    _
  // Predicated region
  $region22: #{unet_forward.40} parent=0 // pred_check
    _
  $region23: #{unet_forward.40} parent=0 // pred_check_branch
    %224 = sbr.rel (0) target = $region25
  $region24: #{unet_forward.40} parent=0 // pred_region
    _
  $region25: #{unet_forward.40} parent=0 // pred_fallthru
    _

// kernel: unet_forward.42
$region0: #{unet_forward.42}
  #allocation0 [shape = 'u32[]', space=smem, size = 0x4, offset = 0x4, fixed_abs, tag = 'smem constant byte address 0x4 - core index']
  #allocation1 [shape = 'u32[72,128]{1,0:T(1,128)}', space=vmem, size = 0x9000, scoped, tag = 'internal scratch']
  %s0 = inlined_call_operand.vmem [shape: f32[8,576], index: 0, kind: input, shape index: {}]
  %s1 = inlined_call_operand.vmem [shape: f32[576,32], index: 1, kind: input, shape index: {}]
  %s2 = inlined_call_operand.vmem [shape: f32[1,32], index: 2, kind: input, shape index: {}]
  %s3 = inlined_call_operand.vmem [shape: f32[1,32], index: 3, kind: input, shape index: {}]
  %s4 = inlined_call_operand.vmem [shape: f32[8,32], index: 4, kind: output, shape index: {}]
  %s5 = sld [smem:[#allocation0]]
  $region26: #{unet_forward.42} parent=0
    _
  %s7 = ssub.s32 1, %s5
  %s8 = scalar_select 0, %s7, %s5
  // Predicated region
  $region2: #{unet_forward.42} parent=0 // pred_check
    _
  $region3: #{unet_forward.42} parent=0 // pred_check_branch
    %10 = sbr.rel (0) target = $region5
  $region4: #{unet_forward.42} parent=0 // pred_region
    _
  $region5: #{unet_forward.42} parent=0 // pred_fallthru
    _
  // Predicated region
  $region6: #{unet_forward.42} parent=0 // pred_check
    _
  $region7: #{unet_forward.42} parent=0 // pred_check_branch
    %12 = sbr.rel (0) target = $region9
  $region8: #{unet_forward.42} parent=0 // pred_region
    _
  $region9: #{unet_forward.42} parent=0 // pred_fallthru
    _
  // Predicated region
  $region10: #{unet_forward.42} parent=0 // pred_check
    _
  $region11: #{unet_forward.42} parent=0 // pred_check_branch
    %14 = sbr.rel (0) target = $region13
  $region12: #{unet_forward.42} parent=0 // pred_region
    _
  $region13: #{unet_forward.42} parent=0 // pred_fallthru
    _
  // Predicated region
  $region14: #{unet_forward.42} parent=0 // pred_check
    _
  $region15: #{unet_forward.42} parent=0 // pred_check_branch
    %16 = sbr.rel (0) target = $region17
  $region16: #{unet_forward.42} parent=0 // pred_region
    _
  $region17: #{unet_forward.42} parent=0 // pred_fallthru
    _
  %v17 = vld [vmem:[%s0] sm:$0xff]
  %v18 = vld [vmem:[%s0 + $0x8] sm:$0xff]
  %v19 = vld [vmem:[%s0 + $0x10] sm:$0xff]
  %v20 = vld [vmem:[%s0 + $0x18] sm:$0xff]
  %v21 = vld [vmem:[%s0 + $0x20] sm:$0xff]
  %v22 = vld [vmem:[%s1] sm:$0xff]
  %v23 = vld [vmem:[%s1 + $0x8] sm:$0xff]
  %v24 = vld [vmem:[%s1 + $0x10] sm:$0xff]
  %v25 = vld [vmem:[%s1 + $0x18] sm:$0xff]
  %v26 = vld [vmem:[%s1 + $0x20] sm:$0xff]
  %v27 = vld [vmem:[%s1 + $0x28] sm:$0xff]
  %v28 = vld [vmem:[%s1 + $0x30] sm:$0xff]
  %v29 = vld [vmem:[%s1 + $0x38] sm:$0xff]
  %v30 = vld [vmem:[%s1 + $0x40] sm:$0xff]
  %v31 = vld [vmem:[%s1 + $0x48] sm:$0xff]
  %v32 = vld [vmem:[%s1 + $0x50] sm:$0xff]
  %v33 = vld [vmem:[%s1 + $0x58] sm:$0xff]
  %v34 = vld [vmem:[%s1 + $0x60] sm:$0xff]
  %v35 = vld [vmem:[%s1 + $0x68] sm:$0xff]
  %v36 = vld [vmem:[%s1 + $0x70] sm:$0xff]
  %v37 = vld [vmem:[%s1 + $0x78] sm:$0xff]
  %v38 = vld [vmem:[%s1 + $0x80] sm:$0xff]
  %v39 = vld [vmem:[%s1 + $0x88] sm:$0xff]
  %v40 = vld [vmem:[%s1 + $0x90] sm:$0xff]
  %v41 = vld [vmem:[%s1 + $0x98] sm:$0xff]
  %v42 = vld [vmem:[%s1 + $0xa0] sm:$0xff]
  %v43 = vld [vmem:[%s1 + $0xa8] sm:$0xff]
  %v44 = vld [vmem:[%s1 + $0xb0] sm:$0xff]
  %v45 = vld [vmem:[%s1 + $0xb8] sm:$0xff]
  %v46 = vld [vmem:[%s1 + $0xc0] sm:$0xff]
  %v47 = vld [vmem:[%s1 + $0xc8] sm:$0xff]
  %v48 = vld [vmem:[%s1 + $0xd0] sm:$0xff]
  %v49 = vld [vmem:[%s1 + $0xd8] sm:$0xff]
  %v50 = vld [vmem:[%s1 + $0xe0] sm:$0xff]
  %v51 = vld [vmem:[%s1 + $0xe8] sm:$0xff]
  %v52 = vld [vmem:[%s1 + $0xf0] sm:$0xff]
  %v53 = vld [vmem:[%s1 + $0xf8] sm:$0xff]
  %v54 = vld [vmem:[%s1 + $0x100] sm:$0xff]
  %v55 = vld [vmem:[%s1 + $0x108] sm:$0xff]
  %v56 = vld [vmem:[%s1 + $0x110] sm:$0xff]
  %v57 = vld [vmem:[%s1 + $0x118] sm:$0xff]
  %v58 = vld [vmem:[%s1 + $0x120] sm:$0xff]
  %v59 = vld [vmem:[%s1 + $0x128] sm:$0xff]
  %v60 = vld [vmem:[%s1 + $0x130] sm:$0xff]
  %v61 = vld [vmem:[%s1 + $0x138] sm:$0xff]
  %v62 = vld [vmem:[%s1 + $0x140] sm:$0xff]
  %v63 = vld [vmem:[%s1 + $0x148] sm:$0xff]
  %v64 = vld [vmem:[%s1 + $0x150] sm:$0xff]
  %v65 = vld [vmem:[%s1 + $0x158] sm:$0xff]
  %v66 = vld [vmem:[%s1 + $0x160] sm:$0xff]
  %v67 = vld [vmem:[%s1 + $0x168] sm:$0xff]
  %v68 = vld [vmem:[%s1 + $0x170] sm:$0xff]
  %v69 = vld [vmem:[%s1 + $0x178] sm:$0xff]
  %v70 = vld [vmem:[%s1 + $0x180] sm:$0xff]
  %v71 = vld [vmem:[%s1 + $0x188] sm:$0xff]
  %v72 = vld [vmem:[%s1 + $0x190] sm:$0xff]
  %v73 = vld [vmem:[%s1 + $0x198] sm:$0xff]
  %v74 = vld [vmem:[%s1 + $0x1a0] sm:$0xff]
  %v75 = vld [vmem:[%s1 + $0x1a8] sm:$0xff]
  %v76 = vld [vmem:[%s1 + $0x1b0] sm:$0xff]
  %v77 = vld [vmem:[%s1 + $0x1b8] sm:$0xff]
  %v78 = vld [vmem:[%s1 + $0x1c0] sm:$0xff]
  %v79 = vld [vmem:[%s1 + $0x1c8] sm:$0xff]
  %v80 = vld [vmem:[%s1 + $0x1d0] sm:$0xff]
  %v81 = vld [vmem:[%s1 + $0x1d8] sm:$0xff]
  %v82 = vld [vmem:[%s1 + $0x1e0] sm:$0xff]
  %v83 = vld [vmem:[%s1 + $0x1e8] sm:$0xff]
  %v84 = vld [vmem:[%s1 + $0x1f0] sm:$0xff]
  %v85 = vld [vmem:[%s1 + $0x1f8] sm:$0xff]
  %v86 = vld [vmem:[%s1 + $0x200] sm:$0xff]
  %v87 = vld [vmem:[%s1 + $0x208] sm:$0xff]
  %v88 = vld [vmem:[%s1 + $0x210] sm:$0xff]
  %v89 = vld [vmem:[%s1 + $0x218] sm:$0xff]
  %v90 = vld [vmem:[%s1 + $0x220] sm:$0xff]
  %v91 = vld [vmem:[%s1 + $0x228] sm:$0xff]
  %v92 = vld [vmem:[%s1 + $0x230] sm:$0xff]
  %v93 = vld [vmem:[%s1 + $0x238] sm:$0xff]
  %vm94 = vcmask 523264
  %v96 = vsel %vm94, %v21, 0
  %98 = vmatpush.msra.mxu0 %v37
  %99 = vmatpush.msra.mxu0 %v36
  %100 = vmatpush.msra.mxu0 %v35
  %101 = vmatpush.msra.mxu0 %v34
  %102 = vmatpush.msra.mxu0 %v33
  %103 = vmatpush.msra.mxu0 %v32
  %104 = vmatpush.msra.mxu0 %v31
  %105 = vmatpush.msra.mxu0 %v30
  %106 = vmatpush.msra.mxu0 %v29
  %107 = vmatpush.msra.mxu0 %v28
  %108 = vmatpush.msra.mxu0 %v27
  %109 = vmatpush.msra.mxu0 %v26
  %110 = vmatpush.msra.mxu0 %v25
  %111 = vmatpush.msra.mxu0 %v24
  %112 = vmatpush.msra.mxu0 %v23
  %113 = vmatpush.msra.mxu0 %v22
  %114 = vmatmul.f32.gmra.mxu0 %v17
  %v115 = vpop.f32.mrf.mxu0
  %v116 = vadd.f32 0.0, %v115
  %117 = vdwg.mxu0
  %118 = vmatpush.msra.mxu0 %v53
  %119 = vmatpush.msra.mxu0 %v52
  %120 = vmatpush.msra.mxu0 %v51
  %121 = vmatpush.msra.mxu0 %v50
  %122 = vmatpush.msra.mxu0 %v49
  %123 = vmatpush.msra.mxu0 %v48
  %124 = vmatpush.msra.mxu0 %v47
  %125 = vmatpush.msra.mxu0 %v46
  %126 = vmatpush.msra.mxu0 %v45
  %127 = vmatpush.msra.mxu0 %v44
  %128 = vmatpush.msra.mxu0 %v43
  %129 = vmatpush.msra.mxu0 %v42
  %130 = vmatpush.msra.mxu0 %v41
  %131 = vmatpush.msra.mxu0 %v40
  %132 = vmatpush.msra.mxu0 %v39
  %133 = vmatpush.msra.mxu0 %v38
  %134 = vmatmul.f32.gmra.mxu0 %v18
  %v135 = vpop.f32.mrf.mxu0
  %v136 = vadd.f32 %v116, %v135
  %137 = vdwg.mxu0
  %138 = vmatpush.msra.mxu0 %v69
  %139 = vmatpush.msra.mxu0 %v68
  %140 = vmatpush.msra.mxu0 %v67
  %141 = vmatpush.msra.mxu0 %v66
  %142 = vmatpush.msra.mxu0 %v65
  %143 = vmatpush.msra.mxu0 %v64
  %144 = vmatpush.msra.mxu0 %v63
  %145 = vmatpush.msra.mxu0 %v62
  %146 = vmatpush.msra.mxu0 %v61
  %147 = vmatpush.msra.mxu0 %v60
  %148 = vmatpush.msra.mxu0 %v59
  %149 = vmatpush.msra.mxu0 %v58
  %150 = vmatpush.msra.mxu0 %v57
  %151 = vmatpush.msra.mxu0 %v56
  %152 = vmatpush.msra.mxu0 %v55
  %153 = vmatpush.msra.mxu0 %v54
  %154 = vmatmul.f32.gmra.mxu0 %v19
  %v155 = vpop.f32.mrf.mxu0
  %v156 = vadd.f32 %v136, %v155
  %157 = vdwg.mxu0
  %158 = vmatpush.msra.mxu0 %v85
  %159 = vmatpush.msra.mxu0 %v84
  %160 = vmatpush.msra.mxu0 %v83
  %161 = vmatpush.msra.mxu0 %v82
  %162 = vmatpush.msra.mxu0 %v81
  %163 = vmatpush.msra.mxu0 %v80
  %164 = vmatpush.msra.mxu0 %v79
  %165 = vmatpush.msra.mxu0 %v78
  %166 = vmatpush.msra.mxu0 %v77
  %167 = vmatpush.msra.mxu0 %v76
  %168 = vmatpush.msra.mxu0 %v75
  %169 = vmatpush.msra.mxu0 %v74
  %170 = vmatpush.msra.mxu0 %v73
  %171 = vmatpush.msra.mxu0 %v72
  %172 = vmatpush.msra.mxu0 %v71
  %173 = vmatpush.msra.mxu0 %v70
  %174 = vmatmul.f32.gmra.mxu0 %v20
  %v175 = vpop.f32.mrf.mxu0
  %v176 = vadd.f32 %v156, %v175
  %177 = vdwg.mxu0
  %178 = vmatpush.msra.mxu0 0.0
  %179 = vmatpush.msra.mxu0 0.0
  %180 = vmatpush.msra.mxu0 0.0
  %181 = vmatpush.msra.mxu0 0.0
  %182 = vmatpush.msra.mxu0 0.0
  %183 = vmatpush.msra.mxu0 0.0
  %184 = vmatpush.msra.mxu0 0.0
  %185 = vmatpush.msra.mxu0 0.0
  %186 = vmatpush.msra.mxu0 %v93
  %187 = vmatpush.msra.mxu0 %v92
  %188 = vmatpush.msra.mxu0 %v91
  %189 = vmatpush.msra.mxu0 %v90
  %190 = vmatpush.msra.mxu0 %v89
  %191 = vmatpush.msra.mxu0 %v88
  %192 = vmatpush.msra.mxu0 %v87
  %193 = vmatpush.msra.mxu0 %v86
  %194 = vmatmul.f32.gmra.mxu0 %v96
  %v195 = vpop.f32.mrf.mxu0
  %v196 = vadd.f32 %v176, %v195
  %197 = vdwg.mxu0
  %v198 = vld [vmem:[%s2] sm:$0x1]
  %v200 = vperm.slane %v198, 0
  %v202 = vmul.f32 %v196, %v200
  %v203 = vld [vmem:[%s3] sm:$0x1]
  %v205 = vperm.slane %v203, 0
  %v207 = vadd.f32 %v202, %v205
  %v208 = vmax.f32 %v207, 0.0
  %vm209 = vcmask 261120
  %210 = vst.msk [vmem:[%s4] sm:$0xff] %vm209, %v208
  // Predicated region
  $region18: #{unet_forward.42} parent=0 // pred_check
    _
  $region19: #{unet_forward.42} parent=0 // pred_check_branch
    %212 = sbr.rel (0) target = $region21
  $region20: #{unet_forward.42} parent=0 // pred_region
    _
  $region21: #{unet_forward.42} parent=0 // pred_fallthru
    _
  // Predicated region
  $region22: #{unet_forward.42} parent=0 // pred_check
    _
  $region23: #{unet_forward.42} parent=0 // pred_check_branch
    %214 = sbr.rel (0) target = $region25
  $region24: #{unet_forward.42} parent=0 // pred_region
    _
  $region25: #{unet_forward.42} parent=0 // pred_fallthru
    _

// kernel: tile.33
$region0: #{tile.33}
  #allocation0 [shape = 's32[1]{0}', space=sflag, size = 0x4, scoped, tag = 'scoped memory for tile.33']
  %s0 = inlined_call_operand.vmem [shape: f32[8], index: 0, kind: input, shape index: {}]
  %s1 = inlined_call_operand.vmem [shape: f32[4,8], index: 1, kind: output, shape index: {}]
  // Predicated region
  $region2: #{tile.33} parent=0 // pred_check
    _
  $region3: #{tile.33} parent=0 // pred_check_branch
    %3 = sbr.rel (0) target = $region5
  $region4: #{tile.33} parent=0 // pred_region
    _
  $region5: #{tile.33} parent=0 // pred_fallthru
    _
  %v4 = vld [vmem:[%s0] ss:$0 sm:$0xff]
  %5 = vst [vmem:[%s1] sm:$0xf] %v4

// kernel: tile.34
$region0: #{tile.34}
  %s0 = inlined_call_operand.vmem [shape: f32[4,8], index: 0, kind: input, shape index: {}]
  %s1 = inlined_call_operand.vmem [shape: f32[1,32], index: 1, kind: output, shape index: {}]
  $region1: #{tile.34} parent=0
    #allocation0 [shape = 'u8[4096]{0}', space=vmem, size = 0x1000, scoped, tag = 'scoped mem for output reshape']
    #allocation1 [shape = 'u8[4096]{0}', space=vmem, size = 0x1000, scoped, tag = 'scoped mem for input reshape']
    %s3 = ssub.s32 16, 1
    %v4 = vld [vmem:[%s0] sm:%s3]
    %5 = vst [vmem:[#allocation1] sm:%s3] %v4
    %v6 = vld [vmem:[#allocation1] sm:$0x1]
    %vm7 = vcmask 64512
    %8 = vst.msk [vmem:[#allocation0] sm:$0x1] %vm7, %v6
    %s9 = scalar_lea.vmem [#allocation1], 3
    %v10 = vld [vmem:[%s9] sm:$0x1]
    %11 = vrot.lane.b32.xlu0 %v10, 24
    %v12 = vpop.permute.xlu0 %11
    %vm13 = vcmask 261312
    %14 = vst.msk [vmem:[#allocation0] sm:$0x1] %vm13, %v12
    %s15 = scalar_lea.vmem [#allocation1], 2
    %v16 = vld [vmem:[%s15] sm:$0x1]
    %17 = vrot.lane.b32.xlu0 %v16, 16
    %v18 = vpop.permute.xlu0 %17
    %vm19 = vcmask 195712
    %20 = vst.msk [vmem:[#allocation0] sm:$0x1] %vm19, %v18
    %s21 = scalar_lea.vmem [#allocation1], 1
    %v22 = vld [vmem:[%s21] sm:$0x1]
    %23 = vrot.lane.b32.xlu0 %v22, 8
    %v24 = vpop.permute.xlu0 %23
    %vm25 = vcmask 130112
    %26 = vst.msk [vmem:[#allocation0] sm:$0x1] %vm25, %v24
    %s28 = ssub.s32 2, 1
    %v29 = vld [vmem:[#allocation0] sm:%s28]
    %s31 = ssub.s32 2, 1
    %32 = vst [vmem:[%s1] sm:%s31] %v29

// kernel: unet_forward.44
$region0: #{unet_forward.44}
  #allocation0 [shape = 'u32[]', space=smem, size = 0x4, offset = 0x4, fixed_abs, tag = 'smem constant byte address 0x4 - core index']
  #allocation1 [shape = 'u32[72,128]{1,0:T(1,128)}', space=vmem, size = 0x9000, scoped, tag = 'internal scratch']
  %s0 = inlined_call_operand.vmem [shape: f32[8,32], index: 0, kind: input, shape index: {}]
  %s1 = inlined_call_operand.vmem [shape: f32[32,64], index: 1, kind: input, shape index: {}]
  %s2 = inlined_call_operand.vmem [shape: f32[1,64], index: 2, kind: input, shape index: {}]
  %s3 = inlined_call_operand.vmem [shape: f32[1,64], index: 3, kind: input, shape index: {}]
  %s4 = inlined_call_operand.vmem [shape: f32[8,64], index: 4, kind: output, shape index: {}]
  %s5 = sld [smem:[#allocation0]]
  $region26: #{unet_forward.44} parent=0
    _
  %s7 = ssub.s32 1, %s5
  %s8 = scalar_select 0, %s7, %s5
  // Predicated region
  $region2: #{unet_forward.44} parent=0 // pred_check
    _
  $region3: #{unet_forward.44} parent=0 // pred_check_branch
    %10 = sbr.rel (0) target = $region5
  $region4: #{unet_forward.44} parent=0 // pred_region
    _
  $region5: #{unet_forward.44} parent=0 // pred_fallthru
    _
  // Predicated region
  $region6: #{unet_forward.44} parent=0 // pred_check
    _
  $region7: #{unet_forward.44} parent=0 // pred_check_branch
    %12 = sbr.rel (0) target = $region9
  $region8: #{unet_forward.44} parent=0 // pred_region
    _
  $region9: #{unet_forward.44} parent=0 // pred_fallthru
    _
  // Predicated region
  $region10: #{unet_forward.44} parent=0 // pred_check
    _
  $region11: #{unet_forward.44} parent=0 // pred_check_branch
    %14 = sbr.rel (0) target = $region13
  $region12: #{unet_forward.44} parent=0 // pred_region
    _
  $region13: #{unet_forward.44} parent=0 // pred_fallthru
    _
  // Predicated region
  $region14: #{unet_forward.44} parent=0 // pred_check
    _
  $region15: #{unet_forward.44} parent=0 // pred_check_branch
    %16 = sbr.rel (0) target = $region17
  $region16: #{unet_forward.44} parent=0 // pred_region
    _
  $region17: #{unet_forward.44} parent=0 // pred_fallthru
    _
  %v17 = vld [vmem:[%s0] sm:$0xff]
  %v18 = vld [vmem:[%s1] sm:$0xff]
  %v19 = vld [vmem:[%s1 + $0x8] sm:$0xff]
  %v20 = vld [vmem:[%s1 + $0x10] sm:$0xff]
  %v21 = vld [vmem:[%s1 + $0x18] sm:$0xff]
  %vm22 = vcmask 261120
  %v24 = vsel %vm22, %v17, 0
  %26 = vmatpush.msra.mxu0 0.0
  %27 = vmatpush.msra.mxu0 0.0
  %28 = vmatpush.msra.mxu0 0.0
  %29 = vmatpush.msra.mxu0 0.0
  %30 = vmatpush.msra.mxu0 0.0
  %31 = vmatpush.msra.mxu0 0.0
  %32 = vmatpush.msra.mxu0 0.0
  %33 = vmatpush.msra.mxu0 0.0
  %34 = vmatpush.msra.mxu0 0.0
  %35 = vmatpush.msra.mxu0 0.0
  %36 = vmatpush.msra.mxu0 0.0
  %37 = vmatpush.msra.mxu0 0.0
  %38 = vmatpush.msra.mxu0 %v21
  %39 = vmatpush.msra.mxu0 %v20
  %40 = vmatpush.msra.mxu0 %v19
  %41 = vmatpush.msra.mxu0 %v18
  %42 = vmatmul.f32.gmra.mxu0 %v24
  %v43 = vpop.f32.mrf.mxu0
  %v44 = vadd.f32 0.0, %v43
  %45 = vdwg.mxu0
  %v46 = vld [vmem:[%s2] sm:$0x1]
  %v48 = vperm.slane %v46, 0
  %v50 = vmul.f32 %v44, %v48
  %v51 = vld [vmem:[%s3] sm:$0x1]
  %v53 = vperm.slane %v51, 0
  %v55 = vadd.f32 %v50, %v53
  %vm56 = vcmask 523264
  %57 = vst.msk [vmem:[%s4] sm:$0xff] %vm56, %v55
  // Predicated region
  $region18: #{unet_forward.44} parent=0 // pred_check
    _
  $region19: #{unet_forward.44} parent=0 // pred_check_branch
    %59 = sbr.rel (0) target = $region21
  $region20: #{unet_forward.44} parent=0 // pred_region
    _
  $region21: #{unet_forward.44} parent=0 // pred_fallthru
    _
  // Predicated region
  $region22: #{unet_forward.44} parent=0 // pred_check
    _
  $region23: #{unet_forward.44} parent=0 // pred_check_branch
    %61 = sbr.rel (0) target = $region25
  $region24: #{unet_forward.44} parent=0 // pred_region
    _
  $region25: #{unet_forward.44} parent=0 // pred_fallthru
    _

// kernel: unet_forward.45
$region0: #{unet_forward.45}
  #allocation0 [shape = 'u32[]', space=smem, size = 0x4, offset = 0x4, fixed_abs, tag = 'smem constant byte address 0x4 - core index']
  #allocation1 [shape = 'u32[72,128]{1,0:T(1,128)}', space=vmem, size = 0x9000, scoped, tag = 'internal scratch']
  %s0 = inlined_call_operand.vmem [shape: f32[32,288], index: 0, kind: input, shape index: {}]
  %s1 = inlined_call_operand.vmem [shape: f32[288,16], index: 1, kind: input, shape index: {}]
  %s2 = inlined_call_operand.vmem [shape: f32[1,16], index: 2, kind: input, shape index: {}]
  %s3 = inlined_call_operand.vmem [shape: f32[1,16], index: 3, kind: input, shape index: {}]
  %s4 = inlined_call_operand.vmem [shape: f32[32,16], index: 4, kind: output, shape index: {}]
  %s5 = sld [smem:[#allocation0]]
  $region26: #{unet_forward.45} parent=0
    _
  %s7 = ssub.s32 1, %s5
  %s8 = scalar_select 0, %s7, %s5
  // Predicated region
  $region2: #{unet_forward.45} parent=0 // pred_check
    _
  $region3: #{unet_forward.45} parent=0 // pred_check_branch
    %10 = sbr.rel (0) target = $region5
  $region4: #{unet_forward.45} parent=0 // pred_region
    _
  $region5: #{unet_forward.45} parent=0 // pred_fallthru
    _
  // Predicated region
  $region6: #{unet_forward.45} parent=0 // pred_check
    _
  $region7: #{unet_forward.45} parent=0 // pred_check_branch
    %12 = sbr.rel (0) target = $region9
  $region8: #{unet_forward.45} parent=0 // pred_region
    _
  $region9: #{unet_forward.45} parent=0 // pred_fallthru
    _
  // Predicated region
  $region10: #{unet_forward.45} parent=0 // pred_check
    _
  $region11: #{unet_forward.45} parent=0 // pred_check_branch
    %14 = sbr.rel (0) target = $region13
  $region12: #{unet_forward.45} parent=0 // pred_region
    _
  $region13: #{unet_forward.45} parent=0 // pred_fallthru
    _
  // Predicated region
  $region14: #{unet_forward.45} parent=0 // pred_check
    _
  $region15: #{unet_forward.45} parent=0 // pred_check_branch
    %16 = sbr.rel (0) target = $region17
  $region16: #{unet_forward.45} parent=0 // pred_region
    _
  $region17: #{unet_forward.45} parent=0 // pred_fallthru
    _
  %v17 = vld [vmem:[%s0] sm:$0xff]
  %v18 = vld [vmem:[%s0 + $0x8] sm:$0xff]
  %v19 = vld [vmem:[%s0 + $0x10] sm:$0xff]
  %v20 = vld [vmem:[%s0 + $0x18] sm:$0xff]
  %v21 = vld [vmem:[%s0 + $0x20] sm:$0xff]
  %v22 = vld [vmem:[%s0 + $0x28] sm:$0xff]
  %v23 = vld [vmem:[%s0 + $0x30] sm:$0xff]
  %v24 = vld [vmem:[%s0 + $0x38] sm:$0xff]
  %v25 = vld [vmem:[%s0 + $0x40] sm:$0xff]
  %v26 = vld [vmem:[%s0 + $0x48] sm:$0xff]
  %v27 = vld [vmem:[%s0 + $0x50] sm:$0xff]
  %v28 = vld [vmem:[%s0 + $0x58] sm:$0xff]
  %v29 = vld [vmem:[%s1] sm:$0xff]
  %v30 = vld [vmem:[%s1 + $0x8] sm:$0xff]
  %v31 = vld [vmem:[%s1 + $0x10] sm:$0xff]
  %v32 = vld [vmem:[%s1 + $0x18] sm:$0xff]
  %v33 = vld [vmem:[%s1 + $0x20] sm:$0xff]
  %v34 = vld [vmem:[%s1 + $0x28] sm:$0xff]
  %v35 = vld [vmem:[%s1 + $0x30] sm:$0xff]
  %v36 = vld [vmem:[%s1 + $0x38] sm:$0xff]
  %v37 = vld [vmem:[%s1 + $0x40] sm:$0xff]
  %v38 = vld [vmem:[%s1 + $0x48] sm:$0xff]
  %v39 = vld [vmem:[%s1 + $0x50] sm:$0xff]
  %v40 = vld [vmem:[%s1 + $0x58] sm:$0xff]
  %v41 = vld [vmem:[%s1 + $0x60] sm:$0xff]
  %v42 = vld [vmem:[%s1 + $0x68] sm:$0xff]
  %v43 = vld [vmem:[%s1 + $0x70] sm:$0xff]
  %v44 = vld [vmem:[%s1 + $0x78] sm:$0xff]
  %v45 = vld [vmem:[%s1 + $0x80] sm:$0xff]
  %v46 = vld [vmem:[%s1 + $0x88] sm:$0xff]
  %v47 = vld [vmem:[%s1 + $0x90] sm:$0xff]
  %v48 = vld [vmem:[%s1 + $0x98] sm:$0xff]
  %v49 = vld [vmem:[%s1 + $0xa0] sm:$0xff]
  %v50 = vld [vmem:[%s1 + $0xa8] sm:$0xff]
  %v51 = vld [vmem:[%s1 + $0xb0] sm:$0xff]
  %v52 = vld [vmem:[%s1 + $0xb8] sm:$0xff]
  %v53 = vld [vmem:[%s1 + $0xc0] sm:$0xff]
  %v54 = vld [vmem:[%s1 + $0xc8] sm:$0xff]
  %v55 = vld [vmem:[%s1 + $0xd0] sm:$0xff]
  %v56 = vld [vmem:[%s1 + $0xd8] sm:$0xff]
  %v57 = vld [vmem:[%s1 + $0xe0] sm:$0xff]
  %v58 = vld [vmem:[%s1 + $0xe8] sm:$0xff]
  %v59 = vld [vmem:[%s1 + $0xf0] sm:$0xff]
  %v60 = vld [vmem:[%s1 + $0xf8] sm:$0xff]
  %v61 = vld [vmem:[%s1 + $0x100] sm:$0xff]
  %v62 = vld [vmem:[%s1 + $0x108] sm:$0xff]
  %v63 = vld [vmem:[%s1 + $0x110] sm:$0xff]
  %v64 = vld [vmem:[%s1 + $0x118] sm:$0xff]
  %vm65 = vcmask 261120
  %v67 = vsel %vm65, %v19, 0
  %v70 = vsel %vm65, %v22, 0
  %v73 = vsel %vm65, %v25, 0
  %v76 = vsel %vm65, %v28, 0
  %78 = vmatpush.msra.mxu0 %v44
  %79 = vmatpush.msra.mxu0 %v43
  %80 = vmatpush.msra.mxu0 %v42
  %81 = vmatpush.msra.mxu0 %v41
  %82 = vmatpush.msra.mxu0 %v40
  %83 = vmatpush.msra.mxu0 %v39
  %84 = vmatpush.msra.mxu0 %v38
  %85 = vmatpush.msra.mxu0 %v37
  %86 = vmatpush.msra.mxu0 %v36
  %87 = vmatpush.msra.mxu0 %v35
  %88 = vmatpush.msra.mxu0 %v34
  %89 = vmatpush.msra.mxu0 %v33
  %90 = vmatpush.msra.mxu0 %v32
  %91 = vmatpush.msra.mxu0 %v31
  %92 = vmatpush.msra.mxu0 %v30
  %93 = vmatpush.msra.mxu0 %v29
  %94 = vmatmul.f32.gmra.mxu0 %v17
  %v95 = vpop.f32.mrf.mxu0
  %v96 = vadd.f32 0.0, %v95
  %97 = vmatmul.f32.gmra.mxu0 %v20
  %v98 = vpop.f32.mrf.mxu0
  %v99 = vadd.f32 0.0, %v98
  %100 = vmatmul.f32.gmra.mxu0 %v23
  %v101 = vpop.f32.mrf.mxu0
  %v102 = vadd.f32 0.0, %v101
  %103 = vmatmul.f32.gmra.mxu0 %v26
  %v104 = vpop.f32.mrf.mxu0
  %v105 = vadd.f32 0.0, %v104
  %106 = vdwg.mxu0
  %107 = vmatpush.msra.mxu0 %v60
  %108 = vmatpush.msra.mxu0 %v59
  %109 = vmatpush.msra.mxu0 %v58
  %110 = vmatpush.msra.mxu0 %v57
  %111 = vmatpush.msra.mxu0 %v56
  %112 = vmatpush.msra.mxu0 %v55
  %113 = vmatpush.msra.mxu0 %v54
  %114 = vmatpush.msra.mxu0 %v53
  %115 = vmatpush.msra.mxu0 %v52
  %116 = vmatpush.msra.mxu0 %v51
  %117 = vmatpush.msra.mxu0 %v50
  %118 = vmatpush.msra.mxu0 %v49
  %119 = vmatpush.msra.mxu0 %v48
  %120 = vmatpush.msra.mxu0 %v47
  %121 = vmatpush.msra.mxu0 %v46
  %122 = vmatpush.msra.mxu0 %v45
  %123 = vmatmul.f32.gmra.mxu0 %v18
  %v124 = vpop.f32.mrf.mxu0
  %v125 = vadd.f32 %v96, %v124
  %126 = vmatmul.f32.gmra.mxu0 %v21
  %v127 = vpop.f32.mrf.mxu0
  %v128 = vadd.f32 %v99, %v127
  %129 = vmatmul.f32.gmra.mxu0 %v24
  %v130 = vpop.f32.mrf.mxu0
  %v131 = vadd.f32 %v102, %v130
  %132 = vmatmul.f32.gmra.mxu0 %v27
  %v133 = vpop.f32.mrf.mxu0
  %v134 = vadd.f32 %v105, %v133
  %135 = vdwg.mxu0
  %136 = vmatpush.msra.mxu0 0.0
  %137 = vmatpush.msra.mxu0 0.0
  %138 = vmatpush.msra.mxu0 0.0
  %139 = vmatpush.msra.mxu0 0.0
  %140 = vmatpush.msra.mxu0 0.0
  %141 = vmatpush.msra.mxu0 0.0
  %142 = vmatpush.msra.mxu0 0.0
  %143 = vmatpush.msra.mxu0 0.0
  %144 = vmatpush.msra.mxu0 0.0
  %145 = vmatpush.msra.mxu0 0.0
  %146 = vmatpush.msra.mxu0 0.0
  %147 = vmatpush.msra.mxu0 0.0
  %148 = vmatpush.msra.mxu0 %v64
  %149 = vmatpush.msra.mxu0 %v63
  %150 = vmatpush.msra.mxu0 %v62
  %151 = vmatpush.msra.mxu0 %v61
  %152 = vmatmul.f32.gmra.mxu0 %v67
  %v153 = vpop.f32.mrf.mxu0
  %v154 = vadd.f32 %v125, %v153
  %155 = vmatmul.f32.gmra.mxu0 %v70
  %v156 = vpop.f32.mrf.mxu0
  %v157 = vadd.f32 %v128, %v156
  %158 = vmatmul.f32.gmra.mxu0 %v73
  %v159 = vpop.f32.mrf.mxu0
  %v160 = vadd.f32 %v131, %v159
  %161 = vmatmul.f32.gmra.mxu0 %v76
  %v162 = vpop.f32.mrf.mxu0
  %v163 = vadd.f32 %v134, %v162
  %164 = vdwg.mxu0
  %v165 = vld [vmem:[%s2] sm:$0x1]
  %v167 = vperm.slane %v165, 0
  %v169 = vmul.f32 %v154, %v167
  %v170 = vmul.f32 %v157, %v167
  %v171 = vmul.f32 %v160, %v167
  %v172 = vmul.f32 %v163, %v167
  %v173 = vld [vmem:[%s3] sm:$0x1]
  %v175 = vperm.slane %v173, 0
  %v177 = vadd.f32 %v169, %v175
  %v178 = vadd.f32 %v170, %v175
  %v179 = vadd.f32 %v171, %v175
  %v180 = vadd.f32 %v172, %v175
  %v181 = vmax.f32 %v177, 0.0
  %v182 = vmax.f32 %v178, 0.0
  %v183 = vmax.f32 %v179, 0.0
  %v184 = vmax.f32 %v180, 0.0
  %vm185 = vcmask 130048
  %186 = vst.msk [vmem:[%s4] sm:$0xff] %vm185, %v181
  %187 = vst.msk [vmem:[%s4 + $0x8] sm:$0xff] %vm185, %v182
  %188 = vst.msk [vmem:[%s4 + $0x10] sm:$0xff] %vm185, %v183
  %189 = vst.msk [vmem:[%s4 + $0x18] sm:$0xff] %vm185, %v184
  // Predicated region
  $region18: #{unet_forward.45} parent=0 // pred_check
    _
  $region19: #{unet_forward.45} parent=0 // pred_check_branch
    %191 = sbr.rel (0) target = $region21
  $region20: #{unet_forward.45} parent=0 // pred_region
    _
  $region21: #{unet_forward.45} parent=0 // pred_fallthru
    _
  // Predicated region
  $region22: #{unet_forward.45} parent=0 // pred_check
    _
  $region23: #{unet_forward.45} parent=0 // pred_check_branch
    %193 = sbr.rel (0) target = $region25
  $region24: #{unet_forward.45} parent=0 // pred_region
    _
  $region25: #{unet_forward.45} parent=0 // pred_fallthru
    _

// kernel: unet_forward.47
$region0: #{unet_forward.47}
  #allocation0 [shape = 'u32[]', space=smem, size = 0x4, offset = 0x4, fixed_abs, tag = 'smem constant byte address 0x4 - core index']
  #allocation1 [shape = 'u32[72,128]{1,0:T(1,128)}', space=vmem, size = 0x9000, scoped, tag = 'internal scratch']
  %s0 = inlined_call_operand.vmem [shape: f32[32,16], index: 0, kind: input, shape index: {}]
  %s1 = inlined_call_operand.vmem [shape: f32[16,32], index: 1, kind: input, shape index: {}]
  %s2 = inlined_call_operand.vmem [shape: f32[1,32], index: 2, kind: input, shape index: {}]
  %s3 = inlined_call_operand.vmem [shape: f32[1,32], index: 3, kind: input, shape index: {}]
  %s4 = inlined_call_operand.vmem [shape: f32[32,32], index: 4, kind: output, shape index: {}]
  %s5 = sld [smem:[#allocation0]]
  $region26: #{unet_forward.47} parent=0
    _
  %s7 = ssub.s32 1, %s5
  %s8 = scalar_select 0, %s7, %s5
  // Predicated region
  $region2: #{unet_forward.47} parent=0 // pred_check
    _
  $region3: #{unet_forward.47} parent=0 // pred_check_branch
    %10 = sbr.rel (0) target = $region5
  $region4: #{unet_forward.47} parent=0 // pred_region
    _
  $region5: #{unet_forward.47} parent=0 // pred_fallthru
    _
  // Predicated region
  $region6: #{unet_forward.47} parent=0 // pred_check
    _
  $region7: #{unet_forward.47} parent=0 // pred_check_branch
    %12 = sbr.rel (0) target = $region9
  $region8: #{unet_forward.47} parent=0 // pred_region
    _
  $region9: #{unet_forward.47} parent=0 // pred_fallthru
    _
  // Predicated region
  $region10: #{unet_forward.47} parent=0 // pred_check
    _
  $region11: #{unet_forward.47} parent=0 // pred_check_branch
    %14 = sbr.rel (0) target = $region13
  $region12: #{unet_forward.47} parent=0 // pred_region
    _
  $region13: #{unet_forward.47} parent=0 // pred_fallthru
    _
  // Predicated region
  $region14: #{unet_forward.47} parent=0 // pred_check
    _
  $region15: #{unet_forward.47} parent=0 // pred_check_branch
    %16 = sbr.rel (0) target = $region17
  $region16: #{unet_forward.47} parent=0 // pred_region
    _
  $region17: #{unet_forward.47} parent=0 // pred_fallthru
    _
  %v17 = vld [vmem:[%s0] sm:$0xff]
  %v18 = vld [vmem:[%s0 + $0x8] sm:$0xff]
  %v19 = vld [vmem:[%s0 + $0x10] sm:$0xff]
  %v20 = vld [vmem:[%s0 + $0x18] sm:$0xff]
  %v21 = vld [vmem:[%s1] sm:$0xff]
  %v22 = vld [vmem:[%s1 + $0x8] sm:$0xff]
  %vm23 = vcmask 130048
  %v25 = vsel %vm23, %v17, 0
  %v28 = vsel %vm23, %v18, 0
  %v31 = vsel %vm23, %v19, 0
  %v34 = vsel %vm23, %v20, 0
  %36 = vmatpush.msra.mxu0 0.0
  %37 = vmatpush.msra.mxu0 0.0
  %38 = vmatpush.msra.mxu0 0.0
  %39 = vmatpush.msra.mxu0 0.0
  %40 = vmatpush.msra.mxu0 0.0
  %41 = vmatpush.msra.mxu0 0.0
  %42 = vmatpush.msra.mxu0 0.0
  %43 = vmatpush.msra.mxu0 0.0
  %44 = vmatpush.msra.mxu0 0.0
  %45 = vmatpush.msra.mxu0 0.0
  %46 = vmatpush.msra.mxu0 0.0
  %47 = vmatpush.msra.mxu0 0.0
  %48 = vmatpush.msra.mxu0 0.0
  %49 = vmatpush.msra.mxu0 0.0
  %50 = vmatpush.msra.mxu0 %v22
  %51 = vmatpush.msra.mxu0 %v21
  %52 = vmatmul.f32.gmra.mxu0 %v25
  %v53 = vpop.f32.mrf.mxu0
  %v54 = vadd.f32 0.0, %v53
  %55 = vmatmul.f32.gmra.mxu0 %v28
  %v56 = vpop.f32.mrf.mxu0
  %v57 = vadd.f32 0.0, %v56
  %58 = vmatmul.f32.gmra.mxu0 %v31
  %v59 = vpop.f32.mrf.mxu0
  %v60 = vadd.f32 0.0, %v59
  %61 = vmatmul.f32.gmra.mxu0 %v34
  %v62 = vpop.f32.mrf.mxu0
  %v63 = vadd.f32 0.0, %v62
  %64 = vdwg.mxu0
  %v65 = vld [vmem:[%s2] sm:$0x1]
  %v67 = vperm.slane %v65, 0
  %v69 = vmul.f32 %v54, %v67
  %v70 = vmul.f32 %v57, %v67
  %v71 = vmul.f32 %v60, %v67
  %v72 = vmul.f32 %v63, %v67
  %v73 = vld [vmem:[%s3] sm:$0x1]
  %v75 = vperm.slane %v73, 0
  %v77 = vadd.f32 %v69, %v75
  %v78 = vadd.f32 %v70, %v75
  %v79 = vadd.f32 %v71, %v75
  %v80 = vadd.f32 %v72, %v75
  %vm81 = vcmask 261120
  %82 = vst.msk [vmem:[%s4] sm:$0xff] %vm81, %v77
  %83 = vst.msk [vmem:[%s4 + $0x8] sm:$0xff] %vm81, %v78
  %84 = vst.msk [vmem:[%s4 + $0x10] sm:$0xff] %vm81, %v79
  %85 = vst.msk [vmem:[%s4 + $0x18] sm:$0xff] %vm81, %v80
  // Predicated region
  $region18: #{unet_forward.47} parent=0 // pred_check
    _
  $region19: #{unet_forward.47} parent=0 // pred_check_branch
    %87 = sbr.rel (0) target = $region21
  $region20: #{unet_forward.47} parent=0 // pred_region
    _
  $region21: #{unet_forward.47} parent=0 // pred_fallthru
    _
  // Predicated region
  $region22: #{unet_forward.47} parent=0 // pred_check
    _
  $region23: #{unet_forward.47} parent=0 // pred_check_branch
    %89 = sbr.rel (0) target = $region25
  $region24: #{unet_forward.47} parent=0 // pred_region
    _
  $region25: #{unet_forward.47} parent=0 // pred_fallthru
    _

// kernel: tile.38
$region0: #{tile.38}
  #allocation0 [shape = 's32[1]{0}', space=sflag, size = 0x4, scoped, tag = 'scoped memory for tile.38']
  %s0 = inlined_call_operand.vmem [shape: f32[4], index: 0, kind: input, shape index: {}]
  %s1 = inlined_call_operand.vmem [shape: f32[4,4], index: 1, kind: output, shape index: {}]
  // Predicated region
  $region2: #{tile.38} parent=0 // pred_check
    _
  $region3: #{tile.38} parent=0 // pred_check_branch
    %3 = sbr.rel (0) target = $region5
  $region4: #{tile.38} parent=0 // pred_region
    _
  $region5: #{tile.38} parent=0 // pred_fallthru
    _
  %v4 = vld [vmem:[%s0] ss:$0 sm:$0xff]
  %5 = vst [vmem:[%s1] sm:$0xf] %v4

// kernel: tile.39
$region0: #{tile.39}
  %s0 = inlined_call_operand.vmem [shape: f32[4,4], index: 0, kind: input, shape index: {}]
  %s1 = inlined_call_operand.vmem [shape: f32[1,16], index: 1, kind: output, shape index: {}]
  $region1: #{tile.39} parent=0
    #allocation0 [shape = 'u8[4096]{0}', space=vmem, size = 0x1000, scoped, tag = 'scoped mem for output reshape']
    #allocation1 [shape = 'u8[4096]{0}', space=vmem, size = 0x1000, scoped, tag = 'scoped mem for input reshape']
    %s3 = ssub.s32 16, 1
    %v4 = vld [vmem:[%s0] sm:%s3]
    %5 = vst [vmem:[#allocation1] sm:%s3] %v4
    %v6 = vld [vmem:[#allocation1] sm:$0x1]
    %vm7 = vcmask 31744
    %8 = vst.msk [vmem:[#allocation0] sm:$0x1] %vm7, %v6
    %s9 = scalar_lea.vmem [#allocation1], 3
    %v10 = vld [vmem:[%s9] sm:$0x1]
    %11 = vrot.lane.b32.xlu0 %v10, 12
    %v12 = vpop.permute.xlu0 %11
    %vm13 = vcmask 130144
    %14 = vst.msk [vmem:[#allocation0] sm:$0x1] %vm13, %v12
    %s15 = scalar_lea.vmem [#allocation1], 2
    %v16 = vld [vmem:[%s15] sm:$0x1]
    %17 = vrot.lane.b32.xlu0 %v16, 8
    %v18 = vpop.permute.xlu0 %17
    %vm19 = vcmask 97344
    %20 = vst.msk [vmem:[#allocation0] sm:$0x1] %vm19, %v18
    %s21 = scalar_lea.vmem [#allocation1], 1
    %v22 = vld [vmem:[%s21] sm:$0x1]
    %23 = vrot.lane.b32.xlu0 %v22, 4
    %v24 = vpop.permute.xlu0 %23
    %vm25 = vcmask 64544
    %26 = vst.msk [vmem:[#allocation0] sm:$0x1] %vm25, %v24
    %s28 = ssub.s32 2, 1
    %v29 = vld [vmem:[#allocation0] sm:%s28]
    %s31 = ssub.s32 2, 1
    %32 = vst [vmem:[%s1] sm:%s31] %v29

// kernel: unet_forward.48
$region0: #{unet_forward.48}
  #allocation0 [shape = 'u32[]', space=smem, size = 0x4, offset = 0x4, fixed_abs, tag = 'smem constant byte address 0x4 - core index']
  #allocation1 [shape = 'u32[72,128]{1,0:T(1,128)}', space=vmem, size = 0x9000, scoped, tag = 'internal scratch']
  %s0 = inlined_call_operand.vmem [shape: f32[128,144], index: 0, kind: input, shape index: {}]
  %s1 = inlined_call_operand.vmem [shape: f32[144,8], index: 1, kind: input, shape index: {}]
  %s2 = inlined_call_operand.vmem [shape: f32[1,8], index: 2, kind: input, shape index: {}]
  %s3 = inlined_call_operand.vmem [shape: f32[1,8], index: 3, kind: input, shape index: {}]
  %s4 = inlined_call_operand.vmem [shape: f32[128,8], index: 4, kind: output, shape index: {}]
  %s5 = sld [smem:[#allocation0]]
  $region26: #{unet_forward.48} parent=0
    _
  %s7 = ssub.s32 1, %s5
  %s8 = scalar_select 0, %s7, %s5
  // Predicated region
  $region2: #{unet_forward.48} parent=0 // pred_check
    _
  $region3: #{unet_forward.48} parent=0 // pred_check_branch
    %10 = sbr.rel (0) target = $region5
  $region4: #{unet_forward.48} parent=0 // pred_region
    _
  $region5: #{unet_forward.48} parent=0 // pred_fallthru
    _
  // Predicated region
  $region6: #{unet_forward.48} parent=0 // pred_check
    _
  $region7: #{unet_forward.48} parent=0 // pred_check_branch
    %12 = sbr.rel (0) target = $region9
  $region8: #{unet_forward.48} parent=0 // pred_region
    _
  $region9: #{unet_forward.48} parent=0 // pred_fallthru
    _
  // Predicated region
  $region10: #{unet_forward.48} parent=0 // pred_check
    _
  $region11: #{unet_forward.48} parent=0 // pred_check_branch
    %14 = sbr.rel (0) target = $region13
  $region12: #{unet_forward.48} parent=0 // pred_region
    _
  $region13: #{unet_forward.48} parent=0 // pred_fallthru
    _
  // Predicated region
  $region14: #{unet_forward.48} parent=0 // pred_check
    _
  $region15: #{unet_forward.48} parent=0 // pred_check_branch
    %16 = sbr.rel (0) target = $region17
  $region16: #{unet_forward.48} parent=0 // pred_region
    _
  $region17: #{unet_forward.48} parent=0 // pred_fallthru
    _
  %v17 = vld [vmem:[%s0] sm:$0xff]
  %v18 = vld [vmem:[%s0 + $0x8] sm:$0xff]
  %v19 = vld [vmem:[%s0 + $0x10] sm:$0xff]
  %v20 = vld [vmem:[%s0 + $0x18] sm:$0xff]
  %v21 = vld [vmem:[%s0 + $0x20] sm:$0xff]
  %v22 = vld [vmem:[%s0 + $0x28] sm:$0xff]
  %v23 = vld [vmem:[%s0 + $0x30] sm:$0xff]
  %v24 = vld [vmem:[%s0 + $0x38] sm:$0xff]
  %v25 = vld [vmem:[%s0 + $0x40] sm:$0xff]
  %v26 = vld [vmem:[%s0 + $0x48] sm:$0xff]
  %v27 = vld [vmem:[%s0 + $0x50] sm:$0xff]
  %v28 = vld [vmem:[%s0 + $0x58] sm:$0xff]
  %v29 = vld [vmem:[%s0 + $0x60] sm:$0xff]
  %v30 = vld [vmem:[%s0 + $0x68] sm:$0xff]
  %v31 = vld [vmem:[%s0 + $0x70] sm:$0xff]
  %v32 = vld [vmem:[%s0 + $0x78] sm:$0xff]
  %v33 = vld [vmem:[%s0 + $0x80] sm:$0xff]
  %v34 = vld [vmem:[%s0 + $0x88] sm:$0xff]
  %v35 = vld [vmem:[%s0 + $0x90] sm:$0xff]
  %v36 = vld [vmem:[%s0 + $0x98] sm:$0xff]
  %v37 = vld [vmem:[%s0 + $0xa0] sm:$0xff]
  %v38 = vld [vmem:[%s0 + $0xa8] sm:$0xff]
  %v39 = vld [vmem:[%s0 + $0xb0] sm:$0xff]
  %v40 = vld [vmem:[%s0 + $0xb8] sm:$0xff]
  %v41 = vld [vmem:[%s0 + $0xc0] sm:$0xff]
  %v42 = vld [vmem:[%s0 + $0xc8] sm:$0xff]
  %v43 = vld [vmem:[%s0 + $0xd0] sm:$0xff]
  %v44 = vld [vmem:[%s0 + $0xd8] sm:$0xff]
  %v45 = vld [vmem:[%s0 + $0xe0] sm:$0xff]
  %v46 = vld [vmem:[%s0 + $0xe8] sm:$0xff]
  %v47 = vld [vmem:[%s0 + $0xf0] sm:$0xff]
  %v48 = vld [vmem:[%s0 + $0xf8] sm:$0xff]
  %v49 = vld [vmem:[%s1] sm:$0xff]
  %v50 = vld [vmem:[%s1 + $0x8] sm:$0xff]
  %v51 = vld [vmem:[%s1 + $0x10] sm:$0xff]
  %v52 = vld [vmem:[%s1 + $0x18] sm:$0xff]
  %v53 = vld [vmem:[%s1 + $0x20] sm:$0xff]
  %v54 = vld [vmem:[%s1 + $0x28] sm:$0xff]
  %v55 = vld [vmem:[%s1 + $0x30] sm:$0xff]
  %v56 = vld [vmem:[%s1 + $0x38] sm:$0xff]
  %v57 = vld [vmem:[%s1 + $0x40] sm:$0xff]
  %v58 = vld [vmem:[%s1 + $0x48] sm:$0xff]
  %v59 = vld [vmem:[%s1 + $0x50] sm:$0xff]
  %v60 = vld [vmem:[%s1 + $0x58] sm:$0xff]
  %v61 = vld [vmem:[%s1 + $0x60] sm:$0xff]
  %v62 = vld [vmem:[%s1 + $0x68] sm:$0xff]
  %v63 = vld [vmem:[%s1 + $0x70] sm:$0xff]
  %v64 = vld [vmem:[%s1 + $0x78] sm:$0xff]
  %v65 = vld [vmem:[%s1 + $0x80] sm:$0xff]
  %v66 = vld [vmem:[%s1 + $0x88] sm:$0xff]
  %vm67 = vcmask 130048
  %v69 = vsel %vm67, %v18, 0
  %v72 = vsel %vm67, %v20, 0
  %v75 = vsel %vm67, %v22, 0
  %v78 = vsel %vm67, %v24, 0
  %v81 = vsel %vm67, %v26, 0
  %v84 = vsel %vm67, %v28, 0
  %v87 = vsel %vm67, %v30, 0
  %v90 = vsel %vm67, %v32, 0
  %v93 = vsel %vm67, %v34, 0
  %v96 = vsel %vm67, %v36, 0
  %v99 = vsel %vm67, %v38, 0
  %v102 = vsel %vm67, %v40, 0
  %v105 = vsel %vm67, %v42, 0
  %v108 = vsel %vm67, %v44, 0
  %v111 = vsel %vm67, %v46, 0
  %v114 = vsel %vm67, %v48, 0
  %116 = vmatpush.msra.mxu0 %v64
  %117 = vmatpush.msra.mxu0 %v63
  %118 = vmatpush.msra.mxu0 %v62
  %119 = vmatpush.msra.mxu0 %v61
  %120 = vmatpush.msra.mxu0 %v60
  %121 = vmatpush.msra.mxu0 %v59
  %122 = vmatpush.msra.mxu0 %v58
  %123 = vmatpush.msra.mxu0 %v57
  %124 = vmatpush.msra.mxu0 %v56
  %125 = vmatpush.msra.mxu0 %v55
  %126 = vmatpush.msra.mxu0 %v54
  %127 = vmatpush.msra.mxu0 %v53
  %128 = vmatpush.msra.mxu0 %v52
  %129 = vmatpush.msra.mxu0 %v51
  %130 = vmatpush.msra.mxu0 %v50
  %131 = vmatpush.msra.mxu0 %v49
  %132 = vmatmul.f32.gmra.mxu0 %v17
  %v133 = vpop.f32.mrf.mxu0
  %v134 = vadd.f32 0.0, %v133
  %135 = vmatmul.f32.gmra.mxu0 %v19
  %v136 = vpop.f32.mrf.mxu0
  %v137 = vadd.f32 0.0, %v136
  %138 = vmatmul.f32.gmra.mxu0 %v21
  %v139 = vpop.f32.mrf.mxu0
  %v140 = vadd.f32 0.0, %v139
  %141 = vmatmul.f32.gmra.mxu0 %v23
  %v142 = vpop.f32.mrf.mxu0
  %v143 = vadd.f32 0.0, %v142
  %144 = vmatmul.f32.gmra.mxu0 %v25
  %v145 = vpop.f32.mrf.mxu0
  %v146 = vadd.f32 0.0, %v145
  %147 = vmatmul.f32.gmra.mxu0 %v27
  %v148 = vpop.f32.mrf.mxu0
  %v149 = vadd.f32 0.0, %v148
  %150 = vmatmul.f32.gmra.mxu0 %v29
  %v151 = vpop.f32.mrf.mxu0
  %v152 = vadd.f32 0.0, %v151
  %153 = vmatmul.f32.gmra.mxu0 %v31
  %v154 = vpop.f32.mrf.mxu0
  %v155 = vadd.f32 0.0, %v154
  %156 = vmatmul.f32.gmra.mxu0 %v33
  %v157 = vpop.f32.mrf.mxu0
  %v158 = vadd.f32 0.0, %v157
  %159 = vmatmul.f32.gmra.mxu0 %v35
  %v160 = vpop.f32.mrf.mxu0
  %v161 = vadd.f32 0.0, %v160
  %162 = vmatmul.f32.gmra.mxu0 %v37
  %v163 = vpop.f32.mrf.mxu0
  %v164 = vadd.f32 0.0, %v163
  %165 = vmatmul.f32.gmra.mxu0 %v39
  %v166 = vpop.f32.mrf.mxu0
  %v167 = vadd.f32 0.0, %v166
  %168 = vmatmul.f32.gmra.mxu0 %v41
  %v169 = vpop.f32.mrf.mxu0
  %v170 = vadd.f32 0.0, %v169
  %171 = vmatmul.f32.gmra.mxu0 %v43
  %v172 = vpop.f32.mrf.mxu0
  %v173 = vadd.f32 0.0, %v172
  %174 = vmatmul.f32.gmra.mxu0 %v45
  %v175 = vpop.f32.mrf.mxu0
  %v176 = vadd.f32 0.0, %v175
  %177 = vmatmul.f32.gmra.mxu0 %v47
  %v178 = vpop.f32.mrf.mxu0
  %v179 = vadd.f32 0.0, %v178
  %180 = vdwg.mxu0
  %181 = vmatpush.msra.mxu0 0.0
  %182 = vmatpush.msra.mxu0 0.0
  %183 = vmatpush.msra.mxu0 0.0
  %184 = vmatpush.msra.mxu0 0.0
  %185 = vmatpush.msra.mxu0 0.0
  %186 = vmatpush.msra.mxu0 0.0
  %187 = vmatpush.msra.mxu0 0.0
  %188 = vmatpush.msra.mxu0 0.0
  %189 = vmatpush.msra.mxu0 0.0
  %190 = vmatpush.msra.mxu0 0.0
  %191 = vmatpush.msra.mxu0 0.0
  %192 = vmatpush.msra.mxu0 0.0
  %193 = vmatpush.msra.mxu0 0.0
  %194 = vmatpush.msra.mxu0 0.0
  %195 = vmatpush.msra.mxu0 %v66
  %196 = vmatpush.msra.mxu0 %v65
  %197 = vmatmul.f32.gmra.mxu0 %v69
  %v198 = vpop.f32.mrf.mxu0
  %v199 = vadd.f32 %v134, %v198
  %200 = vmatmul.f32.gmra.mxu0 %v72
  %v201 = vpop.f32.mrf.mxu0
  %v202 = vadd.f32 %v137, %v201
  %203 = vmatmul.f32.gmra.mxu0 %v75
  %v204 = vpop.f32.mrf.mxu0
  %v205 = vadd.f32 %v140, %v204
  %206 = vmatmul.f32.gmra.mxu0 %v78
  %v207 = vpop.f32.mrf.mxu0
  %v208 = vadd.f32 %v143, %v207
  %209 = vmatmul.f32.gmra.mxu0 %v81
  %v210 = vpop.f32.mrf.mxu0
  %v211 = vadd.f32 %v146, %v210
  %212 = vmatmul.f32.gmra.mxu0 %v84
  %v213 = vpop.f32.mrf.mxu0
  %v214 = vadd.f32 %v149, %v213
  %215 = vmatmul.f32.gmra.mxu0 %v87
  %v216 = vpop.f32.mrf.mxu0
  %v217 = vadd.f32 %v152, %v216
  %218 = vmatmul.f32.gmra.mxu0 %v90
  %v219 = vpop.f32.mrf.mxu0
  %v220 = vadd.f32 %v155, %v219
  %221 = vmatmul.f32.gmra.mxu0 %v93
  %v222 = vpop.f32.mrf.mxu0
  %v223 = vadd.f32 %v158, %v222
  %224 = vmatmul.f32.gmra.mxu0 %v96
  %v225 = vpop.f32.mrf.mxu0
  %v226 = vadd.f32 %v161, %v225
  %227 = vmatmul.f32.gmra.mxu0 %v99
  %v228 = vpop.f32.mrf.mxu0
  %v229 = vadd.f32 %v164, %v228
  %230 = vmatmul.f32.gmra.mxu0 %v102
  %v231 = vpop.f32.mrf.mxu0
  %v232 = vadd.f32 %v167, %v231
  %233 = vmatmul.f32.gmra.mxu0 %v105
  %v234 = vpop.f32.mrf.mxu0
  %v235 = vadd.f32 %v170, %v234
  %236 = vmatmul.f32.gmra.mxu0 %v108
  %v237 = vpop.f32.mrf.mxu0
  %v238 = vadd.f32 %v173, %v237
  %239 = vmatmul.f32.gmra.mxu0 %v111
  %v240 = vpop.f32.mrf.mxu0
  %v241 = vadd.f32 %v176, %v240
  %242 = vmatmul.f32.gmra.mxu0 %v114
  %v243 = vpop.f32.mrf.mxu0
  %v244 = vadd.f32 %v179, %v243
  %245 = vdwg.mxu0
  %v246 = vld [vmem:[%s2] sm:$0x1]
  %v248 = vperm.slane %v246, 0
  %v250 = vmul.f32 %v199, %v248
  %v251 = vmul.f32 %v202, %v248
  %v252 = vmul.f32 %v205, %v248
  %v253 = vmul.f32 %v208, %v248
  %v254 = vmul.f32 %v211, %v248
  %v255 = vmul.f32 %v214, %v248
  %v256 = vmul.f32 %v217, %v248
  %v257 = vmul.f32 %v220, %v248
  %v258 = vmul.f32 %v223, %v248
  %v259 = vmul.f32 %v226, %v248
  %v260 = vmul.f32 %v229, %v248
  %v261 = vmul.f32 %v232, %v248
  %v262 = vmul.f32 %v235, %v248
  %v263 = vmul.f32 %v238, %v248
  %v264 = vmul.f32 %v241, %v248
  %v265 = vmul.f32 %v244, %v248
  %v266 = vld [vmem:[%s3] sm:$0x1]
  %v268 = vperm.slane %v266, 0
  %v270 = vadd.f32 %v250, %v268
  %v271 = vadd.f32 %v251, %v268
  %v272 = vadd.f32 %v252, %v268
  %v273 = vadd.f32 %v253, %v268
  %v274 = vadd.f32 %v254, %v268
  %v275 = vadd.f32 %v255, %v268
  %v276 = vadd.f32 %v256, %v268
  %v277 = vadd.f32 %v257, %v268
  %v278 = vadd.f32 %v258, %v268
  %v279 = vadd.f32 %v259, %v268
  %v280 = vadd.f32 %v260, %v268
  %v281 = vadd.f32 %v261, %v268
  %v282 = vadd.f32 %v262, %v268
  %v283 = vadd.f32 %v263, %v268
  %v284 = vadd.f32 %v264, %v268
  %v285 = vadd.f32 %v265, %v268
  %v286 = vmax.f32 %v270, 0.0
  %v287 = vmax.f32 %v271, 0.0
  %v288 = vmax.f32 %v272, 0.0
  %v289 = vmax.f32 %v273, 0.0
  %v290 = vmax.f32 %v274, 0.0
  %v291 = vmax.f32 %v275, 0.0
  %v292 = vmax.f32 %v276, 0.0
  %v293 = vmax.f32 %v277, 0.0
  %v294 = vmax.f32 %v278, 0.0
  %v295 = vmax.f32 %v279, 0.0
  %v296 = vmax.f32 %v280, 0.0
  %v297 = vmax.f32 %v281, 0.0
  %v298 = vmax.f32 %v282, 0.0
  %v299 = vmax.f32 %v283, 0.0
  %v300 = vmax.f32 %v284, 0.0
  %v301 = vmax.f32 %v285, 0.0
  %vm302 = vcmask 64512
  %303 = vst.msk [vmem:[%s4] sm:$0xff] %vm302, %v286
  %304 = vst.msk [vmem:[%s4 + $0x8] sm:$0xff] %vm302, %v287
  %305 = vst.msk [vmem:[%s4 + $0x10] sm:$0xff] %vm302, %v288
  %306 = vst.msk [vmem:[%s4 + $0x18] sm:$0xff] %vm302, %v289
  %307 = vst.msk [vmem:[%s4 + $0x20] sm:$0xff] %vm302, %v290
  %308 = vst.msk [vmem:[%s4 + $0x28] sm:$0xff] %vm302, %v291
  %309 = vst.msk [vmem:[%s4 + $0x30] sm:$0xff] %vm302, %v292
  %310 = vst.msk [vmem:[%s4 + $0x38] sm:$0xff] %vm302, %v293
  %311 = vst.msk [vmem:[%s4 + $0x40] sm:$0xff] %vm302, %v294
  %312 = vst.msk [vmem:[%s4 + $0x48] sm:$0xff] %vm302, %v295
  %313 = vst.msk [vmem:[%s4 + $0x50] sm:$0xff] %vm302, %v296
  %314 = vst.msk [vmem:[%s4 + $0x58] sm:$0xff] %vm302, %v297
  %315 = vst.msk [vmem:[%s4 + $0x60] sm:$0xff] %vm302, %v298
  %316 = vst.msk [vmem:[%s4 + $0x68] sm:$0xff] %vm302, %v299
  %317 = vst.msk [vmem:[%s4 + $0x70] sm:$0xff] %vm302, %v300
  %318 = vst.msk [vmem:[%s4 + $0x78] sm:$0xff] %vm302, %v301
  // Predicated region
  $region18: #{unet_forward.48} parent=0 // pred_check
    _
  $region19: #{unet_forward.48} parent=0 // pred_check_branch
    %320 = sbr.rel (0) target = $region21
  $region20: #{unet_forward.48} parent=0 // pred_region
    _
  $region21: #{unet_forward.48} parent=0 // pred_fallthru
    _
  // Predicated region
  $region22: #{unet_forward.48} parent=0 // pred_check
    _
  $region23: #{unet_forward.48} parent=0 // pred_check_branch
    %322 = sbr.rel (0) target = $region25
  $region24: #{unet_forward.48} parent=0 // pred_region
    _
  $region25: #{unet_forward.48} parent=0 // pred_fallthru
    _

// kernel: unet_forward.50
$region0: #{unet_forward.50}
  #allocation0 [shape = 'u32[]', space=smem, size = 0x4, offset = 0x4, fixed_abs, tag = 'smem constant byte address 0x4 - core index']
  #allocation1 [shape = 'u32[72,128]{1,0:T(1,128)}', space=vmem, size = 0x9000, scoped, tag = 'internal scratch']
  %s0 = inlined_call_operand.vmem [shape: f32[128,8], index: 0, kind: input, shape index: {}]
  %s1 = inlined_call_operand.vmem [shape: f32[8,16], index: 1, kind: input, shape index: {}]
  %s2 = inlined_call_operand.vmem [shape: f32[1,16], index: 2, kind: input, shape index: {}]
  %s3 = inlined_call_operand.vmem [shape: f32[1,16], index: 3, kind: input, shape index: {}]
  %s4 = inlined_call_operand.vmem [shape: f32[128,16], index: 4, kind: output, shape index: {}]
  %s5 = sld [smem:[#allocation0]]
  $region26: #{unet_forward.50} parent=0
    _
  %s7 = ssub.s32 1, %s5
  %s8 = scalar_select 0, %s7, %s5
  // Predicated region
  $region2: #{unet_forward.50} parent=0 // pred_check
    _
  $region3: #{unet_forward.50} parent=0 // pred_check_branch
    %10 = sbr.rel (0) target = $region5
  $region4: #{unet_forward.50} parent=0 // pred_region
    _
  $region5: #{unet_forward.50} parent=0 // pred_fallthru
    _
  // Predicated region
  $region6: #{unet_forward.50} parent=0 // pred_check
    _
  $region7: #{unet_forward.50} parent=0 // pred_check_branch
    %12 = sbr.rel (0) target = $region9
  $region8: #{unet_forward.50} parent=0 // pred_region
    _
  $region9: #{unet_forward.50} parent=0 // pred_fallthru
    _
  // Predicated region
  $region10: #{unet_forward.50} parent=0 // pred_check
    _
  $region11: #{unet_forward.50} parent=0 // pred_check_branch
    %14 = sbr.rel (0) target = $region13
  $region12: #{unet_forward.50} parent=0 // pred_region
    _
  $region13: #{unet_forward.50} parent=0 // pred_fallthru
    _
  // Predicated region
  $region14: #{unet_forward.50} parent=0 // pred_check
    _
  $region15: #{unet_forward.50} parent=0 // pred_check_branch
    %16 = sbr.rel (0) target = $region17
  $region16: #{unet_forward.50} parent=0 // pred_region
    _
  $region17: #{unet_forward.50} parent=0 // pred_fallthru
    _
  %v17 = vld [vmem:[%s0] sm:$0xff]
  %v18 = vld [vmem:[%s0 + $0x8] sm:$0xff]
  %v19 = vld [vmem:[%s0 + $0x10] sm:$0xff]
  %v20 = vld [vmem:[%s0 + $0x18] sm:$0xff]
  %v21 = vld [vmem:[%s0 + $0x20] sm:$0xff]
  %v22 = vld [vmem:[%s0 + $0x28] sm:$0xff]
  %v23 = vld [vmem:[%s0 + $0x30] sm:$0xff]
  %v24 = vld [vmem:[%s0 + $0x38] sm:$0xff]
  %v25 = vld [vmem:[%s0 + $0x40] sm:$0xff]
  %v26 = vld [vmem:[%s0 + $0x48] sm:$0xff]
  %v27 = vld [vmem:[%s0 + $0x50] sm:$0xff]
  %v28 = vld [vmem:[%s0 + $0x58] sm:$0xff]
  %v29 = vld [vmem:[%s0 + $0x60] sm:$0xff]
  %v30 = vld [vmem:[%s0 + $0x68] sm:$0xff]
  %v31 = vld [vmem:[%s0 + $0x70] sm:$0xff]
  %v32 = vld [vmem:[%s0 + $0x78] sm:$0xff]
  %v33 = vld [vmem:[%s1] sm:$0xff]
  %vm34 = vcmask 64512
  %v36 = vsel %vm34, %v17, 0
  %v39 = vsel %vm34, %v18, 0
  %v42 = vsel %vm34, %v19, 0
  %v45 = vsel %vm34, %v20, 0
  %v48 = vsel %vm34, %v21, 0
  %v51 = vsel %vm34, %v22, 0
  %v54 = vsel %vm34, %v23, 0
  %v57 = vsel %vm34, %v24, 0
  %v60 = vsel %vm34, %v25, 0
  %v63 = vsel %vm34, %v26, 0
  %v66 = vsel %vm34, %v27, 0
  %v69 = vsel %vm34, %v28, 0
  %v72 = vsel %vm34, %v29, 0
  %v75 = vsel %vm34, %v30, 0
  %v78 = vsel %vm34, %v31, 0
  %v81 = vsel %vm34, %v32, 0
  %83 = vmatpush.msra.mxu0 0.0
  %84 = vmatpush.msra.mxu0 0.0
  %85 = vmatpush.msra.mxu0 0.0
  %86 = vmatpush.msra.mxu0 0.0
  %87 = vmatpush.msra.mxu0 0.0
  %88 = vmatpush.msra.mxu0 0.0
  %89 = vmatpush.msra.mxu0 0.0
  %90 = vmatpush.msra.mxu0 0.0
  %91 = vmatpush.msra.mxu0 0.0
  %92 = vmatpush.msra.mxu0 0.0
  %93 = vmatpush.msra.mxu0 0.0
  %94 = vmatpush.msra.mxu0 0.0
  %95 = vmatpush.msra.mxu0 0.0
  %96 = vmatpush.msra.mxu0 0.0
  %97 = vmatpush.msra.mxu0 0.0
  %98 = vmatpush.msra.mxu0 %v33
  %99 = vmatmul.f32.gmra.mxu0 %v36
  %v100 = vpop.f32.mrf.mxu0
  %v101 = vadd.f32 0.0, %v100
  %102 = vmatmul.f32.gmra.mxu0 %v39
  %v103 = vpop.f32.mrf.mxu0
  %v104 = vadd.f32 0.0, %v103
  %105 = vmatmul.f32.gmra.mxu0 %v42
  %v106 = vpop.f32.mrf.mxu0
  %v107 = vadd.f32 0.0, %v106
  %108 = vmatmul.f32.gmra.mxu0 %v45
  %v109 = vpop.f32.mrf.mxu0
  %v110 = vadd.f32 0.0, %v109
  %111 = vmatmul.f32.gmra.mxu0 %v48
  %v112 = vpop.f32.mrf.mxu0
  %v113 = vadd.f32 0.0, %v112
  %114 = vmatmul.f32.gmra.mxu0 %v51
  %v115 = vpop.f32.mrf.mxu0
  %v116 = vadd.f32 0.0, %v115
  %117 = vmatmul.f32.gmra.mxu0 %v54
  %v118 = vpop.f32.mrf.mxu0
  %v119 = vadd.f32 0.0, %v118
  %120 = vmatmul.f32.gmra.mxu0 %v57
  %v121 = vpop.f32.mrf.mxu0
  %v122 = vadd.f32 0.0, %v121
  %123 = vmatmul.f32.gmra.mxu0 %v60
  %v124 = vpop.f32.mrf.mxu0
  %v125 = vadd.f32 0.0, %v124
  %126 = vmatmul.f32.gmra.mxu0 %v63
  %v127 = vpop.f32.mrf.mxu0
  %v128 = vadd.f32 0.0, %v127
  %129 = vmatmul.f32.gmra.mxu0 %v66
  %v130 = vpop.f32.mrf.mxu0
  %v131 = vadd.f32 0.0, %v130
  %132 = vmatmul.f32.gmra.mxu0 %v69
  %v133 = vpop.f32.mrf.mxu0
  %v134 = vadd.f32 0.0, %v133
  %135 = vmatmul.f32.gmra.mxu0 %v72
  %v136 = vpop.f32.mrf.mxu0
  %v137 = vadd.f32 0.0, %v136
  %138 = vmatmul.f32.gmra.mxu0 %v75
  %v139 = vpop.f32.mrf.mxu0
  %v140 = vadd.f32 0.0, %v139
  %141 = vmatmul.f32.gmra.mxu0 %v78
  %v142 = vpop.f32.mrf.mxu0
  %v143 = vadd.f32 0.0, %v142
  %144 = vmatmul.f32.gmra.mxu0 %v81
  %v145 = vpop.f32.mrf.mxu0
  %v146 = vadd.f32 0.0, %v145
  %147 = vdwg.mxu0
  %v148 = vld [vmem:[%s2] sm:$0x1]
  %v150 = vperm.slane %v148, 0
  %v152 = vmul.f32 %v101, %v150
  %v153 = vmul.f32 %v104, %v150
  %v154 = vmul.f32 %v107, %v150
  %v155 = vmul.f32 %v110, %v150
  %v156 = vmul.f32 %v113, %v150
  %v157 = vmul.f32 %v116, %v150
  %v158 = vmul.f32 %v119, %v150
  %v159 = vmul.f32 %v122, %v150
  %v160 = vmul.f32 %v125, %v150
  %v161 = vmul.f32 %v128, %v150
  %v162 = vmul.f32 %v131, %v150
  %v163 = vmul.f32 %v134, %v150
  %v164 = vmul.f32 %v137, %v150
  %v165 = vmul.f32 %v140, %v150
  %v166 = vmul.f32 %v143, %v150
  %v167 = vmul.f32 %v146, %v150
  %v168 = vld [vmem:[%s3] sm:$0x1]
  %v170 = vperm.slane %v168, 0
  %v172 = vadd.f32 %v152, %v170
  %v173 = vadd.f32 %v153, %v170
  %v174 = vadd.f32 %v154, %v170
  %v175 = vadd.f32 %v155, %v170
  %v176 = vadd.f32 %v156, %v170
  %v177 = vadd.f32 %v157, %v170
  %v178 = vadd.f32 %v158, %v170
  %v179 = vadd.f32 %v159, %v170
  %v180 = vadd.f32 %v160, %v170
  %v181 = vadd.f32 %v161, %v170
  %v182 = vadd.f32 %v162, %v170
  %v183 = vadd.f32 %v163, %v170
  %v184 = vadd.f32 %v164, %v170
  %v185 = vadd.f32 %v165, %v170
  %v186 = vadd.f32 %v166, %v170
  %v187 = vadd.f32 %v167, %v170
  %vm188 = vcmask 130048
  %189 = vst.msk [vmem:[%s4] sm:$0xff] %vm188, %v172
  %190 = vst.msk [vmem:[%s4 + $0x8] sm:$0xff] %vm188, %v173
  %191 = vst.msk [vmem:[%s4 + $0x10] sm:$0xff] %vm188, %v174
  %192 = vst.msk [vmem:[%s4 + $0x18] sm:$0xff] %vm188, %v175
  %193 = vst.msk [vmem:[%s4 + $0x20] sm:$0xff] %vm188, %v176
  %194 = vst.msk [vmem:[%s4 + $0x28] sm:$0xff] %vm188, %v177
  %195 = vst.msk [vmem:[%s4 + $0x30] sm:$0xff] %vm188, %v178
  %196 = vst.msk [vmem:[%s4 + $0x38] sm:$0xff] %vm188, %v179
  %197 = vst.msk [vmem:[%s4 + $0x40] sm:$0xff] %vm188, %v180
  %198 = vst.msk [vmem:[%s4 + $0x48] sm:$0xff] %vm188, %v181
  %199 = vst.msk [vmem:[%s4 + $0x50] sm:$0xff] %vm188, %v182
  %200 = vst.msk [vmem:[%s4 + $0x58] sm:$0xff] %vm188, %v183
  %201 = vst.msk [vmem:[%s4 + $0x60] sm:$0xff] %vm188, %v184
  %202 = vst.msk [vmem:[%s4 + $0x68] sm:$0xff] %vm188, %v185
  %203 = vst.msk [vmem:[%s4 + $0x70] sm:$0xff] %vm188, %v186
  %204 = vst.msk [vmem:[%s4 + $0x78] sm:$0xff] %vm188, %v187
  // Predicated region
  $region18: #{unet_forward.50} parent=0 // pred_check
    _
  $region19: #{unet_forward.50} parent=0 // pred_check_branch
    %206 = sbr.rel (0) target = $region21
  $region20: #{unet_forward.50} parent=0 // pred_region
    _
  $region21: #{unet_forward.50} parent=0 // pred_fallthru
    _
  // Predicated region
  $region22: #{unet_forward.50} parent=0 // pred_check
    _
  $region23: #{unet_forward.50} parent=0 // pred_check_branch
    %208 = sbr.rel (0) target = $region25
  $region24: #{unet_forward.50} parent=0 // pred_region
    _
  $region25: #{unet_forward.50} parent=0 // pred_fallthru
    _

// kernel: unet_forward.51
$region0: #{unet_forward.51}
  #allocation0 [shape = 'u32[]', space=smem, size = 0x4, offset = 0x4, fixed_abs, tag = 'smem constant byte address 0x4 - core index']
  #allocation1 [shape = 'u32[72,128]{1,0:T(1,128)}', space=vmem, size = 0x9000, scoped, tag = 'internal scratch']
  %s0 = inlined_call_operand.vmem [shape: f32[512,72], index: 0, kind: input, shape index: {}]
  %s1 = inlined_call_operand.vmem [shape: f32[72,4], index: 1, kind: input, shape index: {}]
  %s2 = inlined_call_operand.vmem [shape: f32[1,4], index: 2, kind: input, shape index: {}]
  %s3 = inlined_call_operand.vmem [shape: f32[1,4], index: 3, kind: input, shape index: {}]
  %s4 = inlined_call_operand.vmem [shape: f32[512,4], index: 4, kind: output, shape index: {}]
  %s5 = sld [smem:[#allocation0]]
  $region26: #{unet_forward.51} parent=0
    _
  %s7 = ssub.s32 1, %s5
  %s8 = scalar_select 0, %s7, %s5
  // Predicated region
  $region2: #{unet_forward.51} parent=0 // pred_check
    _
  $region3: #{unet_forward.51} parent=0 // pred_check_branch
    %10 = sbr.rel (0) target = $region5
  $region4: #{unet_forward.51} parent=0 // pred_region
    _
  $region5: #{unet_forward.51} parent=0 // pred_fallthru
    _
  // Predicated region
  $region6: #{unet_forward.51} parent=0 // pred_check
    _
  $region7: #{unet_forward.51} parent=0 // pred_check_branch
    %12 = sbr.rel (0) target = $region9
  $region8: #{unet_forward.51} parent=0 // pred_region
    _
  $region9: #{unet_forward.51} parent=0 // pred_fallthru
    _
  // Predicated region
  $region10: #{unet_forward.51} parent=0 // pred_check
    _
  $region11: #{unet_forward.51} parent=0 // pred_check_branch
    %14 = sbr.rel (0) target = $region13
  $region12: #{unet_forward.51} parent=0 // pred_region
    _
  $region13: #{unet_forward.51} parent=0 // pred_fallthru
    _
  // Predicated region
  $region14: #{unet_forward.51} parent=0 // pred_check
    _
  $region15: #{unet_forward.51} parent=0 // pred_check_branch
    %16 = sbr.rel (0) target = $region17
  $region16: #{unet_forward.51} parent=0 // pred_region
    _
  $region17: #{unet_forward.51} parent=0 // pred_fallthru
    _
  %v17 = vld [vmem:[%s0] sm:$0xff]
  %v18 = vld [vmem:[%s0 + $0x8] sm:$0xff]
  %v19 = vld [vmem:[%s0 + $0x10] sm:$0xff]
  %v20 = vld [vmem:[%s0 + $0x18] sm:$0xff]
  %v21 = vld [vmem:[%s0 + $0x20] sm:$0xff]
  %v22 = vld [vmem:[%s0 + $0x28] sm:$0xff]
  %v23 = vld [vmem:[%s0 + $0x30] sm:$0xff]
  %v24 = vld [vmem:[%s0 + $0x38] sm:$0xff]
  %v25 = vld [vmem:[%s0 + $0x40] sm:$0xff]
  %v26 = vld [vmem:[%s0 + $0x48] sm:$0xff]
  %v27 = vld [vmem:[%s0 + $0x50] sm:$0xff]
  %v28 = vld [vmem:[%s0 + $0x58] sm:$0xff]
  %v29 = vld [vmem:[%s0 + $0x60] sm:$0xff]
  %v30 = vld [vmem:[%s0 + $0x68] sm:$0xff]
  %v31 = vld [vmem:[%s0 + $0x70] sm:$0xff]
  %v32 = vld [vmem:[%s0 + $0x78] sm:$0xff]
  %v33 = vld [vmem:[%s0 + $0x80] sm:$0xff]
  %v34 = vld [vmem:[%s0 + $0x88] sm:$0xff]
  %v35 = vld [vmem:[%s0 + $0x90] sm:$0xff]
  %v36 = vld [vmem:[%s0 + $0x98] sm:$0xff]
  %v37 = vld [vmem:[%s0 + $0xa0] sm:$0xff]
  %v38 = vld [vmem:[%s0 + $0xa8] sm:$0xff]
  %v39 = vld [vmem:[%s0 + $0xb0] sm:$0xff]
  %v40 = vld [vmem:[%s0 + $0xb8] sm:$0xff]
  %v41 = vld [vmem:[%s0 + $0xc0] sm:$0xff]
  %v42 = vld [vmem:[%s0 + $0xc8] sm:$0xff]
  %v43 = vld [vmem:[%s0 + $0xd0] sm:$0xff]
  %v44 = vld [vmem:[%s0 + $0xd8] sm:$0xff]
  %v45 = vld [vmem:[%s0 + $0xe0] sm:$0xff]
  %v46 = vld [vmem:[%s0 + $0xe8] sm:$0xff]
  %v47 = vld [vmem:[%s0 + $0xf0] sm:$0xff]
  %v48 = vld [vmem:[%s0 + $0xf8] sm:$0xff]
  %v49 = vld [vmem:[%s0 + $0x100] sm:$0xff]
  %v50 = vld [vmem:[%s0 + $0x108] sm:$0xff]
  %v51 = vld [vmem:[%s0 + $0x110] sm:$0xff]
  %v52 = vld [vmem:[%s0 + $0x118] sm:$0xff]
  %v53 = vld [vmem:[%s0 + $0x120] sm:$0xff]
  %v54 = vld [vmem:[%s0 + $0x128] sm:$0xff]
  %v55 = vld [vmem:[%s0 + $0x130] sm:$0xff]
  %v56 = vld [vmem:[%s0 + $0x138] sm:$0xff]
  %v57 = vld [vmem:[%s0 + $0x140] sm:$0xff]
  %v58 = vld [vmem:[%s0 + $0x148] sm:$0xff]
  %v59 = vld [vmem:[%s0 + $0x150] sm:$0xff]
  %v60 = vld [vmem:[%s0 + $0x158] sm:$0xff]
  %v61 = vld [vmem:[%s0 + $0x160] sm:$0xff]
  %v62 = vld [vmem:[%s0 + $0x168] sm:$0xff]
  %v63 = vld [vmem:[%s0 + $0x170] sm:$0xff]
  %v64 = vld [vmem:[%s0 + $0x178] sm:$0xff]
  %v65 = vld [vmem:[%s0 + $0x180] sm:$0xff]
  %v66 = vld [vmem:[%s0 + $0x188] sm:$0xff]
  %v67 = vld [vmem:[%s0 + $0x190] sm:$0xff]
  %v68 = vld [vmem:[%s0 + $0x198] sm:$0xff]
  %v69 = vld [vmem:[%s0 + $0x1a0] sm:$0xff]
  %v70 = vld [vmem:[%s0 + $0x1a8] sm:$0xff]
  %v71 = vld [vmem:[%s0 + $0x1b0] sm:$0xff]
  %v72 = vld [vmem:[%s0 + $0x1b8] sm:$0xff]
  %v73 = vld [vmem:[%s0 + $0x1c0] sm:$0xff]
  %v74 = vld [vmem:[%s0 + $0x1c8] sm:$0xff]
  %v75 = vld [vmem:[%s0 + $0x1d0] sm:$0xff]
  %v76 = vld [vmem:[%s0 + $0x1d8] sm:$0xff]
  %v77 = vld [vmem:[%s0 + $0x1e0] sm:$0xff]
  %v78 = vld [vmem:[%s0 + $0x1e8] sm:$0xff]
  %v79 = vld [vmem:[%s0 + $0x1f0] sm:$0xff]
  %v80 = vld [vmem:[%s0 + $0x1f8] sm:$0xff]
  %v81 = vld [vmem:[%s1] sm:$0xff]
  %v82 = vld [vmem:[%s1 + $0x8] sm:$0xff]
  %v83 = vld [vmem:[%s1 + $0x10] sm:$0xff]
  %v84 = vld [vmem:[%s1 + $0x18] sm:$0xff]
  %v85 = vld [vmem:[%s1 + $0x20] sm:$0xff]
  %v86 = vld [vmem:[%s1 + $0x28] sm:$0xff]
  %v87 = vld [vmem:[%s1 + $0x30] sm:$0xff]
  %v88 = vld [vmem:[%s1 + $0x38] sm:$0xff]
  %v89 = vld [vmem:[%s1 + $0x40] sm:$0xff]
  %vm90 = vcmask 588800
  %v92 = vsel %vm90, %v17, 0
  %v95 = vsel %vm90, %v18, 0
  %v98 = vsel %vm90, %v19, 0
  %v101 = vsel %vm90, %v20, 0
  %v104 = vsel %vm90, %v21, 0
  %v107 = vsel %vm90, %v22, 0
  %v110 = vsel %vm90, %v23, 0
  %v113 = vsel %vm90, %v24, 0
  %v116 = vsel %vm90, %v25, 0
  %v119 = vsel %vm90, %v26, 0
  %v122 = vsel %vm90, %v27, 0
  %v125 = vsel %vm90, %v28, 0
  %v128 = vsel %vm90, %v29, 0
  %v131 = vsel %vm90, %v30, 0
  %v134 = vsel %vm90, %v31, 0
  %v137 = vsel %vm90, %v32, 0
  %v140 = vsel %vm90, %v33, 0
  %v143 = vsel %vm90, %v34, 0
  %v146 = vsel %vm90, %v35, 0
  %v149 = vsel %vm90, %v36, 0
  %v152 = vsel %vm90, %v37, 0
  %v155 = vsel %vm90, %v38, 0
  %v158 = vsel %vm90, %v39, 0
  %v161 = vsel %vm90, %v40, 0
  %v164 = vsel %vm90, %v41, 0
  %v167 = vsel %vm90, %v42, 0
  %v170 = vsel %vm90, %v43, 0
  %v173 = vsel %vm90, %v44, 0
  %v176 = vsel %vm90, %v45, 0
  %v179 = vsel %vm90, %v46, 0
  %v182 = vsel %vm90, %v47, 0
  %v185 = vsel %vm90, %v48, 0
  %v188 = vsel %vm90, %v49, 0
  %v191 = vsel %vm90, %v50, 0
  %v194 = vsel %vm90, %v51, 0
  %v197 = vsel %vm90, %v52, 0
  %v200 = vsel %vm90, %v53, 0
  %v203 = vsel %vm90, %v54, 0
  %v206 = vsel %vm90, %v55, 0
  %v209 = vsel %vm90, %v56, 0
  %v212 = vsel %vm90, %v57, 0
  %v215 = vsel %vm90, %v58, 0
  %v218 = vsel %vm90, %v59, 0
  %v221 = vsel %vm90, %v60, 0
  %v224 = vsel %vm90, %v61, 0
  %v227 = vsel %vm90, %v62, 0
  %v230 = vsel %vm90, %v63, 0
  %v233 = vsel %vm90, %v64, 0
  %v236 = vsel %vm90, %v65, 0
  %v239 = vsel %vm90, %v66, 0
  %v242 = vsel %vm90, %v67, 0
  %v245 = vsel %vm90, %v68, 0
  %v248 = vsel %vm90, %v69, 0
  %v251 = vsel %vm90, %v70, 0
  %v254 = vsel %vm90, %v71, 0
  %v257 = vsel %vm90, %v72, 0
  %v260 = vsel %vm90, %v73, 0
  %v263 = vsel %vm90, %v74, 0
  %v266 = vsel %vm90, %v75, 0
  %v269 = vsel %vm90, %v76, 0
  %v272 = vsel %vm90, %v77, 0
  %v275 = vsel %vm90, %v78, 0
  %v278 = vsel %vm90, %v79, 0
  %v281 = vsel %vm90, %v80, 0
  %283 = vmatpush.msra.mxu0 0.0
  %284 = vmatpush.msra.mxu0 0.0
  %285 = vmatpush.msra.mxu0 0.0
  %286 = vmatpush.msra.mxu0 0.0
  %287 = vmatpush.msra.mxu0 0.0
  %288 = vmatpush.msra.mxu0 0.0
  %289 = vmatpush.msra.mxu0 0.0
  %290 = vmatpush.msra.mxu0 %v89
  %291 = vmatpush.msra.mxu0 %v88
  %292 = vmatpush.msra.mxu0 %v87
  %293 = vmatpush.msra.mxu0 %v86
  %294 = vmatpush.msra.mxu0 %v85
  %295 = vmatpush.msra.mxu0 %v84
  %296 = vmatpush.msra.mxu0 %v83
  %297 = vmatpush.msra.mxu0 %v82
  %298 = vmatpush.msra.mxu0 %v81
  %299 = vmatmul.f32.gmra.mxu0 %v92
  %v300 = vpop.f32.mrf.mxu0
  %v301 = vadd.f32 0.0, %v300
  %302 = vmatmul.f32.gmra.mxu0 %v95
  %v303 = vpop.f32.mrf.mxu0
  %v304 = vadd.f32 0.0, %v303
  %305 = vmatmul.f32.gmra.mxu0 %v98
  %v306 = vpop.f32.mrf.mxu0
  %v307 = vadd.f32 0.0, %v306
  %308 = vmatmul.f32.gmra.mxu0 %v101
  %v309 = vpop.f32.mrf.mxu0
  %v310 = vadd.f32 0.0, %v309
  %311 = vmatmul.f32.gmra.mxu0 %v104
  %v312 = vpop.f32.mrf.mxu0
  %v313 = vadd.f32 0.0, %v312
  %314 = vmatmul.f32.gmra.mxu0 %v107
  %v315 = vpop.f32.mrf.mxu0
  %v316 = vadd.f32 0.0, %v315
  %317 = vmatmul.f32.gmra.mxu0 %v110
  %v318 = vpop.f32.mrf.mxu0
  %v319 = vadd.f32 0.0, %v318
  %320 = vmatmul.f32.gmra.mxu0 %v113
  %v321 = vpop.f32.mrf.mxu0
  %v322 = vadd.f32 0.0, %v321
  %323 = vmatmul.f32.gmra.mxu0 %v116
  %v324 = vpop.f32.mrf.mxu0
  %v325 = vadd.f32 0.0, %v324
  %326 = vmatmul.f32.gmra.mxu0 %v119
  %v327 = vpop.f32.mrf.mxu0
  %v328 = vadd.f32 0.0, %v327
  %329 = vmatmul.f32.gmra.mxu0 %v122
  %v330 = vpop.f32.mrf.mxu0
  %v331 = vadd.f32 0.0, %v330
  %332 = vmatmul.f32.gmra.mxu0 %v125
  %v333 = vpop.f32.mrf.mxu0
  %v334 = vadd.f32 0.0, %v333
  %335 = vmatmul.f32.gmra.mxu0 %v128
  %v336 = vpop.f32.mrf.mxu0
  %v337 = vadd.f32 0.0, %v336
  %338 = vmatmul.f32.gmra.mxu0 %v131
  %v339 = vpop.f32.mrf.mxu0
  %v340 = vadd.f32 0.0, %v339
  %341 = vmatmul.f32.gmra.mxu0 %v134
  %v342 = vpop.f32.mrf.mxu0
  %v343 = vadd.f32 0.0, %v342
  %344 = vmatmul.f32.gmra.mxu0 %v137
  %v345 = vpop.f32.mrf.mxu0
  %v346 = vadd.f32 0.0, %v345
  %347 = vmatmul.f32.gmra.mxu0 %v140
  %v348 = vpop.f32.mrf.mxu0
  %v349 = vadd.f32 0.0, %v348
  %350 = vmatmul.f32.gmra.mxu0 %v143
  %v351 = vpop.f32.mrf.mxu0
  %v352 = vadd.f32 0.0, %v351
  %353 = vmatmul.f32.gmra.mxu0 %v146
  %v354 = vpop.f32.mrf.mxu0
  %v355 = vadd.f32 0.0, %v354
  %356 = vmatmul.f32.gmra.mxu0 %v149
  %v357 = vpop.f32.mrf.mxu0
  %v358 = vadd.f32 0.0, %v357
  %359 = vmatmul.f32.gmra.mxu0 %v152
  %v360 = vpop.f32.mrf.mxu0
  %v361 = vadd.f32 0.0, %v360
  %362 = vmatmul.f32.gmra.mxu0 %v155
  %v363 = vpop.f32.mrf.mxu0
  %v364 = vadd.f32 0.0, %v363
  %365 = vmatmul.f32.gmra.mxu0 %v158
  %v366 = vpop.f32.mrf.mxu0
  %v367 = vadd.f32 0.0, %v366
  %368 = vmatmul.f32.gmra.mxu0 %v161
  %v369 = vpop.f32.mrf.mxu0
  %v370 = vadd.f32 0.0, %v369
  %371 = vmatmul.f32.gmra.mxu0 %v164
  %v372 = vpop.f32.mrf.mxu0
  %v373 = vadd.f32 0.0, %v372
  %374 = vmatmul.f32.gmra.mxu0 %v167
  %v375 = vpop.f32.mrf.mxu0
  %v376 = vadd.f32 0.0, %v375
  %377 = vmatmul.f32.gmra.mxu0 %v170
  %v378 = vpop.f32.mrf.mxu0
  %v379 = vadd.f32 0.0, %v378
  %380 = vmatmul.f32.gmra.mxu0 %v173
  %v381 = vpop.f32.mrf.mxu0
  %v382 = vadd.f32 0.0, %v381
  %383 = vmatmul.f32.gmra.mxu0 %v176
  %v384 = vpop.f32.mrf.mxu0
  %v385 = vadd.f32 0.0, %v384
  %386 = vmatmul.f32.gmra.mxu0 %v179
  %v387 = vpop.f32.mrf.mxu0
  %v388 = vadd.f32 0.0, %v387
  %389 = vmatmul.f32.gmra.mxu0 %v182
  %v390 = vpop.f32.mrf.mxu0
  %v391 = vadd.f32 0.0, %v390
  %392 = vmatmul.f32.gmra.mxu0 %v185
  %v393 = vpop.f32.mrf.mxu0
  %v394 = vadd.f32 0.0, %v393
  %395 = vmatmul.f32.gmra.mxu0 %v188
  %v396 = vpop.f32.mrf.mxu0
  %v397 = vadd.f32 0.0, %v396
  %398 = vmatmul.f32.gmra.mxu0 %v191
  %v399 = vpop.f32.mrf.mxu0
  %v400 = vadd.f32 0.0, %v399
  %401 = vmatmul.f32.gmra.mxu0 %v194
  %v402 = vpop.f32.mrf.mxu0
  %v403 = vadd.f32 0.0, %v402
  %404 = vmatmul.f32.gmra.mxu0 %v197
  %v405 = vpop.f32.mrf.mxu0
  %v406 = vadd.f32 0.0, %v405
  %407 = vmatmul.f32.gmra.mxu0 %v200
  %v408 = vpop.f32.mrf.mxu0
  %v409 = vadd.f32 0.0, %v408
  %410 = vmatmul.f32.gmra.mxu0 %v203
  %v411 = vpop.f32.mrf.mxu0
  %v412 = vadd.f32 0.0, %v411
  %413 = vmatmul.f32.gmra.mxu0 %v206
  %v414 = vpop.f32.mrf.mxu0
  %v415 = vadd.f32 0.0, %v414
  %416 = vmatmul.f32.gmra.mxu0 %v209
  %v417 = vpop.f32.mrf.mxu0
  %v418 = vadd.f32 0.0, %v417
  %419 = vmatmul.f32.gmra.mxu0 %v212
  %v420 = vpop.f32.mrf.mxu0
  %v421 = vadd.f32 0.0, %v420
  %422 = vmatmul.f32.gmra.mxu0 %v215
  %v423 = vpop.f32.mrf.mxu0
  %v424 = vadd.f32 0.0, %v423
  %425 = vmatmul.f32.gmra.mxu0 %v218
  %v426 = vpop.f32.mrf.mxu0
  %v427 = vadd.f32 0.0, %v426
  %428 = vmatmul.f32.gmra.mxu0 %v221
  %v429 = vpop.f32.mrf.mxu0
  %v430 = vadd.f32 0.0, %v429
  %431 = vmatmul.f32.gmra.mxu0 %v224
  %v432 = vpop.f32.mrf.mxu0
  %v433 = vadd.f32 0.0, %v432
  %434 = vmatmul.f32.gmra.mxu0 %v227
  %v435 = vpop.f32.mrf.mxu0
  %v436 = vadd.f32 0.0, %v435
  %437 = vmatmul.f32.gmra.mxu0 %v230
  %v438 = vpop.f32.mrf.mxu0
  %v439 = vadd.f32 0.0, %v438
  %440 = vmatmul.f32.gmra.mxu0 %v233
  %v441 = vpop.f32.mrf.mxu0
  %v442 = vadd.f32 0.0, %v441
  %443 = vmatmul.f32.gmra.mxu0 %v236
  %v444 = vpop.f32.mrf.mxu0
  %v445 = vadd.f32 0.0, %v444
  %446 = vmatmul.f32.gmra.mxu0 %v239
  %v447 = vpop.f32.mrf.mxu0
  %v448 = vadd.f32 0.0, %v447
  %449 = vmatmul.f32.gmra.mxu0 %v242
  %v450 = vpop.f32.mrf.mxu0
  %v451 = vadd.f32 0.0, %v450
  %452 = vmatmul.f32.gmra.mxu0 %v245
  %v453 = vpop.f32.mrf.mxu0
  %v454 = vadd.f32 0.0, %v453
  %455 = vmatmul.f32.gmra.mxu0 %v248
  %v456 = vpop.f32.mrf.mxu0
  %v457 = vadd.f32 0.0, %v456
  %458 = vmatmul.f32.gmra.mxu0 %v251
  %v459 = vpop.f32.mrf.mxu0
  %v460 = vadd.f32 0.0, %v459
  %461 = vmatmul.f32.gmra.mxu0 %v254
  %v462 = vpop.f32.mrf.mxu0
  %v463 = vadd.f32 0.0, %v462
  %464 = vmatmul.f32.gmra.mxu0 %v257
  %v465 = vpop.f32.mrf.mxu0
  %v466 = vadd.f32 0.0, %v465
  %467 = vmatmul.f32.gmra.mxu0 %v260
  %v468 = vpop.f32.mrf.mxu0
  %v469 = vadd.f32 0.0, %v468
  %470 = vmatmul.f32.gmra.mxu0 %v263
  %v471 = vpop.f32.mrf.mxu0
  %v472 = vadd.f32 0.0, %v471
  %473 = vmatmul.f32.gmra.mxu0 %v266
  %v474 = vpop.f32.mrf.mxu0
  %v475 = vadd.f32 0.0, %v474
  %476 = vmatmul.f32.gmra.mxu0 %v269
  %v477 = vpop.f32.mrf.mxu0
  %v478 = vadd.f32 0.0, %v477
  %479 = vmatmul.f32.gmra.mxu0 %v272
  %v480 = vpop.f32.mrf.mxu0
  %v481 = vadd.f32 0.0, %v480
  %482 = vmatmul.f32.gmra.mxu0 %v275
  %v483 = vpop.f32.mrf.mxu0
  %v484 = vadd.f32 0.0, %v483
  %485 = vmatmul.f32.gmra.mxu0 %v278
  %v486 = vpop.f32.mrf.mxu0
  %v487 = vadd.f32 0.0, %v486
  %488 = vmatmul.f32.gmra.mxu0 %v281
  %v489 = vpop.f32.mrf.mxu0
  %v490 = vadd.f32 0.0, %v489
  %491 = vdwg.mxu0
  %v492 = vld [vmem:[%s2] sm:$0x1]
  %v494 = vperm.slane %v492, 0
  %v496 = vmul.f32 %v301, %v494
  %v497 = vmul.f32 %v304, %v494
  %v498 = vmul.f32 %v307, %v494
  %v499 = vmul.f32 %v310, %v494
  %v500 = vmul.f32 %v313, %v494
  %v501 = vmul.f32 %v316, %v494
  %v502 = vmul.f32 %v319, %v494
  %v503 = vmul.f32 %v322, %v494
  %v504 = vmul.f32 %v325, %v494
  %v505 = vmul.f32 %v328, %v494
  %v506 = vmul.f32 %v331, %v494
  %v507 = vmul.f32 %v334, %v494
  %v508 = vmul.f32 %v337, %v494
  %v509 = vmul.f32 %v340, %v494
  %v510 = vmul.f32 %v343, %v494
  %v511 = vmul.f32 %v346, %v494
  %v512 = vmul.f32 %v349, %v494
  %v513 = vmul.f32 %v352, %v494
  %v514 = vmul.f32 %v355, %v494
  %v515 = vmul.f32 %v358, %v494
  %v516 = vmul.f32 %v361, %v494
  %v517 = vmul.f32 %v364, %v494
  %v518 = vmul.f32 %v367, %v494
  %v519 = vmul.f32 %v370, %v494
  %v520 = vmul.f32 %v373, %v494
  %v521 = vmul.f32 %v376, %v494
  %v522 = vmul.f32 %v379, %v494
  %v523 = vmul.f32 %v382, %v494
  %v524 = vmul.f32 %v385, %v494
  %v525 = vmul.f32 %v388, %v494
  %v526 = vmul.f32 %v391, %v494
  %v527 = vmul.f32 %v394, %v494
  %v528 = vmul.f32 %v397, %v494
  %v529 = vmul.f32 %v400, %v494
  %v530 = vmul.f32 %v403, %v494
  %v531 = vmul.f32 %v406, %v494
  %v532 = vmul.f32 %v409, %v494
  %v533 = vmul.f32 %v412, %v494
  %v534 = vmul.f32 %v415, %v494
  %v535 = vmul.f32 %v418, %v494
  %v536 = vmul.f32 %v421, %v494
  %v537 = vmul.f32 %v424, %v494
  %v538 = vmul.f32 %v427, %v494
  %v539 = vmul.f32 %v430, %v494
  %v540 = vmul.f32 %v433, %v494
  %v541 = vmul.f32 %v436, %v494
  %v542 = vmul.f32 %v439, %v494
  %v543 = vmul.f32 %v442, %v494
  %v544 = vmul.f32 %v445, %v494
  %v545 = vmul.f32 %v448, %v494
  %v546 = vmul.f32 %v451, %v494
  %v547 = vmul.f32 %v454, %v494
  %v548 = vmul.f32 %v457, %v494
  %v549 = vmul.f32 %v460, %v494
  %v550 = vmul.f32 %v463, %v494
  %v551 = vmul.f32 %v466, %v494
  %v552 = vmul.f32 %v469, %v494
  %v553 = vmul.f32 %v472, %v494
  %v554 = vmul.f32 %v475, %v494
  %v555 = vmul.f32 %v478, %v494
  %v556 = vmul.f32 %v481, %v494
  %v557 = vmul.f32 %v484, %v494
  %v558 = vmul.f32 %v487, %v494
  %v559 = vmul.f32 %v490, %v494
  %v560 = vld [vmem:[%s3] sm:$0x1]
  %v562 = vperm.slane %v560, 0
  %v564 = vadd.f32 %v496, %v562
  %v565 = vadd.f32 %v497, %v562
  %v566 = vadd.f32 %v498, %v562
  %v567 = vadd.f32 %v499, %v562
  %v568 = vadd.f32 %v500, %v562
  %v569 = vadd.f32 %v501, %v562
  %v570 = vadd.f32 %v502, %v562
  %v571 = vadd.f32 %v503, %v562
  %v572 = vadd.f32 %v504, %v562
  %v573 = vadd.f32 %v505, %v562
  %v574 = vadd.f32 %v506, %v562
  %v575 = vadd.f32 %v507, %v562
  %v576 = vadd.f32 %v508, %v562
  %v577 = vadd.f32 %v509, %v562
  %v578 = vadd.f32 %v510, %v562
  %v579 = vadd.f32 %v511, %v562
  %v580 = vadd.f32 %v512, %v562
  %v581 = vadd.f32 %v513, %v562
  %v582 = vadd.f32 %v514, %v562
  %v583 = vadd.f32 %v515, %v562
  %v584 = vadd.f32 %v516, %v562
  %v585 = vadd.f32 %v517, %v562
  %v586 = vadd.f32 %v518, %v562
  %v587 = vadd.f32 %v519, %v562
  %v588 = vadd.f32 %v520, %v562
  %v589 = vadd.f32 %v521, %v562
  %v590 = vadd.f32 %v522, %v562
  %v591 = vadd.f32 %v523, %v562
  %v592 = vadd.f32 %v524, %v562
  %v593 = vadd.f32 %v525, %v562
  %v594 = vadd.f32 %v526, %v562
  %v595 = vadd.f32 %v527, %v562
  %v596 = vadd.f32 %v528, %v562
  %v597 = vadd.f32 %v529, %v562
  %v598 = vadd.f32 %v530, %v562
  %v599 = vadd.f32 %v531, %v562
  %v600 = vadd.f32 %v532, %v562
  %v601 = vadd.f32 %v533, %v562
  %v602 = vadd.f32 %v534, %v562
  %v603 = vadd.f32 %v535, %v562
  %v604 = vadd.f32 %v536, %v562
  %v605 = vadd.f32 %v537, %v562
  %v606 = vadd.f32 %v538, %v562
  %v607 = vadd.f32 %v539, %v562
  %v608 = vadd.f32 %v540, %v562
  %v609 = vadd.f32 %v541, %v562
  %v610 = vadd.f32 %v542, %v562
  %v611 = vadd.f32 %v543, %v562
  %v612 = vadd.f32 %v544, %v562
  %v613 = vadd.f32 %v545, %v562
  %v614 = vadd.f32 %v546, %v562
  %v615 = vadd.f32 %v547, %v562
  %v616 = vadd.f32 %v548, %v562
  %v617 = vadd.f32 %v549, %v562
  %v618 = vadd.f32 %v550, %v562
  %v619 = vadd.f32 %v551, %v562
  %v620 = vadd.f32 %v552, %v562
  %v621 = vadd.f32 %v553, %v562
  %v622 = vadd.f32 %v554, %v562
  %v623 = vadd.f32 %v555, %v562
  %v624 = vadd.f32 %v556, %v562
  %v625 = vadd.f32 %v557, %v562
  %v626 = vadd.f32 %v558, %v562
  %v627 = vadd.f32 %v559, %v562
  %v628 = vmax.f32 %v564, 0.0
  %v629 = vmax.f32 %v565, 0.0
  %v630 = vmax.f32 %v566, 0.0
  %v631 = vmax.f32 %v567, 0.0
  %v632 = vmax.f32 %v568, 0.0
  %v633 = vmax.f32 %v569, 0.0
  %v634 = vmax.f32 %v570, 0.0
  %v635 = vmax.f32 %v571, 0.0
  %v636 = vmax.f32 %v572, 0.0
  %v637 = vmax.f32 %v573, 0.0
  %v638 = vmax.f32 %v574, 0.0
  %v639 = vmax.f32 %v575, 0.0
  %v640 = vmax.f32 %v576, 0.0
  %v641 = vmax.f32 %v577, 0.0
  %v642 = vmax.f32 %v578, 0.0
  %v643 = vmax.f32 %v579, 0.0
  %v644 = vmax.f32 %v580, 0.0
  %v645 = vmax.f32 %v581, 0.0
  %v646 = vmax.f32 %v582, 0.0
  %v647 = vmax.f32 %v583, 0.0
  %v648 = vmax.f32 %v584, 0.0
  %v649 = vmax.f32 %v585, 0.0
  %v650 = vmax.f32 %v586, 0.0
  %v651 = vmax.f32 %v587, 0.0
  %v652 = vmax.f32 %v588, 0.0
  %v653 = vmax.f32 %v589, 0.0
  %v654 = vmax.f32 %v590, 0.0
  %v655 = vmax.f32 %v591, 0.0
  %v656 = vmax.f32 %v592, 0.0
  %v657 = vmax.f32 %v593, 0.0
  %v658 = vmax.f32 %v594, 0.0
  %v659 = vmax.f32 %v595, 0.0
  %v660 = vmax.f32 %v596, 0.0
  %v661 = vmax.f32 %v597, 0.0
  %v662 = vmax.f32 %v598, 0.0
  %v663 = vmax.f32 %v599, 0.0
  %v664 = vmax.f32 %v600, 0.0
  %v665 = vmax.f32 %v601, 0.0
  %v666 = vmax.f32 %v602, 0.0
  %v667 = vmax.f32 %v603, 0.0
  %v668 = vmax.f32 %v604, 0.0
  %v669 = vmax.f32 %v605, 0.0
  %v670 = vmax.f32 %v606, 0.0
  %v671 = vmax.f32 %v607, 0.0
  %v672 = vmax.f32 %v608, 0.0
  %v673 = vmax.f32 %v609, 0.0
  %v674 = vmax.f32 %v610, 0.0
  %v675 = vmax.f32 %v611, 0.0
  %v676 = vmax.f32 %v612, 0.0
  %v677 = vmax.f32 %v613, 0.0
  %v678 = vmax.f32 %v614, 0.0
  %v679 = vmax.f32 %v615, 0.0
  %v680 = vmax.f32 %v616, 0.0
  %v681 = vmax.f32 %v617, 0.0
  %v682 = vmax.f32 %v618, 0.0
  %v683 = vmax.f32 %v619, 0.0
  %v684 = vmax.f32 %v620, 0.0
  %v685 = vmax.f32 %v621, 0.0
  %v686 = vmax.f32 %v622, 0.0
  %v687 = vmax.f32 %v623, 0.0
  %v688 = vmax.f32 %v624, 0.0
  %v689 = vmax.f32 %v625, 0.0
  %v690 = vmax.f32 %v626, 0.0
  %v691 = vmax.f32 %v627, 0.0
  %vm692 = vcmask 31744
  %693 = vst.msk [vmem:[%s4] sm:$0xff] %vm692, %v628
  %694 = vst.msk [vmem:[%s4 + $0x8] sm:$0xff] %vm692, %v629
  %695 = vst.msk [vmem:[%s4 + $0x10] sm:$0xff] %vm692, %v630
  %696 = vst.msk [vmem:[%s4 + $0x18] sm:$0xff] %vm692, %v631
  %697 = vst.msk [vmem:[%s4 + $0x20] sm:$0xff] %vm692, %v632
  %698 = vst.msk [vmem:[%s4 + $0x28] sm:$0xff] %vm692, %v633
  %699 = vst.msk [vmem:[%s4 + $0x30] sm:$0xff] %vm692, %v634
  %700 = vst.msk [vmem:[%s4 + $0x38] sm:$0xff] %vm692, %v635
  %701 = vst.msk [vmem:[%s4 + $0x40] sm:$0xff] %vm692, %v636
  %702 = vst.msk [vmem:[%s4 + $0x48] sm:$0xff] %vm692, %v637
  %703 = vst.msk [vmem:[%s4 + $0x50] sm:$0xff] %vm692, %v638
  %704 = vst.msk [vmem:[%s4 + $0x58] sm:$0xff] %vm692, %v639
  %705 = vst.msk [vmem:[%s4 + $0x60] sm:$0xff] %vm692, %v640
  %706 = vst.msk [vmem:[%s4 + $0x68] sm:$0xff] %vm692, %v641
  %707 = vst.msk [vmem:[%s4 + $0x70] sm:$0xff] %vm692, %v642
  %708 = vst.msk [vmem:[%s4 + $0x78] sm:$0xff] %vm692, %v643
  %709 = vst.msk [vmem:[%s4 + $0x80] sm:$0xff] %vm692, %v644
  %710 = vst.msk [vmem:[%s4 + $0x88] sm:$0xff] %vm692, %v645
  %711 = vst.msk [vmem:[%s4 + $0x90] sm:$0xff] %vm692, %v646
  %712 = vst.msk [vmem:[%s4 + $0x98] sm:$0xff] %vm692, %v647
  %713 = vst.msk [vmem:[%s4 + $0xa0] sm:$0xff] %vm692, %v648
  %714 = vst.msk [vmem:[%s4 + $0xa8] sm:$0xff] %vm692, %v649
  %715 = vst.msk [vmem:[%s4 + $0xb0] sm:$0xff] %vm692, %v650
  %716 = vst.msk [vmem:[%s4 + $0xb8] sm:$0xff] %vm692, %v651
  %717 = vst.msk [vmem:[%s4 + $0xc0] sm:$0xff] %vm692, %v652
  %718 = vst.msk [vmem:[%s4 + $0xc8] sm:$0xff] %vm692, %v653
  %719 = vst.msk [vmem:[%s4 + $0xd0] sm:$0xff] %vm692, %v654
  %720 = vst.msk [vmem:[%s4 + $0xd8] sm:$0xff] %vm692, %v655
  %721 = vst.msk [vmem:[%s4 + $0xe0] sm:$0xff] %vm692, %v656
  %722 = vst.msk [vmem:[%s4 + $0xe8] sm:$0xff] %vm692, %v657
  %723 = vst.msk [vmem:[%s4 + $0xf0] sm:$0xff] %vm692, %v658
  %724 = vst.msk [vmem:[%s4 + $0xf8] sm:$0xff] %vm692, %v659
  %725 = vst.msk [vmem:[%s4 + $0x100] sm:$0xff] %vm692, %v660
  %726 = vst.msk [vmem:[%s4 + $0x108] sm:$0xff] %vm692, %v661
  %727 = vst.msk [vmem:[%s4 + $0x110] sm:$0xff] %vm692, %v662
  %728 = vst.msk [vmem:[%s4 + $0x118] sm:$0xff] %vm692, %v663
  %729 = vst.msk [vmem:[%s4 + $0x120] sm:$0xff] %vm692, %v664
  %730 = vst.msk [vmem:[%s4 + $0x128] sm:$0xff] %vm692, %v665
  %731 = vst.msk [vmem:[%s4 + $0x130] sm:$0xff] %vm692, %v666
  %732 = vst.msk [vmem:[%s4 + $0x138] sm:$0xff] %vm692, %v667
  %733 = vst.msk [vmem:[%s4 + $0x140] sm:$0xff] %vm692, %v668
  %734 = vst.msk [vmem:[%s4 + $0x148] sm:$0xff] %vm692, %v669
  %735 = vst.msk [vmem:[%s4 + $0x150] sm:$0xff] %vm692, %v670
  %736 = vst.msk [vmem:[%s4 + $0x158] sm:$0xff] %vm692, %v671
  %737 = vst.msk [vmem:[%s4 + $0x160] sm:$0xff] %vm692, %v672
  %738 = vst.msk [vmem:[%s4 + $0x168] sm:$0xff] %vm692, %v673
  %739 = vst.msk [vmem:[%s4 + $0x170] sm:$0xff] %vm692, %v674
  %740 = vst.msk [vmem:[%s4 + $0x178] sm:$0xff] %vm692, %v675
  %741 = vst.msk [vmem:[%s4 + $0x180] sm:$0xff] %vm692, %v676
  %742 = vst.msk [vmem:[%s4 + $0x188] sm:$0xff] %vm692, %v677
  %743 = vst.msk [vmem:[%s4 + $0x190] sm:$0xff] %vm692, %v678
  %744 = vst.msk [vmem:[%s4 + $0x198] sm:$0xff] %vm692, %v679
  %745 = vst.msk [vmem:[%s4 + $0x1a0] sm:$0xff] %vm692, %v680
  %746 = vst.msk [vmem:[%s4 + $0x1a8] sm:$0xff] %vm692, %v681
  %747 = vst.msk [vmem:[%s4 + $0x1b0] sm:$0xff] %vm692, %v682
  %748 = vst.msk [vmem:[%s4 + $0x1b8] sm:$0xff] %vm692, %v683
  %749 = vst.msk [vmem:[%s4 + $0x1c0] sm:$0xff] %vm692, %v684
  %750 = vst.msk [vmem:[%s4 + $0x1c8] sm:$0xff] %vm692, %v685
  %751 = vst.msk [vmem:[%s4 + $0x1d0] sm:$0xff] %vm692, %v686
  %752 = vst.msk [vmem:[%s4 + $0x1d8] sm:$0xff] %vm692, %v687
  %753 = vst.msk [vmem:[%s4 + $0x1e0] sm:$0xff] %vm692, %v688
  %754 = vst.msk [vmem:[%s4 + $0x1e8] sm:$0xff] %vm692, %v689
  %755 = vst.msk [vmem:[%s4 + $0x1f0] sm:$0xff] %vm692, %v690
  %756 = vst.msk [vmem:[%s4 + $0x1f8] sm:$0xff] %vm692, %v691
  // Predicated region
  $region18: #{unet_forward.51} parent=0 // pred_check
    _
  $region19: #{unet_forward.51} parent=0 // pred_check_branch
    %758 = sbr.rel (0) target = $region21
  $region20: #{unet_forward.51} parent=0 // pred_region
    _
  $region21: #{unet_forward.51} parent=0 // pred_fallthru
    _
  // Predicated region
  $region22: #{unet_forward.51} parent=0 // pred_check
    _
  $region23: #{unet_forward.51} parent=0 // pred_check_branch
    %760 = sbr.rel (0) target = $region25
  $region24: #{unet_forward.51} parent=0 // pred_region
    _
  $region25: #{unet_forward.51} parent=0 // pred_fallthru
    _

// kernel: unet_forward.53
$region0: #{unet_forward.53}
  #allocation0 [shape = 'u32[]', space=smem, size = 0x4, offset = 0x4, fixed_abs, tag = 'smem constant byte address 0x4 - core index']
  #allocation1 [shape = 'u32[72,128]{1,0:T(1,128)}', space=vmem, size = 0x9000, scoped, tag = 'internal scratch']
  %s0 = inlined_call_operand.vmem [shape: f32[512,4], index: 0, kind: input, shape index: {}]
  %s1 = inlined_call_operand.vmem [shape: f32[4,2], index: 1, kind: input, shape index: {}]
  %s2 = inlined_call_operand.vmem [shape: f32[1,2], index: 2, kind: input, shape index: {}]
  %s3 = inlined_call_operand.vmem [shape: f32[1,2], index: 3, kind: input, shape index: {}]
  %s4 = inlined_call_operand.vmem [shape: f32[512,2], index: 4, kind: output, shape index: {}]
  %s5 = sld [smem:[#allocation0]]
  $region26: #{unet_forward.53} parent=0
    _
  %s7 = ssub.s32 1, %s5
  %s8 = scalar_select 0, %s7, %s5
  // Predicated region
  $region2: #{unet_forward.53} parent=0 // pred_check
    _
  $region3: #{unet_forward.53} parent=0 // pred_check_branch
    %10 = sbr.rel (0) target = $region5
  $region4: #{unet_forward.53} parent=0 // pred_region
    _
  $region5: #{unet_forward.53} parent=0 // pred_fallthru
    _
  // Predicated region
  $region6: #{unet_forward.53} parent=0 // pred_check
    _
  $region7: #{unet_forward.53} parent=0 // pred_check_branch
    %12 = sbr.rel (0) target = $region9
  $region8: #{unet_forward.53} parent=0 // pred_region
    _
  $region9: #{unet_forward.53} parent=0 // pred_fallthru
    _
  // Predicated region
  $region10: #{unet_forward.53} parent=0 // pred_check
    _
  $region11: #{unet_forward.53} parent=0 // pred_check_branch
    %14 = sbr.rel (0) target = $region13
  $region12: #{unet_forward.53} parent=0 // pred_region
    _
  $region13: #{unet_forward.53} parent=0 // pred_fallthru
    _
  // Predicated region
  $region14: #{unet_forward.53} parent=0 // pred_check
    _
  $region15: #{unet_forward.53} parent=0 // pred_check_branch
    %16 = sbr.rel (0) target = $region17
  $region16: #{unet_forward.53} parent=0 // pred_region
    _
  $region17: #{unet_forward.53} parent=0 // pred_fallthru
    _
  %v17 = vld [vmem:[%s0] sm:$0xff]
  %v18 = vld [vmem:[%s0 + $0x8] sm:$0xff]
  %v19 = vld [vmem:[%s0 + $0x10] sm:$0xff]
  %v20 = vld [vmem:[%s0 + $0x18] sm:$0xff]
  %v21 = vld [vmem:[%s0 + $0x20] sm:$0xff]
  %v22 = vld [vmem:[%s0 + $0x28] sm:$0xff]
  %v23 = vld [vmem:[%s0 + $0x30] sm:$0xff]
  %v24 = vld [vmem:[%s0 + $0x38] sm:$0xff]
  %v25 = vld [vmem:[%s0 + $0x40] sm:$0xff]
  %v26 = vld [vmem:[%s0 + $0x48] sm:$0xff]
  %v27 = vld [vmem:[%s0 + $0x50] sm:$0xff]
  %v28 = vld [vmem:[%s0 + $0x58] sm:$0xff]
  %v29 = vld [vmem:[%s0 + $0x60] sm:$0xff]
  %v30 = vld [vmem:[%s0 + $0x68] sm:$0xff]
  %v31 = vld [vmem:[%s0 + $0x70] sm:$0xff]
  %v32 = vld [vmem:[%s0 + $0x78] sm:$0xff]
  %v33 = vld [vmem:[%s0 + $0x80] sm:$0xff]
  %v34 = vld [vmem:[%s0 + $0x88] sm:$0xff]
  %v35 = vld [vmem:[%s0 + $0x90] sm:$0xff]
  %v36 = vld [vmem:[%s0 + $0x98] sm:$0xff]
  %v37 = vld [vmem:[%s0 + $0xa0] sm:$0xff]
  %v38 = vld [vmem:[%s0 + $0xa8] sm:$0xff]
  %v39 = vld [vmem:[%s0 + $0xb0] sm:$0xff]
  %v40 = vld [vmem:[%s0 + $0xb8] sm:$0xff]
  %v41 = vld [vmem:[%s0 + $0xc0] sm:$0xff]
  %v42 = vld [vmem:[%s0 + $0xc8] sm:$0xff]
  %v43 = vld [vmem:[%s0 + $0xd0] sm:$0xff]
  %v44 = vld [vmem:[%s0 + $0xd8] sm:$0xff]
  %v45 = vld [vmem:[%s0 + $0xe0] sm:$0xff]
  %v46 = vld [vmem:[%s0 + $0xe8] sm:$0xff]
  %v47 = vld [vmem:[%s0 + $0xf0] sm:$0xff]
  %v48 = vld [vmem:[%s0 + $0xf8] sm:$0xff]
  %v49 = vld [vmem:[%s0 + $0x100] sm:$0xff]
  %v50 = vld [vmem:[%s0 + $0x108] sm:$0xff]
  %v51 = vld [vmem:[%s0 + $0x110] sm:$0xff]
  %v52 = vld [vmem:[%s0 + $0x118] sm:$0xff]
  %v53 = vld [vmem:[%s0 + $0x120] sm:$0xff]
  %v54 = vld [vmem:[%s0 + $0x128] sm:$0xff]
  %v55 = vld [vmem:[%s0 + $0x130] sm:$0xff]
  %v56 = vld [vmem:[%s0 + $0x138] sm:$0xff]
  %v57 = vld [vmem:[%s0 + $0x140] sm:$0xff]
  %v58 = vld [vmem:[%s0 + $0x148] sm:$0xff]
  %v59 = vld [vmem:[%s0 + $0x150] sm:$0xff]
  %v60 = vld [vmem:[%s0 + $0x158] sm:$0xff]
  %v61 = vld [vmem:[%s0 + $0x160] sm:$0xff]
  %v62 = vld [vmem:[%s0 + $0x168] sm:$0xff]
  %v63 = vld [vmem:[%s0 + $0x170] sm:$0xff]
  %v64 = vld [vmem:[%s0 + $0x178] sm:$0xff]
  %v65 = vld [vmem:[%s0 + $0x180] sm:$0xff]
  %v66 = vld [vmem:[%s0 + $0x188] sm:$0xff]
  %v67 = vld [vmem:[%s0 + $0x190] sm:$0xff]
  %v68 = vld [vmem:[%s0 + $0x198] sm:$0xff]
  %v69 = vld [vmem:[%s0 + $0x1a0] sm:$0xff]
  %v70 = vld [vmem:[%s0 + $0x1a8] sm:$0xff]
  %v71 = vld [vmem:[%s0 + $0x1b0] sm:$0xff]
  %v72 = vld [vmem:[%s0 + $0x1b8] sm:$0xff]
  %v73 = vld [vmem:[%s0 + $0x1c0] sm:$0xff]
  %v74 = vld [vmem:[%s0 + $0x1c8] sm:$0xff]
  %v75 = vld [vmem:[%s0 + $0x1d0] sm:$0xff]
  %v76 = vld [vmem:[%s0 + $0x1d8] sm:$0xff]
  %v77 = vld [vmem:[%s0 + $0x1e0] sm:$0xff]
  %v78 = vld [vmem:[%s0 + $0x1e8] sm:$0xff]
  %v79 = vld [vmem:[%s0 + $0x1f0] sm:$0xff]
  %v80 = vld [vmem:[%s0 + $0x1f8] sm:$0xff]
  %v81 = vld [vmem:[%s1] sm:$0xf]
  %vm82 = vcmask 31744
  %v84 = vsel %vm82, %v17, 0
  %v87 = vsel %vm82, %v18, 0
  %v90 = vsel %vm82, %v19, 0
  %v93 = vsel %vm82, %v20, 0
  %v96 = vsel %vm82, %v21, 0
  %v99 = vsel %vm82, %v22, 0
  %v102 = vsel %vm82, %v23, 0
  %v105 = vsel %vm82, %v24, 0
  %v108 = vsel %vm82, %v25, 0
  %v111 = vsel %vm82, %v26, 0
  %v114 = vsel %vm82, %v27, 0
  %v117 = vsel %vm82, %v28, 0
  %v120 = vsel %vm82, %v29, 0
  %v123 = vsel %vm82, %v30, 0
  %v126 = vsel %vm82, %v31, 0
  %v129 = vsel %vm82, %v32, 0
  %v132 = vsel %vm82, %v33, 0
  %v135 = vsel %vm82, %v34, 0
  %v138 = vsel %vm82, %v35, 0
  %v141 = vsel %vm82, %v36, 0
  %v144 = vsel %vm82, %v37, 0
  %v147 = vsel %vm82, %v38, 0
  %v150 = vsel %vm82, %v39, 0
  %v153 = vsel %vm82, %v40, 0
  %v156 = vsel %vm82, %v41, 0
  %v159 = vsel %vm82, %v42, 0
  %v162 = vsel %vm82, %v43, 0
  %v165 = vsel %vm82, %v44, 0
  %v168 = vsel %vm82, %v45, 0
  %v171 = vsel %vm82, %v46, 0
  %v174 = vsel %vm82, %v47, 0
  %v177 = vsel %vm82, %v48, 0
  %v180 = vsel %vm82, %v49, 0
  %v183 = vsel %vm82, %v50, 0
  %v186 = vsel %vm82, %v51, 0
  %v189 = vsel %vm82, %v52, 0
  %v192 = vsel %vm82, %v53, 0
  %v195 = vsel %vm82, %v54, 0
  %v198 = vsel %vm82, %v55, 0
  %v201 = vsel %vm82, %v56, 0
  %v204 = vsel %vm82, %v57, 0
  %v207 = vsel %vm82, %v58, 0
  %v210 = vsel %vm82, %v59, 0
  %v213 = vsel %vm82, %v60, 0
  %v216 = vsel %vm82, %v61, 0
  %v219 = vsel %vm82, %v62, 0
  %v222 = vsel %vm82, %v63, 0
  %v225 = vsel %vm82, %v64, 0
  %v228 = vsel %vm82, %v65, 0
  %v231 = vsel %vm82, %v66, 0
  %v234 = vsel %vm82, %v67, 0
  %v237 = vsel %vm82, %v68, 0
  %v240 = vsel %vm82, %v69, 0
  %v243 = vsel %vm82, %v70, 0
  %v246 = vsel %vm82, %v71, 0
  %v249 = vsel %vm82, %v72, 0
  %v252 = vsel %vm82, %v73, 0
  %v255 = vsel %vm82, %v74, 0
  %v258 = vsel %vm82, %v75, 0
  %v261 = vsel %vm82, %v76, 0
  %v264 = vsel %vm82, %v77, 0
  %v267 = vsel %vm82, %v78, 0
  %v270 = vsel %vm82, %v79, 0
  %v273 = vsel %vm82, %v80, 0
  %vm275 = vcmask 1043456
  %v277 = vsel %vm275, %v81, 0
  %279 = vmatpush.msra.mxu0 0.0
  %280 = vmatpush.msra.mxu0 0.0
  %281 = vmatpush.msra.mxu0 0.0
  %282 = vmatpush.msra.mxu0 0.0
  %283 = vmatpush.msra.mxu0 0.0
  %284 = vmatpush.msra.mxu0 0.0
  %285 = vmatpush.msra.mxu0 0.0
  %286 = vmatpush.msra.mxu0 0.0
  %287 = vmatpush.msra.mxu0 0.0
  %288 = vmatpush.msra.mxu0 0.0
  %289 = vmatpush.msra.mxu0 0.0
  %290 = vmatpush.msra.mxu0 0.0
  %291 = vmatpush.msra.mxu0 0.0
  %292 = vmatpush.msra.mxu0 0.0
  %293 = vmatpush.msra.mxu0 0.0
  %294 = vmatpush.msra.mxu0 %v277
  %295 = vmatmul.f32.gmra.mxu0 %v84
  %v296 = vpop.f32.mrf.mxu0
  %v297 = vadd.f32 0.0, %v296
  %298 = vmatmul.f32.gmra.mxu0 %v87
  %v299 = vpop.f32.mrf.mxu0
  %v300 = vadd.f32 0.0, %v299
  %301 = vmatmul.f32.gmra.mxu0 %v90
  %v302 = vpop.f32.mrf.mxu0
  %v303 = vadd.f32 0.0, %v302
  %304 = vmatmul.f32.gmra.mxu0 %v93
  %v305 = vpop.f32.mrf.mxu0
  %v306 = vadd.f32 0.0, %v305
  %307 = vmatmul.f32.gmra.mxu0 %v96
  %v308 = vpop.f32.mrf.mxu0
  %v309 = vadd.f32 0.0, %v308
  %310 = vmatmul.f32.gmra.mxu0 %v99
  %v311 = vpop.f32.mrf.mxu0
  %v312 = vadd.f32 0.0, %v311
  %313 = vmatmul.f32.gmra.mxu0 %v102
  %v314 = vpop.f32.mrf.mxu0
  %v315 = vadd.f32 0.0, %v314
  %316 = vmatmul.f32.gmra.mxu0 %v105
  %v317 = vpop.f32.mrf.mxu0
  %v318 = vadd.f32 0.0, %v317
  %319 = vmatmul.f32.gmra.mxu0 %v108
  %v320 = vpop.f32.mrf.mxu0
  %v321 = vadd.f32 0.0, %v320
  %322 = vmatmul.f32.gmra.mxu0 %v111
  %v323 = vpop.f32.mrf.mxu0
  %v324 = vadd.f32 0.0, %v323
  %325 = vmatmul.f32.gmra.mxu0 %v114
  %v326 = vpop.f32.mrf.mxu0
  %v327 = vadd.f32 0.0, %v326
  %328 = vmatmul.f32.gmra.mxu0 %v117
  %v329 = vpop.f32.mrf.mxu0
  %v330 = vadd.f32 0.0, %v329
  %331 = vmatmul.f32.gmra.mxu0 %v120
  %v332 = vpop.f32.mrf.mxu0
  %v333 = vadd.f32 0.0, %v332
  %334 = vmatmul.f32.gmra.mxu0 %v123
  %v335 = vpop.f32.mrf.mxu0
  %v336 = vadd.f32 0.0, %v335
  %337 = vmatmul.f32.gmra.mxu0 %v126
  %v338 = vpop.f32.mrf.mxu0
  %v339 = vadd.f32 0.0, %v338
  %340 = vmatmul.f32.gmra.mxu0 %v129
  %v341 = vpop.f32.mrf.mxu0
  %v342 = vadd.f32 0.0, %v341
  %343 = vmatmul.f32.gmra.mxu0 %v132
  %v344 = vpop.f32.mrf.mxu0
  %v345 = vadd.f32 0.0, %v344
  %346 = vmatmul.f32.gmra.mxu0 %v135
  %v347 = vpop.f32.mrf.mxu0
  %v348 = vadd.f32 0.0, %v347
  %349 = vmatmul.f32.gmra.mxu0 %v138
  %v350 = vpop.f32.mrf.mxu0
  %v351 = vadd.f32 0.0, %v350
  %352 = vmatmul.f32.gmra.mxu0 %v141
  %v353 = vpop.f32.mrf.mxu0
  %v354 = vadd.f32 0.0, %v353
  %355 = vmatmul.f32.gmra.mxu0 %v144
  %v356 = vpop.f32.mrf.mxu0
  %v357 = vadd.f32 0.0, %v356
  %358 = vmatmul.f32.gmra.mxu0 %v147
  %v359 = vpop.f32.mrf.mxu0
  %v360 = vadd.f32 0.0, %v359
  %361 = vmatmul.f32.gmra.mxu0 %v150
  %v362 = vpop.f32.mrf.mxu0
  %v363 = vadd.f32 0.0, %v362
  %364 = vmatmul.f32.gmra.mxu0 %v153
  %v365 = vpop.f32.mrf.mxu0
  %v366 = vadd.f32 0.0, %v365
  %367 = vmatmul.f32.gmra.mxu0 %v156
  %v368 = vpop.f32.mrf.mxu0
  %v369 = vadd.f32 0.0, %v368
  %370 = vmatmul.f32.gmra.mxu0 %v159
  %v371 = vpop.f32.mrf.mxu0
  %v372 = vadd.f32 0.0, %v371
  %373 = vmatmul.f32.gmra.mxu0 %v162
  %v374 = vpop.f32.mrf.mxu0
  %v375 = vadd.f32 0.0, %v374
  %376 = vmatmul.f32.gmra.mxu0 %v165
  %v377 = vpop.f32.mrf.mxu0
  %v378 = vadd.f32 0.0, %v377
  %379 = vmatmul.f32.gmra.mxu0 %v168
  %v380 = vpop.f32.mrf.mxu0
  %v381 = vadd.f32 0.0, %v380
  %382 = vmatmul.f32.gmra.mxu0 %v171
  %v383 = vpop.f32.mrf.mxu0
  %v384 = vadd.f32 0.0, %v383
  %385 = vmatmul.f32.gmra.mxu0 %v174
  %v386 = vpop.f32.mrf.mxu0
  %v387 = vadd.f32 0.0, %v386
  %388 = vmatmul.f32.gmra.mxu0 %v177
  %v389 = vpop.f32.mrf.mxu0
  %v390 = vadd.f32 0.0, %v389
  %391 = vmatmul.f32.gmra.mxu0 %v180
  %v392 = vpop.f32.mrf.mxu0
  %v393 = vadd.f32 0.0, %v392
  %394 = vmatmul.f32.gmra.mxu0 %v183
  %v395 = vpop.f32.mrf.mxu0
  %v396 = vadd.f32 0.0, %v395
  %397 = vmatmul.f32.gmra.mxu0 %v186
  %v398 = vpop.f32.mrf.mxu0
  %v399 = vadd.f32 0.0, %v398
  %400 = vmatmul.f32.gmra.mxu0 %v189
  %v401 = vpop.f32.mrf.mxu0
  %v402 = vadd.f32 0.0, %v401
  %403 = vmatmul.f32.gmra.mxu0 %v192
  %v404 = vpop.f32.mrf.mxu0
  %v405 = vadd.f32 0.0, %v404
  %406 = vmatmul.f32.gmra.mxu0 %v195
  %v407 = vpop.f32.mrf.mxu0
  %v408 = vadd.f32 0.0, %v407
  %409 = vmatmul.f32.gmra.mxu0 %v198
  %v410 = vpop.f32.mrf.mxu0
  %v411 = vadd.f32 0.0, %v410
  %412 = vmatmul.f32.gmra.mxu0 %v201
  %v413 = vpop.f32.mrf.mxu0
  %v414 = vadd.f32 0.0, %v413
  %415 = vmatmul.f32.gmra.mxu0 %v204
  %v416 = vpop.f32.mrf.mxu0
  %v417 = vadd.f32 0.0, %v416
  %418 = vmatmul.f32.gmra.mxu0 %v207
  %v419 = vpop.f32.mrf.mxu0
  %v420 = vadd.f32 0.0, %v419
  %421 = vmatmul.f32.gmra.mxu0 %v210
  %v422 = vpop.f32.mrf.mxu0
  %v423 = vadd.f32 0.0, %v422
  %424 = vmatmul.f32.gmra.mxu0 %v213
  %v425 = vpop.f32.mrf.mxu0
  %v426 = vadd.f32 0.0, %v425
  %427 = vmatmul.f32.gmra.mxu0 %v216
  %v428 = vpop.f32.mrf.mxu0
  %v429 = vadd.f32 0.0, %v428
  %430 = vmatmul.f32.gmra.mxu0 %v219
  %v431 = vpop.f32.mrf.mxu0
  %v432 = vadd.f32 0.0, %v431
  %433 = vmatmul.f32.gmra.mxu0 %v222
  %v434 = vpop.f32.mrf.mxu0
  %v435 = vadd.f32 0.0, %v434
  %436 = vmatmul.f32.gmra.mxu0 %v225
  %v437 = vpop.f32.mrf.mxu0
  %v438 = vadd.f32 0.0, %v437
  %439 = vmatmul.f32.gmra.mxu0 %v228
  %v440 = vpop.f32.mrf.mxu0
  %v441 = vadd.f32 0.0, %v440
  %442 = vmatmul.f32.gmra.mxu0 %v231
  %v443 = vpop.f32.mrf.mxu0
  %v444 = vadd.f32 0.0, %v443
  %445 = vmatmul.f32.gmra.mxu0 %v234
  %v446 = vpop.f32.mrf.mxu0
  %v447 = vadd.f32 0.0, %v446
  %448 = vmatmul.f32.gmra.mxu0 %v237
  %v449 = vpop.f32.mrf.mxu0
  %v450 = vadd.f32 0.0, %v449
  %451 = vmatmul.f32.gmra.mxu0 %v240
  %v452 = vpop.f32.mrf.mxu0
  %v453 = vadd.f32 0.0, %v452
  %454 = vmatmul.f32.gmra.mxu0 %v243
  %v455 = vpop.f32.mrf.mxu0
  %v456 = vadd.f32 0.0, %v455
  %457 = vmatmul.f32.gmra.mxu0 %v246
  %v458 = vpop.f32.mrf.mxu0
  %v459 = vadd.f32 0.0, %v458
  %460 = vmatmul.f32.gmra.mxu0 %v249
  %v461 = vpop.f32.mrf.mxu0
  %v462 = vadd.f32 0.0, %v461
  %463 = vmatmul.f32.gmra.mxu0 %v252
  %v464 = vpop.f32.mrf.mxu0
  %v465 = vadd.f32 0.0, %v464
  %466 = vmatmul.f32.gmra.mxu0 %v255
  %v467 = vpop.f32.mrf.mxu0
  %v468 = vadd.f32 0.0, %v467
  %469 = vmatmul.f32.gmra.mxu0 %v258
  %v470 = vpop.f32.mrf.mxu0
  %v471 = vadd.f32 0.0, %v470
  %472 = vmatmul.f32.gmra.mxu0 %v261
  %v473 = vpop.f32.mrf.mxu0
  %v474 = vadd.f32 0.0, %v473
  %475 = vmatmul.f32.gmra.mxu0 %v264
  %v476 = vpop.f32.mrf.mxu0
  %v477 = vadd.f32 0.0, %v476
  %478 = vmatmul.f32.gmra.mxu0 %v267
  %v479 = vpop.f32.mrf.mxu0
  %v480 = vadd.f32 0.0, %v479
  %481 = vmatmul.f32.gmra.mxu0 %v270
  %v482 = vpop.f32.mrf.mxu0
  %v483 = vadd.f32 0.0, %v482
  %484 = vmatmul.f32.gmra.mxu0 %v273
  %v485 = vpop.f32.mrf.mxu0
  %v486 = vadd.f32 0.0, %v485
  %487 = vdwg.mxu0
  %v488 = vld [vmem:[%s2] sm:$0x1]
  %v490 = vperm.slane %v488, 0
  %v492 = vmul.f32 %v297, %v490
  %v493 = vmul.f32 %v300, %v490
  %v494 = vmul.f32 %v303, %v490
  %v495 = vmul.f32 %v306, %v490
  %v496 = vmul.f32 %v309, %v490
  %v497 = vmul.f32 %v312, %v490
  %v498 = vmul.f32 %v315, %v490
  %v499 = vmul.f32 %v318, %v490
  %v500 = vmul.f32 %v321, %v490
  %v501 = vmul.f32 %v324, %v490
  %v502 = vmul.f32 %v327, %v490
  %v503 = vmul.f32 %v330, %v490
  %v504 = vmul.f32 %v333, %v490
  %v505 = vmul.f32 %v336, %v490
  %v506 = vmul.f32 %v339, %v490
  %v507 = vmul.f32 %v342, %v490
  %v508 = vmul.f32 %v345, %v490
  %v509 = vmul.f32 %v348, %v490
  %v510 = vmul.f32 %v351, %v490
  %v511 = vmul.f32 %v354, %v490
  %v512 = vmul.f32 %v357, %v490
  %v513 = vmul.f32 %v360, %v490
  %v514 = vmul.f32 %v363, %v490
  %v515 = vmul.f32 %v366, %v490
  %v516 = vmul.f32 %v369, %v490
  %v517 = vmul.f32 %v372, %v490
  %v518 = vmul.f32 %v375, %v490
  %v519 = vmul.f32 %v378, %v490
  %v520 = vmul.f32 %v381, %v490
  %v521 = vmul.f32 %v384, %v490
  %v522 = vmul.f32 %v387, %v490
  %v523 = vmul.f32 %v390, %v490
  %v524 = vmul.f32 %v393, %v490
  %v525 = vmul.f32 %v396, %v490
  %v526 = vmul.f32 %v399, %v490
  %v527 = vmul.f32 %v402, %v490
  %v528 = vmul.f32 %v405, %v490
  %v529 = vmul.f32 %v408, %v490
  %v530 = vmul.f32 %v411, %v490
  %v531 = vmul.f32 %v414, %v490
  %v532 = vmul.f32 %v417, %v490
  %v533 = vmul.f32 %v420, %v490
  %v534 = vmul.f32 %v423, %v490
  %v535 = vmul.f32 %v426, %v490
  %v536 = vmul.f32 %v429, %v490
  %v537 = vmul.f32 %v432, %v490
  %v538 = vmul.f32 %v435, %v490
  %v539 = vmul.f32 %v438, %v490
  %v540 = vmul.f32 %v441, %v490
  %v541 = vmul.f32 %v444, %v490
  %v542 = vmul.f32 %v447, %v490
  %v543 = vmul.f32 %v450, %v490
  %v544 = vmul.f32 %v453, %v490
  %v545 = vmul.f32 %v456, %v490
  %v546 = vmul.f32 %v459, %v490
  %v547 = vmul.f32 %v462, %v490
  %v548 = vmul.f32 %v465, %v490
  %v549 = vmul.f32 %v468, %v490
  %v550 = vmul.f32 %v471, %v490
  %v551 = vmul.f32 %v474, %v490
  %v552 = vmul.f32 %v477, %v490
  %v553 = vmul.f32 %v480, %v490
  %v554 = vmul.f32 %v483, %v490
  %v555 = vmul.f32 %v486, %v490
  %v556 = vld [vmem:[%s3] sm:$0x1]
  %v558 = vperm.slane %v556, 0
  %v560 = vadd.f32 %v492, %v558
  %v561 = vadd.f32 %v493, %v558
  %v562 = vadd.f32 %v494, %v558
  %v563 = vadd.f32 %v495, %v558
  %v564 = vadd.f32 %v496, %v558
  %v565 = vadd.f32 %v497, %v558
  %v566 = vadd.f32 %v498, %v558
  %v567 = vadd.f32 %v499, %v558
  %v568 = vadd.f32 %v500, %v558
  %v569 = vadd.f32 %v501, %v558
  %v570 = vadd.f32 %v502, %v558
  %v571 = vadd.f32 %v503, %v558
  %v572 = vadd.f32 %v504, %v558
  %v573 = vadd.f32 %v505, %v558
  %v574 = vadd.f32 %v506, %v558
  %v575 = vadd.f32 %v507, %v558
  %v576 = vadd.f32 %v508, %v558
  %v577 = vadd.f32 %v509, %v558
  %v578 = vadd.f32 %v510, %v558
  %v579 = vadd.f32 %v511, %v558
  %v580 = vadd.f32 %v512, %v558
  %v581 = vadd.f32 %v513, %v558
  %v582 = vadd.f32 %v514, %v558
  %v583 = vadd.f32 %v515, %v558
  %v584 = vadd.f32 %v516, %v558
  %v585 = vadd.f32 %v517, %v558
  %v586 = vadd.f32 %v518, %v558
  %v587 = vadd.f32 %v519, %v558
  %v588 = vadd.f32 %v520, %v558
  %v589 = vadd.f32 %v521, %v558
  %v590 = vadd.f32 %v522, %v558
  %v591 = vadd.f32 %v523, %v558
  %v592 = vadd.f32 %v524, %v558
  %v593 = vadd.f32 %v525, %v558
  %v594 = vadd.f32 %v526, %v558
  %v595 = vadd.f32 %v527, %v558
  %v596 = vadd.f32 %v528, %v558
  %v597 = vadd.f32 %v529, %v558
  %v598 = vadd.f32 %v530, %v558
  %v599 = vadd.f32 %v531, %v558
  %v600 = vadd.f32 %v532, %v558
  %v601 = vadd.f32 %v533, %v558
  %v602 = vadd.f32 %v534, %v558
  %v603 = vadd.f32 %v535, %v558
  %v604 = vadd.f32 %v536, %v558
  %v605 = vadd.f32 %v537, %v558
  %v606 = vadd.f32 %v538, %v558
  %v607 = vadd.f32 %v539, %v558
  %v608 = vadd.f32 %v540, %v558
  %v609 = vadd.f32 %v541, %v558
  %v610 = vadd.f32 %v542, %v558
  %v611 = vadd.f32 %v543, %v558
  %v612 = vadd.f32 %v544, %v558
  %v613 = vadd.f32 %v545, %v558
  %v614 = vadd.f32 %v546, %v558
  %v615 = vadd.f32 %v547, %v558
  %v616 = vadd.f32 %v548, %v558
  %v617 = vadd.f32 %v549, %v558
  %v618 = vadd.f32 %v550, %v558
  %v619 = vadd.f32 %v551, %v558
  %v620 = vadd.f32 %v552, %v558
  %v621 = vadd.f32 %v553, %v558
  %v622 = vadd.f32 %v554, %v558
  %v623 = vadd.f32 %v555, %v558
  %vm624 = vcmask 15360
  %625 = vst.msk [vmem:[%s4] sm:$0xff] %vm624, %v560
  %626 = vst.msk [vmem:[%s4 + $0x8] sm:$0xff] %vm624, %v561
  %627 = vst.msk [vmem:[%s4 + $0x10] sm:$0xff] %vm624, %v562
  %628 = vst.msk [vmem:[%s4 + $0x18] sm:$0xff] %vm624, %v563
  %629 = vst.msk [vmem:[%s4 + $0x20] sm:$0xff] %vm624, %v564
  %630 = vst.msk [vmem:[%s4 + $0x28] sm:$0xff] %vm624, %v565
  %631 = vst.msk [vmem:[%s4 + $0x30] sm:$0xff] %vm624, %v566
  %632 = vst.msk [vmem:[%s4 + $0x38] sm:$0xff] %vm624, %v567
  %633 = vst.msk [vmem:[%s4 + $0x40] sm:$0xff] %vm624, %v568
  %634 = vst.msk [vmem:[%s4 + $0x48] sm:$0xff] %vm624, %v569
  %635 = vst.msk [vmem:[%s4 + $0x50] sm:$0xff] %vm624, %v570
  %636 = vst.msk [vmem:[%s4 + $0x58] sm:$0xff] %vm624, %v571
  %637 = vst.msk [vmem:[%s4 + $0x60] sm:$0xff] %vm624, %v572
  %638 = vst.msk [vmem:[%s4 + $0x68] sm:$0xff] %vm624, %v573
  %639 = vst.msk [vmem:[%s4 + $0x70] sm:$0xff] %vm624, %v574
  %640 = vst.msk [vmem:[%s4 + $0x78] sm:$0xff] %vm624, %v575
  %641 = vst.msk [vmem:[%s4 + $0x80] sm:$0xff] %vm624, %v576
  %642 = vst.msk [vmem:[%s4 + $0x88] sm:$0xff] %vm624, %v577
  %643 = vst.msk [vmem:[%s4 + $0x90] sm:$0xff] %vm624, %v578
  %644 = vst.msk [vmem:[%s4 + $0x98] sm:$0xff] %vm624, %v579
  %645 = vst.msk [vmem:[%s4 + $0xa0] sm:$0xff] %vm624, %v580
  %646 = vst.msk [vmem:[%s4 + $0xa8] sm:$0xff] %vm624, %v581
  %647 = vst.msk [vmem:[%s4 + $0xb0] sm:$0xff] %vm624, %v582
  %648 = vst.msk [vmem:[%s4 + $0xb8] sm:$0xff] %vm624, %v583
  %649 = vst.msk [vmem:[%s4 + $0xc0] sm:$0xff] %vm624, %v584
  %650 = vst.msk [vmem:[%s4 + $0xc8] sm:$0xff] %vm624, %v585
  %651 = vst.msk [vmem:[%s4 + $0xd0] sm:$0xff] %vm624, %v586
  %652 = vst.msk [vmem:[%s4 + $0xd8] sm:$0xff] %vm624, %v587
  %653 = vst.msk [vmem:[%s4 + $0xe0] sm:$0xff] %vm624, %v588
  %654 = vst.msk [vmem:[%s4 + $0xe8] sm:$0xff] %vm624, %v589
  %655 = vst.msk [vmem:[%s4 + $0xf0] sm:$0xff] %vm624, %v590
  %656 = vst.msk [vmem:[%s4 + $0xf8] sm:$0xff] %vm624, %v591
  %657 = vst.msk [vmem:[%s4 + $0x100] sm:$0xff] %vm624, %v592
  %658 = vst.msk [vmem:[%s4 + $0x108] sm:$0xff] %vm624, %v593
  %659 = vst.msk [vmem:[%s4 + $0x110] sm:$0xff] %vm624, %v594
  %660 = vst.msk [vmem:[%s4 + $0x118] sm:$0xff] %vm624, %v595
  %661 = vst.msk [vmem:[%s4 + $0x120] sm:$0xff] %vm624, %v596
  %662 = vst.msk [vmem:[%s4 + $0x128] sm:$0xff] %vm624, %v597
  %663 = vst.msk [vmem:[%s4 + $0x130] sm:$0xff] %vm624, %v598
  %664 = vst.msk [vmem:[%s4 + $0x138] sm:$0xff] %vm624, %v599
  %665 = vst.msk [vmem:[%s4 + $0x140] sm:$0xff] %vm624, %v600
  %666 = vst.msk [vmem:[%s4 + $0x148] sm:$0xff] %vm624, %v601
  %667 = vst.msk [vmem:[%s4 + $0x150] sm:$0xff] %vm624, %v602
  %668 = vst.msk [vmem:[%s4 + $0x158] sm:$0xff] %vm624, %v603
  %669 = vst.msk [vmem:[%s4 + $0x160] sm:$0xff] %vm624, %v604
  %670 = vst.msk [vmem:[%s4 + $0x168] sm:$0xff] %vm624, %v605
  %671 = vst.msk [vmem:[%s4 + $0x170] sm:$0xff] %vm624, %v606
  %672 = vst.msk [vmem:[%s4 + $0x178] sm:$0xff] %vm624, %v607
  %673 = vst.msk [vmem:[%s4 + $0x180] sm:$0xff] %vm624, %v608
  %674 = vst.msk [vmem:[%s4 + $0x188] sm:$0xff] %vm624, %v609
  %675 = vst.msk [vmem:[%s4 + $0x190] sm:$0xff] %vm624, %v610
  %676 = vst.msk [vmem:[%s4 + $0x198] sm:$0xff] %vm624, %v611
  %677 = vst.msk [vmem:[%s4 + $0x1a0] sm:$0xff] %vm624, %v612
  %678 = vst.msk [vmem:[%s4 + $0x1a8] sm:$0xff] %vm624, %v613
  %679 = vst.msk [vmem:[%s4 + $0x1b0] sm:$0xff] %vm624, %v614
  %680 = vst.msk [vmem:[%s4 + $0x1b8] sm:$0xff] %vm624, %v615
  %681 = vst.msk [vmem:[%s4 + $0x1c0] sm:$0xff] %vm624, %v616
  %682 = vst.msk [vmem:[%s4 + $0x1c8] sm:$0xff] %vm624, %v617
  %683 = vst.msk [vmem:[%s4 + $0x1d0] sm:$0xff] %vm624, %v618
  %684 = vst.msk [vmem:[%s4 + $0x1d8] sm:$0xff] %vm624, %v619
  %685 = vst.msk [vmem:[%s4 + $0x1e0] sm:$0xff] %vm624, %v620
  %686 = vst.msk [vmem:[%s4 + $0x1e8] sm:$0xff] %vm624, %v621
  %687 = vst.msk [vmem:[%s4 + $0x1f0] sm:$0xff] %vm624, %v622
  %688 = vst.msk [vmem:[%s4 + $0x1f8] sm:$0xff] %vm624, %v623
  // Predicated region
  $region18: #{unet_forward.53} parent=0 // pred_check
    _
  $region19: #{unet_forward.53} parent=0 // pred_check_branch
    %690 = sbr.rel (0) target = $region21
  $region20: #{unet_forward.53} parent=0 // pred_region
    _
  $region21: #{unet_forward.53} parent=0 // pred_fallthru
    _
  // Predicated region
  $region22: #{unet_forward.53} parent=0 // pred_check
    _
  $region23: #{unet_forward.53} parent=0 // pred_check_branch
    %692 = sbr.rel (0) target = $region25
  $region24: #{unet_forward.53} parent=0 // pred_region
    _
  $region25: #{unet_forward.53} parent=0 // pred_fallthru
    _

</llo_original>
